<compile_context>
chip_gen: v7x
topology: tpu7x:2x2x1
jax: 0.10.0
libtpu: 0.0.40
codegen_flags: <defaults>
</compile_context>

<pallas_src>
import functools

import numpy as np
import jax
import jax.numpy as jnp
from jax import lax
from jax.experimental import pallas as pl
from jax.experimental.pallas import tpu as pltpu


def _round_up(x, m):
    return ((x + m - 1) // m) * m


# ----------------------------------------------------------------------------
# Static network plan (mirrors UNet.__init__ channel bookkeeping, dims=2)
# ----------------------------------------------------------------------------
def make_plan(in_channels, out_classes, num_encoding_blocks, c_first, H, W):
    depth = num_encoding_blocks - 1
    plan = {"in_channels": in_channels, "out_classes": out_classes,
            "H": H, "W": W, "c_first": c_first}
    enc = []
    cin, cout = in_channels, c_first
    h, w = H, W
    for _ in range(depth):
        enc.append(dict(cin=cin, cout=cout, h=h, w=w))
        cin, cout = cout, 2 * cout
        h, w = h // 2, w // 2
    plan["enc"] = enc
    plan["bottom"] = dict(cin=cin, cout=2 * cin, h=h, w=w)
    power = depth - 1
    skip = c_first * 2 ** power
    dec = []
    for _ in range(depth):
        h, w = 2 * h, 2 * w
        dec.append(dict(skip=skip, up=2 * skip, h=h, w=w))
        skip //= 2
    plan["dec"] = dec
    return plan


def _scratch_dims(plan, G):
    c_stage = plan["in_channels"]
    c_conv_in = 1
    for blk in plan["enc"]:
        c_stage = max(c_stage, blk["cin"], blk["cout"])
        c_conv_in = max(c_conv_in, blk["cin"], blk["cout"])
    c_stage = max(c_stage, plan["bottom"]["cin"], plan["bottom"]["cout"])
    c_conv_in = max(c_conv_in, plan["bottom"]["cin"], plan["bottom"]["cout"])
    for blk in plan["dec"]:
        c_stage = max(c_stage, blk["skip"] + blk["up"])
        c_conv_in = max(c_conv_in, blk["skip"] + blk["up"])
    HW = plan["H"] * plan["W"]
    stage_shape = (_round_up(c_stage, 8),
                   _round_up(G + HW + plan["W"] + 1, 128))
    slab_shape = (_round_up(9 * c_conv_in, 8), _round_up(HW, 128))
    return stage_shape, slab_shape


# ----------------------------------------------------------------------------
# Fused whole-network kernel
# ----------------------------------------------------------------------------
def make_unet_kernel(plan, layout, G):
    enc_plan, bottom_plan, dec_plan = plan["enc"], plan["bottom"], plan["dec"]
    out_classes = plan["out_classes"]
    c_first = plan["c_first"]

    def kernel(x_ref, c_ref, b_ref, o_ref, stage, slab):
        # Per-resolution lane masks, built once per unique (h, w) in the trace.
        masks = {}

        def edge_masks(h, w):
            if (h, w) not in masks:
                P = h * w
                px = lax.broadcasted_iota(jnp.int32, (1, P), 1) % w
                masks[(h, w)] = (px > 0, px < (w - 1))
            return masks[(h, w)]

        def stage_tile(parts, c_total, h, w):
            # Invariant: both halo strips of width w+1 around [G, G+P) are
            # zeroed for rows [0, c_total) -> shifted reads see exact
            # zero-padding vertically and stay finite (no full-buffer zeroing).
            P = h * w
            halo = w + 1
            z = jnp.zeros((c_total, halo), jnp.float32)
            stage[pl.ds(0, c_total), pl.ds(G - halo, halo)] = z
            stage[pl.ds(0, c_total), pl.ds(G + P, halo)] = z
            for r0, v in parts:
                stage[pl.ds(r0, v.shape[0]), pl.ds(G, P)] = v

        def conv3x3(w_row, b_col, cin, cout, h, w, relu=True):
            # Input must already be staged at stage[0:cin, G:G+P].
            P = h * w
            ml, mr = edge_masks(h, w)
            for dy in range(3):
                for dx in range(3):
                    t = dy * 3 + dx
                    off = (dy - 1) * w + (dx - 1)
                    win = stage[pl.ds(0, cin), pl.ds(G + off, P)]
                    if dx == 0:          # left column taps: mask px == 0
                        win = jnp.where(ml, win, 0.0)
                    elif dx == 2:        # right column taps: mask px == w-1
                        win = jnp.where(mr, win, 0.0)
                    slab[pl.ds(t * cin, cin), pl.ds(0, P)] = win
            K = 9 * cin
            wmat = c_ref[pl.ds(w_row, cout), pl.ds(0, K)]        # bf16 weights
            smat = slab[pl.ds(0, K), pl.ds(0, P)].astype(jnp.bfloat16)
            out = jnp.dot(wmat, smat, preferred_element_type=jnp.float32)
            out = out + b_ref[pl.ds(0, cout), pl.ds(b_col, 1)]
            if relu:
                out = jnp.maximum(out, 0.0)
            return out

        def maxpool2x2(g_row, x, c, h, w):
            P = h * w
            Q = P // 4
            stage_tile([(0, x)], c, h, w)
            v00 = stage[pl.ds(0, c), pl.ds(G, P)]
            v01 = stage[pl.ds(0, c), pl.ds(G + 1, P)]
            v10 = stage[pl.ds(0, c), pl.ds(G + w, P)]
            v11 = stage[pl.ds(0, c), pl.ds(G + w + 1, P)]
            m = jnp.maximum(jnp.maximum(v00, v01), jnp.maximum(v10, v11))
            gat = c_ref[pl.ds(g_row, P), pl.ds(0, Q)]            # one-hot bf16
            return jnp.dot(m.astype(jnp.bfloat16), gat,
                           preferred_element_type=jnp.float32)

        def tconv2x2(w_row, b_col, s_row, x, cin, cout, h2, w2):
            # nn.ConvTranspose2d(kernel=2, stride=2): 1 fused tap matmul
            # (4*cout rows) + 4 precomputed one-hot scatter matmuls.
            P = h2 * w2
            Pout = 4 * P
            wall = c_ref[pl.ds(w_row, 4 * cout), pl.ds(0, cin)]
            y = jnp.dot(wall, x.astype(jnp.bfloat16),
                        preferred_element_type=jnp.float32)      # (4*cout, P)
            yb = y.astype(jnp.bfloat16)
            out = jnp.zeros((cout, Pout), jnp.float32)
            for t in range(4):
                s_t = c_ref[pl.ds(s_row + t * P, P), pl.ds(0, Pout)]
                out = out + jnp.dot(yb[t * cout:(t + 1) * cout, :], s_t,
                                    preferred_element_type=jnp.float32)
            return out + b_ref[pl.ds(0, cout), pl.ds(b_col, 1)]

        x = x_ref[0].astype(jnp.float32)          # (cin, H*W) for this image

        # ------------------------------ encoder ------------------------------
        skips = []
        for blk, lay in zip(enc_plan, layout["enc"]):
            h, w, cin, cout = blk["h"], blk["w"], blk["cin"], blk["cout"]
            stage_tile([(0, x)], cin, h, w)
            x = conv3x3(lay["w1"], lay["b1"], cin, cout, h, w)
            stage_tile([(0, x)], cout, h, w)
            x = conv3x3(lay["w2"], lay["b2"], cout, cout, h, w)
            # TODO(synk): at larger configs spill skips to a bf16 VMEM scratch
            # region instead of holding them as long-lived values.
            skips.append(x)                       # skip taken before pooling
            x = maxpool2x2(lay["pool"], x, cout, h, w)

        # ------------------------------ bottom -------------------------------
        blk, lay = bottom_plan, layout["bottom"]
        h, w, cin, cout = blk["h"], blk["w"], blk["cin"], blk["cout"]
        stage_tile([(0, x)], cin, h, w)
        x = conv3x3(lay["w1"], lay["b1"], cin, cout, h, w)
        stage_tile([(0, x)], cout, h, w)
        x = conv3x3(lay["w2"], lay["b2"], cout, cout, h, w)

        # ------------------------------ decoder ------------------------------
        for blk, lay, skip in zip(dec_plan, layout["dec"], reversed(skips)):
            h, w = blk["h"], blk["w"]             # spatial size after upsample
            cs, cu = blk["skip"], blk["up"]
            up = tconv2x2(lay["wt"], lay["bt"], lay["scat"], x, cu, cu,
                          h // 2, w // 2)
            # padding=1 keeps sizes equal -> reference center_crop is identity.
            # Fused torch.cat((skip, up), dim=1): adjacent staged row ranges.
            stage_tile([(0, skip), (cs, up)], cs + cu, h, w)
            x = conv3x3(lay["w1"], lay["b1"], cs + cu, cs, h, w)
            stage_tile([(0, x)], cs, h, w)
            x = conv3x3(lay["w2"], lay["b2"], cs, cs, h, w)

        # --------------------- classifier (1x1 conv, no act) -----------------
        lay = layout["cls"]
        wc = c_ref[pl.ds(lay["w"], out_classes), pl.ds(0, c_first)]
        logits = jnp.dot(wc, x.astype(jnp.bfloat16),
                         preferred_element_type=jnp.float32)
        logits = logits + b_ref[pl.ds(0, out_classes), pl.ds(lay["b"], 1)]
        o_ref[0] = logits.astype(o_ref.dtype)

    return kernel


# ----------------------------------------------------------------------------
# Parameter construction (same shapes / distributions as the reference init)
# ----------------------------------------------------------------------------
def init_params(key, in_channels=1, out_classes=2, num_encoding_blocks=3,
                out_channels_first_layer=8):
    depth = num_encoding_blocks - 1
    params = {}
    keys = iter(jax.random.split(key, 64))

    def conv_w(cin, cout, k):
        bound = 1.0 / float(cin * k * k) ** 0.5
        kw, kb = jax.random.split(next(keys))
        w = jax.random.uniform(kw, (k, k, cin, cout), jnp.float32, -bound, bound)
        b = jax.random.uniform(kb, (cout,), jnp.float32, -bound, bound)
        return w, b

    def tconv_w(cin, cout):
        bound = 1.0 / float(cout * 4) ** 0.5
        kw, kb = jax.random.split(next(keys))
        w = jax.random.uniform(kw, (cin, cout, 2, 2), jnp.float32, -bound, bound)
        b = jax.random.uniform(kb, (cout,), jnp.float32, -bound, bound)
        return w, b

    enc = []
    cin = in_channels
    cout_first = out_channels_first_layer
    for _ in range(depth):
        w1, b1 = conv_w(cin, cout_first, 3)
        w2, b2 = conv_w(cout_first, cout_first, 3)
        enc.append(dict(w1=w1, b1=b1, w2=w2, b2=b2))
        cin = cout_first
        cout_first = 2 * cin
    params["encoder"] = enc
    encoder_out = cin

    bo = 2 * encoder_out
    w1, b1 = conv_w(encoder_out, bo, 3)
    w2, b2 = conv_w(bo, bo, 3)
    params["bottom"] = dict(w1=w1, b1=b1, w2=w2, b2=b2)

    power = depth - 1
    skip_ch = out_channels_first_layer * 2 ** power
    dec = []
    for _ in range(depth):
        up_ch = 2 * skip_ch
        wt, bt = tconv_w(up_ch, up_ch)
        w1, b1 = conv_w(3 * skip_ch, skip_ch, 3)   # cat(skip, upsampled)
        w2, b2 = conv_w(skip_ch, skip_ch, 3)
        dec.append(dict(wt=wt, bt=bt, w1=w1, b1=b1, w2=w2, b2=b2))
        skip_ch //= 2
    params["decoder"] = dec

    wc, bc = conv_w(out_channels_first_layer, out_classes, 1)
    params["classifier"] = dict(
        w=wc.reshape(out_channels_first_layer, out_classes), b=bc)
    return params


# ----------------------------------------------------------------------------
# Host-side packing: one bf16 constant buffer (weights + one-hot gather/scatter
# matrices) + one small f32 bias buffer, plus the static row/column layout.
# ----------------------------------------------------------------------------
def _pool_gather(h, w):
    P, wo = h * w, w // 2
    Q = (h // 2) * wo
    g = np.zeros((P, Q), np.float32)
    for q in range(Q):
        y, x = q // wo, q % wo
        g[(2 * y) * w + 2 * x, q] = 1.0
    return g


def _tconv_scatter(h2, w2):
    P = h2 * w2
    Pout = 4 * P
    w = 2 * w2
    s = np.zeros((4 * P, Pout), np.float32)
    for o in range(Pout):
        yo, xo = o // w, o % w
        t = (yo % 2) * 2 + (xo % 2)
        p = (yo // 2) * w2 + (xo // 2)
        s[t * P + p, o] = 1.0
    return s


def pack_constants(params, plan):
    entries = []
    row = 0

    def add(a):
        nonlocal row
        a = np.asarray(a, np.float32)
        r0 = row
        entries.append((r0, a))
        row = _round_up(r0 + a.shape[0], 16)      # bf16-tile friendly starts
        return r0

    biases = []

    def addb(b):
        biases.append(np.asarray(b, np.float32).reshape(-1))
        return len(biases) - 1

    def conv_pack(w):   # (3,3,cin,cout) -> (cout, 9*cin), tap-major then cin
        w = np.asarray(w, np.float32)
        return np.transpose(w, (3, 0, 1, 2)).reshape(w.shape[3], -1)

    def tconv_pack(w):  # (cin,cout,2,2) -> (4*cout, cin), tap-major then cout
        w = np.asarray(w, np.float32)
        return np.transpose(w, (2, 3, 1, 0)).reshape(-1, w.shape[0])

    layout = {"enc": [], "dec": []}
    for blk, pb in zip(plan["enc"], params["encoder"]):
        layout["enc"].append(dict(
            w1=add(conv_pack(pb["w1"])), b1=addb(pb["b1"]),
            w2=add(conv_pack(pb["w2"])), b2=addb(pb["b2"]),
            pool=add(_pool_gather(blk["h"], blk["w"]))))
    pb = params["bottom"]
    layout["bottom"] = dict(w1=add(conv_pack(pb["w1"])), b1=addb(pb["b1"]),
                            w2=add(conv_pack(pb["w2"])), b2=addb(pb["b2"]))
    for blk, pb in zip(plan["dec"], params["decoder"]):
        layout["dec"].append(dict(
            wt=add(tconv_pack(pb["wt"])), bt=addb(pb["bt"]),
            scat=add(_tconv_scatter(blk["h"] // 2, blk["w"] // 2)),
            w1=add(conv_pack(pb["w1"])), b1=addb(pb["b1"]),
            w2=add(conv_pack(pb["w2"])), b2=addb(pb["b2"])))
    layout["cls"] = dict(
        w=add(np.asarray(params["classifier"]["w"], np.float32).T),
        b=addb(params["classifier"]["b"]))

    kmax = _round_up(max(a.shape[1] for _, a in entries), 128)
    nrows = _round_up(row, 16)
    const = np.zeros((nrows, kmax), np.float32)
    for r0, a in entries:
        const[r0:r0 + a.shape[0], :a.shape[1]] = a

    brows = _round_up(max(b.shape[0] for b in biases), 8)
    bcols = _round_up(len(biases), 128)
    bias = np.zeros((brows, bcols), np.float32)
    for j, b in enumerate(biases):
        bias[:b.shape[0], j] = b

    return (jnp.asarray(const, dtype=jnp.bfloat16),
            jnp.asarray(bias, dtype=jnp.float32), layout)


# ----------------------------------------------------------------------------
# Forward pass wrapper: one pallas_call for the whole network
# ----------------------------------------------------------------------------
def unet_forward(x_nchw, const, bias, plan, layout):
    N, cin, H, W = x_nchw.shape
    assert cin == plan["in_channels"] and H == plan["H"] and W == plan["W"]
    HW = H * W
    out_classes = plan["out_classes"]

    G = 128                                 # lane-aligned staging offset
    assert G >= W + 1
    stage_shape, slab_shape = _scratch_dims(plan, G)

    x = x_nchw.reshape(N, cin, HW).astype(jnp.float32)
    kernel = make_unet_kernel(plan, layout, G)

    out = pl.pallas_call(
        kernel,
        out_shape=jax.ShapeDtypeStruct((N, out_classes, HW), jnp.float32),
        grid=(N,),
        in_specs=[pl.BlockSpec((1, cin, HW), lambda i: (i, 0, 0)),
                  pl.BlockSpec(const.shape, lambda i: (0, 0)),
                  pl.BlockSpec(bias.shape, lambda i: (0, 0))],
        out_specs=pl.BlockSpec((1, out_classes, HW), lambda i: (i, 0, 0)),
        scratch_shapes=[pltpu.VMEM(stage_shape, jnp.float32),   # halo staging
                        pltpu.VMEM(slab_shape, jnp.float32)],   # im2col slab
        compiler_params=pltpu.CompilerParams(
            dimension_semantics=("parallel",),
            vmem_limit_bytes=32 * 1024 * 1024),
    )(x, const, bias)
    return out.reshape(N, out_classes, H, W)


if __name__ == "__main__":
    key = jax.random.PRNGKey(0)
    kx, kp = jax.random.split(key)

    # Small config consistent with the module: in_channels=1, out_classes=2,
    # dimensions=2, num_encoding_blocks=3, out_channels_first_layer=8,
    # padding=1 (so skip/decoder sizes match and center_crop is a no-op).
    N, C, H, W = 2, 1, 16, 16
    x = jax.random.normal(kx, (N, C, H, W), jnp.float32)       # NCHW input

    params = init_params(kp, in_channels=1, out_classes=2,
                         num_encoding_blocks=3, out_channels_first_layer=8)
    plan = make_plan(in_channels=1, out_classes=2, num_encoding_blocks=3,
                     c_first=8, H=H, W=W)
    const, bias, layout = pack_constants(params, plan)

    fwd = jax.jit(functools.partial(unet_forward, plan=plan, layout=layout))
    out = jax.block_until_ready(fwd(x, const, bias))
    assert out.shape == (2, 2, 16, 16), out.shape
    assert bool(jnp.all(jnp.isfinite(out)))
    print("KERNEL_OK")
</pallas_src>

<mosaic_0001>
module attributes {stable_mosaic.version = 11 : i64} {
  func.func @kernel(%arg0: i32, %arg1: memref<1x1x256xf32, #tpu.memory_space<vmem>>, %arg2: memref<1040x512xbf16, #tpu.memory_space<vmem>>, %arg3: memref<32x128xf32, #tpu.memory_space<vmem>>, %arg4: memref<1x2x256xf32, #tpu.memory_space<vmem>>, %arg5: memref<48x512xf32, #tpu.memory_space<vmem>>, %arg6: memref<432x256xf32, #tpu.memory_space<vmem>>) attributes {dimension_semantics = [#tpu.dimension_semantics<parallel>], iteration_bounds = array<i64: 2>, scalar_prefetch = 0 : i64, scratch_operands = 2 : i64, tpu.core_type = #tpu.core_type<tc>, window_params = [{transform_indices = @transform_0, window_bounds = array<i64: 1, 1, 256>}, {pipeline_mode = #tpu.pipeline_mode<synchronous>, transform_indices = @transform_1, window_bounds = array<i64: 1040, 512>}, {pipeline_mode = #tpu.pipeline_mode<synchronous>, transform_indices = @transform_2, window_bounds = array<i64: 32, 128>}, {transform_indices = @transform_3, window_bounds = array<i64: 1, 2, 256>}]} {
    %c0 = arith.constant 0 : index
    %c0_0 = arith.constant 0 : index
    %c0_1 = arith.constant 0 : index
    %0 = vector.load %arg1[%c0, %c0_0, %c0_1] : memref<1x1x256xf32, #tpu.memory_space<vmem>>, vector<1x1x256xf32>
    %1 = vector.shape_cast %0 : vector<1x1x256xf32> to vector<1x256xf32>
    %cst = arith.constant 0.000000e+00 : f32
    %2 = vector.broadcast %cst : f32 to vector<1x17xf32>
    %c0_2 = arith.constant 0 : index
    %c111 = arith.constant 111 : index
    %3 = vector.load %arg5[%c0_2, %c111] : memref<48x512xf32, #tpu.memory_space<vmem>>, vector<1x17xf32>
    tpu.vector_store %arg5[%c0_2, %c111], %2 {strides = array<i32>} : memref<48x512xf32, #tpu.memory_space<vmem>>, vector<1x17xf32>,
    %c0_3 = arith.constant 0 : index
    %c384 = arith.constant 384 : index
    %4 = vector.load %arg5[%c0_3, %c384] : memref<48x512xf32, #tpu.memory_space<vmem>>, vector<1x17xf32>
    tpu.vector_store %arg5[%c0_3, %c384], %2 {strides = array<i32>} : memref<48x512xf32, #tpu.memory_space<vmem>>, vector<1x17xf32>,
    %c0_4 = arith.constant 0 : index
    %c128 = arith.constant 128 : index
    %5 = vector.load %arg5[%c0_4, %c128] : memref<48x512xf32, #tpu.memory_space<vmem>>, vector<1x256xf32>
    tpu.vector_store %arg5[%c0_4, %c128], %1 {strides = array<i32>} : memref<48x512xf32, #tpu.memory_space<vmem>>, vector<1x256xf32>,
    %6 = tpu.iota {dimensions = array<i32: 1>} : vector<1x256xi32>
    %c16_i32 = arith.constant 16 : i32
    %c0_i32 = arith.constant 0 : i32
    %7 = arith.cmpi eq, %c16_i32, %c0_i32 : i32
    %c1_i32 = arith.constant 1 : i32
    %8 = arith.select %7, %c1_i32, %c16_i32 : i32
    %9 = vector.broadcast %8 : i32 to vector<1x256xi32>
    %10 = arith.remsi %6, %9 : vector<1x256xi32>
    %c0_i32_5 = arith.constant 0 : i32
    %11 = vector.broadcast %c0_i32_5 : i32 to vector<1x256xi32>
    %12 = arith.cmpi ne, %10, %11 : vector<1x256xi32>
    %c0_i32_6 = arith.constant 0 : i32
    %13 = vector.broadcast %c0_i32_6 : i32 to vector<1x256xi32>
    %14 = arith.cmpi slt, %10, %13 : vector<1x256xi32>
    %c0_i32_7 = arith.constant 0 : i32
    %15 = arith.cmpi slt, %8, %c0_i32_7 : i32
    %16 = vector.broadcast %15 : i1 to vector<1x256xi1>
    %17 = vector.broadcast %16 : vector<1x256xi1> to vector<1x256xi1>
    %18 = arith.xori %14, %17 : vector<1x256xi1>
    %19 = arith.andi %18, %12 : vector<1x256xi1>
    %20 = vector.broadcast %8 : i32 to vector<1x256xi32>
    %21 = arith.addi %10, %20 : vector<1x256xi32>
    %22 = arith.select %19, %21, %10 : vector<1x256xi1>, vector<1x256xi32>
    %c0_i32_8 = arith.constant 0 : i32
    %23 = vector.broadcast %c0_i32_8 : i32 to vector<1x256xi32>
    %24 = arith.cmpi sgt, %22, %23 : vector<1x256xi32>
    %c15_i32 = arith.constant 15 : i32
    %25 = vector.broadcast %c15_i32 : i32 to vector<1x256xi32>
    %26 = arith.cmpi slt, %22, %25 : vector<1x256xi32>
    %c0_9 = arith.constant 0 : index
    %c111_10 = arith.constant 111 : index
    %27 = vector.load %arg5[%c0_9, %c111_10] : memref<48x512xf32, #tpu.memory_space<vmem>>, vector<1x256xf32>
    %cst_11 = arith.constant 0.000000e+00 : f32
    %28 = vector.broadcast %cst_11 : f32 to vector<1x256xf32>
    %29 = arith.select %24, %27, %28 : vector<1x256xi1>, vector<1x256xf32>
    %c0_12 = arith.constant 0 : index
    %c0_13 = arith.constant 0 : index
    %30 = vector.load %arg6[%c0_12, %c0_13] : memref<432x256xf32, #tpu.memory_space<vmem>>, vector<1x256xf32>
    tpu.vector_store %arg6[%c0_12, %c0_13], %29 {strides = array<i32>} : memref<432x256xf32, #tpu.memory_space<vmem>>, vector<1x256xf32>,
    %c0_14 = arith.constant 0 : index
    %c112 = arith.constant 112 : index
    %31 = vector.load %arg5[%c0_14, %c112] : memref<48x512xf32, #tpu.memory_space<vmem>>, vector<1x256xf32>
    %c1 = arith.constant 1 : index
    %c0_15 = arith.constant 0 : index
    %32 = vector.load %arg6[%c1, %c0_15] : memref<432x256xf32, #tpu.memory_space<vmem>>, vector<1x256xf32>
    tpu.vector_store %arg6[%c1, %c0_15], %31 {strides = array<i32>} : memref<432x256xf32, #tpu.memory_space<vmem>>, vector<1x256xf32>,
    %c0_16 = arith.constant 0 : index
    %c113 = arith.constant 113 : index
    %33 = vector.load %arg5[%c0_16, %c113] : memref<48x512xf32, #tpu.memory_space<vmem>>, vector<1x256xf32>
    %cst_17 = arith.constant 0.000000e+00 : f32
    %34 = vector.broadcast %cst_17 : f32 to vector<1x256xf32>
    %35 = arith.select %26, %33, %34 : vector<1x256xi1>, vector<1x256xf32>
    %c2 = arith.constant 2 : index
    %c0_18 = arith.constant 0 : index
    %36 = vector.load %arg6[%c2, %c0_18] : memref<432x256xf32, #tpu.memory_space<vmem>>, vector<1x256xf32>
    tpu.vector_store %arg6[%c2, %c0_18], %35 {strides = array<i32>} : memref<432x256xf32, #tpu.memory_space<vmem>>, vector<1x256xf32>,
    %c0_19 = arith.constant 0 : index
    %c127 = arith.constant 127 : index
    %37 = vector.load %arg5[%c0_19, %c127] : memref<48x512xf32, #tpu.memory_space<vmem>>, vector<1x256xf32>
    %cst_20 = arith.constant 0.000000e+00 : f32
    %38 = vector.broadcast %cst_20 : f32 to vector<1x256xf32>
    %39 = arith.select %24, %37, %38 : vector<1x256xi1>, vector<1x256xf32>
    %c3 = arith.constant 3 : index
    %c0_21 = arith.constant 0 : index
    %40 = vector.load %arg6[%c3, %c0_21] : memref<432x256xf32, #tpu.memory_space<vmem>>, vector<1x256xf32>
    tpu.vector_store %arg6[%c3, %c0_21], %39 {strides = array<i32>} : memref<432x256xf32, #tpu.memory_space<vmem>>, vector<1x256xf32>,
    %c0_22 = arith.constant 0 : index
    %c128_23 = arith.constant 128 : index
    %41 = vector.load %arg5[%c0_22, %c128_23] : memref<48x512xf32, #tpu.memory_space<vmem>>, vector<1x256xf32>
    %c4 = arith.constant 4 : index
    %c0_24 = arith.constant 0 : index
    %42 = vector.load %arg6[%c4, %c0_24] : memref<432x256xf32, #tpu.memory_space<vmem>>, vector<1x256xf32>
    tpu.vector_store %arg6[%c4, %c0_24], %41 {strides = array<i32>} : memref<432x256xf32, #tpu.memory_space<vmem>>, vector<1x256xf32>,
    %c0_25 = arith.constant 0 : index
    %c129 = arith.constant 129 : index
    %43 = vector.load %arg5[%c0_25, %c129] : memref<48x512xf32, #tpu.memory_space<vmem>>, vector<1x256xf32>
    %cst_26 = arith.constant 0.000000e+00 : f32
    %44 = vector.broadcast %cst_26 : f32 to vector<1x256xf32>
    %45 = arith.select %26, %43, %44 : vector<1x256xi1>, vector<1x256xf32>
    %c5 = arith.constant 5 : index
    %c0_27 = arith.constant 0 : index
    %46 = vector.load %arg6[%c5, %c0_27] : memref<432x256xf32, #tpu.memory_space<vmem>>, vector<1x256xf32>
    tpu.vector_store %arg6[%c5, %c0_27], %45 {strides = array<i32>} : memref<432x256xf32, #tpu.memory_space<vmem>>, vector<1x256xf32>,
    %c0_28 = arith.constant 0 : index
    %c143 = arith.constant 143 : index
    %47 = vector.load %arg5[%c0_28, %c143] : memref<48x512xf32, #tpu.memory_space<vmem>>, vector<1x256xf32>
    %cst_29 = arith.constant 0.000000e+00 : f32
    %48 = vector.broadcast %cst_29 : f32 to vector<1x256xf32>
    %49 = arith.select %24, %47, %48 : vector<1x256xi1>, vector<1x256xf32>
    %c6 = arith.constant 6 : index
    %c0_30 = arith.constant 0 : index
    %50 = vector.load %arg6[%c6, %c0_30] : memref<432x256xf32, #tpu.memory_space<vmem>>, vector<1x256xf32>
    tpu.vector_store %arg6[%c6, %c0_30], %49 {strides = array<i32>} : memref<432x256xf32, #tpu.memory_space<vmem>>, vector<1x256xf32>,
    %c0_31 = arith.constant 0 : index
    %c144 = arith.constant 144 : index
    %51 = vector.load %arg5[%c0_31, %c144] : memref<48x512xf32, #tpu.memory_space<vmem>>, vector<1x256xf32>
    %c7 = arith.constant 7 : index
    %c0_32 = arith.constant 0 : index
    %52 = vector.load %arg6[%c7, %c0_32] : memref<432x256xf32, #tpu.memory_space<vmem>>, vector<1x256xf32>
    tpu.vector_store %arg6[%c7, %c0_32], %51 {strides = array<i32>} : memref<432x256xf32, #tpu.memory_space<vmem>>, vector<1x256xf32>,
    %c0_33 = arith.constant 0 : index
    %c145 = arith.constant 145 : index
    %53 = vector.load %arg5[%c0_33, %c145] : memref<48x512xf32, #tpu.memory_space<vmem>>, vector<1x256xf32>
    %cst_34 = arith.constant 0.000000e+00 : f32
    %54 = vector.broadcast %cst_34 : f32 to vector<1x256xf32>
    %55 = arith.select %26, %53, %54 : vector<1x256xi1>, vector<1x256xf32>
    %c8 = arith.constant 8 : index
    %c0_35 = arith.constant 0 : index
    %56 = vector.load %arg6[%c8, %c0_35] : memref<432x256xf32, #tpu.memory_space<vmem>>, vector<1x256xf32>
    tpu.vector_store %arg6[%c8, %c0_35], %55 {strides = array<i32>} : memref<432x256xf32, #tpu.memory_space<vmem>>, vector<1x256xf32>,
    %c0_36 = arith.constant 0 : index
    %c0_37 = arith.constant 0 : index
    %57 = vector.load %arg2[%c0_36, %c0_37] : memref<1040x512xbf16, #tpu.memory_space<vmem>>, vector<8x9xbf16>
    %c0_38 = arith.constant 0 : index
    %c0_39 = arith.constant 0 : index
    %58 = vector.load %arg6[%c0_38, %c0_39] : memref<432x256xf32, #tpu.memory_space<vmem>>, vector<9x256xf32>
    %59 = arith.truncf %58 : vector<9x256xf32> to vector<9x256xbf16>
    %cst_40 = arith.constant dense<0.000000e+00> : vector<8x256xf32>
    %60 = tpu.matmul %57, %59, %cst_40 {dimension_numbers = #tpu.dot_dimension_numbers<[1], [0], [0], [1], [0, 0, 1, 1], [], []>} : vector<8x9xbf16>, vector<9x256xbf16>, vector<8x256xf32> -> vector<8x256xf32>
    %c0_41 = arith.constant 0 : index
    %c0_42 = arith.constant 0 : index
    %61 = vector.load %arg3[%c0_41, %c0_42] : memref<32x128xf32, #tpu.memory_space<vmem>>, vector<8x1xf32>
    %62 = vector.broadcast %61 : vector<8x1xf32> to vector<8x256xf32>
    %63 = arith.addf %60, %62 : vector<8x256xf32>
    %cst_43 = arith.constant 0.000000e+00 : f32
    %64 = vector.broadcast %cst_43 : f32 to vector<8x256xf32>
    %65 = arith.maximumf %63, %64 : vector<8x256xf32>
    %cst_44 = arith.constant 0.000000e+00 : f32
    %66 = vector.broadcast %cst_44 : f32 to vector<8x17xf32>
    %c0_45 = arith.constant 0 : index
    %c111_46 = arith.constant 111 : index
    %67 = vector.load %arg5[%c0_45, %c111_46] : memref<48x512xf32, #tpu.memory_space<vmem>>, vector<8x17xf32>
    tpu.vector_store %arg5[%c0_45, %c111_46], %66 {strides = array<i32>} : memref<48x512xf32, #tpu.memory_space<vmem>>, vector<8x17xf32>,
    %c0_47 = arith.constant 0 : index
    %c384_48 = arith.constant 384 : index
    %68 = vector.load %arg5[%c0_47, %c384_48] : memref<48x512xf32, #tpu.memory_space<vmem>>, vector<8x17xf32>
    tpu.vector_store %arg5[%c0_47, %c384_48], %66 {strides = array<i32>} : memref<48x512xf32, #tpu.memory_space<vmem>>, vector<8x17xf32>,
    %c0_49 = arith.constant 0 : index
    %c128_50 = arith.constant 128 : index
    %69 = vector.load %arg5[%c0_49, %c128_50] : memref<48x512xf32, #tpu.memory_space<vmem>>, vector<8x256xf32>
    tpu.vector_store %arg5[%c0_49, %c128_50], %65 {strides = array<i32>} : memref<48x512xf32, #tpu.memory_space<vmem>>, vector<8x256xf32>,
    %c0_51 = arith.constant 0 : index
    %c111_52 = arith.constant 111 : index
    %70 = vector.load %arg5[%c0_51, %c111_52] : memref<48x512xf32, #tpu.memory_space<vmem>>, vector<8x256xf32>
    %cst_53 = arith.constant 0.000000e+00 : f32
    %71 = vector.shape_cast %24 : vector<1x256xi1> to vector<1x256xi1>
    %72 = vector.broadcast %71 : vector<1x256xi1> to vector<8x256xi1>
    %73 = vector.broadcast %cst_53 : f32 to vector<8x256xf32>
    %74 = arith.select %72, %70, %73 : vector<8x256xi1>, vector<8x256xf32>
    %c0_54 = arith.constant 0 : index
    %c0_55 = arith.constant 0 : index
    %75 = vector.load %arg6[%c0_54, %c0_55] : memref<432x256xf32, #tpu.memory_space<vmem>>, vector<8x256xf32>
    tpu.vector_store %arg6[%c0_54, %c0_55], %74 {strides = array<i32>} : memref<432x256xf32, #tpu.memory_space<vmem>>, vector<8x256xf32>,
    %c0_56 = arith.constant 0 : index
    %c112_57 = arith.constant 112 : index
    %76 = vector.load %arg5[%c0_56, %c112_57] : memref<48x512xf32, #tpu.memory_space<vmem>>, vector<8x256xf32>
    %c8_58 = arith.constant 8 : index
    %c0_59 = arith.constant 0 : index
    %77 = vector.load %arg6[%c8_58, %c0_59] : memref<432x256xf32, #tpu.memory_space<vmem>>, vector<8x256xf32>
    tpu.vector_store %arg6[%c8_58, %c0_59], %76 {strides = array<i32>} : memref<432x256xf32, #tpu.memory_space<vmem>>, vector<8x256xf32>,
    %c0_60 = arith.constant 0 : index
    %c113_61 = arith.constant 113 : index
    %78 = vector.load %arg5[%c0_60, %c113_61] : memref<48x512xf32, #tpu.memory_space<vmem>>, vector<8x256xf32>
    %cst_62 = arith.constant 0.000000e+00 : f32
    %79 = vector.shape_cast %26 : vector<1x256xi1> to vector<1x256xi1>
    %80 = vector.broadcast %79 : vector<1x256xi1> to vector<8x256xi1>
    %81 = vector.broadcast %cst_62 : f32 to vector<8x256xf32>
    %82 = arith.select %80, %78, %81 : vector<8x256xi1>, vector<8x256xf32>
    %c16 = arith.constant 16 : index
    %c0_63 = arith.constant 0 : index
    %83 = vector.load %arg6[%c16, %c0_63] : memref<432x256xf32, #tpu.memory_space<vmem>>, vector<8x256xf32>
    tpu.vector_store %arg6[%c16, %c0_63], %82 {strides = array<i32>} : memref<432x256xf32, #tpu.memory_space<vmem>>, vector<8x256xf32>,
    %c0_64 = arith.constant 0 : index
    %c127_65 = arith.constant 127 : index
    %84 = vector.load %arg5[%c0_64, %c127_65] : memref<48x512xf32, #tpu.memory_space<vmem>>, vector<8x256xf32>
    %cst_66 = arith.constant 0.000000e+00 : f32
    %85 = vector.shape_cast %24 : vector<1x256xi1> to vector<1x256xi1>
    %86 = vector.broadcast %85 : vector<1x256xi1> to vector<8x256xi1>
    %87 = vector.broadcast %cst_66 : f32 to vector<8x256xf32>
    %88 = arith.select %86, %84, %87 : vector<8x256xi1>, vector<8x256xf32>
    %c24 = arith.constant 24 : index
    %c0_67 = arith.constant 0 : index
    %89 = vector.load %arg6[%c24, %c0_67] : memref<432x256xf32, #tpu.memory_space<vmem>>, vector<8x256xf32>
    tpu.vector_store %arg6[%c24, %c0_67], %88 {strides = array<i32>} : memref<432x256xf32, #tpu.memory_space<vmem>>, vector<8x256xf32>,
    %c0_68 = arith.constant 0 : index
    %c128_69 = arith.constant 128 : index
    %90 = vector.load %arg5[%c0_68, %c128_69] : memref<48x512xf32, #tpu.memory_space<vmem>>, vector<8x256xf32>
    %c32 = arith.constant 32 : index
    %c0_70 = arith.constant 0 : index
    %91 = vector.load %arg6[%c32, %c0_70] : memref<432x256xf32, #tpu.memory_space<vmem>>, vector<8x256xf32>
    tpu.vector_store %arg6[%c32, %c0_70], %90 {strides = array<i32>} : memref<432x256xf32, #tpu.memory_space<vmem>>, vector<8x256xf32>,
    %c0_71 = arith.constant 0 : index
    %c129_72 = arith.constant 129 : index
    %92 = vector.load %arg5[%c0_71, %c129_72] : memref<48x512xf32, #tpu.memory_space<vmem>>, vector<8x256xf32>
    %cst_73 = arith.constant 0.000000e+00 : f32
    %93 = vector.shape_cast %26 : vector<1x256xi1> to vector<1x256xi1>
    %94 = vector.broadcast %93 : vector<1x256xi1> to vector<8x256xi1>
    %95 = vector.broadcast %cst_73 : f32 to vector<8x256xf32>
    %96 = arith.select %94, %92, %95 : vector<8x256xi1>, vector<8x256xf32>
    %c40 = arith.constant 40 : index
    %c0_74 = arith.constant 0 : index
    %97 = vector.load %arg6[%c40, %c0_74] : memref<432x256xf32, #tpu.memory_space<vmem>>, vector<8x256xf32>
    tpu.vector_store %arg6[%c40, %c0_74], %96 {strides = array<i32>} : memref<432x256xf32, #tpu.memory_space<vmem>>, vector<8x256xf32>,
    %c0_75 = arith.constant 0 : index
    %c143_76 = arith.constant 143 : index
    %98 = vector.load %arg5[%c0_75, %c143_76] : memref<48x512xf32, #tpu.memory_space<vmem>>, vector<8x256xf32>
    %cst_77 = arith.constant 0.000000e+00 : f32
    %99 = vector.shape_cast %24 : vector<1x256xi1> to vector<1x256xi1>
    %100 = vector.broadcast %99 : vector<1x256xi1> to vector<8x256xi1>
    %101 = vector.broadcast %cst_77 : f32 to vector<8x256xf32>
    %102 = arith.select %100, %98, %101 : vector<8x256xi1>, vector<8x256xf32>
    %c48 = arith.constant 48 : index
    %c0_78 = arith.constant 0 : index
    %103 = vector.load %arg6[%c48, %c0_78] : memref<432x256xf32, #tpu.memory_space<vmem>>, vector<8x256xf32>
    tpu.vector_store %arg6[%c48, %c0_78], %102 {strides = array<i32>} : memref<432x256xf32, #tpu.memory_space<vmem>>, vector<8x256xf32>,
    %c0_79 = arith.constant 0 : index
    %c144_80 = arith.constant 144 : index
    %104 = vector.load %arg5[%c0_79, %c144_80] : memref<48x512xf32, #tpu.memory_space<vmem>>, vector<8x256xf32>
    %c56 = arith.constant 56 : index
    %c0_81 = arith.constant 0 : index
    %105 = vector.load %arg6[%c56, %c0_81] : memref<432x256xf32, #tpu.memory_space<vmem>>, vector<8x256xf32>
    tpu.vector_store %arg6[%c56, %c0_81], %104 {strides = array<i32>} : memref<432x256xf32, #tpu.memory_space<vmem>>, vector<8x256xf32>,
    %c0_82 = arith.constant 0 : index
    %c145_83 = arith.constant 145 : index
    %106 = vector.load %arg5[%c0_82, %c145_83] : memref<48x512xf32, #tpu.memory_space<vmem>>, vector<8x256xf32>
    %cst_84 = arith.constant 0.000000e+00 : f32
    %107 = vector.shape_cast %26 : vector<1x256xi1> to vector<1x256xi1>
    %108 = vector.broadcast %107 : vector<1x256xi1> to vector<8x256xi1>
    %109 = vector.broadcast %cst_84 : f32 to vector<8x256xf32>
    %110 = arith.select %108, %106, %109 : vector<8x256xi1>, vector<8x256xf32>
    %c64 = arith.constant 64 : index
    %c0_85 = arith.constant 0 : index
    %111 = vector.load %arg6[%c64, %c0_85] : memref<432x256xf32, #tpu.memory_space<vmem>>, vector<8x256xf32>
    tpu.vector_store %arg6[%c64, %c0_85], %110 {strides = array<i32>} : memref<432x256xf32, #tpu.memory_space<vmem>>, vector<8x256xf32>,
    %c16_86 = arith.constant 16 : index
    %c0_87 = arith.constant 0 : index
    %112 = vector.load %arg2[%c16_86, %c0_87] : memref<1040x512xbf16, #tpu.memory_space<vmem>>, vector<8x72xbf16>
    %c0_88 = arith.constant 0 : index
    %c0_89 = arith.constant 0 : index
    %113 = vector.load %arg6[%c0_88, %c0_89] : memref<432x256xf32, #tpu.memory_space<vmem>>, vector<72x256xf32>
    %114 = arith.truncf %113 : vector<72x256xf32> to vector<72x256xbf16>
    %cst_90 = arith.constant dense<0.000000e+00> : vector<8x256xf32>
    %115 = tpu.matmul %112, %114, %cst_90 {dimension_numbers = #tpu.dot_dimension_numbers<[1], [0], [0], [1], [0, 0, 1, 1], [], []>} : vector<8x72xbf16>, vector<72x256xbf16>, vector<8x256xf32> -> vector<8x256xf32>
    %c0_91 = arith.constant 0 : index
    %c1_92 = arith.constant 1 : index
    %116 = vector.load %arg3[%c0_91, %c1_92] : memref<32x128xf32, #tpu.memory_space<vmem>>, vector<8x1xf32>
    %117 = vector.broadcast %116 : vector<8x1xf32> to vector<8x256xf32>
    %118 = arith.addf %115, %117 : vector<8x256xf32>
    %cst_93 = arith.constant 0.000000e+00 : f32
    %119 = vector.broadcast %cst_93 : f32 to vector<8x256xf32>
    %120 = arith.maximumf %118, %119 : vector<8x256xf32>
    %cst_94 = arith.constant 0.000000e+00 : f32
    %121 = vector.broadcast %cst_94 : f32 to vector<8x17xf32>
    %c0_95 = arith.constant 0 : index
    %c111_96 = arith.constant 111 : index
    %122 = vector.load %arg5[%c0_95, %c111_96] : memref<48x512xf32, #tpu.memory_space<vmem>>, vector<8x17xf32>
    tpu.vector_store %arg5[%c0_95, %c111_96], %121 {strides = array<i32>} : memref<48x512xf32, #tpu.memory_space<vmem>>, vector<8x17xf32>,
    %c0_97 = arith.constant 0 : index
    %c384_98 = arith.constant 384 : index
    %123 = vector.load %arg5[%c0_97, %c384_98] : memref<48x512xf32, #tpu.memory_space<vmem>>, vector<8x17xf32>
    tpu.vector_store %arg5[%c0_97, %c384_98], %121 {strides = array<i32>} : memref<48x512xf32, #tpu.memory_space<vmem>>, vector<8x17xf32>,
    %c0_99 = arith.constant 0 : index
    %c128_100 = arith.constant 128 : index
    %124 = vector.load %arg5[%c0_99, %c128_100] : memref<48x512xf32, #tpu.memory_space<vmem>>, vector<8x256xf32>
    tpu.vector_store %arg5[%c0_99, %c128_100], %120 {strides = array<i32>} : memref<48x512xf32, #tpu.memory_space<vmem>>, vector<8x256xf32>,
    %c0_101 = arith.constant 0 : index
    %c128_102 = arith.constant 128 : index
    %125 = vector.load %arg5[%c0_101, %c128_102] : memref<48x512xf32, #tpu.memory_space<vmem>>, vector<8x256xf32>
    %c0_103 = arith.constant 0 : index
    %c129_104 = arith.constant 129 : index
    %126 = vector.load %arg5[%c0_103, %c129_104] : memref<48x512xf32, #tpu.memory_space<vmem>>, vector<8x256xf32>
    %c0_105 = arith.constant 0 : index
    %c144_106 = arith.constant 144 : index
    %127 = vector.load %arg5[%c0_105, %c144_106] : memref<48x512xf32, #tpu.memory_space<vmem>>, vector<8x256xf32>
    %c0_107 = arith.constant 0 : index
    %c145_108 = arith.constant 145 : index
    %128 = vector.load %arg5[%c0_107, %c145_108] : memref<48x512xf32, #tpu.memory_space<vmem>>, vector<8x256xf32>
    %129 = arith.maximumf %125, %126 : vector<8x256xf32>
    %130 = arith.maximumf %127, %128 : vector<8x256xf32>
    %131 = arith.maximumf %129, %130 : vector<8x256xf32>
    %c32_109 = arith.constant 32 : index
    %c0_110 = arith.constant 0 : index
    %132 = vector.load %arg2[%c32_109, %c0_110] : memref<1040x512xbf16, #tpu.memory_space<vmem>>, vector<256x64xbf16>
    %133 = arith.truncf %131 : vector<8x256xf32> to vector<8x256xbf16>
    %cst_111 = arith.constant dense<0.000000e+00> : vector<8x64xf32>
    %134 = tpu.matmul %133, %132, %cst_111 {dimension_numbers = #tpu.dot_dimension_numbers<[1], [0], [0], [1], [0, 0, 1, 1], [], []>} : vector<8x256xbf16>, vector<256x64xbf16>, vector<8x64xf32> -> vector<8x64xf32>
    %cst_112 = arith.constant 0.000000e+00 : f32
    %135 = vector.broadcast %cst_112 : f32 to vector<8x9xf32>
    %c0_113 = arith.constant 0 : index
    %c119 = arith.constant 119 : index
    %136 = vector.load %arg5[%c0_113, %c119] : memref<48x512xf32, #tpu.memory_space<vmem>>, vector<8x9xf32>
    tpu.vector_store %arg5[%c0_113, %c119], %135 {strides = array<i32>} : memref<48x512xf32, #tpu.memory_space<vmem>>, vector<8x9xf32>,
    %c0_114 = arith.constant 0 : index
    %c192 = arith.constant 192 : index
    %137 = vector.load %arg5[%c0_114, %c192] : memref<48x512xf32, #tpu.memory_space<vmem>>, vector<8x9xf32>
    tpu.vector_store %arg5[%c0_114, %c192], %135 {strides = array<i32>} : memref<48x512xf32, #tpu.memory_space<vmem>>, vector<8x9xf32>,
    %c0_115 = arith.constant 0 : index
    %c128_116 = arith.constant 128 : index
    %138 = vector.load %arg5[%c0_115, %c128_116] : memref<48x512xf32, #tpu.memory_space<vmem>>, vector<8x64xf32>
    tpu.vector_store %arg5[%c0_115, %c128_116], %134 {strides = array<i32>} : memref<48x512xf32, #tpu.memory_space<vmem>>, vector<8x64xf32>,
    %139 = tpu.iota {dimensions = array<i32: 1>} : vector<1x64xi32>
    %c8_i32 = arith.constant 8 : i32
    %c0_i32_117 = arith.constant 0 : i32
    %140 = arith.cmpi eq, %c8_i32, %c0_i32_117 : i32
    %c1_i32_118 = arith.constant 1 : i32
    %141 = arith.select %140, %c1_i32_118, %c8_i32 : i32
    %142 = vector.broadcast %141 : i32 to vector<1x64xi32>
    %143 = arith.remsi %139, %142 : vector<1x64xi32>
    %c0_i32_119 = arith.constant 0 : i32
    %144 = vector.broadcast %c0_i32_119 : i32 to vector<1x64xi32>
    %145 = arith.cmpi ne, %143, %144 : vector<1x64xi32>
    %c0_i32_120 = arith.constant 0 : i32
    %146 = vector.broadcast %c0_i32_120 : i32 to vector<1x64xi32>
    %147 = arith.cmpi slt, %143, %146 : vector<1x64xi32>
    %c0_i32_121 = arith.constant 0 : i32
    %148 = arith.cmpi slt, %141, %c0_i32_121 : i32
    %149 = vector.broadcast %148 : i1 to vector<1x64xi1>
    %150 = vector.broadcast %149 : vector<1x64xi1> to vector<1x64xi1>
    %151 = arith.xori %147, %150 : vector<1x64xi1>
    %152 = arith.andi %151, %145 : vector<1x64xi1>
    %153 = vector.broadcast %141 : i32 to vector<1x64xi32>
    %154 = arith.addi %143, %153 : vector<1x64xi32>
    %155 = arith.select %152, %154, %143 : vector<1x64xi1>, vector<1x64xi32>
    %c0_i32_122 = arith.constant 0 : i32
    %156 = vector.broadcast %c0_i32_122 : i32 to vector<1x64xi32>
    %157 = arith.cmpi sgt, %155, %156 : vector<1x64xi32>
    %c7_i32 = arith.constant 7 : i32
    %158 = vector.broadcast %c7_i32 : i32 to vector<1x64xi32>
    %159 = arith.cmpi slt, %155, %158 : vector<1x64xi32>
    %c0_123 = arith.constant 0 : index
    %c119_124 = arith.constant 119 : index
    %160 = vector.load %arg5[%c0_123, %c119_124] : memref<48x512xf32, #tpu.memory_space<vmem>>, vector<8x64xf32>
    %cst_125 = arith.constant 0.000000e+00 : f32
    %161 = vector.shape_cast %157 : vector<1x64xi1> to vector<1x64xi1>
    %162 = vector.broadcast %161 : vector<1x64xi1> to vector<8x64xi1>
    %163 = vector.broadcast %cst_125 : f32 to vector<8x64xf32>
    %164 = arith.select %162, %160, %163 : vector<8x64xi1>, vector<8x64xf32>
    %c0_126 = arith.constant 0 : index
    %c0_127 = arith.constant 0 : index
    %165 = vector.load %arg6[%c0_126, %c0_127] : memref<432x256xf32, #tpu.memory_space<vmem>>, vector<8x64xf32>
    tpu.vector_store %arg6[%c0_126, %c0_127], %164 {strides = array<i32>} : memref<432x256xf32, #tpu.memory_space<vmem>>, vector<8x64xf32>,
    %c0_128 = arith.constant 0 : index
    %c120 = arith.constant 120 : index
    %166 = vector.load %arg5[%c0_128, %c120] : memref<48x512xf32, #tpu.memory_space<vmem>>, vector<8x64xf32>
    %c8_129 = arith.constant 8 : index
    %c0_130 = arith.constant 0 : index
    %167 = vector.load %arg6[%c8_129, %c0_130] : memref<432x256xf32, #tpu.memory_space<vmem>>, vector<8x64xf32>
    tpu.vector_store %arg6[%c8_129, %c0_130], %166 {strides = array<i32>} : memref<432x256xf32, #tpu.memory_space<vmem>>, vector<8x64xf32>,
    %c0_131 = arith.constant 0 : index
    %c121 = arith.constant 121 : index
    %168 = vector.load %arg5[%c0_131, %c121] : memref<48x512xf32, #tpu.memory_space<vmem>>, vector<8x64xf32>
    %cst_132 = arith.constant 0.000000e+00 : f32
    %169 = vector.shape_cast %159 : vector<1x64xi1> to vector<1x64xi1>
    %170 = vector.broadcast %169 : vector<1x64xi1> to vector<8x64xi1>
    %171 = vector.broadcast %cst_132 : f32 to vector<8x64xf32>
    %172 = arith.select %170, %168, %171 : vector<8x64xi1>, vector<8x64xf32>
    %c16_133 = arith.constant 16 : index
    %c0_134 = arith.constant 0 : index
    %173 = vector.load %arg6[%c16_133, %c0_134] : memref<432x256xf32, #tpu.memory_space<vmem>>, vector<8x64xf32>
    tpu.vector_store %arg6[%c16_133, %c0_134], %172 {strides = array<i32>} : memref<432x256xf32, #tpu.memory_space<vmem>>, vector<8x64xf32>,
    %c0_135 = arith.constant 0 : index
    %c127_136 = arith.constant 127 : index
    %174 = vector.load %arg5[%c0_135, %c127_136] : memref<48x512xf32, #tpu.memory_space<vmem>>, vector<8x64xf32>
    %cst_137 = arith.constant 0.000000e+00 : f32
    %175 = vector.shape_cast %157 : vector<1x64xi1> to vector<1x64xi1>
    %176 = vector.broadcast %175 : vector<1x64xi1> to vector<8x64xi1>
    %177 = vector.broadcast %cst_137 : f32 to vector<8x64xf32>
    %178 = arith.select %176, %174, %177 : vector<8x64xi1>, vector<8x64xf32>
    %c24_138 = arith.constant 24 : index
    %c0_139 = arith.constant 0 : index
    %179 = vector.load %arg6[%c24_138, %c0_139] : memref<432x256xf32, #tpu.memory_space<vmem>>, vector<8x64xf32>
    tpu.vector_store %arg6[%c24_138, %c0_139], %178 {strides = array<i32>} : memref<432x256xf32, #tpu.memory_space<vmem>>, vector<8x64xf32>,
    %c0_140 = arith.constant 0 : index
    %c128_141 = arith.constant 128 : index
    %180 = vector.load %arg5[%c0_140, %c128_141] : memref<48x512xf32, #tpu.memory_space<vmem>>, vector<8x64xf32>
    %c32_142 = arith.constant 32 : index
    %c0_143 = arith.constant 0 : index
    %181 = vector.load %arg6[%c32_142, %c0_143] : memref<432x256xf32, #tpu.memory_space<vmem>>, vector<8x64xf32>
    tpu.vector_store %arg6[%c32_142, %c0_143], %180 {strides = array<i32>} : memref<432x256xf32, #tpu.memory_space<vmem>>, vector<8x64xf32>,
    %c0_144 = arith.constant 0 : index
    %c129_145 = arith.constant 129 : index
    %182 = vector.load %arg5[%c0_144, %c129_145] : memref<48x512xf32, #tpu.memory_space<vmem>>, vector<8x64xf32>
    %cst_146 = arith.constant 0.000000e+00 : f32
    %183 = vector.shape_cast %159 : vector<1x64xi1> to vector<1x64xi1>
    %184 = vector.broadcast %183 : vector<1x64xi1> to vector<8x64xi1>
    %185 = vector.broadcast %cst_146 : f32 to vector<8x64xf32>
    %186 = arith.select %184, %182, %185 : vector<8x64xi1>, vector<8x64xf32>
    %c40_147 = arith.constant 40 : index
    %c0_148 = arith.constant 0 : index
    %187 = vector.load %arg6[%c40_147, %c0_148] : memref<432x256xf32, #tpu.memory_space<vmem>>, vector<8x64xf32>
    tpu.vector_store %arg6[%c40_147, %c0_148], %186 {strides = array<i32>} : memref<432x256xf32, #tpu.memory_space<vmem>>, vector<8x64xf32>,
    %c0_149 = arith.constant 0 : index
    %c135 = arith.constant 135 : index
    %188 = vector.load %arg5[%c0_149, %c135] : memref<48x512xf32, #tpu.memory_space<vmem>>, vector<8x64xf32>
    %cst_150 = arith.constant 0.000000e+00 : f32
    %189 = vector.shape_cast %157 : vector<1x64xi1> to vector<1x64xi1>
    %190 = vector.broadcast %189 : vector<1x64xi1> to vector<8x64xi1>
    %191 = vector.broadcast %cst_150 : f32 to vector<8x64xf32>
    %192 = arith.select %190, %188, %191 : vector<8x64xi1>, vector<8x64xf32>
    %c48_151 = arith.constant 48 : index
    %c0_152 = arith.constant 0 : index
    %193 = vector.load %arg6[%c48_151, %c0_152] : memref<432x256xf32, #tpu.memory_space<vmem>>, vector<8x64xf32>
    tpu.vector_store %arg6[%c48_151, %c0_152], %192 {strides = array<i32>} : memref<432x256xf32, #tpu.memory_space<vmem>>, vector<8x64xf32>,
    %c0_153 = arith.constant 0 : index
    %c136 = arith.constant 136 : index
    %194 = vector.load %arg5[%c0_153, %c136] : memref<48x512xf32, #tpu.memory_space<vmem>>, vector<8x64xf32>
    %c56_154 = arith.constant 56 : index
    %c0_155 = arith.constant 0 : index
    %195 = vector.load %arg6[%c56_154, %c0_155] : memref<432x256xf32, #tpu.memory_space<vmem>>, vector<8x64xf32>
    tpu.vector_store %arg6[%c56_154, %c0_155], %194 {strides = array<i32>} : memref<432x256xf32, #tpu.memory_space<vmem>>, vector<8x64xf32>,
    %c0_156 = arith.constant 0 : index
    %c137 = arith.constant 137 : index
    %196 = vector.load %arg5[%c0_156, %c137] : memref<48x512xf32, #tpu.memory_space<vmem>>, vector<8x64xf32>
    %cst_157 = arith.constant 0.000000e+00 : f32
    %197 = vector.shape_cast %159 : vector<1x64xi1> to vector<1x64xi1>
    %198 = vector.broadcast %197 : vector<1x64xi1> to vector<8x64xi1>
    %199 = vector.broadcast %cst_157 : f32 to vector<8x64xf32>
    %200 = arith.select %198, %196, %199 : vector<8x64xi1>, vector<8x64xf32>
    %c64_158 = arith.constant 64 : index
    %c0_159 = arith.constant 0 : index
    %201 = vector.load %arg6[%c64_158, %c0_159] : memref<432x256xf32, #tpu.memory_space<vmem>>, vector<8x64xf32>
    tpu.vector_store %arg6[%c64_158, %c0_159], %200 {strides = array<i32>} : memref<432x256xf32, #tpu.memory_space<vmem>>, vector<8x64xf32>,
    %c288 = arith.constant 288 : index
    %c0_160 = arith.constant 0 : index
    %202 = vector.load %arg2[%c288, %c0_160] : memref<1040x512xbf16, #tpu.memory_space<vmem>>, vector<16x72xbf16>
    %c0_161 = arith.constant 0 : index
    %c0_162 = arith.constant 0 : index
    %203 = vector.load %arg6[%c0_161, %c0_162] : memref<432x256xf32, #tpu.memory_space<vmem>>, vector<72x64xf32>
    %204 = arith.truncf %203 : vector<72x64xf32> to vector<72x64xbf16>
    %cst_163 = arith.constant dense<0.000000e+00> : vector<16x64xf32>
    %205 = tpu.matmul %202, %204, %cst_163 {dimension_numbers = #tpu.dot_dimension_numbers<[1], [0], [0], [1], [0, 0, 1, 1], [], []>} : vector<16x72xbf16>, vector<72x64xbf16>, vector<16x64xf32> -> vector<16x64xf32>
    %c0_164 = arith.constant 0 : index
    %c2_165 = arith.constant 2 : index
    %206 = vector.load %arg3[%c0_164, %c2_165] : memref<32x128xf32, #tpu.memory_space<vmem>>, vector<16x1xf32>
    %207 = vector.broadcast %206 : vector<16x1xf32> to vector<16x64xf32>
    %208 = arith.addf %205, %207 : vector<16x64xf32>
    %cst_166 = arith.constant 0.000000e+00 : f32
    %209 = vector.broadcast %cst_166 : f32 to vector<16x64xf32>
    %210 = arith.maximumf %208, %209 : vector<16x64xf32>
    %cst_167 = arith.constant 0.000000e+00 : f32
    %211 = vector.broadcast %cst_167 : f32 to vector<16x9xf32>
    %c0_168 = arith.constant 0 : index
    %c119_169 = arith.constant 119 : index
    %212 = vector.load %arg5[%c0_168, %c119_169] : memref<48x512xf32, #tpu.memory_space<vmem>>, vector<16x9xf32>
    tpu.vector_store %arg5[%c0_168, %c119_169], %211 {strides = array<i32>} : memref<48x512xf32, #tpu.memory_space<vmem>>, vector<16x9xf32>,
    %c0_170 = arith.constant 0 : index
    %c192_171 = arith.constant 192 : index
    %213 = vector.load %arg5[%c0_170, %c192_171] : memref<48x512xf32, #tpu.memory_space<vmem>>, vector<16x9xf32>
    tpu.vector_store %arg5[%c0_170, %c192_171], %211 {strides = array<i32>} : memref<48x512xf32, #tpu.memory_space<vmem>>, vector<16x9xf32>,
    %c0_172 = arith.constant 0 : index
    %c128_173 = arith.constant 128 : index
    %214 = vector.load %arg5[%c0_172, %c128_173] : memref<48x512xf32, #tpu.memory_space<vmem>>, vector<16x64xf32>
    tpu.vector_store %arg5[%c0_172, %c128_173], %210 {strides = array<i32>} : memref<48x512xf32, #tpu.memory_space<vmem>>, vector<16x64xf32>,
    %c0_174 = arith.constant 0 : index
    %c119_175 = arith.constant 119 : index
    %215 = vector.load %arg5[%c0_174, %c119_175] : memref<48x512xf32, #tpu.memory_space<vmem>>, vector<16x64xf32>
    %cst_176 = arith.constant 0.000000e+00 : f32
    %216 = vector.shape_cast %157 : vector<1x64xi1> to vector<1x64xi1>
    %217 = vector.broadcast %216 : vector<1x64xi1> to vector<16x64xi1>
    %218 = vector.broadcast %cst_176 : f32 to vector<16x64xf32>
    %219 = arith.select %217, %215, %218 : vector<16x64xi1>, vector<16x64xf32>
    %c0_177 = arith.constant 0 : index
    %c0_178 = arith.constant 0 : index
    %220 = vector.load %arg6[%c0_177, %c0_178] : memref<432x256xf32, #tpu.memory_space<vmem>>, vector<16x64xf32>
    tpu.vector_store %arg6[%c0_177, %c0_178], %219 {strides = array<i32>} : memref<432x256xf32, #tpu.memory_space<vmem>>, vector<16x64xf32>,
    %c0_179 = arith.constant 0 : index
    %c120_180 = arith.constant 120 : index
    %221 = vector.load %arg5[%c0_179, %c120_180] : memref<48x512xf32, #tpu.memory_space<vmem>>, vector<16x64xf32>
    %c16_181 = arith.constant 16 : index
    %c0_182 = arith.constant 0 : index
    %222 = vector.load %arg6[%c16_181, %c0_182] : memref<432x256xf32, #tpu.memory_space<vmem>>, vector<16x64xf32>
    tpu.vector_store %arg6[%c16_181, %c0_182], %221 {strides = array<i32>} : memref<432x256xf32, #tpu.memory_space<vmem>>, vector<16x64xf32>,
    %c0_183 = arith.constant 0 : index
    %c121_184 = arith.constant 121 : index
    %223 = vector.load %arg5[%c0_183, %c121_184] : memref<48x512xf32, #tpu.memory_space<vmem>>, vector<16x64xf32>
    %cst_185 = arith.constant 0.000000e+00 : f32
    %224 = vector.shape_cast %159 : vector<1x64xi1> to vector<1x64xi1>
    %225 = vector.broadcast %224 : vector<1x64xi1> to vector<16x64xi1>
    %226 = vector.broadcast %cst_185 : f32 to vector<16x64xf32>
    %227 = arith.select %225, %223, %226 : vector<16x64xi1>, vector<16x64xf32>
    %c32_186 = arith.constant 32 : index
    %c0_187 = arith.constant 0 : index
    %228 = vector.load %arg6[%c32_186, %c0_187] : memref<432x256xf32, #tpu.memory_space<vmem>>, vector<16x64xf32>
    tpu.vector_store %arg6[%c32_186, %c0_187], %227 {strides = array<i32>} : memref<432x256xf32, #tpu.memory_space<vmem>>, vector<16x64xf32>,
    %c0_188 = arith.constant 0 : index
    %c127_189 = arith.constant 127 : index
    %229 = vector.load %arg5[%c0_188, %c127_189] : memref<48x512xf32, #tpu.memory_space<vmem>>, vector<16x64xf32>
    %cst_190 = arith.constant 0.000000e+00 : f32
    %230 = vector.shape_cast %157 : vector<1x64xi1> to vector<1x64xi1>
    %231 = vector.broadcast %230 : vector<1x64xi1> to vector<16x64xi1>
    %232 = vector.broadcast %cst_190 : f32 to vector<16x64xf32>
    %233 = arith.select %231, %229, %232 : vector<16x64xi1>, vector<16x64xf32>
    %c48_191 = arith.constant 48 : index
    %c0_192 = arith.constant 0 : index
    %234 = vector.load %arg6[%c48_191, %c0_192] : memref<432x256xf32, #tpu.memory_space<vmem>>, vector<16x64xf32>
    tpu.vector_store %arg6[%c48_191, %c0_192], %233 {strides = array<i32>} : memref<432x256xf32, #tpu.memory_space<vmem>>, vector<16x64xf32>,
    %c0_193 = arith.constant 0 : index
    %c128_194 = arith.constant 128 : index
    %235 = vector.load %arg5[%c0_193, %c128_194] : memref<48x512xf32, #tpu.memory_space<vmem>>, vector<16x64xf32>
    %c64_195 = arith.constant 64 : index
    %c0_196 = arith.constant 0 : index
    %236 = vector.load %arg6[%c64_195, %c0_196] : memref<432x256xf32, #tpu.memory_space<vmem>>, vector<16x64xf32>
    tpu.vector_store %arg6[%c64_195, %c0_196], %235 {strides = array<i32>} : memref<432x256xf32, #tpu.memory_space<vmem>>, vector<16x64xf32>,
    %c0_197 = arith.constant 0 : index
    %c129_198 = arith.constant 129 : index
    %237 = vector.load %arg5[%c0_197, %c129_198] : memref<48x512xf32, #tpu.memory_space<vmem>>, vector<16x64xf32>
    %cst_199 = arith.constant 0.000000e+00 : f32
    %238 = vector.shape_cast %159 : vector<1x64xi1> to vector<1x64xi1>
    %239 = vector.broadcast %238 : vector<1x64xi1> to vector<16x64xi1>
    %240 = vector.broadcast %cst_199 : f32 to vector<16x64xf32>
    %241 = arith.select %239, %237, %240 : vector<16x64xi1>, vector<16x64xf32>
    %c80 = arith.constant 80 : index
    %c0_200 = arith.constant 0 : index
    %242 = vector.load %arg6[%c80, %c0_200] : memref<432x256xf32, #tpu.memory_space<vmem>>, vector<16x64xf32>
    tpu.vector_store %arg6[%c80, %c0_200], %241 {strides = array<i32>} : memref<432x256xf32, #tpu.memory_space<vmem>>, vector<16x64xf32>,
    %c0_201 = arith.constant 0 : index
    %c135_202 = arith.constant 135 : index
    %243 = vector.load %arg5[%c0_201, %c135_202] : memref<48x512xf32, #tpu.memory_space<vmem>>, vector<16x64xf32>
    %cst_203 = arith.constant 0.000000e+00 : f32
    %244 = vector.shape_cast %157 : vector<1x64xi1> to vector<1x64xi1>
    %245 = vector.broadcast %244 : vector<1x64xi1> to vector<16x64xi1>
    %246 = vector.broadcast %cst_203 : f32 to vector<16x64xf32>
    %247 = arith.select %245, %243, %246 : vector<16x64xi1>, vector<16x64xf32>
    %c96 = arith.constant 96 : index
    %c0_204 = arith.constant 0 : index
    %248 = vector.load %arg6[%c96, %c0_204] : memref<432x256xf32, #tpu.memory_space<vmem>>, vector<16x64xf32>
    tpu.vector_store %arg6[%c96, %c0_204], %247 {strides = array<i32>} : memref<432x256xf32, #tpu.memory_space<vmem>>, vector<16x64xf32>,
    %c0_205 = arith.constant 0 : index
    %c136_206 = arith.constant 136 : index
    %249 = vector.load %arg5[%c0_205, %c136_206] : memref<48x512xf32, #tpu.memory_space<vmem>>, vector<16x64xf32>
    %c112_207 = arith.constant 112 : index
    %c0_208 = arith.constant 0 : index
    %250 = vector.load %arg6[%c112_207, %c0_208] : memref<432x256xf32, #tpu.memory_space<vmem>>, vector<16x64xf32>
    tpu.vector_store %arg6[%c112_207, %c0_208], %249 {strides = array<i32>} : memref<432x256xf32, #tpu.memory_space<vmem>>, vector<16x64xf32>,
    %c0_209 = arith.constant 0 : index
    %c137_210 = arith.constant 137 : index
    %251 = vector.load %arg5[%c0_209, %c137_210] : memref<48x512xf32, #tpu.memory_space<vmem>>, vector<16x64xf32>
    %cst_211 = arith.constant 0.000000e+00 : f32
    %252 = vector.shape_cast %159 : vector<1x64xi1> to vector<1x64xi1>
    %253 = vector.broadcast %252 : vector<1x64xi1> to vector<16x64xi1>
    %254 = vector.broadcast %cst_211 : f32 to vector<16x64xf32>
    %255 = arith.select %253, %251, %254 : vector<16x64xi1>, vector<16x64xf32>
    %c128_212 = arith.constant 128 : index
    %c0_213 = arith.constant 0 : index
    %256 = vector.load %arg6[%c128_212, %c0_213] : memref<432x256xf32, #tpu.memory_space<vmem>>, vector<16x64xf32>
    tpu.vector_store %arg6[%c128_212, %c0_213], %255 {strides = array<i32>} : memref<432x256xf32, #tpu.memory_space<vmem>>, vector<16x64xf32>,
    %c304 = arith.constant 304 : index
    %c0_214 = arith.constant 0 : index
    %257 = vector.load %arg2[%c304, %c0_214] : memref<1040x512xbf16, #tpu.memory_space<vmem>>, vector<16x144xbf16>
    %c0_215 = arith.constant 0 : index
    %c0_216 = arith.constant 0 : index
    %258 = vector.load %arg6[%c0_215, %c0_216] : memref<432x256xf32, #tpu.memory_space<vmem>>, vector<144x64xf32>
    %259 = arith.truncf %258 : vector<144x64xf32> to vector<144x64xbf16>
    %cst_217 = arith.constant dense<0.000000e+00> : vector<16x64xf32>
    %260 = tpu.matmul %257, %259, %cst_217 {dimension_numbers = #tpu.dot_dimension_numbers<[1], [0], [0], [1], [0, 0, 1, 1], [], []>} : vector<16x144xbf16>, vector<144x64xbf16>, vector<16x64xf32> -> vector<16x64xf32>
    %c0_218 = arith.constant 0 : index
    %c3_219 = arith.constant 3 : index
    %261 = vector.load %arg3[%c0_218, %c3_219] : memref<32x128xf32, #tpu.memory_space<vmem>>, vector<16x1xf32>
    %262 = vector.broadcast %261 : vector<16x1xf32> to vector<16x64xf32>
    %263 = arith.addf %260, %262 : vector<16x64xf32>
    %cst_220 = arith.constant 0.000000e+00 : f32
    %264 = vector.broadcast %cst_220 : f32 to vector<16x64xf32>
    %265 = arith.maximumf %263, %264 : vector<16x64xf32>
    %cst_221 = arith.constant 0.000000e+00 : f32
    %266 = vector.broadcast %cst_221 : f32 to vector<16x9xf32>
    %c0_222 = arith.constant 0 : index
    %c119_223 = arith.constant 119 : index
    %267 = vector.load %arg5[%c0_222, %c119_223] : memref<48x512xf32, #tpu.memory_space<vmem>>, vector<16x9xf32>
    tpu.vector_store %arg5[%c0_222, %c119_223], %266 {strides = array<i32>} : memref<48x512xf32, #tpu.memory_space<vmem>>, vector<16x9xf32>,
    %c0_224 = arith.constant 0 : index
    %c192_225 = arith.constant 192 : index
    %268 = vector.load %arg5[%c0_224, %c192_225] : memref<48x512xf32, #tpu.memory_space<vmem>>, vector<16x9xf32>
    tpu.vector_store %arg5[%c0_224, %c192_225], %266 {strides = array<i32>} : memref<48x512xf32, #tpu.memory_space<vmem>>, vector<16x9xf32>,
    %c0_226 = arith.constant 0 : index
    %c128_227 = arith.constant 128 : index
    %269 = vector.load %arg5[%c0_226, %c128_227] : memref<48x512xf32, #tpu.memory_space<vmem>>, vector<16x64xf32>
    tpu.vector_store %arg5[%c0_226, %c128_227], %265 {strides = array<i32>} : memref<48x512xf32, #tpu.memory_space<vmem>>, vector<16x64xf32>,
    %c0_228 = arith.constant 0 : index
    %c128_229 = arith.constant 128 : index
    %270 = vector.load %arg5[%c0_228, %c128_229] : memref<48x512xf32, #tpu.memory_space<vmem>>, vector<16x64xf32>
    %c0_230 = arith.constant 0 : index
    %c129_231 = arith.constant 129 : index
    %271 = vector.load %arg5[%c0_230, %c129_231] : memref<48x512xf32, #tpu.memory_space<vmem>>, vector<16x64xf32>
    %c0_232 = arith.constant 0 : index
    %c136_233 = arith.constant 136 : index
    %272 = vector.load %arg5[%c0_232, %c136_233] : memref<48x512xf32, #tpu.memory_space<vmem>>, vector<16x64xf32>
    %c0_234 = arith.constant 0 : index
    %c137_235 = arith.constant 137 : index
    %273 = vector.load %arg5[%c0_234, %c137_235] : memref<48x512xf32, #tpu.memory_space<vmem>>, vector<16x64xf32>
    %274 = arith.maximumf %270, %271 : vector<16x64xf32>
    %275 = arith.maximumf %272, %273 : vector<16x64xf32>
    %276 = arith.maximumf %274, %275 : vector<16x64xf32>
    %c320 = arith.constant 320 : index
    %c0_236 = arith.constant 0 : index
    %277 = vector.load %arg2[%c320, %c0_236] : memref<1040x512xbf16, #tpu.memory_space<vmem>>, vector<64x16xbf16>
    %278 = arith.truncf %276 : vector<16x64xf32> to vector<16x64xbf16>
    %cst_237 = arith.constant dense<0.000000e+00> : vector<16x16xf32>
    %279 = tpu.matmul %278, %277, %cst_237 {dimension_numbers = #tpu.dot_dimension_numbers<[1], [0], [0], [1], [0, 0, 1, 1], [], []>} : vector<16x64xbf16>, vector<64x16xbf16>, vector<16x16xf32> -> vector<16x16xf32>
    %cst_238 = arith.constant 0.000000e+00 : f32
    %280 = vector.broadcast %cst_238 : f32 to vector<16x5xf32>
    %c0_239 = arith.constant 0 : index
    %c123 = arith.constant 123 : index
    %281 = vector.load %arg5[%c0_239, %c123] : memref<48x512xf32, #tpu.memory_space<vmem>>, vector<16x5xf32>
    tpu.vector_store %arg5[%c0_239, %c123], %280 {strides = array<i32>} : memref<48x512xf32, #tpu.memory_space<vmem>>, vector<16x5xf32>,
    %c0_240 = arith.constant 0 : index
    %c144_241 = arith.constant 144 : index
    %282 = vector.load %arg5[%c0_240, %c144_241] : memref<48x512xf32, #tpu.memory_space<vmem>>, vector<16x5xf32>
    tpu.vector_store %arg5[%c0_240, %c144_241], %280 {strides = array<i32>} : memref<48x512xf32, #tpu.memory_space<vmem>>, vector<16x5xf32>,
    %c0_242 = arith.constant 0 : index
    %c128_243 = arith.constant 128 : index
    %283 = vector.load %arg5[%c0_242, %c128_243] : memref<48x512xf32, #tpu.memory_space<vmem>>, vector<16x16xf32>
    tpu.vector_store %arg5[%c0_242, %c128_243], %279 {strides = array<i32>} : memref<48x512xf32, #tpu.memory_space<vmem>>, vector<16x16xf32>,
    %284 = tpu.iota {dimensions = array<i32: 1>} : vector<1x16xi32>
    %c4_i32 = arith.constant 4 : i32
    %c0_i32_244 = arith.constant 0 : i32
    %285 = arith.cmpi eq, %c4_i32, %c0_i32_244 : i32
    %c1_i32_245 = arith.constant 1 : i32
    %286 = arith.select %285, %c1_i32_245, %c4_i32 : i32
    %287 = vector.broadcast %286 : i32 to vector<1x16xi32>
    %288 = arith.remsi %284, %287 : vector<1x16xi32>
    %c0_i32_246 = arith.constant 0 : i32
    %289 = vector.broadcast %c0_i32_246 : i32 to vector<1x16xi32>
    %290 = arith.cmpi ne, %288, %289 : vector<1x16xi32>
    %c0_i32_247 = arith.constant 0 : i32
    %291 = vector.broadcast %c0_i32_247 : i32 to vector<1x16xi32>
    %292 = arith.cmpi slt, %288, %291 : vector<1x16xi32>
    %c0_i32_248 = arith.constant 0 : i32
    %293 = arith.cmpi slt, %286, %c0_i32_248 : i32
    %294 = vector.broadcast %293 : i1 to vector<1x16xi1>
    %295 = vector.broadcast %294 : vector<1x16xi1> to vector<1x16xi1>
    %296 = arith.xori %292, %295 : vector<1x16xi1>
    %297 = arith.andi %296, %290 : vector<1x16xi1>
    %298 = vector.broadcast %286 : i32 to vector<1x16xi32>
    %299 = arith.addi %288, %298 : vector<1x16xi32>
    %300 = arith.select %297, %299, %288 : vector<1x16xi1>, vector<1x16xi32>
    %c0_i32_249 = arith.constant 0 : i32
    %301 = vector.broadcast %c0_i32_249 : i32 to vector<1x16xi32>
    %302 = arith.cmpi sgt, %300, %301 : vector<1x16xi32>
    %c3_i32 = arith.constant 3 : i32
    %303 = vector.broadcast %c3_i32 : i32 to vector<1x16xi32>
    %304 = arith.cmpi slt, %300, %303 : vector<1x16xi32>
    %c0_250 = arith.constant 0 : index
    %c123_251 = arith.constant 123 : index
    %305 = vector.load %arg5[%c0_250, %c123_251] : memref<48x512xf32, #tpu.memory_space<vmem>>, vector<16x16xf32>
    %cst_252 = arith.constant 0.000000e+00 : f32
    %306 = vector.shape_cast %302 : vector<1x16xi1> to vector<1x16xi1>
    %307 = vector.broadcast %306 : vector<1x16xi1> to vector<16x16xi1>
    %308 = vector.broadcast %cst_252 : f32 to vector<16x16xf32>
    %309 = arith.select %307, %305, %308 : vector<16x16xi1>, vector<16x16xf32>
    %c0_253 = arith.constant 0 : index
    %c0_254 = arith.constant 0 : index
    %310 = vector.load %arg6[%c0_253, %c0_254] : memref<432x256xf32, #tpu.memory_space<vmem>>, vector<16x16xf32>
    tpu.vector_store %arg6[%c0_253, %c0_254], %309 {strides = array<i32>} : memref<432x256xf32, #tpu.memory_space<vmem>>, vector<16x16xf32>,
    %c0_255 = arith.constant 0 : index
    %c124 = arith.constant 124 : index
    %311 = vector.load %arg5[%c0_255, %c124] : memref<48x512xf32, #tpu.memory_space<vmem>>, vector<16x16xf32>
    %c16_256 = arith.constant 16 : index
    %c0_257 = arith.constant 0 : index
    %312 = vector.load %arg6[%c16_256, %c0_257] : memref<432x256xf32, #tpu.memory_space<vmem>>, vector<16x16xf32>
    tpu.vector_store %arg6[%c16_256, %c0_257], %311 {strides = array<i32>} : memref<432x256xf32, #tpu.memory_space<vmem>>, vector<16x16xf32>,
    %c0_258 = arith.constant 0 : index
    %c125 = arith.constant 125 : index
    %313 = vector.load %arg5[%c0_258, %c125] : memref<48x512xf32, #tpu.memory_space<vmem>>, vector<16x16xf32>
    %cst_259 = arith.constant 0.000000e+00 : f32
    %314 = vector.shape_cast %304 : vector<1x16xi1> to vector<1x16xi1>
    %315 = vector.broadcast %314 : vector<1x16xi1> to vector<16x16xi1>
    %316 = vector.broadcast %cst_259 : f32 to vector<16x16xf32>
    %317 = arith.select %315, %313, %316 : vector<16x16xi1>, vector<16x16xf32>
    %c32_260 = arith.constant 32 : index
    %c0_261 = arith.constant 0 : index
    %318 = vector.load %arg6[%c32_260, %c0_261] : memref<432x256xf32, #tpu.memory_space<vmem>>, vector<16x16xf32>
    tpu.vector_store %arg6[%c32_260, %c0_261], %317 {strides = array<i32>} : memref<432x256xf32, #tpu.memory_space<vmem>>, vector<16x16xf32>,
    %c0_262 = arith.constant 0 : index
    %c127_263 = arith.constant 127 : index
    %319 = vector.load %arg5[%c0_262, %c127_263] : memref<48x512xf32, #tpu.memory_space<vmem>>, vector<16x16xf32>
    %cst_264 = arith.constant 0.000000e+00 : f32
    %320 = vector.shape_cast %302 : vector<1x16xi1> to vector<1x16xi1>
    %321 = vector.broadcast %320 : vector<1x16xi1> to vector<16x16xi1>
    %322 = vector.broadcast %cst_264 : f32 to vector<16x16xf32>
    %323 = arith.select %321, %319, %322 : vector<16x16xi1>, vector<16x16xf32>
    %c48_265 = arith.constant 48 : index
    %c0_266 = arith.constant 0 : index
    %324 = vector.load %arg6[%c48_265, %c0_266] : memref<432x256xf32, #tpu.memory_space<vmem>>, vector<16x16xf32>
    tpu.vector_store %arg6[%c48_265, %c0_266], %323 {strides = array<i32>} : memref<432x256xf32, #tpu.memory_space<vmem>>, vector<16x16xf32>,
    %c0_267 = arith.constant 0 : index
    %c128_268 = arith.constant 128 : index
    %325 = vector.load %arg5[%c0_267, %c128_268] : memref<48x512xf32, #tpu.memory_space<vmem>>, vector<16x16xf32>
    %c64_269 = arith.constant 64 : index
    %c0_270 = arith.constant 0 : index
    %326 = vector.load %arg6[%c64_269, %c0_270] : memref<432x256xf32, #tpu.memory_space<vmem>>, vector<16x16xf32>
    tpu.vector_store %arg6[%c64_269, %c0_270], %325 {strides = array<i32>} : memref<432x256xf32, #tpu.memory_space<vmem>>, vector<16x16xf32>,
    %c0_271 = arith.constant 0 : index
    %c129_272 = arith.constant 129 : index
    %327 = vector.load %arg5[%c0_271, %c129_272] : memref<48x512xf32, #tpu.memory_space<vmem>>, vector<16x16xf32>
    %cst_273 = arith.constant 0.000000e+00 : f32
    %328 = vector.shape_cast %304 : vector<1x16xi1> to vector<1x16xi1>
    %329 = vector.broadcast %328 : vector<1x16xi1> to vector<16x16xi1>
    %330 = vector.broadcast %cst_273 : f32 to vector<16x16xf32>
    %331 = arith.select %329, %327, %330 : vector<16x16xi1>, vector<16x16xf32>
    %c80_274 = arith.constant 80 : index
    %c0_275 = arith.constant 0 : index
    %332 = vector.load %arg6[%c80_274, %c0_275] : memref<432x256xf32, #tpu.memory_space<vmem>>, vector<16x16xf32>
    tpu.vector_store %arg6[%c80_274, %c0_275], %331 {strides = array<i32>} : memref<432x256xf32, #tpu.memory_space<vmem>>, vector<16x16xf32>,
    %c0_276 = arith.constant 0 : index
    %c131 = arith.constant 131 : index
    %333 = vector.load %arg5[%c0_276, %c131] : memref<48x512xf32, #tpu.memory_space<vmem>>, vector<16x16xf32>
    %cst_277 = arith.constant 0.000000e+00 : f32
    %334 = vector.shape_cast %302 : vector<1x16xi1> to vector<1x16xi1>
    %335 = vector.broadcast %334 : vector<1x16xi1> to vector<16x16xi1>
    %336 = vector.broadcast %cst_277 : f32 to vector<16x16xf32>
    %337 = arith.select %335, %333, %336 : vector<16x16xi1>, vector<16x16xf32>
    %c96_278 = arith.constant 96 : index
    %c0_279 = arith.constant 0 : index
    %338 = vector.load %arg6[%c96_278, %c0_279] : memref<432x256xf32, #tpu.memory_space<vmem>>, vector<16x16xf32>
    tpu.vector_store %arg6[%c96_278, %c0_279], %337 {strides = array<i32>} : memref<432x256xf32, #tpu.memory_space<vmem>>, vector<16x16xf32>,
    %c0_280 = arith.constant 0 : index
    %c132 = arith.constant 132 : index
    %339 = vector.load %arg5[%c0_280, %c132] : memref<48x512xf32, #tpu.memory_space<vmem>>, vector<16x16xf32>
    %c112_281 = arith.constant 112 : index
    %c0_282 = arith.constant 0 : index
    %340 = vector.load %arg6[%c112_281, %c0_282] : memref<432x256xf32, #tpu.memory_space<vmem>>, vector<16x16xf32>
    tpu.vector_store %arg6[%c112_281, %c0_282], %339 {strides = array<i32>} : memref<432x256xf32, #tpu.memory_space<vmem>>, vector<16x16xf32>,
    %c0_283 = arith.constant 0 : index
    %c133 = arith.constant 133 : index
    %341 = vector.load %arg5[%c0_283, %c133] : memref<48x512xf32, #tpu.memory_space<vmem>>, vector<16x16xf32>
    %cst_284 = arith.constant 0.000000e+00 : f32
    %342 = vector.shape_cast %304 : vector<1x16xi1> to vector<1x16xi1>
    %343 = vector.broadcast %342 : vector<1x16xi1> to vector<16x16xi1>
    %344 = vector.broadcast %cst_284 : f32 to vector<16x16xf32>
    %345 = arith.select %343, %341, %344 : vector<16x16xi1>, vector<16x16xf32>
    %c128_285 = arith.constant 128 : index
    %c0_286 = arith.constant 0 : index
    %346 = vector.load %arg6[%c128_285, %c0_286] : memref<432x256xf32, #tpu.memory_space<vmem>>, vector<16x16xf32>
    tpu.vector_store %arg6[%c128_285, %c0_286], %345 {strides = array<i32>} : memref<432x256xf32, #tpu.memory_space<vmem>>, vector<16x16xf32>,
    %c384_287 = arith.constant 384 : index
    %c0_288 = arith.constant 0 : index
    %347 = vector.load %arg2[%c384_287, %c0_288] : memref<1040x512xbf16, #tpu.memory_space<vmem>>, vector<32x144xbf16>
    %c0_289 = arith.constant 0 : index
    %c0_290 = arith.constant 0 : index
    %348 = vector.load %arg6[%c0_289, %c0_290] : memref<432x256xf32, #tpu.memory_space<vmem>>, vector<144x16xf32>
    %349 = arith.truncf %348 : vector<144x16xf32> to vector<144x16xbf16>
    %cst_291 = arith.constant dense<0.000000e+00> : vector<32x16xf32>
    %350 = tpu.matmul %347, %349, %cst_291 {dimension_numbers = #tpu.dot_dimension_numbers<[1], [0], [0], [1], [0, 0, 1, 1], [], []>} : vector<32x144xbf16>, vector<144x16xbf16>, vector<32x16xf32> -> vector<32x16xf32>
    %c0_292 = arith.constant 0 : index
    %c4_293 = arith.constant 4 : index
    %351 = vector.load %arg3[%c0_292, %c4_293] : memref<32x128xf32, #tpu.memory_space<vmem>>, vector<32x1xf32>
    %352 = vector.broadcast %351 : vector<32x1xf32> to vector<32x16xf32>
    %353 = arith.addf %350, %352 : vector<32x16xf32>
    %cst_294 = arith.constant 0.000000e+00 : f32
    %354 = vector.broadcast %cst_294 : f32 to vector<32x16xf32>
    %355 = arith.maximumf %353, %354 : vector<32x16xf32>
    %cst_295 = arith.constant 0.000000e+00 : f32
    %356 = vector.broadcast %cst_295 : f32 to vector<32x5xf32>
    %c0_296 = arith.constant 0 : index
    %c123_297 = arith.constant 123 : index
    %357 = vector.load %arg5[%c0_296, %c123_297] : memref<48x512xf32, #tpu.memory_space<vmem>>, vector<32x5xf32>
    tpu.vector_store %arg5[%c0_296, %c123_297], %356 {strides = array<i32>} : memref<48x512xf32, #tpu.memory_space<vmem>>, vector<32x5xf32>,
    %c0_298 = arith.constant 0 : index
    %c144_299 = arith.constant 144 : index
    %358 = vector.load %arg5[%c0_298, %c144_299] : memref<48x512xf32, #tpu.memory_space<vmem>>, vector<32x5xf32>
    tpu.vector_store %arg5[%c0_298, %c144_299], %356 {strides = array<i32>} : memref<48x512xf32, #tpu.memory_space<vmem>>, vector<32x5xf32>,
    %c0_300 = arith.constant 0 : index
    %c128_301 = arith.constant 128 : index
    %359 = vector.load %arg5[%c0_300, %c128_301] : memref<48x512xf32, #tpu.memory_space<vmem>>, vector<32x16xf32>
    tpu.vector_store %arg5[%c0_300, %c128_301], %355 {strides = array<i32>} : memref<48x512xf32, #tpu.memory_space<vmem>>, vector<32x16xf32>,
    %c0_302 = arith.constant 0 : index
    %c123_303 = arith.constant 123 : index
    %360 = vector.load %arg5[%c0_302, %c123_303] : memref<48x512xf32, #tpu.memory_space<vmem>>, vector<32x16xf32>
    %cst_304 = arith.constant 0.000000e+00 : f32
    %361 = vector.shape_cast %302 : vector<1x16xi1> to vector<1x16xi1>
    %362 = vector.broadcast %361 : vector<1x16xi1> to vector<32x16xi1>
    %363 = vector.broadcast %cst_304 : f32 to vector<32x16xf32>
    %364 = arith.select %362, %360, %363 : vector<32x16xi1>, vector<32x16xf32>
    %c0_305 = arith.constant 0 : index
    %c0_306 = arith.constant 0 : index
    %365 = vector.load %arg6[%c0_305, %c0_306] : memref<432x256xf32, #tpu.memory_space<vmem>>, vector<32x16xf32>
    tpu.vector_store %arg6[%c0_305, %c0_306], %364 {strides = array<i32>} : memref<432x256xf32, #tpu.memory_space<vmem>>, vector<32x16xf32>,
    %c0_307 = arith.constant 0 : index
    %c124_308 = arith.constant 124 : index
    %366 = vector.load %arg5[%c0_307, %c124_308] : memref<48x512xf32, #tpu.memory_space<vmem>>, vector<32x16xf32>
    %c32_309 = arith.constant 32 : index
    %c0_310 = arith.constant 0 : index
    %367 = vector.load %arg6[%c32_309, %c0_310] : memref<432x256xf32, #tpu.memory_space<vmem>>, vector<32x16xf32>
    tpu.vector_store %arg6[%c32_309, %c0_310], %366 {strides = array<i32>} : memref<432x256xf32, #tpu.memory_space<vmem>>, vector<32x16xf32>,
    %c0_311 = arith.constant 0 : index
    %c125_312 = arith.constant 125 : index
    %368 = vector.load %arg5[%c0_311, %c125_312] : memref<48x512xf32, #tpu.memory_space<vmem>>, vector<32x16xf32>
    %cst_313 = arith.constant 0.000000e+00 : f32
    %369 = vector.shape_cast %304 : vector<1x16xi1> to vector<1x16xi1>
    %370 = vector.broadcast %369 : vector<1x16xi1> to vector<32x16xi1>
    %371 = vector.broadcast %cst_313 : f32 to vector<32x16xf32>
    %372 = arith.select %370, %368, %371 : vector<32x16xi1>, vector<32x16xf32>
    %c64_314 = arith.constant 64 : index
    %c0_315 = arith.constant 0 : index
    %373 = vector.load %arg6[%c64_314, %c0_315] : memref<432x256xf32, #tpu.memory_space<vmem>>, vector<32x16xf32>
    tpu.vector_store %arg6[%c64_314, %c0_315], %372 {strides = array<i32>} : memref<432x256xf32, #tpu.memory_space<vmem>>, vector<32x16xf32>,
    %c0_316 = arith.constant 0 : index
    %c127_317 = arith.constant 127 : index
    %374 = vector.load %arg5[%c0_316, %c127_317] : memref<48x512xf32, #tpu.memory_space<vmem>>, vector<32x16xf32>
    %cst_318 = arith.constant 0.000000e+00 : f32
    %375 = vector.shape_cast %302 : vector<1x16xi1> to vector<1x16xi1>
    %376 = vector.broadcast %375 : vector<1x16xi1> to vector<32x16xi1>
    %377 = vector.broadcast %cst_318 : f32 to vector<32x16xf32>
    %378 = arith.select %376, %374, %377 : vector<32x16xi1>, vector<32x16xf32>
    %c96_319 = arith.constant 96 : index
    %c0_320 = arith.constant 0 : index
    %379 = vector.load %arg6[%c96_319, %c0_320] : memref<432x256xf32, #tpu.memory_space<vmem>>, vector<32x16xf32>
    tpu.vector_store %arg6[%c96_319, %c0_320], %378 {strides = array<i32>} : memref<432x256xf32, #tpu.memory_space<vmem>>, vector<32x16xf32>,
    %c0_321 = arith.constant 0 : index
    %c128_322 = arith.constant 128 : index
    %380 = vector.load %arg5[%c0_321, %c128_322] : memref<48x512xf32, #tpu.memory_space<vmem>>, vector<32x16xf32>
    %c128_323 = arith.constant 128 : index
    %c0_324 = arith.constant 0 : index
    %381 = vector.load %arg6[%c128_323, %c0_324] : memref<432x256xf32, #tpu.memory_space<vmem>>, vector<32x16xf32>
    tpu.vector_store %arg6[%c128_323, %c0_324], %380 {strides = array<i32>} : memref<432x256xf32, #tpu.memory_space<vmem>>, vector<32x16xf32>,
    %c0_325 = arith.constant 0 : index
    %c129_326 = arith.constant 129 : index
    %382 = vector.load %arg5[%c0_325, %c129_326] : memref<48x512xf32, #tpu.memory_space<vmem>>, vector<32x16xf32>
    %cst_327 = arith.constant 0.000000e+00 : f32
    %383 = vector.shape_cast %304 : vector<1x16xi1> to vector<1x16xi1>
    %384 = vector.broadcast %383 : vector<1x16xi1> to vector<32x16xi1>
    %385 = vector.broadcast %cst_327 : f32 to vector<32x16xf32>
    %386 = arith.select %384, %382, %385 : vector<32x16xi1>, vector<32x16xf32>
    %c160 = arith.constant 160 : index
    %c0_328 = arith.constant 0 : index
    %387 = vector.load %arg6[%c160, %c0_328] : memref<432x256xf32, #tpu.memory_space<vmem>>, vector<32x16xf32>
    tpu.vector_store %arg6[%c160, %c0_328], %386 {strides = array<i32>} : memref<432x256xf32, #tpu.memory_space<vmem>>, vector<32x16xf32>,
    %c0_329 = arith.constant 0 : index
    %c131_330 = arith.constant 131 : index
    %388 = vector.load %arg5[%c0_329, %c131_330] : memref<48x512xf32, #tpu.memory_space<vmem>>, vector<32x16xf32>
    %cst_331 = arith.constant 0.000000e+00 : f32
    %389 = vector.shape_cast %302 : vector<1x16xi1> to vector<1x16xi1>
    %390 = vector.broadcast %389 : vector<1x16xi1> to vector<32x16xi1>
    %391 = vector.broadcast %cst_331 : f32 to vector<32x16xf32>
    %392 = arith.select %390, %388, %391 : vector<32x16xi1>, vector<32x16xf32>
    %c192_332 = arith.constant 192 : index
    %c0_333 = arith.constant 0 : index
    %393 = vector.load %arg6[%c192_332, %c0_333] : memref<432x256xf32, #tpu.memory_space<vmem>>, vector<32x16xf32>
    tpu.vector_store %arg6[%c192_332, %c0_333], %392 {strides = array<i32>} : memref<432x256xf32, #tpu.memory_space<vmem>>, vector<32x16xf32>,
    %c0_334 = arith.constant 0 : index
    %c132_335 = arith.constant 132 : index
    %394 = vector.load %arg5[%c0_334, %c132_335] : memref<48x512xf32, #tpu.memory_space<vmem>>, vector<32x16xf32>
    %c224 = arith.constant 224 : index
    %c0_336 = arith.constant 0 : index
    %395 = vector.load %arg6[%c224, %c0_336] : memref<432x256xf32, #tpu.memory_space<vmem>>, vector<32x16xf32>
    tpu.vector_store %arg6[%c224, %c0_336], %394 {strides = array<i32>} : memref<432x256xf32, #tpu.memory_space<vmem>>, vector<32x16xf32>,
    %c0_337 = arith.constant 0 : index
    %c133_338 = arith.constant 133 : index
    %396 = vector.load %arg5[%c0_337, %c133_338] : memref<48x512xf32, #tpu.memory_space<vmem>>, vector<32x16xf32>
    %cst_339 = arith.constant 0.000000e+00 : f32
    %397 = vector.shape_cast %304 : vector<1x16xi1> to vector<1x16xi1>
    %398 = vector.broadcast %397 : vector<1x16xi1> to vector<32x16xi1>
    %399 = vector.broadcast %cst_339 : f32 to vector<32x16xf32>
    %400 = arith.select %398, %396, %399 : vector<32x16xi1>, vector<32x16xf32>
    %c256 = arith.constant 256 : index
    %c0_340 = arith.constant 0 : index
    %401 = vector.load %arg6[%c256, %c0_340] : memref<432x256xf32, #tpu.memory_space<vmem>>, vector<32x16xf32>
    tpu.vector_store %arg6[%c256, %c0_340], %400 {strides = array<i32>} : memref<432x256xf32, #tpu.memory_space<vmem>>, vector<32x16xf32>,
    %c416 = arith.constant 416 : index
    %c0_341 = arith.constant 0 : index
    %402 = vector.load %arg2[%c416, %c0_341] : memref<1040x512xbf16, #tpu.memory_space<vmem>>, vector<32x288xbf16>
    %c0_342 = arith.constant 0 : index
    %c0_343 = arith.constant 0 : index
    %403 = vector.load %arg6[%c0_342, %c0_343] : memref<432x256xf32, #tpu.memory_space<vmem>>, vector<288x16xf32>
    %404 = arith.truncf %403 : vector<288x16xf32> to vector<288x16xbf16>
    %cst_344 = arith.constant dense<0.000000e+00> : vector<32x16xf32>
    %405 = tpu.matmul %402, %404, %cst_344 {dimension_numbers = #tpu.dot_dimension_numbers<[1], [0], [0], [1], [0, 0, 1, 1], [], []>} : vector<32x288xbf16>, vector<288x16xbf16>, vector<32x16xf32> -> vector<32x16xf32>
    %c0_345 = arith.constant 0 : index
    %c5_346 = arith.constant 5 : index
    %406 = vector.load %arg3[%c0_345, %c5_346] : memref<32x128xf32, #tpu.memory_space<vmem>>, vector<32x1xf32>
    %407 = vector.broadcast %406 : vector<32x1xf32> to vector<32x16xf32>
    %408 = arith.addf %405, %407 : vector<32x16xf32>
    %cst_347 = arith.constant 0.000000e+00 : f32
    %409 = vector.broadcast %cst_347 : f32 to vector<32x16xf32>
    %410 = arith.maximumf %408, %409 : vector<32x16xf32>
    %c448 = arith.constant 448 : index
    %c0_348 = arith.constant 0 : index
    %411 = vector.load %arg2[%c448, %c0_348] : memref<1040x512xbf16, #tpu.memory_space<vmem>>, vector<128x32xbf16>
    %412 = arith.truncf %410 : vector<32x16xf32> to vector<32x16xbf16>
    %cst_349 = arith.constant dense<0.000000e+00> : vector<128x16xf32>
    %413 = tpu.matmul %411, %412, %cst_349 {dimension_numbers = #tpu.dot_dimension_numbers<[1], [0], [0], [1], [0, 0, 1, 1], [], []>} : vector<128x32xbf16>, vector<32x16xbf16>, vector<128x16xf32> -> vector<128x16xf32>
    %414 = arith.truncf %413 : vector<128x16xf32> to vector<128x16xbf16>
    %cst_350 = arith.constant 0.000000e+00 : f32
    %415 = vector.broadcast %cst_350 : f32 to vector<32x64xf32>
    %c576 = arith.constant 576 : index
    %c0_351 = arith.constant 0 : index
    %416 = vector.load %arg2[%c576, %c0_351] : memref<1040x512xbf16, #tpu.memory_space<vmem>>, vector<16x64xbf16>
    %417 = vector.extract_strided_slice %414 {offsets = [0, 0], sizes = [32, 16], strides = [1, 1]} : vector<128x16xbf16> to vector<32x16xbf16>
    %cst_352 = arith.constant dense<0.000000e+00> : vector<32x64xf32>
    %418 = tpu.matmul %417, %416, %cst_352 {dimension_numbers = #tpu.dot_dimension_numbers<[1], [0], [0], [1], [0, 0, 1, 1], [], []>} : vector<32x16xbf16>, vector<16x64xbf16>, vector<32x64xf32> -> vector<32x64xf32>
    %419 = arith.addf %415, %418 : vector<32x64xf32>
    %c592 = arith.constant 592 : index
    %c0_353 = arith.constant 0 : index
    %420 = vector.load %arg2[%c592, %c0_353] : memref<1040x512xbf16, #tpu.memory_space<vmem>>, vector<16x64xbf16>
    %421 = vector.extract_strided_slice %414 {offsets = [32, 0], sizes = [32, 16], strides = [1, 1]} : vector<128x16xbf16> to vector<32x16xbf16>
    %cst_354 = arith.constant dense<0.000000e+00> : vector<32x64xf32>
    %422 = tpu.matmul %421, %420, %cst_354 {dimension_numbers = #tpu.dot_dimension_numbers<[1], [0], [0], [1], [0, 0, 1, 1], [], []>} : vector<32x16xbf16>, vector<16x64xbf16>, vector<32x64xf32> -> vector<32x64xf32>
    %423 = arith.addf %419, %422 : vector<32x64xf32>
    %c608 = arith.constant 608 : index
    %c0_355 = arith.constant 0 : index
    %424 = vector.load %arg2[%c608, %c0_355] : memref<1040x512xbf16, #tpu.memory_space<vmem>>, vector<16x64xbf16>
    %425 = vector.extract_strided_slice %414 {offsets = [64, 0], sizes = [32, 16], strides = [1, 1]} : vector<128x16xbf16> to vector<32x16xbf16>
    %cst_356 = arith.constant dense<0.000000e+00> : vector<32x64xf32>
    %426 = tpu.matmul %425, %424, %cst_356 {dimension_numbers = #tpu.dot_dimension_numbers<[1], [0], [0], [1], [0, 0, 1, 1], [], []>} : vector<32x16xbf16>, vector<16x64xbf16>, vector<32x64xf32> -> vector<32x64xf32>
    %427 = arith.addf %423, %426 : vector<32x64xf32>
    %c624 = arith.constant 624 : index
    %c0_357 = arith.constant 0 : index
    %428 = vector.load %arg2[%c624, %c0_357] : memref<1040x512xbf16, #tpu.memory_space<vmem>>, vector<16x64xbf16>
    %429 = vector.extract_strided_slice %414 {offsets = [96, 0], sizes = [32, 16], strides = [1, 1]} : vector<128x16xbf16> to vector<32x16xbf16>
    %cst_358 = arith.constant dense<0.000000e+00> : vector<32x64xf32>
    %430 = tpu.matmul %429, %428, %cst_358 {dimension_numbers = #tpu.dot_dimension_numbers<[1], [0], [0], [1], [0, 0, 1, 1], [], []>} : vector<32x16xbf16>, vector<16x64xbf16>, vector<32x64xf32> -> vector<32x64xf32>
    %431 = arith.addf %427, %430 : vector<32x64xf32>
    %c0_359 = arith.constant 0 : index
    %c6_360 = arith.constant 6 : index
    %432 = vector.load %arg3[%c0_359, %c6_360] : memref<32x128xf32, #tpu.memory_space<vmem>>, vector<32x1xf32>
    %433 = vector.broadcast %432 : vector<32x1xf32> to vector<32x64xf32>
    %434 = arith.addf %431, %433 : vector<32x64xf32>
    %cst_361 = arith.constant 0.000000e+00 : f32
    %435 = vector.broadcast %cst_361 : f32 to vector<48x9xf32>
    %c0_362 = arith.constant 0 : index
    %c119_363 = arith.constant 119 : index
    %436 = vector.load %arg5[%c0_362, %c119_363] : memref<48x512xf32, #tpu.memory_space<vmem>>, vector<48x9xf32>
    tpu.vector_store %arg5[%c0_362, %c119_363], %435 {strides = array<i32>} : memref<48x512xf32, #tpu.memory_space<vmem>>, vector<48x9xf32>,
    %c0_364 = arith.constant 0 : index
    %c192_365 = arith.constant 192 : index
    %437 = vector.load %arg5[%c0_364, %c192_365] : memref<48x512xf32, #tpu.memory_space<vmem>>, vector<48x9xf32>
    tpu.vector_store %arg5[%c0_364, %c192_365], %435 {strides = array<i32>} : memref<48x512xf32, #tpu.memory_space<vmem>>, vector<48x9xf32>,
    %c0_366 = arith.constant 0 : index
    %c128_367 = arith.constant 128 : index
    %438 = vector.load %arg5[%c0_366, %c128_367] : memref<48x512xf32, #tpu.memory_space<vmem>>, vector<16x64xf32>
    tpu.vector_store %arg5[%c0_366, %c128_367], %265 {strides = array<i32>} : memref<48x512xf32, #tpu.memory_space<vmem>>, vector<16x64xf32>,
    %c16_368 = arith.constant 16 : index
    %c128_369 = arith.constant 128 : index
    %439 = vector.load %arg5[%c16_368, %c128_369] : memref<48x512xf32, #tpu.memory_space<vmem>>, vector<32x64xf32>
    tpu.vector_store %arg5[%c16_368, %c128_369], %434 {strides = array<i32>} : memref<48x512xf32, #tpu.memory_space<vmem>>, vector<32x64xf32>,
    %c0_370 = arith.constant 0 : index
    %c119_371 = arith.constant 119 : index
    %440 = vector.load %arg5[%c0_370, %c119_371] : memref<48x512xf32, #tpu.memory_space<vmem>>, vector<48x64xf32>
    %cst_372 = arith.constant 0.000000e+00 : f32
    %441 = vector.shape_cast %157 : vector<1x64xi1> to vector<1x64xi1>
    %442 = vector.broadcast %441 : vector<1x64xi1> to vector<48x64xi1>
    %443 = vector.broadcast %cst_372 : f32 to vector<48x64xf32>
    %444 = arith.select %442, %440, %443 : vector<48x64xi1>, vector<48x64xf32>
    %c0_373 = arith.constant 0 : index
    %c0_374 = arith.constant 0 : index
    %445 = vector.load %arg6[%c0_373, %c0_374] : memref<432x256xf32, #tpu.memory_space<vmem>>, vector<48x64xf32>
    tpu.vector_store %arg6[%c0_373, %c0_374], %444 {strides = array<i32>} : memref<432x256xf32, #tpu.memory_space<vmem>>, vector<48x64xf32>,
    %c0_375 = arith.constant 0 : index
    %c120_376 = arith.constant 120 : index
    %446 = vector.load %arg5[%c0_375, %c120_376] : memref<48x512xf32, #tpu.memory_space<vmem>>, vector<48x64xf32>
    %c48_377 = arith.constant 48 : index
    %c0_378 = arith.constant 0 : index
    %447 = vector.load %arg6[%c48_377, %c0_378] : memref<432x256xf32, #tpu.memory_space<vmem>>, vector<48x64xf32>
    tpu.vector_store %arg6[%c48_377, %c0_378], %446 {strides = array<i32>} : memref<432x256xf32, #tpu.memory_space<vmem>>, vector<48x64xf32>,
    %c0_379 = arith.constant 0 : index
    %c121_380 = arith.constant 121 : index
    %448 = vector.load %arg5[%c0_379, %c121_380] : memref<48x512xf32, #tpu.memory_space<vmem>>, vector<48x64xf32>
    %cst_381 = arith.constant 0.000000e+00 : f32
    %449 = vector.shape_cast %159 : vector<1x64xi1> to vector<1x64xi1>
    %450 = vector.broadcast %449 : vector<1x64xi1> to vector<48x64xi1>
    %451 = vector.broadcast %cst_381 : f32 to vector<48x64xf32>
    %452 = arith.select %450, %448, %451 : vector<48x64xi1>, vector<48x64xf32>
    %c96_382 = arith.constant 96 : index
    %c0_383 = arith.constant 0 : index
    %453 = vector.load %arg6[%c96_382, %c0_383] : memref<432x256xf32, #tpu.memory_space<vmem>>, vector<48x64xf32>
    tpu.vector_store %arg6[%c96_382, %c0_383], %452 {strides = array<i32>} : memref<432x256xf32, #tpu.memory_space<vmem>>, vector<48x64xf32>,
    %c0_384 = arith.constant 0 : index
    %c127_385 = arith.constant 127 : index
    %454 = vector.load %arg5[%c0_384, %c127_385] : memref<48x512xf32, #tpu.memory_space<vmem>>, vector<48x64xf32>
    %cst_386 = arith.constant 0.000000e+00 : f32
    %455 = vector.shape_cast %157 : vector<1x64xi1> to vector<1x64xi1>
    %456 = vector.broadcast %455 : vector<1x64xi1> to vector<48x64xi1>
    %457 = vector.broadcast %cst_386 : f32 to vector<48x64xf32>
    %458 = arith.select %456, %454, %457 : vector<48x64xi1>, vector<48x64xf32>
    %c144_387 = arith.constant 144 : index
    %c0_388 = arith.constant 0 : index
    %459 = vector.load %arg6[%c144_387, %c0_388] : memref<432x256xf32, #tpu.memory_space<vmem>>, vector<48x64xf32>
    tpu.vector_store %arg6[%c144_387, %c0_388], %458 {strides = array<i32>} : memref<432x256xf32, #tpu.memory_space<vmem>>, vector<48x64xf32>,
    %c0_389 = arith.constant 0 : index
    %c128_390 = arith.constant 128 : index
    %460 = vector.load %arg5[%c0_389, %c128_390] : memref<48x512xf32, #tpu.memory_space<vmem>>, vector<48x64xf32>
    %c192_391 = arith.constant 192 : index
    %c0_392 = arith.constant 0 : index
    %461 = vector.load %arg6[%c192_391, %c0_392] : memref<432x256xf32, #tpu.memory_space<vmem>>, vector<48x64xf32>
    tpu.vector_store %arg6[%c192_391, %c0_392], %460 {strides = array<i32>} : memref<432x256xf32, #tpu.memory_space<vmem>>, vector<48x64xf32>,
    %c0_393 = arith.constant 0 : index
    %c129_394 = arith.constant 129 : index
    %462 = vector.load %arg5[%c0_393, %c129_394] : memref<48x512xf32, #tpu.memory_space<vmem>>, vector<48x64xf32>
    %cst_395 = arith.constant 0.000000e+00 : f32
    %463 = vector.shape_cast %159 : vector<1x64xi1> to vector<1x64xi1>
    %464 = vector.broadcast %463 : vector<1x64xi1> to vector<48x64xi1>
    %465 = vector.broadcast %cst_395 : f32 to vector<48x64xf32>
    %466 = arith.select %464, %462, %465 : vector<48x64xi1>, vector<48x64xf32>
    %c240 = arith.constant 240 : index
    %c0_396 = arith.constant 0 : index
    %467 = vector.load %arg6[%c240, %c0_396] : memref<432x256xf32, #tpu.memory_space<vmem>>, vector<48x64xf32>
    tpu.vector_store %arg6[%c240, %c0_396], %466 {strides = array<i32>} : memref<432x256xf32, #tpu.memory_space<vmem>>, vector<48x64xf32>,
    %c0_397 = arith.constant 0 : index
    %c135_398 = arith.constant 135 : index
    %468 = vector.load %arg5[%c0_397, %c135_398] : memref<48x512xf32, #tpu.memory_space<vmem>>, vector<48x64xf32>
    %cst_399 = arith.constant 0.000000e+00 : f32
    %469 = vector.shape_cast %157 : vector<1x64xi1> to vector<1x64xi1>
    %470 = vector.broadcast %469 : vector<1x64xi1> to vector<48x64xi1>
    %471 = vector.broadcast %cst_399 : f32 to vector<48x64xf32>
    %472 = arith.select %470, %468, %471 : vector<48x64xi1>, vector<48x64xf32>
    %c288_400 = arith.constant 288 : index
    %c0_401 = arith.constant 0 : index
    %473 = vector.load %arg6[%c288_400, %c0_401] : memref<432x256xf32, #tpu.memory_space<vmem>>, vector<48x64xf32>
    tpu.vector_store %arg6[%c288_400, %c0_401], %472 {strides = array<i32>} : memref<432x256xf32, #tpu.memory_space<vmem>>, vector<48x64xf32>,
    %c0_402 = arith.constant 0 : index
    %c136_403 = arith.constant 136 : index
    %474 = vector.load %arg5[%c0_402, %c136_403] : memref<48x512xf32, #tpu.memory_space<vmem>>, vector<48x64xf32>
    %c336 = arith.constant 336 : index
    %c0_404 = arith.constant 0 : index
    %475 = vector.load %arg6[%c336, %c0_404] : memref<432x256xf32, #tpu.memory_space<vmem>>, vector<48x64xf32>
    tpu.vector_store %arg6[%c336, %c0_404], %474 {strides = array<i32>} : memref<432x256xf32, #tpu.memory_space<vmem>>, vector<48x64xf32>,
    %c0_405 = arith.constant 0 : index
    %c137_406 = arith.constant 137 : index
    %476 = vector.load %arg5[%c0_405, %c137_406] : memref<48x512xf32, #tpu.memory_space<vmem>>, vector<48x64xf32>
    %cst_407 = arith.constant 0.000000e+00 : f32
    %477 = vector.shape_cast %159 : vector<1x64xi1> to vector<1x64xi1>
    %478 = vector.broadcast %477 : vector<1x64xi1> to vector<48x64xi1>
    %479 = vector.broadcast %cst_407 : f32 to vector<48x64xf32>
    %480 = arith.select %478, %476, %479 : vector<48x64xi1>, vector<48x64xf32>
    %c384_408 = arith.constant 384 : index
    %c0_409 = arith.constant 0 : index
    %481 = vector.load %arg6[%c384_408, %c0_409] : memref<432x256xf32, #tpu.memory_space<vmem>>, vector<48x64xf32>
    tpu.vector_store %arg6[%c384_408, %c0_409], %480 {strides = array<i32>} : memref<432x256xf32, #tpu.memory_space<vmem>>, vector<48x64xf32>,
    %c640 = arith.constant 640 : index
    %c0_410 = arith.constant 0 : index
    %482 = vector.load %arg2[%c640, %c0_410] : memref<1040x512xbf16, #tpu.memory_space<vmem>>, vector<16x432xbf16>
    %c0_411 = arith.constant 0 : index
    %c0_412 = arith.constant 0 : index
    %483 = vector.load %arg6[%c0_411, %c0_412] : memref<432x256xf32, #tpu.memory_space<vmem>>, vector<432x64xf32>
    %484 = arith.truncf %483 : vector<432x64xf32> to vector<432x64xbf16>
    %cst_413 = arith.constant dense<0.000000e+00> : vector<16x64xf32>
    %485 = tpu.matmul %482, %484, %cst_413 {dimension_numbers = #tpu.dot_dimension_numbers<[1], [0], [0], [1], [0, 0, 1, 1], [], []>} : vector<16x432xbf16>, vector<432x64xbf16>, vector<16x64xf32> -> vector<16x64xf32>
    %c0_414 = arith.constant 0 : index
    %c7_415 = arith.constant 7 : index
    %486 = vector.load %arg3[%c0_414, %c7_415] : memref<32x128xf32, #tpu.memory_space<vmem>>, vector<16x1xf32>
    %487 = vector.broadcast %486 : vector<16x1xf32> to vector<16x64xf32>
    %488 = arith.addf %485, %487 : vector<16x64xf32>
    %cst_416 = arith.constant 0.000000e+00 : f32
    %489 = vector.broadcast %cst_416 : f32 to vector<16x64xf32>
    %490 = arith.maximumf %488, %489 : vector<16x64xf32>
    %cst_417 = arith.constant 0.000000e+00 : f32
    %491 = vector.broadcast %cst_417 : f32 to vector<16x9xf32>
    %c0_418 = arith.constant 0 : index
    %c119_419 = arith.constant 119 : index
    %492 = vector.load %arg5[%c0_418, %c119_419] : memref<48x512xf32, #tpu.memory_space<vmem>>, vector<16x9xf32>
    tpu.vector_store %arg5[%c0_418, %c119_419], %491 {strides = array<i32>} : memref<48x512xf32, #tpu.memory_space<vmem>>, vector<16x9xf32>,
    %c0_420 = arith.constant 0 : index
    %c192_421 = arith.constant 192 : index
    %493 = vector.load %arg5[%c0_420, %c192_421] : memref<48x512xf32, #tpu.memory_space<vmem>>, vector<16x9xf32>
    tpu.vector_store %arg5[%c0_420, %c192_421], %491 {strides = array<i32>} : memref<48x512xf32, #tpu.memory_space<vmem>>, vector<16x9xf32>,
    %c0_422 = arith.constant 0 : index
    %c128_423 = arith.constant 128 : index
    %494 = vector.load %arg5[%c0_422, %c128_423] : memref<48x512xf32, #tpu.memory_space<vmem>>, vector<16x64xf32>
    tpu.vector_store %arg5[%c0_422, %c128_423], %490 {strides = array<i32>} : memref<48x512xf32, #tpu.memory_space<vmem>>, vector<16x64xf32>,
    %c0_424 = arith.constant 0 : index
    %c119_425 = arith.constant 119 : index
    %495 = vector.load %arg5[%c0_424, %c119_425] : memref<48x512xf32, #tpu.memory_space<vmem>>, vector<16x64xf32>
    %cst_426 = arith.constant 0.000000e+00 : f32
    %496 = vector.shape_cast %157 : vector<1x64xi1> to vector<1x64xi1>
    %497 = vector.broadcast %496 : vector<1x64xi1> to vector<16x64xi1>
    %498 = vector.broadcast %cst_426 : f32 to vector<16x64xf32>
    %499 = arith.select %497, %495, %498 : vector<16x64xi1>, vector<16x64xf32>
    %c0_427 = arith.constant 0 : index
    %c0_428 = arith.constant 0 : index
    %500 = vector.load %arg6[%c0_427, %c0_428] : memref<432x256xf32, #tpu.memory_space<vmem>>, vector<16x64xf32>
    tpu.vector_store %arg6[%c0_427, %c0_428], %499 {strides = array<i32>} : memref<432x256xf32, #tpu.memory_space<vmem>>, vector<16x64xf32>,
    %c0_429 = arith.constant 0 : index
    %c120_430 = arith.constant 120 : index
    %501 = vector.load %arg5[%c0_429, %c120_430] : memref<48x512xf32, #tpu.memory_space<vmem>>, vector<16x64xf32>
    %c16_431 = arith.constant 16 : index
    %c0_432 = arith.constant 0 : index
    %502 = vector.load %arg6[%c16_431, %c0_432] : memref<432x256xf32, #tpu.memory_space<vmem>>, vector<16x64xf32>
    tpu.vector_store %arg6[%c16_431, %c0_432], %501 {strides = array<i32>} : memref<432x256xf32, #tpu.memory_space<vmem>>, vector<16x64xf32>,
    %c0_433 = arith.constant 0 : index
    %c121_434 = arith.constant 121 : index
    %503 = vector.load %arg5[%c0_433, %c121_434] : memref<48x512xf32, #tpu.memory_space<vmem>>, vector<16x64xf32>
    %cst_435 = arith.constant 0.000000e+00 : f32
    %504 = vector.shape_cast %159 : vector<1x64xi1> to vector<1x64xi1>
    %505 = vector.broadcast %504 : vector<1x64xi1> to vector<16x64xi1>
    %506 = vector.broadcast %cst_435 : f32 to vector<16x64xf32>
    %507 = arith.select %505, %503, %506 : vector<16x64xi1>, vector<16x64xf32>
    %c32_436 = arith.constant 32 : index
    %c0_437 = arith.constant 0 : index
    %508 = vector.load %arg6[%c32_436, %c0_437] : memref<432x256xf32, #tpu.memory_space<vmem>>, vector<16x64xf32>
    tpu.vector_store %arg6[%c32_436, %c0_437], %507 {strides = array<i32>} : memref<432x256xf32, #tpu.memory_space<vmem>>, vector<16x64xf32>,
    %c0_438 = arith.constant 0 : index
    %c127_439 = arith.constant 127 : index
    %509 = vector.load %arg5[%c0_438, %c127_439] : memref<48x512xf32, #tpu.memory_space<vmem>>, vector<16x64xf32>
    %cst_440 = arith.constant 0.000000e+00 : f32
    %510 = vector.shape_cast %157 : vector<1x64xi1> to vector<1x64xi1>
    %511 = vector.broadcast %510 : vector<1x64xi1> to vector<16x64xi1>
    %512 = vector.broadcast %cst_440 : f32 to vector<16x64xf32>
    %513 = arith.select %511, %509, %512 : vector<16x64xi1>, vector<16x64xf32>
    %c48_441 = arith.constant 48 : index
    %c0_442 = arith.constant 0 : index
    %514 = vector.load %arg6[%c48_441, %c0_442] : memref<432x256xf32, #tpu.memory_space<vmem>>, vector<16x64xf32>
    tpu.vector_store %arg6[%c48_441, %c0_442], %513 {strides = array<i32>} : memref<432x256xf32, #tpu.memory_space<vmem>>, vector<16x64xf32>,
    %c0_443 = arith.constant 0 : index
    %c128_444 = arith.constant 128 : index
    %515 = vector.load %arg5[%c0_443, %c128_444] : memref<48x512xf32, #tpu.memory_space<vmem>>, vector<16x64xf32>
    %c64_445 = arith.constant 64 : index
    %c0_446 = arith.constant 0 : index
    %516 = vector.load %arg6[%c64_445, %c0_446] : memref<432x256xf32, #tpu.memory_space<vmem>>, vector<16x64xf32>
    tpu.vector_store %arg6[%c64_445, %c0_446], %515 {strides = array<i32>} : memref<432x256xf32, #tpu.memory_space<vmem>>, vector<16x64xf32>,
    %c0_447 = arith.constant 0 : index
    %c129_448 = arith.constant 129 : index
    %517 = vector.load %arg5[%c0_447, %c129_448] : memref<48x512xf32, #tpu.memory_space<vmem>>, vector<16x64xf32>
    %cst_449 = arith.constant 0.000000e+00 : f32
    %518 = vector.shape_cast %159 : vector<1x64xi1> to vector<1x64xi1>
    %519 = vector.broadcast %518 : vector<1x64xi1> to vector<16x64xi1>
    %520 = vector.broadcast %cst_449 : f32 to vector<16x64xf32>
    %521 = arith.select %519, %517, %520 : vector<16x64xi1>, vector<16x64xf32>
    %c80_450 = arith.constant 80 : index
    %c0_451 = arith.constant 0 : index
    %522 = vector.load %arg6[%c80_450, %c0_451] : memref<432x256xf32, #tpu.memory_space<vmem>>, vector<16x64xf32>
    tpu.vector_store %arg6[%c80_450, %c0_451], %521 {strides = array<i32>} : memref<432x256xf32, #tpu.memory_space<vmem>>, vector<16x64xf32>,
    %c0_452 = arith.constant 0 : index
    %c135_453 = arith.constant 135 : index
    %523 = vector.load %arg5[%c0_452, %c135_453] : memref<48x512xf32, #tpu.memory_space<vmem>>, vector<16x64xf32>
    %cst_454 = arith.constant 0.000000e+00 : f32
    %524 = vector.shape_cast %157 : vector<1x64xi1> to vector<1x64xi1>
    %525 = vector.broadcast %524 : vector<1x64xi1> to vector<16x64xi1>
    %526 = vector.broadcast %cst_454 : f32 to vector<16x64xf32>
    %527 = arith.select %525, %523, %526 : vector<16x64xi1>, vector<16x64xf32>
    %c96_455 = arith.constant 96 : index
    %c0_456 = arith.constant 0 : index
    %528 = vector.load %arg6[%c96_455, %c0_456] : memref<432x256xf32, #tpu.memory_space<vmem>>, vector<16x64xf32>
    tpu.vector_store %arg6[%c96_455, %c0_456], %527 {strides = array<i32>} : memref<432x256xf32, #tpu.memory_space<vmem>>, vector<16x64xf32>,
    %c0_457 = arith.constant 0 : index
    %c136_458 = arith.constant 136 : index
    %529 = vector.load %arg5[%c0_457, %c136_458] : memref<48x512xf32, #tpu.memory_space<vmem>>, vector<16x64xf32>
    %c112_459 = arith.constant 112 : index
    %c0_460 = arith.constant 0 : index
    %530 = vector.load %arg6[%c112_459, %c0_460] : memref<432x256xf32, #tpu.memory_space<vmem>>, vector<16x64xf32>
    tpu.vector_store %arg6[%c112_459, %c0_460], %529 {strides = array<i32>} : memref<432x256xf32, #tpu.memory_space<vmem>>, vector<16x64xf32>,
    %c0_461 = arith.constant 0 : index
    %c137_462 = arith.constant 137 : index
    %531 = vector.load %arg5[%c0_461, %c137_462] : memref<48x512xf32, #tpu.memory_space<vmem>>, vector<16x64xf32>
    %cst_463 = arith.constant 0.000000e+00 : f32
    %532 = vector.shape_cast %159 : vector<1x64xi1> to vector<1x64xi1>
    %533 = vector.broadcast %532 : vector<1x64xi1> to vector<16x64xi1>
    %534 = vector.broadcast %cst_463 : f32 to vector<16x64xf32>
    %535 = arith.select %533, %531, %534 : vector<16x64xi1>, vector<16x64xf32>
    %c128_464 = arith.constant 128 : index
    %c0_465 = arith.constant 0 : index
    %536 = vector.load %arg6[%c128_464, %c0_465] : memref<432x256xf32, #tpu.memory_space<vmem>>, vector<16x64xf32>
    tpu.vector_store %arg6[%c128_464, %c0_465], %535 {strides = array<i32>} : memref<432x256xf32, #tpu.memory_space<vmem>>, vector<16x64xf32>,
    %c656 = arith.constant 656 : index
    %c0_466 = arith.constant 0 : index
    %537 = vector.load %arg2[%c656, %c0_466] : memref<1040x512xbf16, #tpu.memory_space<vmem>>, vector<16x144xbf16>
    %c0_467 = arith.constant 0 : index
    %c0_468 = arith.constant 0 : index
    %538 = vector.load %arg6[%c0_467, %c0_468] : memref<432x256xf32, #tpu.memory_space<vmem>>, vector<144x64xf32>
    %539 = arith.truncf %538 : vector<144x64xf32> to vector<144x64xbf16>
    %cst_469 = arith.constant dense<0.000000e+00> : vector<16x64xf32>
    %540 = tpu.matmul %537, %539, %cst_469 {dimension_numbers = #tpu.dot_dimension_numbers<[1], [0], [0], [1], [0, 0, 1, 1], [], []>} : vector<16x144xbf16>, vector<144x64xbf16>, vector<16x64xf32> -> vector<16x64xf32>
    %c0_470 = arith.constant 0 : index
    %c8_471 = arith.constant 8 : index
    %541 = vector.load %arg3[%c0_470, %c8_471] : memref<32x128xf32, #tpu.memory_space<vmem>>, vector<16x1xf32>
    %542 = vector.broadcast %541 : vector<16x1xf32> to vector<16x64xf32>
    %543 = arith.addf %540, %542 : vector<16x64xf32>
    %cst_472 = arith.constant 0.000000e+00 : f32
    %544 = vector.broadcast %cst_472 : f32 to vector<16x64xf32>
    %545 = arith.maximumf %543, %544 : vector<16x64xf32>
    %c672 = arith.constant 672 : index
    %c0_473 = arith.constant 0 : index
    %546 = vector.load %arg2[%c672, %c0_473] : memref<1040x512xbf16, #tpu.memory_space<vmem>>, vector<64x16xbf16>
    %547 = arith.truncf %545 : vector<16x64xf32> to vector<16x64xbf16>
    %cst_474 = arith.constant dense<0.000000e+00> : vector<64x64xf32>
    %548 = tpu.matmul %546, %547, %cst_474 {dimension_numbers = #tpu.dot_dimension_numbers<[1], [0], [0], [1], [0, 0, 1, 1], [], []>} : vector<64x16xbf16>, vector<16x64xbf16>, vector<64x64xf32> -> vector<64x64xf32>
    %549 = arith.truncf %548 : vector<64x64xf32> to vector<64x64xbf16>
    %cst_475 = arith.constant 0.000000e+00 : f32
    %550 = vector.broadcast %cst_475 : f32 to vector<16x256xf32>
    %c736 = arith.constant 736 : index
    %c0_476 = arith.constant 0 : index
    %551 = vector.load %arg2[%c736, %c0_476] : memref<1040x512xbf16, #tpu.memory_space<vmem>>, vector<64x256xbf16>
    %552 = vector.extract_strided_slice %549 {offsets = [0, 0], sizes = [16, 64], strides = [1, 1]} : vector<64x64xbf16> to vector<16x64xbf16>
    %cst_477 = arith.constant dense<0.000000e+00> : vector<16x256xf32>
    %553 = tpu.matmul %552, %551, %cst_477 {dimension_numbers = #tpu.dot_dimension_numbers<[1], [0], [0], [1], [0, 0, 1, 1], [], []>} : vector<16x64xbf16>, vector<64x256xbf16>, vector<16x256xf32> -> vector<16x256xf32>
    %554 = arith.addf %550, %553 : vector<16x256xf32>
    %c800 = arith.constant 800 : index
    %c0_478 = arith.constant 0 : index
    %555 = vector.load %arg2[%c800, %c0_478] : memref<1040x512xbf16, #tpu.memory_space<vmem>>, vector<64x256xbf16>
    %556 = vector.extract_strided_slice %549 {offsets = [16, 0], sizes = [16, 64], strides = [1, 1]} : vector<64x64xbf16> to vector<16x64xbf16>
    %cst_479 = arith.constant dense<0.000000e+00> : vector<16x256xf32>
    %557 = tpu.matmul %556, %555, %cst_479 {dimension_numbers = #tpu.dot_dimension_numbers<[1], [0], [0], [1], [0, 0, 1, 1], [], []>} : vector<16x64xbf16>, vector<64x256xbf16>, vector<16x256xf32> -> vector<16x256xf32>
    %558 = arith.addf %554, %557 : vector<16x256xf32>
    %c864 = arith.constant 864 : index
    %c0_480 = arith.constant 0 : index
    %559 = vector.load %arg2[%c864, %c0_480] : memref<1040x512xbf16, #tpu.memory_space<vmem>>, vector<64x256xbf16>
    %560 = vector.extract_strided_slice %549 {offsets = [32, 0], sizes = [16, 64], strides = [1, 1]} : vector<64x64xbf16> to vector<16x64xbf16>
    %cst_481 = arith.constant dense<0.000000e+00> : vector<16x256xf32>
    %561 = tpu.matmul %560, %559, %cst_481 {dimension_numbers = #tpu.dot_dimension_numbers<[1], [0], [0], [1], [0, 0, 1, 1], [], []>} : vector<16x64xbf16>, vector<64x256xbf16>, vector<16x256xf32> -> vector<16x256xf32>
    %562 = arith.addf %558, %561 : vector<16x256xf32>
    %c928 = arith.constant 928 : index
    %c0_482 = arith.constant 0 : index
    %563 = vector.load %arg2[%c928, %c0_482] : memref<1040x512xbf16, #tpu.memory_space<vmem>>, vector<64x256xbf16>
    %564 = vector.extract_strided_slice %549 {offsets = [48, 0], sizes = [16, 64], strides = [1, 1]} : vector<64x64xbf16> to vector<16x64xbf16>
    %cst_483 = arith.constant dense<0.000000e+00> : vector<16x256xf32>
    %565 = tpu.matmul %564, %563, %cst_483 {dimension_numbers = #tpu.dot_dimension_numbers<[1], [0], [0], [1], [0, 0, 1, 1], [], []>} : vector<16x64xbf16>, vector<64x256xbf16>, vector<16x256xf32> -> vector<16x256xf32>
    %566 = arith.addf %562, %565 : vector<16x256xf32>
    %c0_484 = arith.constant 0 : index
    %c9 = arith.constant 9 : index
    %567 = vector.load %arg3[%c0_484, %c9] : memref<32x128xf32, #tpu.memory_space<vmem>>, vector<16x1xf32>
    %568 = vector.broadcast %567 : vector<16x1xf32> to vector<16x256xf32>
    %569 = arith.addf %566, %568 : vector<16x256xf32>
    %cst_485 = arith.constant 0.000000e+00 : f32
    %570 = vector.broadcast %cst_485 : f32 to vector<24x17xf32>
    %c0_486 = arith.constant 0 : index
    %c111_487 = arith.constant 111 : index
    %571 = vector.load %arg5[%c0_486, %c111_487] : memref<48x512xf32, #tpu.memory_space<vmem>>, vector<24x17xf32>
    tpu.vector_store %arg5[%c0_486, %c111_487], %570 {strides = array<i32>} : memref<48x512xf32, #tpu.memory_space<vmem>>, vector<24x17xf32>,
    %c0_488 = arith.constant 0 : index
    %c384_489 = arith.constant 384 : index
    %572 = vector.load %arg5[%c0_488, %c384_489] : memref<48x512xf32, #tpu.memory_space<vmem>>, vector<24x17xf32>
    tpu.vector_store %arg5[%c0_488, %c384_489], %570 {strides = array<i32>} : memref<48x512xf32, #tpu.memory_space<vmem>>, vector<24x17xf32>,
    %c0_490 = arith.constant 0 : index
    %c128_491 = arith.constant 128 : index
    %573 = vector.load %arg5[%c0_490, %c128_491] : memref<48x512xf32, #tpu.memory_space<vmem>>, vector<8x256xf32>
    tpu.vector_store %arg5[%c0_490, %c128_491], %120 {strides = array<i32>} : memref<48x512xf32, #tpu.memory_space<vmem>>, vector<8x256xf32>,
    %c8_492 = arith.constant 8 : index
    %c128_493 = arith.constant 128 : index
    %574 = vector.load %arg5[%c8_492, %c128_493] : memref<48x512xf32, #tpu.memory_space<vmem>>, vector<16x256xf32>
    tpu.vector_store %arg5[%c8_492, %c128_493], %569 {strides = array<i32>} : memref<48x512xf32, #tpu.memory_space<vmem>>, vector<16x256xf32>,
    %c0_494 = arith.constant 0 : index
    %c111_495 = arith.constant 111 : index
    %575 = vector.load %arg5[%c0_494, %c111_495] : memref<48x512xf32, #tpu.memory_space<vmem>>, vector<24x256xf32>
    %cst_496 = arith.constant 0.000000e+00 : f32
    %576 = vector.shape_cast %24 : vector<1x256xi1> to vector<1x256xi1>
    %577 = vector.broadcast %576 : vector<1x256xi1> to vector<24x256xi1>
    %578 = vector.broadcast %cst_496 : f32 to vector<24x256xf32>
    %579 = arith.select %577, %575, %578 : vector<24x256xi1>, vector<24x256xf32>
    %c0_497 = arith.constant 0 : index
    %c0_498 = arith.constant 0 : index
    %580 = vector.load %arg6[%c0_497, %c0_498] : memref<432x256xf32, #tpu.memory_space<vmem>>, vector<24x256xf32>
    tpu.vector_store %arg6[%c0_497, %c0_498], %579 {strides = array<i32>} : memref<432x256xf32, #tpu.memory_space<vmem>>, vector<24x256xf32>,
    %c0_499 = arith.constant 0 : index
    %c112_500 = arith.constant 112 : index
    %581 = vector.load %arg5[%c0_499, %c112_500] : memref<48x512xf32, #tpu.memory_space<vmem>>, vector<24x256xf32>
    %c24_501 = arith.constant 24 : index
    %c0_502 = arith.constant 0 : index
    %582 = vector.load %arg6[%c24_501, %c0_502] : memref<432x256xf32, #tpu.memory_space<vmem>>, vector<24x256xf32>
    tpu.vector_store %arg6[%c24_501, %c0_502], %581 {strides = array<i32>} : memref<432x256xf32, #tpu.memory_space<vmem>>, vector<24x256xf32>,
    %c0_503 = arith.constant 0 : index
    %c113_504 = arith.constant 113 : index
    %583 = vector.load %arg5[%c0_503, %c113_504] : memref<48x512xf32, #tpu.memory_space<vmem>>, vector<24x256xf32>
    %cst_505 = arith.constant 0.000000e+00 : f32
    %584 = vector.shape_cast %26 : vector<1x256xi1> to vector<1x256xi1>
    %585 = vector.broadcast %584 : vector<1x256xi1> to vector<24x256xi1>
    %586 = vector.broadcast %cst_505 : f32 to vector<24x256xf32>
    %587 = arith.select %585, %583, %586 : vector<24x256xi1>, vector<24x256xf32>
    %c48_506 = arith.constant 48 : index
    %c0_507 = arith.constant 0 : index
    %588 = vector.load %arg6[%c48_506, %c0_507] : memref<432x256xf32, #tpu.memory_space<vmem>>, vector<24x256xf32>
    tpu.vector_store %arg6[%c48_506, %c0_507], %587 {strides = array<i32>} : memref<432x256xf32, #tpu.memory_space<vmem>>, vector<24x256xf32>,
    %c0_508 = arith.constant 0 : index
    %c127_509 = arith.constant 127 : index
    %589 = vector.load %arg5[%c0_508, %c127_509] : memref<48x512xf32, #tpu.memory_space<vmem>>, vector<24x256xf32>
    %cst_510 = arith.constant 0.000000e+00 : f32
    %590 = vector.shape_cast %24 : vector<1x256xi1> to vector<1x256xi1>
    %591 = vector.broadcast %590 : vector<1x256xi1> to vector<24x256xi1>
    %592 = vector.broadcast %cst_510 : f32 to vector<24x256xf32>
    %593 = arith.select %591, %589, %592 : vector<24x256xi1>, vector<24x256xf32>
    %c72 = arith.constant 72 : index
    %c0_511 = arith.constant 0 : index
    %594 = vector.load %arg6[%c72, %c0_511] : memref<432x256xf32, #tpu.memory_space<vmem>>, vector<24x256xf32>
    tpu.vector_store %arg6[%c72, %c0_511], %593 {strides = array<i32>} : memref<432x256xf32, #tpu.memory_space<vmem>>, vector<24x256xf32>,
    %c0_512 = arith.constant 0 : index
    %c128_513 = arith.constant 128 : index
    %595 = vector.load %arg5[%c0_512, %c128_513] : memref<48x512xf32, #tpu.memory_space<vmem>>, vector<24x256xf32>
    %c96_514 = arith.constant 96 : index
    %c0_515 = arith.constant 0 : index
    %596 = vector.load %arg6[%c96_514, %c0_515] : memref<432x256xf32, #tpu.memory_space<vmem>>, vector<24x256xf32>
    tpu.vector_store %arg6[%c96_514, %c0_515], %595 {strides = array<i32>} : memref<432x256xf32, #tpu.memory_space<vmem>>, vector<24x256xf32>,
    %c0_516 = arith.constant 0 : index
    %c129_517 = arith.constant 129 : index
    %597 = vector.load %arg5[%c0_516, %c129_517] : memref<48x512xf32, #tpu.memory_space<vmem>>, vector<24x256xf32>
    %cst_518 = arith.constant 0.000000e+00 : f32
    %598 = vector.shape_cast %26 : vector<1x256xi1> to vector<1x256xi1>
    %599 = vector.broadcast %598 : vector<1x256xi1> to vector<24x256xi1>
    %600 = vector.broadcast %cst_518 : f32 to vector<24x256xf32>
    %601 = arith.select %599, %597, %600 : vector<24x256xi1>, vector<24x256xf32>
    %c120_519 = arith.constant 120 : index
    %c0_520 = arith.constant 0 : index
    %602 = vector.load %arg6[%c120_519, %c0_520] : memref<432x256xf32, #tpu.memory_space<vmem>>, vector<24x256xf32>
    tpu.vector_store %arg6[%c120_519, %c0_520], %601 {strides = array<i32>} : memref<432x256xf32, #tpu.memory_space<vmem>>, vector<24x256xf32>,
    %c0_521 = arith.constant 0 : index
    %c143_522 = arith.constant 143 : index
    %603 = vector.load %arg5[%c0_521, %c143_522] : memref<48x512xf32, #tpu.memory_space<vmem>>, vector<24x256xf32>
    %cst_523 = arith.constant 0.000000e+00 : f32
    %604 = vector.shape_cast %24 : vector<1x256xi1> to vector<1x256xi1>
    %605 = vector.broadcast %604 : vector<1x256xi1> to vector<24x256xi1>
    %606 = vector.broadcast %cst_523 : f32 to vector<24x256xf32>
    %607 = arith.select %605, %603, %606 : vector<24x256xi1>, vector<24x256xf32>
    %c144_524 = arith.constant 144 : index
    %c0_525 = arith.constant 0 : index
    %608 = vector.load %arg6[%c144_524, %c0_525] : memref<432x256xf32, #tpu.memory_space<vmem>>, vector<24x256xf32>
    tpu.vector_store %arg6[%c144_524, %c0_525], %607 {strides = array<i32>} : memref<432x256xf32, #tpu.memory_space<vmem>>, vector<24x256xf32>,
    %c0_526 = arith.constant 0 : index
    %c144_527 = arith.constant 144 : index
    %609 = vector.load %arg5[%c0_526, %c144_527] : memref<48x512xf32, #tpu.memory_space<vmem>>, vector<24x256xf32>
    %c168 = arith.constant 168 : index
    %c0_528 = arith.constant 0 : index
    %610 = vector.load %arg6[%c168, %c0_528] : memref<432x256xf32, #tpu.memory_space<vmem>>, vector<24x256xf32>
    tpu.vector_store %arg6[%c168, %c0_528], %609 {strides = array<i32>} : memref<432x256xf32, #tpu.memory_space<vmem>>, vector<24x256xf32>,
    %c0_529 = arith.constant 0 : index
    %c145_530 = arith.constant 145 : index
    %611 = vector.load %arg5[%c0_529, %c145_530] : memref<48x512xf32, #tpu.memory_space<vmem>>, vector<24x256xf32>
    %cst_531 = arith.constant 0.000000e+00 : f32
    %612 = vector.shape_cast %26 : vector<1x256xi1> to vector<1x256xi1>
    %613 = vector.broadcast %612 : vector<1x256xi1> to vector<24x256xi1>
    %614 = vector.broadcast %cst_531 : f32 to vector<24x256xf32>
    %615 = arith.select %613, %611, %614 : vector<24x256xi1>, vector<24x256xf32>
    %c192_532 = arith.constant 192 : index
    %c0_533 = arith.constant 0 : index
    %616 = vector.load %arg6[%c192_532, %c0_533] : memref<432x256xf32, #tpu.memory_space<vmem>>, vector<24x256xf32>
    tpu.vector_store %arg6[%c192_532, %c0_533], %615 {strides = array<i32>} : memref<432x256xf32, #tpu.memory_space<vmem>>, vector<24x256xf32>,
    %c992 = arith.constant 992 : index
    %c0_534 = arith.constant 0 : index
    %617 = vector.load %arg2[%c992, %c0_534] : memref<1040x512xbf16, #tpu.memory_space<vmem>>, vector<8x216xbf16>
    %c0_535 = arith.constant 0 : index
    %c0_536 = arith.constant 0 : index
    %618 = vector.load %arg6[%c0_535, %c0_536] : memref<432x256xf32, #tpu.memory_space<vmem>>, vector<216x256xf32>
    %619 = arith.truncf %618 : vector<216x256xf32> to vector<216x256xbf16>
    %cst_537 = arith.constant dense<0.000000e+00> : vector<8x256xf32>
    %620 = tpu.matmul %617, %619, %cst_537 {dimension_numbers = #tpu.dot_dimension_numbers<[1], [0], [0], [1], [0, 0, 1, 1], [], []>} : vector<8x216xbf16>, vector<216x256xbf16>, vector<8x256xf32> -> vector<8x256xf32>
    %c0_538 = arith.constant 0 : index
    %c10 = arith.constant 10 : index
    %621 = vector.load %arg3[%c0_538, %c10] : memref<32x128xf32, #tpu.memory_space<vmem>>, vector<8x1xf32>
    %622 = vector.broadcast %621 : vector<8x1xf32> to vector<8x256xf32>
    %623 = arith.addf %620, %622 : vector<8x256xf32>
    %cst_539 = arith.constant 0.000000e+00 : f32
    %624 = vector.broadcast %cst_539 : f32 to vector<8x256xf32>
    %625 = arith.maximumf %623, %624 : vector<8x256xf32>
    %cst_540 = arith.constant 0.000000e+00 : f32
    %626 = vector.broadcast %cst_540 : f32 to vector<8x17xf32>
    %c0_541 = arith.constant 0 : index
    %c111_542 = arith.constant 111 : index
    %627 = vector.load %arg5[%c0_541, %c111_542] : memref<48x512xf32, #tpu.memory_space<vmem>>, vector<8x17xf32>
    tpu.vector_store %arg5[%c0_541, %c111_542], %626 {strides = array<i32>} : memref<48x512xf32, #tpu.memory_space<vmem>>, vector<8x17xf32>,
    %c0_543 = arith.constant 0 : index
    %c384_544 = arith.constant 384 : index
    %628 = vector.load %arg5[%c0_543, %c384_544] : memref<48x512xf32, #tpu.memory_space<vmem>>, vector<8x17xf32>
    tpu.vector_store %arg5[%c0_543, %c384_544], %626 {strides = array<i32>} : memref<48x512xf32, #tpu.memory_space<vmem>>, vector<8x17xf32>,
    %c0_545 = arith.constant 0 : index
    %c128_546 = arith.constant 128 : index
    %629 = vector.load %arg5[%c0_545, %c128_546] : memref<48x512xf32, #tpu.memory_space<vmem>>, vector<8x256xf32>
    tpu.vector_store %arg5[%c0_545, %c128_546], %625 {strides = array<i32>} : memref<48x512xf32, #tpu.memory_space<vmem>>, vector<8x256xf32>,
    %c0_547 = arith.constant 0 : index
    %c111_548 = arith.constant 111 : index
    %630 = vector.load %arg5[%c0_547, %c111_548] : memref<48x512xf32, #tpu.memory_space<vmem>>, vector<8x256xf32>
    %cst_549 = arith.constant 0.000000e+00 : f32
    %631 = vector.shape_cast %24 : vector<1x256xi1> to vector<1x256xi1>
    %632 = vector.broadcast %631 : vector<1x256xi1> to vector<8x256xi1>
    %633 = vector.broadcast %cst_549 : f32 to vector<8x256xf32>
    %634 = arith.select %632, %630, %633 : vector<8x256xi1>, vector<8x256xf32>
    %c0_550 = arith.constant 0 : index
    %c0_551 = arith.constant 0 : index
    %635 = vector.load %arg6[%c0_550, %c0_551] : memref<432x256xf32, #tpu.memory_space<vmem>>, vector<8x256xf32>
    tpu.vector_store %arg6[%c0_550, %c0_551], %634 {strides = array<i32>} : memref<432x256xf32, #tpu.memory_space<vmem>>, vector<8x256xf32>,
    %c0_552 = arith.constant 0 : index
    %c112_553 = arith.constant 112 : index
    %636 = vector.load %arg5[%c0_552, %c112_553] : memref<48x512xf32, #tpu.memory_space<vmem>>, vector<8x256xf32>
    %c8_554 = arith.constant 8 : index
    %c0_555 = arith.constant 0 : index
    %637 = vector.load %arg6[%c8_554, %c0_555] : memref<432x256xf32, #tpu.memory_space<vmem>>, vector<8x256xf32>
    tpu.vector_store %arg6[%c8_554, %c0_555], %636 {strides = array<i32>} : memref<432x256xf32, #tpu.memory_space<vmem>>, vector<8x256xf32>,
    %c0_556 = arith.constant 0 : index
    %c113_557 = arith.constant 113 : index
    %638 = vector.load %arg5[%c0_556, %c113_557] : memref<48x512xf32, #tpu.memory_space<vmem>>, vector<8x256xf32>
    %cst_558 = arith.constant 0.000000e+00 : f32
    %639 = vector.shape_cast %26 : vector<1x256xi1> to vector<1x256xi1>
    %640 = vector.broadcast %639 : vector<1x256xi1> to vector<8x256xi1>
    %641 = vector.broadcast %cst_558 : f32 to vector<8x256xf32>
    %642 = arith.select %640, %638, %641 : vector<8x256xi1>, vector<8x256xf32>
    %c16_559 = arith.constant 16 : index
    %c0_560 = arith.constant 0 : index
    %643 = vector.load %arg6[%c16_559, %c0_560] : memref<432x256xf32, #tpu.memory_space<vmem>>, vector<8x256xf32>
    tpu.vector_store %arg6[%c16_559, %c0_560], %642 {strides = array<i32>} : memref<432x256xf32, #tpu.memory_space<vmem>>, vector<8x256xf32>,
    %c0_561 = arith.constant 0 : index
    %c127_562 = arith.constant 127 : index
    %644 = vector.load %arg5[%c0_561, %c127_562] : memref<48x512xf32, #tpu.memory_space<vmem>>, vector<8x256xf32>
    %cst_563 = arith.constant 0.000000e+00 : f32
    %645 = vector.shape_cast %24 : vector<1x256xi1> to vector<1x256xi1>
    %646 = vector.broadcast %645 : vector<1x256xi1> to vector<8x256xi1>
    %647 = vector.broadcast %cst_563 : f32 to vector<8x256xf32>
    %648 = arith.select %646, %644, %647 : vector<8x256xi1>, vector<8x256xf32>
    %c24_564 = arith.constant 24 : index
    %c0_565 = arith.constant 0 : index
    %649 = vector.load %arg6[%c24_564, %c0_565] : memref<432x256xf32, #tpu.memory_space<vmem>>, vector<8x256xf32>
    tpu.vector_store %arg6[%c24_564, %c0_565], %648 {strides = array<i32>} : memref<432x256xf32, #tpu.memory_space<vmem>>, vector<8x256xf32>,
    %c0_566 = arith.constant 0 : index
    %c128_567 = arith.constant 128 : index
    %650 = vector.load %arg5[%c0_566, %c128_567] : memref<48x512xf32, #tpu.memory_space<vmem>>, vector<8x256xf32>
    %c32_568 = arith.constant 32 : index
    %c0_569 = arith.constant 0 : index
    %651 = vector.load %arg6[%c32_568, %c0_569] : memref<432x256xf32, #tpu.memory_space<vmem>>, vector<8x256xf32>
    tpu.vector_store %arg6[%c32_568, %c0_569], %650 {strides = array<i32>} : memref<432x256xf32, #tpu.memory_space<vmem>>, vector<8x256xf32>,
    %c0_570 = arith.constant 0 : index
    %c129_571 = arith.constant 129 : index
    %652 = vector.load %arg5[%c0_570, %c129_571] : memref<48x512xf32, #tpu.memory_space<vmem>>, vector<8x256xf32>
    %cst_572 = arith.constant 0.000000e+00 : f32
    %653 = vector.shape_cast %26 : vector<1x256xi1> to vector<1x256xi1>
    %654 = vector.broadcast %653 : vector<1x256xi1> to vector<8x256xi1>
    %655 = vector.broadcast %cst_572 : f32 to vector<8x256xf32>
    %656 = arith.select %654, %652, %655 : vector<8x256xi1>, vector<8x256xf32>
    %c40_573 = arith.constant 40 : index
    %c0_574 = arith.constant 0 : index
    %657 = vector.load %arg6[%c40_573, %c0_574] : memref<432x256xf32, #tpu.memory_space<vmem>>, vector<8x256xf32>
    tpu.vector_store %arg6[%c40_573, %c0_574], %656 {strides = array<i32>} : memref<432x256xf32, #tpu.memory_space<vmem>>, vector<8x256xf32>,
    %c0_575 = arith.constant 0 : index
    %c143_576 = arith.constant 143 : index
    %658 = vector.load %arg5[%c0_575, %c143_576] : memref<48x512xf32, #tpu.memory_space<vmem>>, vector<8x256xf32>
    %cst_577 = arith.constant 0.000000e+00 : f32
    %659 = vector.shape_cast %24 : vector<1x256xi1> to vector<1x256xi1>
    %660 = vector.broadcast %659 : vector<1x256xi1> to vector<8x256xi1>
    %661 = vector.broadcast %cst_577 : f32 to vector<8x256xf32>
    %662 = arith.select %660, %658, %661 : vector<8x256xi1>, vector<8x256xf32>
    %c48_578 = arith.constant 48 : index
    %c0_579 = arith.constant 0 : index
    %663 = vector.load %arg6[%c48_578, %c0_579] : memref<432x256xf32, #tpu.memory_space<vmem>>, vector<8x256xf32>
    tpu.vector_store %arg6[%c48_578, %c0_579], %662 {strides = array<i32>} : memref<432x256xf32, #tpu.memory_space<vmem>>, vector<8x256xf32>,
    %c0_580 = arith.constant 0 : index
    %c144_581 = arith.constant 144 : index
    %664 = vector.load %arg5[%c0_580, %c144_581] : memref<48x512xf32, #tpu.memory_space<vmem>>, vector<8x256xf32>
    %c56_582 = arith.constant 56 : index
    %c0_583 = arith.constant 0 : index
    %665 = vector.load %arg6[%c56_582, %c0_583] : memref<432x256xf32, #tpu.memory_space<vmem>>, vector<8x256xf32>
    tpu.vector_store %arg6[%c56_582, %c0_583], %664 {strides = array<i32>} : memref<432x256xf32, #tpu.memory_space<vmem>>, vector<8x256xf32>,
    %c0_584 = arith.constant 0 : index
    %c145_585 = arith.constant 145 : index
    %666 = vector.load %arg5[%c0_584, %c145_585] : memref<48x512xf32, #tpu.memory_space<vmem>>, vector<8x256xf32>
    %cst_586 = arith.constant 0.000000e+00 : f32
    %667 = vector.shape_cast %26 : vector<1x256xi1> to vector<1x256xi1>
    %668 = vector.broadcast %667 : vector<1x256xi1> to vector<8x256xi1>
    %669 = vector.broadcast %cst_586 : f32 to vector<8x256xf32>
    %670 = arith.select %668, %666, %669 : vector<8x256xi1>, vector<8x256xf32>
    %c64_587 = arith.constant 64 : index
    %c0_588 = arith.constant 0 : index
    %671 = vector.load %arg6[%c64_587, %c0_588] : memref<432x256xf32, #tpu.memory_space<vmem>>, vector<8x256xf32>
    tpu.vector_store %arg6[%c64_587, %c0_588], %670 {strides = array<i32>} : memref<432x256xf32, #tpu.memory_space<vmem>>, vector<8x256xf32>,
    %c1008 = arith.constant 1008 : index
    %c0_589 = arith.constant 0 : index
    %672 = vector.load %arg2[%c1008, %c0_589] : memref<1040x512xbf16, #tpu.memory_space<vmem>>, vector<8x72xbf16>
    %c0_590 = arith.constant 0 : index
    %c0_591 = arith.constant 0 : index
    %673 = vector.load %arg6[%c0_590, %c0_591] : memref<432x256xf32, #tpu.memory_space<vmem>>, vector<72x256xf32>
    %674 = arith.truncf %673 : vector<72x256xf32> to vector<72x256xbf16>
    %cst_592 = arith.constant dense<0.000000e+00> : vector<8x256xf32>
    %675 = tpu.matmul %672, %674, %cst_592 {dimension_numbers = #tpu.dot_dimension_numbers<[1], [0], [0], [1], [0, 0, 1, 1], [], []>} : vector<8x72xbf16>, vector<72x256xbf16>, vector<8x256xf32> -> vector<8x256xf32>
    %c0_593 = arith.constant 0 : index
    %c11 = arith.constant 11 : index
    %676 = vector.load %arg3[%c0_593, %c11] : memref<32x128xf32, #tpu.memory_space<vmem>>, vector<8x1xf32>
    %677 = vector.broadcast %676 : vector<8x1xf32> to vector<8x256xf32>
    %678 = arith.addf %675, %677 : vector<8x256xf32>
    %cst_594 = arith.constant 0.000000e+00 : f32
    %679 = vector.broadcast %cst_594 : f32 to vector<8x256xf32>
    %680 = arith.maximumf %678, %679 : vector<8x256xf32>
    %c1024 = arith.constant 1024 : index
    %c0_595 = arith.constant 0 : index
    %681 = vector.load %arg2[%c1024, %c0_595] : memref<1040x512xbf16, #tpu.memory_space<vmem>>, vector<2x8xbf16>
    %682 = arith.truncf %680 : vector<8x256xf32> to vector<8x256xbf16>
    %cst_596 = arith.constant dense<0.000000e+00> : vector<2x256xf32>
    %683 = tpu.matmul %681, %682, %cst_596 {dimension_numbers = #tpu.dot_dimension_numbers<[1], [0], [0], [1], [0, 0, 1, 1], [], []>} : vector<2x8xbf16>, vector<8x256xbf16>, vector<2x256xf32> -> vector<2x256xf32>
    %c0_597 = arith.constant 0 : index
    %c12 = arith.constant 12 : index
    %684 = vector.load %arg3[%c0_597, %c12] : memref<32x128xf32, #tpu.memory_space<vmem>>, vector<2x1xf32>
    %685 = vector.broadcast %684 : vector<2x1xf32> to vector<2x256xf32>
    %686 = arith.addf %683, %685 : vector<2x256xf32>
    %c0_598 = arith.constant 0 : index
    %c0_599 = arith.constant 0 : index
    %c0_600 = arith.constant 0 : index
    %687 = vector.load %arg4[%c0_598, %c0_599, %c0_600] : memref<1x2x256xf32, #tpu.memory_space<vmem>>, vector<1x2x256xf32>
    %688 = vector.shape_cast %687 : vector<1x2x256xf32> to vector<2x256xf32>
    %689 = vector.shape_cast %686 : vector<2x256xf32> to vector<1x2x256xf32>
    tpu.vector_store %arg4[%c0_598, %c0_599, %c0_600], %689 {strides = array<i32>} : memref<1x2x256xf32, #tpu.memory_space<vmem>>, vector<1x2x256xf32>,
    return
  }
  func.func @transform_0(%arg0: i32) -> (i32, i32, i32) {
    %c0_i32 = arith.constant 0 : i32
    %c0_i32_0 = arith.constant 0 : i32
    %c0_i32_1 = arith.constant 0 : i32
    return %arg0, %c0_i32, %c0_i32_0 : i32, i32, i32
  }
  func.func @transform_1(%arg0: i32) -> (i32, i32) {
    %c0_i32 = arith.constant 0 : i32
    %c0_i32_0 = arith.constant 0 : i32
    %c0_i32_1 = arith.constant 0 : i32
    return %c0_i32, %c0_i32_0 : i32, i32
  }
  func.func @transform_2(%arg0: i32) -> (i32, i32) {
    %c0_i32 = arith.constant 0 : i32
    %c0_i32_0 = arith.constant 0 : i32
    %c0_i32_1 = arith.constant 0 : i32
    return %c0_i32, %c0_i32_0 : i32, i32
  }
  func.func @transform_3(%arg0: i32) -> (i32, i32, i32) {
    %c0_i32 = arith.constant 0 : i32
    %c0_i32_0 = arith.constant 0 : i32
    %c0_i32_1 = arith.constant 0 : i32
    return %arg0, %c0_i32, %c0_i32_0 : i32, i32, i32
  }
}

</mosaic_0001>

<llo_original>
// kernel: unet_forward.1
$region0: #{unet_forward.1}
  #allocation0 [shape = 'u32[]', space=smem, size = 0x4, offset = 0x4, fixed_abs, tag = 'smem constant byte address 0x4 - core index']
  #allocation1 [shape = 'u32[144,128]{1,0:T(1,128)}', space=vmem, size = 0x12000, scoped, tag = 'internal scratch']
  #allocation2 [shape = 'f32[48,512]{1,0:T(8,128)}', space=vmem, size = 0x18000, scoped, tag = 'scratch operand']
  #allocation3 [shape = 'f32[432,256]{1,0:T(8,128)}', space=vmem, size = 0x6c000, scoped, tag = 'scratch operand']
  %s0 = inlined_call_operand.vmem [shape: f32[2,1,256], index: 0, kind: input, shape index: {}]
  %s1 = inlined_call_operand.hbm [shape: bf16[1040,512], index: 1, kind: input, shape index: {}]
  %s2 = inlined_call_operand.hbm [shape: f32[32,128], index: 2, kind: input, shape index: {}]
  %s3 = inlined_call_operand.vmem [shape: f32[2,2,256], index: 3, kind: output, shape index: {}]
  %s4 = sld [smem:[#allocation0]]
  $region53: #{unet_forward.1} parent=0
    _
  %s6 = ssub.s32 1, %s4
  %s7 = scalar_select 0, %s6, %s4
  $region1: #{unet_forward.1} parent=0
    #allocation4 [shape = 'u8[1064960]{0}', space=vmem, size = 0x104000, scoped, tag = 'input window, operand 1, single buffered']
    #allocation5 [shape = 's32[2]{0}', space=sflag, size = 0x8, scoped, tag = 'scoped memory for unet_forward.1']
    #allocation6 [shape = 'u8[16384]{0}', space=vmem, size = 0x4000, scoped, tag = 'input window, operand 2, single buffered']
    #allocation7 [shape = 's32[1]{0}', space=sflag, size = 0x4, scoped, tag = 'scoped memory for unet_forward.1']
    %8 = vsyncpa [#allocation5], 0
    %9 = vsyncpa [#allocation7], 0
    loop: start=0, step=1, limit=4
    $region2: #{unet_forward.1} parent=1 // loop_pre_header
      _
    $region3: #{unet_forward.1} parent=1 // loop_header
      %s11 = sphi 0, %s15
      %p12 = scmp.ge.s32.totalorder %s11, 4
      %s21 = sphi 0, %s23
      %s24 = sphi 0, %s21
      %s25 = sphi 0, %s24
      %s41 = sphi 0, %s25
      %s45 = sphi 0, %s45
      %s47 = sphi 0, %s45
      %s48 = sphi 0, %s47
      %s62 = sphi 0, %s48
      %s66 = sphi 0, %s66
      %s68 = sphi 0, %s66
      %s69 = sphi 0, %s68
      %s83 = sphi 0, %s69
      %s89 = sphi 0, %s91
      %s92 = sphi 0, %s89
      %s93 = sphi 0, %s92
      %s109 = sphi 0, %s93
    $region4: #{unet_forward.1} parent=1 // loop_header_branch
      %14 = sbr.rel (%p12) target = $region8
    $region5: #{unet_forward.1} parent=1 // loop_body
      %s16 = ssub.s32 %s11, 1
      %s17 = ssub.s32 %s11, 2
      %s18 = sadd.s32 %s11, 1
      %s19 = ssub.s32 %s11, %s18
      %p20 = scmp.eq.s32.totalorder %s19, 0
      %s22 = sadd.s32 %s21, 1
      %s23 = scalar_select %p20, %s21, %s22
      %p26 = pneg %p20
      %p27 = scmp.eq.s32.totalorder %s11, 1
      %p28 = por %p26, %p27
      %p29 = scmp.ne.s32.totalorder %s21, %s24
      %p30 = scmp.eq.s32.totalorder %s11, 0
      %p31 = por %p29, %p30
      %p32 = scmp.ne.s32.totalorder %s21, %s24
      %p33 = scmp.eq.s32.totalorder %s16, 1
      %p34 = por %p32, %p33
      %p35 = scmp.ne.s32.totalorder %s24, %s25
      %p36 = scmp.eq.s32.totalorder %s16, 0
      %p37 = por %p35, %p36
      %p38 = scmp.ne.s32.totalorder %s24, %s25
      %p39 = scmp.eq.s32.totalorder %s17, 1
      %p40 = por %p38, %p39
      %p42 = scmp.ne.s32.totalorder %s25, %s41
      %p43 = scmp.eq.s32.totalorder %s17, 0
      %p44 = por %p42, %p43
      %s46 = sadd.s32 %s45, 1
      %p49 = scmp.eq.s32.totalorder %s11, 1
      %p50 = scmp.ne.s32.totalorder %s45, %s47
      %p51 = scmp.eq.s32.totalorder %s11, 0
      %p52 = por %p50, %p51
      %p53 = scmp.ne.s32.totalorder %s45, %s47
      %p54 = scmp.eq.s32.totalorder %s16, 1
      %p55 = por %p53, %p54
      %p56 = scmp.ne.s32.totalorder %s47, %s48
      %p57 = scmp.eq.s32.totalorder %s16, 0
      %p58 = por %p56, %p57
      %p59 = scmp.ne.s32.totalorder %s47, %s48
      %p60 = scmp.eq.s32.totalorder %s17, 1
      %p61 = por %p59, %p60
      %p63 = scmp.ne.s32.totalorder %s48, %s62
      %p64 = scmp.eq.s32.totalorder %s17, 0
      %p65 = por %p63, %p64
      %s67 = sadd.s32 %s66, 1
      %p70 = scmp.eq.s32.totalorder %s11, 1
      %p71 = scmp.ne.s32.totalorder %s66, %s68
      %p72 = scmp.eq.s32.totalorder %s11, 0
      %p73 = por %p71, %p72
      %p74 = scmp.ne.s32.totalorder %s66, %s68
      %p75 = scmp.eq.s32.totalorder %s16, 1
      %p76 = por %p74, %p75
      %p77 = scmp.ne.s32.totalorder %s68, %s69
      %p78 = scmp.eq.s32.totalorder %s16, 0
      %p79 = por %p77, %p78
      %p80 = scmp.ne.s32.totalorder %s68, %s69
      %p81 = scmp.eq.s32.totalorder %s17, 1
      %p82 = por %p80, %p81
      %p84 = scmp.ne.s32.totalorder %s69, %s83
      %p85 = scmp.eq.s32.totalorder %s17, 0
      %p86 = por %p84, %p85
      %s87 = ssub.s32 %s11, %s18
      %p88 = scmp.eq.s32.totalorder %s87, 0
      %s90 = sadd.s32 %s89, 1
      %s91 = scalar_select %p88, %s89, %s90
      %p94 = pneg %p88
      %p95 = scmp.eq.s32.totalorder %s11, 1
      %p96 = por %p94, %p95
      %p97 = scmp.ne.s32.totalorder %s89, %s92
      %p98 = scmp.eq.s32.totalorder %s11, 0
      %p99 = por %p97, %p98
      %p100 = scmp.ne.s32.totalorder %s89, %s92
      %p101 = scmp.eq.s32.totalorder %s16, 1
      %p102 = por %p100, %p101
      %p103 = scmp.ne.s32.totalorder %s92, %s93
      %p104 = scmp.eq.s32.totalorder %s16, 0
      %p105 = por %p103, %p104
      %p106 = scmp.ne.s32.totalorder %s92, %s93
      %p107 = scmp.eq.s32.totalorder %s17, 1
      %p108 = por %p106, %p107
      %p110 = scmp.ne.s32.totalorder %s93, %s109
      %p111 = scmp.eq.s32.totalorder %s17, 0
      %p112 = por %p110, %p111
      %p113 = scmp.le.s32.totalorder 1, %s11
      %p114 = scmp.lt.s32.totalorder %s11, 3
      %p115 = pnand %p113, %p114
      %p116 = pneg %p115
      // Predicated region
      $region9: #{unet_forward.1} parent=5 // pred_check
        _
      $region10: #{unet_forward.1} parent=5 // pred_check_branch
        %118 = sbr.rel (%p115) target = $region12
      $region11: #{unet_forward.1} parent=5 // pred_region
        %s119 = ssub.s32 %s11, 1
        // Predicated region
        $region13: #{unet_forward.1} parent=11 // pred_check
          %p120 = pneg %p58
        $region14: #{unet_forward.1} parent=11 // pred_check_branch
          %122 = sbr.rel (%p120) target = $region16
        $region15: #{unet_forward.1} parent=11 // pred_region
          %s124 = ssub.s32 33280, 33280
          %125 = vsyncadd [#allocation5], %s124
          %s126 = sshll.u32 [#allocation4], 4
          %s127 = int_to_ptr.vmem [resolvable:$true] %s126
          %132 = dma.hbm_to_vmem [thread:$0]  %s1, 33280, %s127, [#allocation5], 256, 256, 16
        $region16: #{unet_forward.1} parent=11 // pred_fallthru
          _
        // Predicated region
        $region17: #{unet_forward.1} parent=11 // pred_check
          %p133 = pneg %p79
        $region18: #{unet_forward.1} parent=11 // pred_check_branch
          %135 = sbr.rel (%p133) target = $region20
        $region19: #{unet_forward.1} parent=11 // pred_region
          %s137 = ssub.s32 512, 512
          %138 = vsyncadd [#allocation7], %s137
          %s139 = sshll.u32 [#allocation6], 4
          %s140 = int_to_ptr.vmem [resolvable:$true] %s139
          %145 = dma.hbm_to_vmem [thread:$0]  %s2, 512, %s140, [#allocation7], 128, 128, 8
        $region20: #{unet_forward.1} parent=11 // pred_fallthru
          _
      $region12: #{unet_forward.1} parent=5 // pred_fallthru
        _
      %p146 = scmp.lt.s32.totalorder %s11, 2
      // Predicated region
      $region21: #{unet_forward.1} parent=5 // pred_check
        %p147 = pneg %p146
      $region22: #{unet_forward.1} parent=5 // pred_check_branch
        %149 = sbr.rel (%p147) target = $region24
      $region23: #{unet_forward.1} parent=5 // pred_region
        // Predicated region
        $region25: #{unet_forward.1} parent=23 // pred_check
          %p150 = pneg %p31
        $region26: #{unet_forward.1} parent=23 // pred_check_branch
          %152 = sbr.rel (%p150) target = $region28
        $region27: #{unet_forward.1} parent=23 // pred_region
          %p153 = scmp.lt.s32.totalorder %s11, 1
          %s154 = scalar_select %p153, %s11, 1
          %s155 = smul.addr %s154, 2
          %s156 = scalar_lea.vmem %s0, %s155
        $region28: #{unet_forward.1} parent=23 // pred_fallthru
          _
      $region24: #{unet_forward.1} parent=5 // pred_fallthru
        _
      %p157 = scmp.le.s32.totalorder 1, %s11
      %p158 = scmp.lt.s32.totalorder %s11, 3
      %p159 = pnand %p157, %p158
      %p160 = pneg %p159
      // Predicated region
      $region29: #{unet_forward.1} parent=5 // pred_check
        _
      $region30: #{unet_forward.1} parent=5 // pred_check_branch
        %162 = sbr.rel (%p159) target = $region32
      $region31: #{unet_forward.1} parent=5 // pred_region
        %s163 = ssub.s32 %s11, 1
        // Predicated region
        $region33: #{unet_forward.1} parent=31 // pred_check
          %p164 = pneg %p58
        $region34: #{unet_forward.1} parent=31 // pred_check_branch
          %166 = sbr.rel (%p164) target = $region36
        $region35: #{unet_forward.1} parent=31 // pred_region
          %167 = dma.done [#allocation5], 33280
        $region36: #{unet_forward.1} parent=31 // pred_fallthru
          _
        // Predicated region
        $region37: #{unet_forward.1} parent=31 // pred_check
          %p168 = pneg %p79
        $region38: #{unet_forward.1} parent=31 // pred_check_branch
          %170 = sbr.rel (%p168) target = $region40
        $region39: #{unet_forward.1} parent=31 // pred_region
          %171 = dma.done [#allocation7], 512
        $region40: #{unet_forward.1} parent=31 // pred_fallthru
          _
        %p172 = scmp.lt.s32.totalorder %s16, 1
        %s173 = scalar_select %p172, %s16, 1
        %s174 = smul.addr %s173, 2
        %s175 = scalar_lea.vmem %s0, %s174
        %p176 = pneg %p37
        %p177 = pneg %p34
        %p178 = pneg %p58
        %p179 = pneg %p55
        %p180 = pneg %p79
        %p181 = pneg %p76
        %p182 = pneg %p105
        %p183 = pneg %p102
        %p184 = scmp.lt.s32.totalorder %s16, 1
        %s185 = scalar_select %p184, %s16, 1
        %s186 = smul.addr %s185, 2
        %s187 = smul.addr %s186, 2
        %s188 = scalar_lea.vmem %s3, %s187
        %p189 = scmp.lt.s32.totalorder %s16, 1
        %s190 = scalar_select %p189, %s16, 1
        %s191 = smul.addr %s190, 2
        %s192 = scalar_lea.vmem %s0, %s191
        %p193 = scmp.lt.s32.totalorder %s16, 1
        %s194 = scalar_select %p193, %s16, 1
        %s195 = smul.addr %s194, 2
        %s196 = smul.addr %s195, 2
        %s197 = scalar_lea.vmem %s3, %s196
        %v199 = vld [vmem:[%s192] sm:$0x3]
        %vm200 = vcmask 1041272
        %201 = vst.msk [vmem:[#allocation2] sm:$0x1] %vm200, 0.0
        %vm202 = vcmask 131072
        %203 = vst.msk [vmem:[#allocation2 + $0x18] sm:$0x1] %vm202, 0.0
        %v204 = vlaneseq
        %vm205 = vcmp.ge.s32.totalorder %v204, 0
        %vm206 = vcmp.lt.s32.totalorder %v204, 256
        %vm207 = vmand %vm205, %vm206
        %s208 = scalar_lea.vmem [#allocation2], 8
        %209 = vst.msk [vmem:[%s208] ss:$8 sm:$0x3] %vm207, %v199
        %210 = vst.msk [vmem:[%s208] ss:$8 sm:$0x0] %vm207, %v199
        %v211 = vlaneseq
        %v212 = vand.u32 %v211, 127
        %v213 = vadd.s32 %v212, 128
        %vm214 = vcmp.lt.s32.totalorder %v212, 0
        %v215 = vsub.s32 0, %v212
        %v216 = vsel %vm214, %v215, %v212
        %v217 = vshrl.u32 %v216, 4
        %v218 = vand.u32 %v216, 15
        %v219 = vsub.s32 0, %v218
        %v220 = vsel %vm214, %v219, %v218
        %vm221 = vcmp.lt.s32.totalorder %v213, 0
        %v222 = vsub.s32 0, %v213
        %v223 = vsel %vm221, %v222, %v213
        %v224 = vshrl.u32 %v223, 4
        %v225 = vand.u32 %v223, 15
        %v226 = vsub.s32 0, %v225
        %v227 = vsel %vm221, %v226, %v225
        %vm228 = vcmp.ne.s32.totalorder %v220, 0
        %vm229 = vcmp.ne.s32.totalorder %v227, 0
        %vm230 = vcmp.lt.s32.totalorder %v220, 0
        %vm231 = vcmp.lt.s32.totalorder %v227, 0
        %vm232 = vmand %vm230, %vm228
        %vm233 = vmand %vm231, %vm229
        %v234 = vadd.s32 %v220, 16
        %v235 = vadd.s32 %v227, 16
        %v236 = vsel %vm232, %v234, %v220
        %v237 = vsel %vm233, %v235, %v227
        %vm238 = vcmp.gt.s32.totalorder %v236, 0
        %vm239 = vcmp.gt.s32.totalorder %v237, 0
        %vm240 = vcmp.lt.s32.totalorder %v236, 15
        %vm241 = vcmp.lt.s32.totalorder %v237, 15
        %v242 = vld [vmem:[#allocation2] ss:$8 sm:$0x7]
        %v244 = vlaneseq
        %v245 = vshrl.u32 %v244, 7
        %v246 = vsub.s32 0, %v245
        %v247 = vrot.slane %v242, %v246
        %v248 = vlaneseq
        %v249 = vshrl.u32 %v248, 7
        %v250 = vsub.s32 1, %v249
        %v251 = vrot.slane %v242, %v250
        %v252 = vlaneseq
        %v253 = vshrl.u32 %v252, 7
        %v254 = vsub.s32 2, %v253
        %v255 = vrot.slane %v242, %v254
        %256 = vrot.lane.b32.xlu0 %v247, 17
        %v257 = vpop.permute.xlu0 %256
        %258 = vrot.lane.b32.xlu0 %v251, 17
        %v259 = vpop.permute.xlu0 %258
        %260 = vrot.lane.b32.xlu0 %v255, 17
        %v261 = vpop.permute.xlu0 %260
        %vm262 = vcmask 138240
        %v263 = vsel %vm262, %v257, %v259
        %v264 = vsel %vm262, %v259, %v261
        %v267 = vsel %vm238, %v263, 0.0
        %v268 = vsel %vm239, %v264, 0.0
        %v271 = vcombine.low %v267, %v268
        %v273 = vunpack.c.l.s4 1966171168
        %v274 = vunpack.c.0.s8 %v273
        %v275 = vlaneseq
        %v276 = vshrl.u32 %v275, 7
        %v277 = vsub.s32 %v274, %v276
        %v278 = vrot.slane %v271, %v277
        %v280 = vunpack.c.l.s4 1966171168
        %v281 = vunpack.c.0.s8 %v280
        %v282 = vlaneseq
        %v283 = vshrl.u32 %v282, 7
        %v284 = vsub.s32 %v281, %v283
        %v285 = vrot.slane %v278, %v284
        %287 = vst.msk [vmem:[#allocation3] ss:$8 sm:$0x3] %vm207, %v285
        %288 = vst.msk [vmem:[#allocation3] ss:$8 sm:$0x0] %vm207, %v285
        %v289 = vld [vmem:[#allocation2] ss:$8 sm:$0x7]
        %291 = vrot.lane.b32.xlu0 %v289, 16
        %v292 = vpop.permute.xlu0 %291
        %v293 = vrot.slane %v292, 1
        %vm294 = vcmask 130048
        %v295 = vsel %vm294, %v292, %v293
        %s297 = scalar_lea.vmem [#allocation3], 1
        %298 = vst.msk [vmem:[%s297] ss:$8 sm:$0x3] %vm207, %v295
        %299 = vst.msk [vmem:[%s297] ss:$8 sm:$0x0] %vm207, %v295
        %v300 = vld [vmem:[#allocation2] ss:$8 sm:$0x7]
        %v302 = vlaneseq
        %v303 = vshrl.u32 %v302, 7
        %v304 = vsub.s32 0, %v303
        %v305 = vrot.slane %v300, %v304
        %v306 = vlaneseq
        %v307 = vshrl.u32 %v306, 7
        %v308 = vsub.s32 1, %v307
        %v309 = vrot.slane %v300, %v308
        %v310 = vlaneseq
        %v311 = vshrl.u32 %v310, 7
        %v312 = vsub.s32 2, %v311
        %v313 = vrot.slane %v300, %v312
        %314 = vrot.lane.b32.xlu0 %v305, 15
        %v315 = vpop.permute.xlu0 %314
        %316 = vrot.lane.b32.xlu0 %v309, 15
        %v317 = vpop.permute.xlu0 %316
        %318 = vrot.lane.b32.xlu0 %v313, 15
        %v319 = vpop.permute.xlu0 %318
        %vm320 = vcmask 121856
        %v321 = vsel %vm320, %v315, %v317
        %v322 = vsel %vm320, %v317, %v319
        %v325 = vsel %vm240, %v321, 0.0
        %v326 = vsel %vm241, %v322, 0.0
        %v329 = vcombine.low %v325, %v326
        %v331 = vunpack.c.l.s4 1966171168
        %v332 = vunpack.c.0.s8 %v331
        %v333 = vlaneseq
        %v334 = vshrl.u32 %v333, 7
        %v335 = vsub.s32 %v332, %v334
        %v336 = vrot.slane %v329, %v335
        %v338 = vunpack.c.l.s4 1966171168
        %v339 = vunpack.c.0.s8 %v338
        %v340 = vlaneseq
        %v341 = vshrl.u32 %v340, 7
        %v342 = vsub.s32 %v339, %v341
        %v343 = vrot.slane %v336, %v342
        %s345 = scalar_lea.vmem [#allocation3], 2
        %346 = vst.msk [vmem:[%s345] ss:$8 sm:$0x3] %vm207, %v343
        %347 = vst.msk [vmem:[%s345] ss:$8 sm:$0x0] %vm207, %v343
        %v348 = vld [vmem:[#allocation2] ss:$8 sm:$0x7]
        %v350 = vlaneseq
        %v351 = vshrl.u32 %v350, 7
        %v352 = vsub.s32 0, %v351
        %v353 = vrot.slane %v348, %v352
        %v354 = vlaneseq
        %v355 = vshrl.u32 %v354, 7
        %v356 = vsub.s32 1, %v355
        %v357 = vrot.slane %v348, %v356
        %v358 = vlaneseq
        %v359 = vshrl.u32 %v358, 7
        %v360 = vsub.s32 2, %v359
        %v361 = vrot.slane %v348, %v360
        %362 = vrot.lane.b32.xlu0 %v353, 1
        %v363 = vpop.permute.xlu0 %362
        %364 = vrot.lane.b32.xlu0 %v357, 1
        %v365 = vpop.permute.xlu0 %364
        %366 = vrot.lane.b32.xlu0 %v361, 1
        %v367 = vpop.permute.xlu0 %366
        %vm368 = vcmask 7168
        %v369 = vsel %vm368, %v363, %v365
        %v370 = vsel %vm368, %v365, %v367
        %v373 = vsel %vm238, %v369, 0.0
        %v374 = vsel %vm239, %v370, 0.0
        %v377 = vcombine.low %v373, %v374
        %v379 = vunpack.c.l.s4 1966171168
        %v380 = vunpack.c.0.s8 %v379
        %v381 = vlaneseq
        %v382 = vshrl.u32 %v381, 7
        %v383 = vsub.s32 %v380, %v382
        %v384 = vrot.slane %v377, %v383
        %v386 = vunpack.c.l.s4 1966171168
        %v387 = vunpack.c.0.s8 %v386
        %v388 = vlaneseq
        %v389 = vshrl.u32 %v388, 7
        %v390 = vsub.s32 %v387, %v389
        %v391 = vrot.slane %v384, %v390
        %s393 = scalar_lea.vmem [#allocation3], 3
        %394 = vst.msk [vmem:[%s393] ss:$8 sm:$0x3] %vm207, %v391
        %395 = vst.msk [vmem:[%s393] ss:$8 sm:$0x0] %vm207, %v391
        %v396 = vld [vmem:[%s208] ss:$8 sm:$0x3]
        %s397 = scalar_lea.vmem [#allocation3], 4
        %398 = vst.msk [vmem:[%s397] ss:$8 sm:$0x3] %vm207, %v396
        %399 = vst.msk [vmem:[%s397] ss:$8 sm:$0x0] %vm207, %v396
        %v400 = vld [vmem:[%s208] ss:$8 sm:$0x7]
        %v402 = vlaneseq
        %v403 = vshrl.u32 %v402, 7
        %v404 = vsub.s32 0, %v403
        %v405 = vrot.slane %v400, %v404
        %v406 = vlaneseq
        %v407 = vshrl.u32 %v406, 7
        %v408 = vsub.s32 1, %v407
        %v409 = vrot.slane %v400, %v408
        %v410 = vlaneseq
        %v411 = vshrl.u32 %v410, 7
        %v412 = vsub.s32 2, %v411
        %v413 = vrot.slane %v400, %v412
        %414 = vrot.lane.b32.xlu0 %v405, 127
        %v415 = vpop.permute.xlu0 %414
        %416 = vrot.lane.b32.xlu0 %v409, 127
        %v417 = vpop.permute.xlu0 %416
        %418 = vrot.lane.b32.xlu0 %v413, 127
        %v419 = vpop.permute.xlu0 %418
        %vm420 = vcmask 1039360
        %v421 = vsel %vm420, %v415, %v417
        %v422 = vsel %vm420, %v417, %v419
        %v425 = vsel %vm240, %v421, 0.0
        %v426 = vsel %vm241, %v422, 0.0
        %v429 = vcombine.low %v425, %v426
        %v431 = vunpack.c.l.s4 1966171168
        %v432 = vunpack.c.0.s8 %v431
        %v433 = vlaneseq
        %v434 = vshrl.u32 %v433, 7
        %v435 = vsub.s32 %v432, %v434
        %v436 = vrot.slane %v429, %v435
        %v438 = vunpack.c.l.s4 1966171168
        %v439 = vunpack.c.0.s8 %v438
        %v440 = vlaneseq
        %v441 = vshrl.u32 %v440, 7
        %v442 = vsub.s32 %v439, %v441
        %v443 = vrot.slane %v436, %v442
        %s445 = scalar_lea.vmem [#allocation3], 5
        %446 = vst.msk [vmem:[%s445] ss:$8 sm:$0x3] %vm207, %v443
        %447 = vst.msk [vmem:[%s445] ss:$8 sm:$0x0] %vm207, %v443
        %v448 = vld [vmem:[%s208] ss:$8 sm:$0x7]
        %v450 = vlaneseq
        %v451 = vshrl.u32 %v450, 7
        %v452 = vsub.s32 0, %v451
        %v453 = vrot.slane %v448, %v452
        %v454 = vlaneseq
        %v455 = vshrl.u32 %v454, 7
        %v456 = vsub.s32 1, %v455
        %v457 = vrot.slane %v448, %v456
        %v458 = vlaneseq
        %v459 = vshrl.u32 %v458, 7
        %v460 = vsub.s32 2, %v459
        %v461 = vrot.slane %v448, %v460
        %462 = vrot.lane.b32.xlu0 %v453, 113
        %v463 = vpop.permute.xlu0 %462
        %464 = vrot.lane.b32.xlu0 %v457, 113
        %v465 = vpop.permute.xlu0 %464
        %466 = vrot.lane.b32.xlu0 %v461, 113
        %v467 = vpop.permute.xlu0 %466
        %vm468 = vcmask 924672
        %v469 = vsel %vm468, %v463, %v465
        %v470 = vsel %vm468, %v465, %v467
        %v473 = vsel %vm238, %v469, 0.0
        %v474 = vsel %vm239, %v470, 0.0
        %v477 = vcombine.low %v473, %v474
        %v479 = vunpack.c.l.s4 1966171168
        %v480 = vunpack.c.0.s8 %v479
        %v481 = vlaneseq
        %v482 = vshrl.u32 %v481, 7
        %v483 = vsub.s32 %v480, %v482
        %v484 = vrot.slane %v477, %v483
        %v486 = vunpack.c.l.s4 1966171168
        %v487 = vunpack.c.0.s8 %v486
        %v488 = vlaneseq
        %v489 = vshrl.u32 %v488, 7
        %v490 = vsub.s32 %v487, %v489
        %v491 = vrot.slane %v484, %v490
        %s493 = scalar_lea.vmem [#allocation3], 6
        %494 = vst.msk [vmem:[%s493] ss:$8 sm:$0x3] %vm207, %v491
        %495 = vst.msk [vmem:[%s493] ss:$8 sm:$0x0] %vm207, %v491
        %v496 = vld [vmem:[%s208] ss:$8 sm:$0x7]
        %498 = vrot.lane.b32.xlu0 %v496, 112
        %v499 = vpop.permute.xlu0 %498
        %v500 = vrot.slane %v499, 1
        %vm501 = vcmask 916480
        %v502 = vsel %vm501, %v499, %v500
        %s504 = scalar_lea.vmem [#allocation3], 7
        %505 = vst.msk [vmem:[%s504] ss:$8 sm:$0x3] %vm207, %v502
        %506 = vst.msk [vmem:[%s504] ss:$8 sm:$0x0] %vm207, %v502
        %v507 = vld [vmem:[%s208] ss:$8 sm:$0x7]
        %v509 = vlaneseq
        %v510 = vshrl.u32 %v509, 7
        %v511 = vsub.s32 0, %v510
        %v512 = vrot.slane %v507, %v511
        %v513 = vlaneseq
        %v514 = vshrl.u32 %v513, 7
        %v515 = vsub.s32 1, %v514
        %v516 = vrot.slane %v507, %v515
        %v517 = vlaneseq
        %v518 = vshrl.u32 %v517, 7
        %v519 = vsub.s32 2, %v518
        %v520 = vrot.slane %v507, %v519
        %521 = vrot.lane.b32.xlu0 %v512, 111
        %v522 = vpop.permute.xlu0 %521
        %523 = vrot.lane.b32.xlu0 %v516, 111
        %v524 = vpop.permute.xlu0 %523
        %525 = vrot.lane.b32.xlu0 %v520, 111
        %v526 = vpop.permute.xlu0 %525
        %vm527 = vcmask 908288
        %v528 = vsel %vm527, %v522, %v524
        %v529 = vsel %vm527, %v524, %v526
        %v532 = vsel %vm240, %v528, 0.0
        %v533 = vsel %vm241, %v529, 0.0
        %v536 = vcombine.low %v532, %v533
        %v538 = vunpack.c.l.s4 1966171168
        %v539 = vunpack.c.0.s8 %v538
        %v540 = vlaneseq
        %v541 = vshrl.u32 %v540, 7
        %v542 = vsub.s32 %v539, %v541
        %v543 = vrot.slane %v536, %v542
        %v545 = vunpack.c.l.s4 1966171168
        %v546 = vunpack.c.0.s8 %v545
        %v547 = vlaneseq
        %v548 = vshrl.u32 %v547, 7
        %v549 = vsub.s32 %v546, %v548
        %v550 = vrot.slane %v543, %v549
        %s552 = scalar_lea.vmem [#allocation3], 16
        %553 = vst.msk [vmem:[%s552] ss:$8 sm:$0x3] %vm207, %v550
        %554 = vst.msk [vmem:[%s552] ss:$8 sm:$0x0] %vm207, %v550
        %v555 = vld [vmem:[#allocation4] sm:$0xf]
        %v556 = vld [vmem:[#allocation3] sm:$0xff]
        %v557 = vld [vmem:[#allocation3 + $0x8] sm:$0xff]
        %v558 = vld [vmem:[#allocation3 + $0x10] sm:$0x1]
        %v559 = vld [vmem:[#allocation3 + $0x18] sm:$0x1]
        %v560 = vpack.c.bf16 %v558, %v556
        %v561 = vpack.c.bf16 %v559, %v557
        %v562 = vld [vmem:[#allocation6] sm:$0xff]
        %564 = vset.pattern.permute.xlu0 0
        %565 = vperm.xlu0 %564, %v562
        %v566 = vpop.permute.xlu0 %565
        %vm568 = vcmask 72704
        %v570 = vsel %vm568, %v555, 0
        %vm572 = vcmask 1043456
        %vm573 = vcmask 1044480
        %v574 = vsel %vm572, 4294967295, 65535
        %v575 = vsel %vm573, %v574, 0
        %v577 = vand.u32 %v560, %v575
        %v580 = vand.u32 %v561, %v575
        %582 = vmatprep.subr.bf16.mxu0 %v580
        %583 = vmatpush1.bf16.msra.mxu0 %v577
        %584 = vmatprep.subr.bf16.mxu0 0
        %585 = vmatpush1.bf16.msra.mxu0 0
        %586 = vmatprep.subr.bf16.mxu0 0
        %587 = vmatpush1.bf16.msra.mxu0 0
        %588 = vmatprep.subr.bf16.mxu0 0
        %589 = vmatpush1.bf16.msra.mxu0 0
        %590 = vmatprep.subr.bf16.mxu0 0
        %591 = vmatpush1.bf16.msra.mxu0 0
        %592 = vmatprep.subr.bf16.mxu0 0
        %593 = vmatpush1.bf16.msra.mxu0 0
        %594 = vmatprep.subr.bf16.mxu0 0
        %595 = vmatpush1.bf16.msra.mxu0 0
        %596 = vmatprep.subr.bf16.mxu0 0
        %597 = vmatpush1.bf16.msra.mxu0 0
        %598 = vmatprep.subr.bf16.mxu0 0
        %599 = vmatpush1.bf16.msra.mxu0 0
        %600 = vmatprep.subr.bf16.mxu0 0
        %601 = vmatpush1.bf16.msra.mxu0 0
        %602 = vmatprep.subr.bf16.mxu0 0
        %603 = vmatpush1.bf16.msra.mxu0 0
        %604 = vmatprep.subr.bf16.mxu0 0
        %605 = vmatpush1.bf16.msra.mxu0 0
        %606 = vmatprep.subr.bf16.mxu0 0
        %607 = vmatpush1.bf16.msra.mxu0 0
        %608 = vmatprep.subr.bf16.mxu0 0
        %609 = vmatpush1.bf16.msra.mxu0 0
        %610 = vmatprep.subr.bf16.mxu0 0
        %611 = vmatpush1.bf16.msra.mxu0 0
        %612 = vmatprep.subr.bf16.mxu0 0
        %613 = vmatpush1.bf16.msra.mxu0 0
        %614 = vmatprep.mubr.bf16.mxu0 0
        %615 = vmatmul.mubr.bf16.gmra.mrb[0].mxu0 %v570
        %v616 = vpop.f32.mrb[0].mxu0
        %v617 = vadd.f32 %v566, %v616
        %v618 = vpop.f32.mrb[0].mxu0
        %v619 = vadd.f32 %v566, %v618
        %v620 = vpop.f32.mrb[0].mxu0
        %v621 = vpop.f32.mrb[0].mxu0
        %622 = vdwg.mxu0
        %v623 = vmax.f32 %v617, 0.0
        %v624 = vmax.f32 %v619, 0.0
        %vm625 = vcmask 1048440
        %626 = vst.msk [vmem:[#allocation2] sm:$0xff] %vm625, 0.0
        %627 = vst.msk [vmem:[#allocation2 + $0x18] sm:$0xff] %vm262, 0.0
        %628 = vst [vmem:[#allocation2 + $0x8] sm:$0xff] %v623
        %629 = vst [vmem:[#allocation2 + $0x10] sm:$0xff] %v624
        %v630 = vld [vmem:[#allocation2] sm:$0xff]
        %v631 = vld [vmem:[#allocation2 + $0x8] sm:$0xff]
        %v632 = vld [vmem:[#allocation2 + $0x10] sm:$0xff]
        %v633 = vsel %vm238, 1, 0
        %v634 = vsel %vm239, 1, 0
        %vm635 = vcmp.eq.s32.totalorder %v633, 1
        %vm636 = vcmp.eq.s32.totalorder %v634, 1
        %640 = vrot.lane.b32.xlu0 %v630, 17
        %v641 = vpop.permute.xlu0 %640
        %642 = vrot.lane.b32.xlu0 %v631, 17
        %v643 = vpop.permute.xlu0 %642
        %644 = vrot.lane.b32.xlu0 %v632, 17
        %v645 = vpop.permute.xlu0 %644
        %v646 = vsel %vm262, %v641, %v643
        %v647 = vsel %vm262, %v643, %v645
        %v650 = vsel %vm635, %v646, 0.0
        %v651 = vsel %vm636, %v647, 0.0
        %652 = vst [vmem:[#allocation3] sm:$0xff] %v650
        %653 = vst [vmem:[#allocation3 + $0x8] sm:$0xff] %v651
        %v654 = vld [vmem:[#allocation2] sm:$0xff]
        %v655 = vld [vmem:[#allocation2 + $0x8] sm:$0xff]
        %v656 = vld [vmem:[#allocation2 + $0x10] sm:$0xff]
        %660 = vrot.lane.b32.xlu0 %v654, 16
        %v661 = vpop.permute.xlu0 %660
        %662 = vrot.lane.b32.xlu0 %v655, 16
        %v663 = vpop.permute.xlu0 %662
        %664 = vrot.lane.b32.xlu0 %v656, 16
        %v665 = vpop.permute.xlu0 %664
        %v666 = vsel %vm294, %v661, %v663
        %v667 = vsel %vm294, %v663, %v665
        %670 = vst [vmem:[#allocation3 + $0x10] sm:$0xff] %v666
        %671 = vst [vmem:[#allocation3 + $0x18] sm:$0xff] %v667
        %v672 = vld [vmem:[#allocation2] sm:$0xff]
        %v673 = vld [vmem:[#allocation2 + $0x8] sm:$0xff]
        %v674 = vld [vmem:[#allocation2 + $0x10] sm:$0xff]
        %v675 = vsel %vm240, 1, 0
        %v676 = vsel %vm241, 1, 0
        %vm677 = vcmp.eq.s32.totalorder %v675, 1
        %vm678 = vcmp.eq.s32.totalorder %v676, 1
        %682 = vrot.lane.b32.xlu0 %v672, 15
        %v683 = vpop.permute.xlu0 %682
        %684 = vrot.lane.b32.xlu0 %v673, 15
        %v685 = vpop.permute.xlu0 %684
        %686 = vrot.lane.b32.xlu0 %v674, 15
        %v687 = vpop.permute.xlu0 %686
        %v688 = vsel %vm320, %v683, %v685
        %v689 = vsel %vm320, %v685, %v687
        %v692 = vsel %vm677, %v688, 0.0
        %v693 = vsel %vm678, %v689, 0.0
        %694 = vst [vmem:[#allocation3 + $0x20] sm:$0xff] %v692
        %695 = vst [vmem:[#allocation3 + $0x28] sm:$0xff] %v693
        %v696 = vld [vmem:[#allocation2] sm:$0xff]
        %v697 = vld [vmem:[#allocation2 + $0x8] sm:$0xff]
        %v698 = vld [vmem:[#allocation2 + $0x10] sm:$0xff]
        %702 = vrot.lane.b32.xlu0 %v696, 1
        %v703 = vpop.permute.xlu0 %702
        %704 = vrot.lane.b32.xlu0 %v697, 1
        %v705 = vpop.permute.xlu0 %704
        %706 = vrot.lane.b32.xlu0 %v698, 1
        %v707 = vpop.permute.xlu0 %706
        %v708 = vsel %vm368, %v703, %v705
        %v709 = vsel %vm368, %v705, %v707
        %v712 = vsel %vm635, %v708, 0.0
        %v713 = vsel %vm636, %v709, 0.0
        %714 = vst [vmem:[#allocation3 + $0x30] sm:$0xff] %v712
        %715 = vst [vmem:[#allocation3 + $0x38] sm:$0xff] %v713
        %v716 = vld [vmem:[#allocation2 + $0x8] sm:$0xff]
        %v717 = vld [vmem:[#allocation2 + $0x10] sm:$0xff]
        %718 = vst [vmem:[#allocation3 + $0x40] sm:$0xff] %v716
        %719 = vst [vmem:[#allocation3 + $0x48] sm:$0xff] %v717
        %v720 = vld [vmem:[#allocation2 + $0x8] sm:$0xff]
        %v721 = vld [vmem:[#allocation2 + $0x10] sm:$0xff]
        %v722 = vld [vmem:[#allocation2 + $0x18] sm:$0xff]
        %726 = vrot.lane.b32.xlu0 %v720, 127
        %v727 = vpop.permute.xlu0 %726
        %728 = vrot.lane.b32.xlu0 %v721, 127
        %v729 = vpop.permute.xlu0 %728
        %730 = vrot.lane.b32.xlu0 %v722, 127
        %v731 = vpop.permute.xlu0 %730
        %v732 = vsel %vm420, %v727, %v729
        %v733 = vsel %vm420, %v729, %v731
        %v736 = vsel %vm677, %v732, 0.0
        %v737 = vsel %vm678, %v733, 0.0
        %738 = vst [vmem:[#allocation3 + $0x50] sm:$0xff] %v736
        %739 = vst [vmem:[#allocation3 + $0x58] sm:$0xff] %v737
        %v740 = vld [vmem:[#allocation2 + $0x8] sm:$0xff]
        %v741 = vld [vmem:[#allocation2 + $0x10] sm:$0xff]
        %v742 = vld [vmem:[#allocation2 + $0x18] sm:$0xff]
        %746 = vrot.lane.b32.xlu0 %v740, 113
        %v747 = vpop.permute.xlu0 %746
        %748 = vrot.lane.b32.xlu0 %v741, 113
        %v749 = vpop.permute.xlu0 %748
        %750 = vrot.lane.b32.xlu0 %v742, 113
        %v751 = vpop.permute.xlu0 %750
        %v752 = vsel %vm468, %v747, %v749
        %v753 = vsel %vm468, %v749, %v751
        %v756 = vsel %vm635, %v752, 0.0
        %v757 = vsel %vm636, %v753, 0.0
        %758 = vst [vmem:[#allocation3 + $0x60] sm:$0xff] %v756
        %759 = vst [vmem:[#allocation3 + $0x68] sm:$0xff] %v757
        %v760 = vld [vmem:[#allocation2 + $0x8] sm:$0xff]
        %v761 = vld [vmem:[#allocation2 + $0x10] sm:$0xff]
        %v762 = vld [vmem:[#allocation2 + $0x18] sm:$0xff]
        %766 = vrot.lane.b32.xlu0 %v760, 112
        %v767 = vpop.permute.xlu0 %766
        %768 = vrot.lane.b32.xlu0 %v761, 112
        %v769 = vpop.permute.xlu0 %768
        %770 = vrot.lane.b32.xlu0 %v762, 112
        %v771 = vpop.permute.xlu0 %770
        %v772 = vsel %vm501, %v767, %v769
        %v773 = vsel %vm501, %v769, %v771
        %776 = vst [vmem:[#allocation3 + $0x70] sm:$0xff] %v772
        %777 = vst [vmem:[#allocation3 + $0x78] sm:$0xff] %v773
        %v778 = vld [vmem:[#allocation2 + $0x8] sm:$0xff]
        %v779 = vld [vmem:[#allocation2 + $0x10] sm:$0xff]
        %v780 = vld [vmem:[#allocation2 + $0x18] sm:$0xff]
        %784 = vrot.lane.b32.xlu0 %v778, 111
        %v785 = vpop.permute.xlu0 %784
        %786 = vrot.lane.b32.xlu0 %v779, 111
        %v787 = vpop.permute.xlu0 %786
        %788 = vrot.lane.b32.xlu0 %v780, 111
        %v789 = vpop.permute.xlu0 %788
        %v790 = vsel %vm527, %v785, %v787
        %v791 = vsel %vm527, %v787, %v789
        %v794 = vsel %vm677, %v790, 0.0
        %v795 = vsel %vm678, %v791, 0.0
        %796 = vst [vmem:[#allocation3 + $0x80] sm:$0xff] %v794
        %797 = vst [vmem:[#allocation3 + $0x88] sm:$0xff] %v795
        %v798 = vld [vmem:[#allocation4 + $0x20] sm:$0xf]
        %v799 = vld [vmem:[#allocation3] sm:$0xff]
        %v800 = vld [vmem:[#allocation3 + $0x8] sm:$0xff]
        %v801 = vld [vmem:[#allocation3 + $0x10] sm:$0xff]
        %v802 = vld [vmem:[#allocation3 + $0x18] sm:$0xff]
        %v803 = vld [vmem:[#allocation3 + $0x20] sm:$0xff]
        %v804 = vld [vmem:[#allocation3 + $0x28] sm:$0xff]
        %v805 = vld [vmem:[#allocation3 + $0x30] sm:$0xff]
        %v806 = vld [vmem:[#allocation3 + $0x38] sm:$0xff]
        %v807 = vld [vmem:[#allocation3 + $0x40] sm:$0xff]
        %v808 = vld [vmem:[#allocation3 + $0x48] sm:$0xff]
        %v809 = vld [vmem:[#allocation3 + $0x50] sm:$0xff]
        %v810 = vld [vmem:[#allocation3 + $0x58] sm:$0xff]
        %v811 = vld [vmem:[#allocation3 + $0x60] sm:$0xff]
        %v812 = vld [vmem:[#allocation3 + $0x68] sm:$0xff]
        %v813 = vld [vmem:[#allocation3 + $0x70] sm:$0xff]
        %v814 = vld [vmem:[#allocation3 + $0x78] sm:$0xff]
        %v815 = vld [vmem:[#allocation3 + $0x80] sm:$0xff]
        %v816 = vld [vmem:[#allocation3 + $0x88] sm:$0xff]
        %v817 = vpack.c.bf16 %v801, %v799
        %v818 = vpack.c.bf16 %v802, %v800
        %v819 = vpack.c.bf16 %v805, %v803
        %v820 = vpack.c.bf16 %v806, %v804
        %v821 = vpack.c.bf16 %v809, %v807
        %v822 = vpack.c.bf16 %v810, %v808
        %v823 = vpack.c.bf16 %v813, %v811
        %v824 = vpack.c.bf16 %v814, %v812
        %v825 = vpack.c.bf16 %v815, %v815
        %v826 = vpack.c.bf16 %v816, %v816
        %v827 = vld [vmem:[#allocation6] sm:$0xff]
        %829 = vset.pattern.permute.xlu0 1
        %830 = vperm.xlu0 %829, %v827
        %v831 = vpop.permute.xlu0 %830
        %vm833 = vcmask 588800
        %v835 = vsel %vm833, %v798, 0
        %v838 = vsel %vm572, %v825, 0
        %v841 = vsel %vm572, %v826, 0
        %843 = vmatprep.subr.bf16.mxu0 %v818
        %844 = vmatpush1.bf16.msra.mxu0 %v817
        %845 = vmatprep.subr.bf16.mxu0 %v820
        %846 = vmatpush1.bf16.msra.mxu0 %v819
        %847 = vmatprep.subr.bf16.mxu0 %v822
        %848 = vmatpush1.bf16.msra.mxu0 %v821
        %849 = vmatprep.subr.bf16.mxu0 %v824
        %850 = vmatpush1.bf16.msra.mxu0 %v823
        %851 = vmatprep.subr.bf16.mxu0 %v841
        %852 = vmatpush1.bf16.msra.mxu0 %v838
        %853 = vmatprep.subr.bf16.mxu0 0
        %854 = vmatpush1.bf16.msra.mxu0 0
        %855 = vmatprep.subr.bf16.mxu0 0
        %856 = vmatpush1.bf16.msra.mxu0 0
        %857 = vmatprep.subr.bf16.mxu0 0
        %858 = vmatpush1.bf16.msra.mxu0 0
        %859 = vmatprep.subr.bf16.mxu0 0
        %860 = vmatpush1.bf16.msra.mxu0 0
        %861 = vmatprep.subr.bf16.mxu0 0
        %862 = vmatpush1.bf16.msra.mxu0 0
        %863 = vmatprep.subr.bf16.mxu0 0
        %864 = vmatpush1.bf16.msra.mxu0 0
        %865 = vmatprep.subr.bf16.mxu0 0
        %866 = vmatpush1.bf16.msra.mxu0 0
        %867 = vmatprep.subr.bf16.mxu0 0
        %868 = vmatpush1.bf16.msra.mxu0 0
        %869 = vmatprep.subr.bf16.mxu0 0
        %870 = vmatpush1.bf16.msra.mxu0 0
        %871 = vmatprep.subr.bf16.mxu0 0
        %872 = vmatpush1.bf16.msra.mxu0 0
        %873 = vmatprep.subr.bf16.mxu0 0
        %874 = vmatpush1.bf16.msra.mxu0 0
        %875 = vmatprep.mubr.bf16.mxu0 0
        %876 = vmatmul.mubr.bf16.gmra.mrb[0].mxu0 %v835
        %v877 = vpop.f32.mrb[0].mxu0
        %v878 = vadd.f32 %v831, %v877
        %v879 = vpop.f32.mrb[0].mxu0
        %v880 = vadd.f32 %v831, %v879
        %v881 = vpop.f32.mrb[0].mxu0
        %v882 = vpop.f32.mrb[0].mxu0
        %883 = vdwg.mxu0
        %v884 = vmax.f32 %v878, 0.0
        %v885 = vmax.f32 %v880, 0.0
        %886 = vst.msk [vmem:[#allocation2] sm:$0xff] %vm625, 0.0
        %887 = vst.msk [vmem:[#allocation2 + $0x18] sm:$0xff] %vm262, 0.0
        %888 = vst [vmem:[#allocation2 + $0x8] sm:$0xff] %v884
        %889 = vst [vmem:[#allocation2 + $0x10] sm:$0xff] %v885
        %v890 = vld [vmem:[#allocation2 + $0x8] sm:$0xff]
        %v891 = vld [vmem:[#allocation2 + $0x10] sm:$0xff]
        %v892 = vld [vmem:[#allocation2 + $0x18] sm:$0xff]
        %896 = vrot.lane.b32.xlu0 %v890, 127
        %v897 = vpop.permute.xlu0 %896
        %898 = vrot.lane.b32.xlu0 %v891, 127
        %v899 = vpop.permute.xlu0 %898
        %900 = vrot.lane.b32.xlu0 %v892, 127
        %v901 = vpop.permute.xlu0 %900
        %v902 = vsel %vm420, %v897, %v899
        %v903 = vsel %vm420, %v899, %v901
        %v906 = vmax.f32 %v890, %v902
        %v907 = vmax.f32 %v891, %v903
        %v909 = vmax.f32 %v892, %v901
        %913 = vrot.lane.b32.xlu0 %v906, 112
        %v914 = vpop.permute.xlu0 %913
        %915 = vrot.lane.b32.xlu0 %v907, 112
        %v916 = vpop.permute.xlu0 %915
        %917 = vrot.lane.b32.xlu0 %v909, 112
        %v918 = vpop.permute.xlu0 %917
        %v919 = vsel %vm501, %v914, %v916
        %v920 = vsel %vm501, %v916, %v918
        %v923 = vmax.f32 %v906, %v919
        %v924 = vmax.f32 %v907, %v920
        %v925 = vld [vmem:[#allocation4 + $0x40] sm:$0xf]
        %v926 = vld [vmem:[#allocation4 + $0x50] sm:$0xf]
        %v927 = vld [vmem:[#allocation4 + $0x60] sm:$0xf]
        %v928 = vld [vmem:[#allocation4 + $0x70] sm:$0xf]
        %v929 = vld [vmem:[#allocation4 + $0x80] sm:$0xf]
        %v930 = vld [vmem:[#allocation4 + $0x90] sm:$0xf]
        %v931 = vld [vmem:[#allocation4 + $0xa0] sm:$0xf]
        %v932 = vld [vmem:[#allocation4 + $0xb0] sm:$0xf]
        %v933 = vld [vmem:[#allocation4 + $0xc0] sm:$0xf]
        %v934 = vld [vmem:[#allocation4 + $0xd0] sm:$0xf]
        %v935 = vld [vmem:[#allocation4 + $0xe0] sm:$0xf]
        %v936 = vld [vmem:[#allocation4 + $0xf0] sm:$0xf]
        %v937 = vld [vmem:[#allocation4 + $0x100] sm:$0xf]
        %v938 = vld [vmem:[#allocation4 + $0x110] sm:$0xf]
        %v939 = vld [vmem:[#allocation4 + $0x120] sm:$0xf]
        %v940 = vld [vmem:[#allocation4 + $0x130] sm:$0xf]
        %v941 = vld [vmem:[#allocation4 + $0x140] sm:$0xf]
        %v942 = vld [vmem:[#allocation4 + $0x150] sm:$0xf]
        %v943 = vld [vmem:[#allocation4 + $0x160] sm:$0xf]
        %v944 = vld [vmem:[#allocation4 + $0x170] sm:$0xf]
        %v945 = vld [vmem:[#allocation4 + $0x180] sm:$0xf]
        %v946 = vld [vmem:[#allocation4 + $0x190] sm:$0xf]
        %v947 = vld [vmem:[#allocation4 + $0x1a0] sm:$0xf]
        %v948 = vld [vmem:[#allocation4 + $0x1b0] sm:$0xf]
        %v949 = vld [vmem:[#allocation4 + $0x1c0] sm:$0xf]
        %v950 = vld [vmem:[#allocation4 + $0x1d0] sm:$0xf]
        %v951 = vld [vmem:[#allocation4 + $0x1e0] sm:$0xf]
        %v952 = vld [vmem:[#allocation4 + $0x1f0] sm:$0xf]
        %v953 = vld [vmem:[#allocation4 + $0x200] sm:$0xf]
        %v954 = vld [vmem:[#allocation4 + $0x210] sm:$0xf]
        %v955 = vld [vmem:[#allocation4 + $0x220] sm:$0xf]
        %v956 = vld [vmem:[#allocation4 + $0x230] sm:$0xf]
        %v957 = vpack.c.bf16 %v923, %v923
        %v958 = vpack.c.bf16 %v924, %v924
        %v991 = vunpack.c.l.b16 %v925
        %v992 = vunpack.c.l.b16 %v926
        %v993 = vunpack.c.l.b16 %v927
        %v994 = vunpack.c.l.b16 %v928
        %v995 = vunpack.c.l.b16 %v929
        %v996 = vunpack.c.l.b16 %v930
        %v997 = vunpack.c.l.b16 %v931
        %v998 = vunpack.c.l.b16 %v932
        %v999 = vunpack.c.l.b16 %v933
        %v1000 = vunpack.c.l.b16 %v934
        %v1001 = vunpack.c.l.b16 %v935
        %v1002 = vunpack.c.l.b16 %v936
        %v1003 = vunpack.c.l.b16 %v937
        %v1004 = vunpack.c.l.b16 %v938
        %v1005 = vunpack.c.l.b16 %v939
        %v1006 = vunpack.c.l.b16 %v940
        %v1007 = vunpack.c.l.b16 %v941
        %v1008 = vunpack.c.l.b16 %v942
        %v1009 = vunpack.c.l.b16 %v943
        %v1010 = vunpack.c.l.b16 %v944
        %v1011 = vunpack.c.l.b16 %v945
        %v1012 = vunpack.c.l.b16 %v946
        %v1013 = vunpack.c.l.b16 %v947
        %v1014 = vunpack.c.l.b16 %v948
        %v1015 = vunpack.c.l.b16 %v949
        %v1016 = vunpack.c.l.b16 %v950
        %v1017 = vunpack.c.l.b16 %v951
        %v1018 = vunpack.c.l.b16 %v952
        %v1019 = vunpack.c.l.b16 %v953
        %v1020 = vunpack.c.l.b16 %v954
        %v1021 = vunpack.c.l.b16 %v955
        %v1022 = vunpack.c.l.b16 %v956
        %v1023 = vpack.c.b16 %v992, %v991
        %v1024 = vpack.c.b16 %v994, %v993
        %v1025 = vpack.c.b16 %v996, %v995
        %v1026 = vpack.c.b16 %v998, %v997
        %v1027 = vpack.c.b16 %v1000, %v999
        %v1028 = vpack.c.b16 %v1002, %v1001
        %v1029 = vpack.c.b16 %v1004, %v1003
        %v1030 = vpack.c.b16 %v1006, %v1005
        %v1031 = vpack.c.b16 %v1008, %v1007
        %v1032 = vpack.c.b16 %v1010, %v1009
        %v1033 = vpack.c.b16 %v1012, %v1011
        %v1034 = vpack.c.b16 %v1014, %v1013
        %v1035 = vpack.c.b16 %v1016, %v1015
        %v1036 = vpack.c.b16 %v1018, %v1017
        %v1037 = vpack.c.b16 %v1020, %v1019
        %v1038 = vpack.c.b16 %v1022, %v1021
        %1055 = vmatprep.subr.bf16.mxu0 0
        %1056 = vmatpush1.bf16.msra.mxu0 %v1023
        %1057 = vmatprep.subr.bf16.mxu0 0
        %1058 = vmatpush1.bf16.msra.mxu0 %v1024
        %1059 = vmatprep.subr.bf16.mxu0 0
        %1060 = vmatpush1.bf16.msra.mxu0 %v1025
        %1061 = vmatprep.subr.bf16.mxu0 0
        %1062 = vmatpush1.bf16.msra.mxu0 %v1026
        %1063 = vmatprep.subr.bf16.mxu0 0
        %1064 = vmatpush1.bf16.msra.mxu0 %v1027
        %1065 = vmatprep.subr.bf16.mxu0 0
        %1066 = vmatpush1.bf16.msra.mxu0 %v1028
        %1067 = vmatprep.subr.bf16.mxu0 0
        %1068 = vmatpush1.bf16.msra.mxu0 %v1029
        %1069 = vmatprep.subr.bf16.mxu0 0
        %1070 = vmatpush1.bf16.msra.mxu0 %v1030
        %1071 = vmatprep.subr.bf16.mxu0 0
        %1072 = vmatpush1.bf16.msra.mxu0 %v1031
        %1073 = vmatprep.subr.bf16.mxu0 0
        %1074 = vmatpush1.bf16.msra.mxu0 %v1032
        %1075 = vmatprep.subr.bf16.mxu0 0
        %1076 = vmatpush1.bf16.msra.mxu0 %v1033
        %1077 = vmatprep.subr.bf16.mxu0 0
        %1078 = vmatpush1.bf16.msra.mxu0 %v1034
        %1079 = vmatprep.subr.bf16.mxu0 0
        %1080 = vmatpush1.bf16.msra.mxu0 %v1035
        %1081 = vmatprep.subr.bf16.mxu0 0
        %1082 = vmatpush1.bf16.msra.mxu0 %v1036
        %1083 = vmatprep.subr.bf16.mxu0 0
        %1084 = vmatpush1.bf16.msra.mxu0 %v1037
        %1085 = vmatprep.subr.bf16.mxu0 0
        %1086 = vmatpush1.bf16.msra.mxu0 %v1038
        %1087 = vmatprep.mubr.bf16.mxu0 %v958
        %1088 = vmatmul.mubr.bf16.gmra.mrb[0].mxu0 %v957
        %v1089 = vpop.f32.mrb[0].mxu0
        %v1090 = vadd.f32 0.0, %v1089
        %v1091 = vpop.f32.mrb[0].mxu0
        %v1092 = vpop.f32.mrb[0].mxu0
        %v1093 = vpop.f32.mrb[0].mxu0
        %1094 = vdwg.mxu0
        %vm1095 = vcmask 1048504
        %1096 = vst.msk [vmem:[#allocation2] sm:$0xff] %vm1095, 0.0
        %vm1097 = vcmask 597504
        %1098 = vst.msk [vmem:[#allocation2 + $0x8] sm:$0xff] %vm1097, 0.0
        %vm1099 = vcmask 523264
        %1100 = vst.msk [vmem:[#allocation2 + $0x8] sm:$0xff] %vm1099, %v1090
        %vm1101 = vcmp.lt.s32.totalorder %v212, 0
        %v1102 = vsub.s32 0, %v212
        %v1103 = vsel %vm1101, %v1102, %v212
        %v1104 = vshrl.u32 %v1103, 3
        %v1105 = vand.u32 %v1103, 7
        %v1106 = vsub.s32 0, %v1105
        %v1107 = vsel %vm1101, %v1106, %v1105
        %vm1108 = vcmp.ne.s32.totalorder %v1107, 0
        %vm1109 = vcmp.lt.s32.totalorder %v1107, 0
        %vm1110 = vmand %vm1109, %vm1108
        %v1111 = vadd.s32 %v1107, 8
        %v1112 = vsel %vm1110, %v1111, %v1107
        %vm1113 = vcmp.gt.s32.totalorder %v1112, 0
        %vm1114 = vcmp.lt.s32.totalorder %v1112, 7
        %v1115 = vld [vmem:[#allocation2] sm:$0xff]
        %v1116 = vld [vmem:[#allocation2 + $0x8] sm:$0xff]
        %v1117 = vsel %vm1113, 1, 0
        %vm1118 = vcmp.eq.s32.totalorder %v1117, 1
        %1121 = vrot.lane.b32.xlu0 %v1115, 9
        %v1122 = vpop.permute.xlu0 %1121
        %1123 = vrot.lane.b32.xlu0 %v1116, 9
        %v1124 = vpop.permute.xlu0 %1123
        %v1125 = vsel %vm568, %v1122, %v1124
        %v1127 = vsel %vm1118, %v1125, 0.0
        %1128 = vst.msk [vmem:[#allocation3] sm:$0xff] %vm1099, %v1127
        %v1129 = vld [vmem:[#allocation2] sm:$0xff]
        %v1130 = vld [vmem:[#allocation2 + $0x8] sm:$0xff]
        %1133 = vrot.lane.b32.xlu0 %v1129, 8
        %v1134 = vpop.permute.xlu0 %1133
        %1135 = vrot.lane.b32.xlu0 %v1130, 8
        %v1136 = vpop.permute.xlu0 %1135
        %vm1137 = vcmask 64512
        %v1138 = vsel %vm1137, %v1134, %v1136
        %1140 = vst.msk [vmem:[#allocation3 + $0x10] sm:$0xff] %vm1099, %v1138
        %v1141 = vld [vmem:[#allocation2] sm:$0xff]
        %v1142 = vld [vmem:[#allocation2 + $0x8] sm:$0xff]
        %v1143 = vsel %vm1114, 1, 0
        %vm1144 = vcmp.eq.s32.totalorder %v1143, 1
        %1147 = vrot.lane.b32.xlu0 %v1141, 7
        %v1148 = vpop.permute.xlu0 %1147
        %1149 = vrot.lane.b32.xlu0 %v1142, 7
        %v1150 = vpop.permute.xlu0 %1149
        %vm1151 = vcmask 56320
        %v1152 = vsel %vm1151, %v1148, %v1150
        %v1154 = vsel %vm1144, %v1152, 0.0
        %1155 = vst.msk [vmem:[#allocation3 + $0x20] sm:$0xff] %vm1099, %v1154
        %v1156 = vld [vmem:[#allocation2] sm:$0xff]
        %v1157 = vld [vmem:[#allocation2 + $0x8] sm:$0xff]
        %1160 = vrot.lane.b32.xlu0 %v1156, 1
        %v1161 = vpop.permute.xlu0 %1160
        %1162 = vrot.lane.b32.xlu0 %v1157, 1
        %v1163 = vpop.permute.xlu0 %1162
        %v1164 = vsel %vm368, %v1161, %v1163
        %v1166 = vsel %vm1118, %v1164, 0.0
        %1167 = vst.msk [vmem:[#allocation3 + $0x30] sm:$0xff] %vm1099, %v1166
        %v1168 = vld [vmem:[#allocation2 + $0x8] sm:$0xff]
        %1169 = vst.msk [vmem:[#allocation3 + $0x40] sm:$0xff] %vm1099, %v1168
        %v1170 = vld [vmem:[#allocation2 + $0x8] sm:$0xff]
        %1172 = vrot.lane.b32.xlu0 %v1170, 127
        %v1173 = vpop.permute.xlu0 %1172
        %v1175 = vsel %vm1144, %v1173, 0.0
        %1176 = vst.msk [vmem:[#allocation3 + $0x50] sm:$0xff] %vm1099, %v1175
        %v1177 = vld [vmem:[#allocation2 + $0x8] sm:$0xff]
        %1179 = vrot.lane.b32.xlu0 %v1177, 121
        %v1180 = vpop.permute.xlu0 %1179
        %v1182 = vsel %vm1118, %v1180, 0.0
        %1183 = vst.msk [vmem:[#allocation3 + $0x60] sm:$0xff] %vm1099, %v1182
        %v1184 = vld [vmem:[#allocation2 + $0x8] sm:$0xff]
        %1186 = vrot.lane.b32.xlu0 %v1184, 120
        %v1187 = vpop.permute.xlu0 %1186
        %1189 = vst.msk [vmem:[#allocation3 + $0x70] sm:$0xff] %vm1099, %v1187
        %v1190 = vld [vmem:[#allocation2 + $0x8] sm:$0xff]
        %1192 = vrot.lane.b32.xlu0 %v1190, 119
        %v1193 = vpop.permute.xlu0 %1192
        %v1195 = vsel %vm1144, %v1193, 0.0
        %1196 = vst.msk [vmem:[#allocation3 + $0x80] sm:$0xff] %vm1099, %v1195
        %v1197 = vld [vmem:[#allocation4 + $0x240] sm:$0xf]
        %v1198 = vld [vmem:[#allocation4 + $0x250] sm:$0xf]
        %v1199 = vld [vmem:[#allocation3] sm:$0xff]
        %v1200 = vld [vmem:[#allocation3 + $0x10] sm:$0xff]
        %v1201 = vld [vmem:[#allocation3 + $0x20] sm:$0xff]
        %v1202 = vld [vmem:[#allocation3 + $0x30] sm:$0xff]
        %v1203 = vld [vmem:[#allocation3 + $0x40] sm:$0xff]
        %v1204 = vld [vmem:[#allocation3 + $0x50] sm:$0xff]
        %v1205 = vld [vmem:[#allocation3 + $0x60] sm:$0xff]
        %v1206 = vld [vmem:[#allocation3 + $0x70] sm:$0xff]
        %v1207 = vld [vmem:[#allocation3 + $0x80] sm:$0xff]
        %v1208 = vpack.c.bf16 %v1200, %v1199
        %v1209 = vpack.c.bf16 %v1202, %v1201
        %v1210 = vpack.c.bf16 %v1204, %v1203
        %v1211 = vpack.c.bf16 %v1206, %v1205
        %v1212 = vpack.c.bf16 %v1207, %v1207
        %v1213 = vld [vmem:[#allocation6] sm:$0xff]
        %v1214 = vld [vmem:[#allocation6 + $0x8] sm:$0xff]
        %1216 = vset.pattern.permute.xlu0 2
        %1217 = vperm.xlu0 %1216, %v1213
        %v1218 = vpop.permute.xlu0 %1217
        %1221 = vset.pattern.permute.xlu0 2
        %1222 = vperm.xlu0 %1221, %v1214
        %v1223 = vpop.permute.xlu0 %1222
        %v1227 = vunpack.c.l.b16 %v1197
        %v1228 = vunpack.c.l.b16 %v1198
        %v1229 = vpack.c.b16 %v1228, %v1227
        %v1231 = vsel %vm833, %v1229, 0
        %v1234 = vsel %vm572, %v1212, 0
        %1236 = vmatprep.subr.bf16.mxu0 0
        %1237 = vmatpush1.bf16.msra.mxu0 %v1208
        %1238 = vmatprep.subr.bf16.mxu0 0
        %1239 = vmatpush1.bf16.msra.mxu0 %v1209
        %1240 = vmatprep.subr.bf16.mxu0 0
        %1241 = vmatpush1.bf16.msra.mxu0 %v1210
        %1242 = vmatprep.subr.bf16.mxu0 0
        %1243 = vmatpush1.bf16.msra.mxu0 %v1211
        %1244 = vmatprep.subr.bf16.mxu0 0
        %1245 = vmatpush1.bf16.msra.mxu0 %v1234
        %1246 = vmatprep.subr.bf16.mxu0 0
        %1247 = vmatpush1.bf16.msra.mxu0 0
        %1248 = vmatprep.subr.bf16.mxu0 0
        %1249 = vmatpush1.bf16.msra.mxu0 0
        %1250 = vmatprep.subr.bf16.mxu0 0
        %1251 = vmatpush1.bf16.msra.mxu0 0
        %1252 = vmatprep.subr.bf16.mxu0 0
        %1253 = vmatpush1.bf16.msra.mxu0 0
        %1254 = vmatprep.subr.bf16.mxu0 0
        %1255 = vmatpush1.bf16.msra.mxu0 0
        %1256 = vmatprep.subr.bf16.mxu0 0
        %1257 = vmatpush1.bf16.msra.mxu0 0
        %1258 = vmatprep.subr.bf16.mxu0 0
        %1259 = vmatpush1.bf16.msra.mxu0 0
        %1260 = vmatprep.subr.bf16.mxu0 0
        %1261 = vmatpush1.bf16.msra.mxu0 0
        %1262 = vmatprep.subr.bf16.mxu0 0
        %1263 = vmatpush1.bf16.msra.mxu0 0
        %1264 = vmatprep.subr.bf16.mxu0 0
        %1265 = vmatpush1.bf16.msra.mxu0 0
        %1266 = vmatprep.subr.bf16.mxu0 0
        %1267 = vmatpush1.bf16.msra.mxu0 0
        %1268 = vmatprep.mubr.bf16.mxu0 0
        %1269 = vmatmul.mubr.bf16.gmra.mrb[0].mxu0 %v1231
        %v1270 = vpop.f32.mrb[0].mxu0
        %v1271 = vadd.f32 %v1218, %v1270
        %v1272 = vpop.f32.mrb[0].mxu0
        %v1273 = vpop.f32.mrb[0].mxu0
        %v1274 = vadd.f32 %v1223, %v1273
        %v1275 = vpop.f32.mrb[0].mxu0
        %1276 = vdwg.mxu0
        %v1277 = vmax.f32 %v1271, 0.0
        %v1278 = vmax.f32 %v1274, 0.0
        %1279 = vst.msk [vmem:[#allocation2] sm:$0xff] %vm1095, 0.0
        %1280 = vst.msk [vmem:[#allocation2 + $0x20] sm:$0xff] %vm1095, 0.0
        %1281 = vst.msk [vmem:[#allocation2 + $0x8] sm:$0xff] %vm1097, 0.0
        %1282 = vst.msk [vmem:[#allocation2 + $0x28] sm:$0xff] %vm1097, 0.0
        %1283 = vst.msk [vmem:[#allocation2 + $0x8] sm:$0xff] %vm1099, %v1277
        %1284 = vst.msk [vmem:[#allocation2 + $0x28] sm:$0xff] %vm1099, %v1278
        %v1285 = vld [vmem:[#allocation2] sm:$0xff]
        %v1286 = vld [vmem:[#allocation2 + $0x8] sm:$0xff]
        %v1287 = vld [vmem:[#allocation2 + $0x20] sm:$0xff]
        %v1288 = vld [vmem:[#allocation2 + $0x28] sm:$0xff]
        %1293 = vrot.lane.b32.xlu0 %v1285, 9
        %v1294 = vpop.permute.xlu0 %1293
        %1295 = vrot.lane.b32.xlu0 %v1286, 9
        %v1296 = vpop.permute.xlu0 %1295
        %1297 = vrot.lane.b32.xlu0 %v1287, 9
        %v1298 = vpop.permute.xlu0 %1297
        %1299 = vrot.lane.b32.xlu0 %v1288, 9
        %v1300 = vpop.permute.xlu0 %1299
        %v1301 = vsel %vm568, %v1294, %v1296
        %v1302 = vsel %vm568, %v1298, %v1300
        %v1305 = vsel %vm1118, %v1301, 0.0
        %v1306 = vsel %vm1118, %v1302, 0.0
        %1307 = vst.msk [vmem:[#allocation3] sm:$0xff] %vm1099, %v1305
        %1308 = vst.msk [vmem:[#allocation3 + $0x10] sm:$0xff] %vm1099, %v1306
        %v1309 = vld [vmem:[#allocation2] sm:$0xff]
        %v1310 = vld [vmem:[#allocation2 + $0x8] sm:$0xff]
        %v1311 = vld [vmem:[#allocation2 + $0x20] sm:$0xff]
        %v1312 = vld [vmem:[#allocation2 + $0x28] sm:$0xff]
        %1317 = vrot.lane.b32.xlu0 %v1309, 8
        %v1318 = vpop.permute.xlu0 %1317
        %1319 = vrot.lane.b32.xlu0 %v1310, 8
        %v1320 = vpop.permute.xlu0 %1319
        %1321 = vrot.lane.b32.xlu0 %v1311, 8
        %v1322 = vpop.permute.xlu0 %1321
        %1323 = vrot.lane.b32.xlu0 %v1312, 8
        %v1324 = vpop.permute.xlu0 %1323
        %v1325 = vsel %vm1137, %v1318, %v1320
        %v1326 = vsel %vm1137, %v1322, %v1324
        %1329 = vst.msk [vmem:[#allocation3 + $0x20] sm:$0xff] %vm1099, %v1325
        %1330 = vst.msk [vmem:[#allocation3 + $0x30] sm:$0xff] %vm1099, %v1326
        %v1331 = vld [vmem:[#allocation2] sm:$0xff]
        %v1332 = vld [vmem:[#allocation2 + $0x8] sm:$0xff]
        %v1333 = vld [vmem:[#allocation2 + $0x20] sm:$0xff]
        %v1334 = vld [vmem:[#allocation2 + $0x28] sm:$0xff]
        %1339 = vrot.lane.b32.xlu0 %v1331, 7
        %v1340 = vpop.permute.xlu0 %1339
        %1341 = vrot.lane.b32.xlu0 %v1332, 7
        %v1342 = vpop.permute.xlu0 %1341
        %1343 = vrot.lane.b32.xlu0 %v1333, 7
        %v1344 = vpop.permute.xlu0 %1343
        %1345 = vrot.lane.b32.xlu0 %v1334, 7
        %v1346 = vpop.permute.xlu0 %1345
        %v1347 = vsel %vm1151, %v1340, %v1342
        %v1348 = vsel %vm1151, %v1344, %v1346
        %v1351 = vsel %vm1144, %v1347, 0.0
        %v1352 = vsel %vm1144, %v1348, 0.0
        %1353 = vst.msk [vmem:[#allocation3 + $0x40] sm:$0xff] %vm1099, %v1351
        %1354 = vst.msk [vmem:[#allocation3 + $0x50] sm:$0xff] %vm1099, %v1352
        %v1355 = vld [vmem:[#allocation2] sm:$0xff]
        %v1356 = vld [vmem:[#allocation2 + $0x8] sm:$0xff]
        %v1357 = vld [vmem:[#allocation2 + $0x20] sm:$0xff]
        %v1358 = vld [vmem:[#allocation2 + $0x28] sm:$0xff]
        %1363 = vrot.lane.b32.xlu0 %v1355, 1
        %v1364 = vpop.permute.xlu0 %1363
        %1365 = vrot.lane.b32.xlu0 %v1356, 1
        %v1366 = vpop.permute.xlu0 %1365
        %1367 = vrot.lane.b32.xlu0 %v1357, 1
        %v1368 = vpop.permute.xlu0 %1367
        %1369 = vrot.lane.b32.xlu0 %v1358, 1
        %v1370 = vpop.permute.xlu0 %1369
        %v1371 = vsel %vm368, %v1364, %v1366
        %v1372 = vsel %vm368, %v1368, %v1370
        %v1375 = vsel %vm1118, %v1371, 0.0
        %v1376 = vsel %vm1118, %v1372, 0.0
        %1377 = vst.msk [vmem:[#allocation3 + $0x60] sm:$0xff] %vm1099, %v1375
        %1378 = vst.msk [vmem:[#allocation3 + $0x70] sm:$0xff] %vm1099, %v1376
        %v1379 = vld [vmem:[#allocation2 + $0x8] sm:$0xff]
        %v1380 = vld [vmem:[#allocation2 + $0x28] sm:$0xff]
        %1381 = vst.msk [vmem:[#allocation3 + $0x80] sm:$0xff] %vm1099, %v1379
        %1382 = vst.msk [vmem:[#allocation3 + $0x90] sm:$0xff] %vm1099, %v1380
        %v1383 = vld [vmem:[#allocation2 + $0x8] sm:$0xff]
        %v1384 = vld [vmem:[#allocation2 + $0x28] sm:$0xff]
        %1387 = vrot.lane.b32.xlu0 %v1383, 127
        %v1388 = vpop.permute.xlu0 %1387
        %1389 = vrot.lane.b32.xlu0 %v1384, 127
        %v1390 = vpop.permute.xlu0 %1389
        %v1393 = vsel %vm1144, %v1388, 0.0
        %v1394 = vsel %vm1144, %v1390, 0.0
        %1395 = vst.msk [vmem:[#allocation3 + $0xa0] sm:$0xff] %vm1099, %v1393
        %1396 = vst.msk [vmem:[#allocation3 + $0xb0] sm:$0xff] %vm1099, %v1394
        %v1397 = vld [vmem:[#allocation2 + $0x8] sm:$0xff]
        %v1398 = vld [vmem:[#allocation2 + $0x28] sm:$0xff]
        %1401 = vrot.lane.b32.xlu0 %v1397, 121
        %v1402 = vpop.permute.xlu0 %1401
        %1403 = vrot.lane.b32.xlu0 %v1398, 121
        %v1404 = vpop.permute.xlu0 %1403
        %v1407 = vsel %vm1118, %v1402, 0.0
        %v1408 = vsel %vm1118, %v1404, 0.0
        %1409 = vst.msk [vmem:[#allocation3 + $0xc0] sm:$0xff] %vm1099, %v1407
        %1410 = vst.msk [vmem:[#allocation3 + $0xd0] sm:$0xff] %vm1099, %v1408
        %v1411 = vld [vmem:[#allocation2 + $0x8] sm:$0xff]
        %v1412 = vld [vmem:[#allocation2 + $0x28] sm:$0xff]
        %1415 = vrot.lane.b32.xlu0 %v1411, 120
        %v1416 = vpop.permute.xlu0 %1415
        %1417 = vrot.lane.b32.xlu0 %v1412, 120
        %v1418 = vpop.permute.xlu0 %1417
        %1421 = vst.msk [vmem:[#allocation3 + $0xe0] sm:$0xff] %vm1099, %v1416
        %1422 = vst.msk [vmem:[#allocation3 + $0xf0] sm:$0xff] %vm1099, %v1418
        %v1423 = vld [vmem:[#allocation2 + $0x8] sm:$0xff]
        %v1424 = vld [vmem:[#allocation2 + $0x28] sm:$0xff]
        %1427 = vrot.lane.b32.xlu0 %v1423, 119
        %v1428 = vpop.permute.xlu0 %1427
        %1429 = vrot.lane.b32.xlu0 %v1424, 119
        %v1430 = vpop.permute.xlu0 %1429
        %v1433 = vsel %vm1144, %v1428, 0.0
        %v1434 = vsel %vm1144, %v1430, 0.0
        %1435 = vst.msk [vmem:[#allocation3 + $0x100] sm:$0xff] %vm1099, %v1433
        %1436 = vst.msk [vmem:[#allocation3 + $0x110] sm:$0xff] %vm1099, %v1434
        %v1437 = vld [vmem:[#allocation4 + $0x260] sm:$0xff]
        %v1438 = vld [vmem:[#allocation4 + $0x270] sm:$0xff]
        %v1439 = vld [vmem:[#allocation3] sm:$0xff]
        %v1440 = vld [vmem:[#allocation3 + $0x10] sm:$0xff]
        %v1441 = vld [vmem:[#allocation3 + $0x20] sm:$0xff]
        %v1442 = vld [vmem:[#allocation3 + $0x30] sm:$0xff]
        %v1443 = vld [vmem:[#allocation3 + $0x40] sm:$0xff]
        %v1444 = vld [vmem:[#allocation3 + $0x50] sm:$0xff]
        %v1445 = vld [vmem:[#allocation3 + $0x60] sm:$0xff]
        %v1446 = vld [vmem:[#allocation3 + $0x70] sm:$0xff]
        %v1447 = vld [vmem:[#allocation3 + $0x80] sm:$0xff]
        %v1448 = vld [vmem:[#allocation3 + $0x90] sm:$0xff]
        %v1449 = vld [vmem:[#allocation3 + $0xa0] sm:$0xff]
        %v1450 = vld [vmem:[#allocation3 + $0xb0] sm:$0xff]
        %v1451 = vld [vmem:[#allocation3 + $0xc0] sm:$0xff]
        %v1452 = vld [vmem:[#allocation3 + $0xd0] sm:$0xff]
        %v1453 = vld [vmem:[#allocation3 + $0xe0] sm:$0xff]
        %v1454 = vld [vmem:[#allocation3 + $0xf0] sm:$0xff]
        %v1455 = vld [vmem:[#allocation3 + $0x100] sm:$0xff]
        %v1456 = vld [vmem:[#allocation3 + $0x110] sm:$0xff]
        %v1457 = vpack.c.bf16 %v1440, %v1439
        %v1458 = vpack.c.bf16 %v1442, %v1441
        %v1459 = vpack.c.bf16 %v1444, %v1443
        %v1460 = vpack.c.bf16 %v1446, %v1445
        %v1461 = vpack.c.bf16 %v1448, %v1447
        %v1462 = vpack.c.bf16 %v1450, %v1449
        %v1463 = vpack.c.bf16 %v1452, %v1451
        %v1464 = vpack.c.bf16 %v1454, %v1453
        %v1465 = vpack.c.bf16 %v1456, %v1455
        %v1466 = vld [vmem:[#allocation6] sm:$0xff]
        %v1467 = vld [vmem:[#allocation6 + $0x8] sm:$0xff]
        %1469 = vset.pattern.permute.xlu0 3
        %1470 = vperm.xlu0 %1469, %v1466
        %v1471 = vpop.permute.xlu0 %1470
        %1474 = vset.pattern.permute.xlu0 3
        %1475 = vperm.xlu0 %1474, %v1467
        %v1476 = vpop.permute.xlu0 %1475
        %v1480 = vunpack.c.l.b16 %v1437
        %v1481 = vunpack.c.h.b16 %v1437
        %v1482 = vunpack.c.l.b16 %v1438
        %v1483 = vunpack.c.h.b16 %v1438
        %v1484 = vpack.c.b16 %v1482, %v1480
        %v1485 = vpack.c.b16 %v1483, %v1481
        %v1488 = vsel %vm294, %v1485, 0
        %1490 = vmatprep.subr.bf16.mxu0 0
        %1491 = vmatpush1.bf16.msra.mxu0 %v1457
        %1492 = vmatprep.subr.bf16.mxu0 0
        %1493 = vmatpush1.bf16.msra.mxu0 %v1458
        %1494 = vmatprep.subr.bf16.mxu0 0
        %1495 = vmatpush1.bf16.msra.mxu0 %v1459
        %1496 = vmatprep.subr.bf16.mxu0 0
        %1497 = vmatpush1.bf16.msra.mxu0 %v1460
        %1498 = vmatprep.subr.bf16.mxu0 0
        %1499 = vmatpush1.bf16.msra.mxu0 %v1461
        %1500 = vmatprep.subr.bf16.mxu0 0
        %1501 = vmatpush1.bf16.msra.mxu0 %v1462
        %1502 = vmatprep.subr.bf16.mxu0 0
        %1503 = vmatpush1.bf16.msra.mxu0 %v1463
        %1504 = vmatprep.subr.bf16.mxu0 0
        %1505 = vmatpush1.bf16.msra.mxu0 %v1464
        %1506 = vmatprep.subr.bf16.mxu0 0
        %1507 = vmatpush1.bf16.msra.mxu0 %v1465
        %1508 = vmatprep.subr.bf16.mxu0 0
        %1509 = vmatpush1.bf16.msra.mxu0 0
        %1510 = vmatprep.subr.bf16.mxu0 0
        %1511 = vmatpush1.bf16.msra.mxu0 0
        %1512 = vmatprep.subr.bf16.mxu0 0
        %1513 = vmatpush1.bf16.msra.mxu0 0
        %1514 = vmatprep.subr.bf16.mxu0 0
        %1515 = vmatpush1.bf16.msra.mxu0 0
        %1516 = vmatprep.subr.bf16.mxu0 0
        %1517 = vmatpush1.bf16.msra.mxu0 0
        %1518 = vmatprep.subr.bf16.mxu0 0
        %1519 = vmatpush1.bf16.msra.mxu0 0
        %1520 = vmatprep.subr.bf16.mxu0 0
        %1521 = vmatpush1.bf16.msra.mxu0 0
        %1522 = vmatprep.mubr.bf16.mxu0 %v1488
        %1523 = vmatmul.mubr.bf16.gmra.mrb[0].mxu0 %v1484
        %v1524 = vpop.f32.mrb[0].mxu0
        %v1525 = vadd.f32 %v1471, %v1524
        %v1526 = vpop.f32.mrb[0].mxu0
        %v1527 = vpop.f32.mrb[0].mxu0
        %v1528 = vadd.f32 %v1476, %v1527
        %v1529 = vpop.f32.mrb[0].mxu0
        %1530 = vdwg.mxu0
        %v1531 = vmax.f32 %v1525, 0.0
        %v1532 = vmax.f32 %v1528, 0.0
        %1533 = vst.msk [vmem:[#allocation2] sm:$0xff] %vm1095, 0.0
        %1534 = vst.msk [vmem:[#allocation2 + $0x20] sm:$0xff] %vm1095, 0.0
        %1535 = vst.msk [vmem:[#allocation2 + $0x8] sm:$0xff] %vm1097, 0.0
        %1536 = vst.msk [vmem:[#allocation2 + $0x28] sm:$0xff] %vm1097, 0.0
        %1537 = vst.msk [vmem:[#allocation2 + $0x8] sm:$0xff] %vm1099, %v1531
        %1538 = vst.msk [vmem:[#allocation2 + $0x28] sm:$0xff] %vm1099, %v1532
        %v1539 = vld [vmem:[#allocation2 + $0x8] sm:$0xff]
        %v1540 = vld [vmem:[#allocation2 + $0x28] sm:$0xff]
        %1543 = vrot.lane.b32.xlu0 %v1539, 127
        %v1544 = vpop.permute.xlu0 %1543
        %1545 = vrot.lane.b32.xlu0 %v1540, 127
        %v1546 = vpop.permute.xlu0 %1545
        %v1549 = vmax.f32 %v1539, %v1544
        %v1550 = vmax.f32 %v1540, %v1546
        %1553 = vrot.lane.b32.xlu0 %v1549, 120
        %v1554 = vpop.permute.xlu0 %1553
        %1555 = vrot.lane.b32.xlu0 %v1550, 120
        %v1556 = vpop.permute.xlu0 %1555
        %v1559 = vmax.f32 %v1549, %v1554
        %v1560 = vmax.f32 %v1550, %v1556
        %v1561 = vld [vmem:[#allocation4 + $0x280] sm:$0xf]
        %v1562 = vld [vmem:[#allocation4 + $0x290] sm:$0xf]
        %v1563 = vld [vmem:[#allocation4 + $0x2a0] sm:$0xf]
        %v1564 = vld [vmem:[#allocation4 + $0x2b0] sm:$0xf]
        %v1565 = vld [vmem:[#allocation4 + $0x2c0] sm:$0xf]
        %v1566 = vld [vmem:[#allocation4 + $0x2d0] sm:$0xf]
        %v1567 = vld [vmem:[#allocation4 + $0x2e0] sm:$0xf]
        %v1568 = vld [vmem:[#allocation4 + $0x2f0] sm:$0xf]
        %v1569 = vpack.c.bf16 %v1560, %v1559
        %v1578 = vunpack.c.l.b16 %v1561
        %v1579 = vunpack.c.l.b16 %v1562
        %v1580 = vunpack.c.l.b16 %v1563
        %v1581 = vunpack.c.l.b16 %v1564
        %v1582 = vunpack.c.l.b16 %v1565
        %v1583 = vunpack.c.l.b16 %v1566
        %v1584 = vunpack.c.l.b16 %v1567
        %v1585 = vunpack.c.l.b16 %v1568
        %v1586 = vpack.c.b16 %v1579, %v1578
        %v1587 = vpack.c.b16 %v1581, %v1580
        %v1588 = vpack.c.b16 %v1583, %v1582
        %v1589 = vpack.c.b16 %v1585, %v1584
        %v1595 = vsel %vm1099, %v1569, 0
        %1597 = vmatprep.subr.bf16.mxu0 0
        %1598 = vmatpush1.bf16.msra.mxu0 %v1586
        %1599 = vmatprep.subr.bf16.mxu0 0
        %1600 = vmatpush1.bf16.msra.mxu0 %v1587
        %1601 = vmatprep.subr.bf16.mxu0 0
        %1602 = vmatpush1.bf16.msra.mxu0 %v1588
        %1603 = vmatprep.subr.bf16.mxu0 0
        %1604 = vmatpush1.bf16.msra.mxu0 %v1589
        %1605 = vmatprep.subr.bf16.mxu0 0
        %1606 = vmatpush1.bf16.msra.mxu0 0
        %1607 = vmatprep.subr.bf16.mxu0 0
        %1608 = vmatpush1.bf16.msra.mxu0 0
        %1609 = vmatprep.subr.bf16.mxu0 0
        %1610 = vmatpush1.bf16.msra.mxu0 0
        %1611 = vmatprep.subr.bf16.mxu0 0
        %1612 = vmatpush1.bf16.msra.mxu0 0
        %1613 = vmatprep.subr.bf16.mxu0 0
        %1614 = vmatpush1.bf16.msra.mxu0 0
        %1615 = vmatprep.subr.bf16.mxu0 0
        %1616 = vmatpush1.bf16.msra.mxu0 0
        %1617 = vmatprep.subr.bf16.mxu0 0
        %1618 = vmatpush1.bf16.msra.mxu0 0
        %1619 = vmatprep.subr.bf16.mxu0 0
        %1620 = vmatpush1.bf16.msra.mxu0 0
        %1621 = vmatprep.subr.bf16.mxu0 0
        %1622 = vmatpush1.bf16.msra.mxu0 0
        %1623 = vmatprep.subr.bf16.mxu0 0
        %1624 = vmatpush1.bf16.msra.mxu0 0
        %1625 = vmatprep.subr.bf16.mxu0 0
        %1626 = vmatpush1.bf16.msra.mxu0 0
        %1627 = vmatprep.subr.bf16.mxu0 0
        %1628 = vmatpush1.bf16.msra.mxu0 0
        %1629 = vmatprep.mubr.bf16.mxu0 0
        %1630 = vmatmul.mubr.bf16.gmra.mrb[0].mxu0 %v1595
        %v1631 = vpop.f32.mrb[0].mxu0
        %v1632 = vadd.f32 0.0, %v1631
        %v1633 = vpop.f32.mrb[0].mxu0
        %v1634 = vpop.f32.mrb[0].mxu0
        %v1635 = vadd.f32 0.0, %v1634
        %v1636 = vpop.f32.mrb[0].mxu0
        %1637 = vdwg.mxu0
        %vm1638 = vcmask 1048536
        %1639 = vst.msk [vmem:[#allocation2] sm:$0xff] %vm1638, 0.0
        %1640 = vst.msk [vmem:[#allocation2 + $0x20] sm:$0xff] %vm1638, 0.0
        %vm1641 = vcmask 171136
        %1642 = vst.msk [vmem:[#allocation2 + $0x8] sm:$0xff] %vm1641, 0.0
        %1643 = vst.msk [vmem:[#allocation2 + $0x28] sm:$0xff] %vm1641, 0.0
        %1644 = vst.msk [vmem:[#allocation2 + $0x8] sm:$0xff] %vm294, %v1632
        %1645 = vst.msk [vmem:[#allocation2 + $0x28] sm:$0xff] %vm294, %v1635
        %vm1646 = vcmp.lt.s32.totalorder %v212, 0
        %v1647 = vsub.s32 0, %v212
        %v1648 = vsel %vm1646, %v1647, %v212
        %v1649 = vshrl.u32 %v1648, 2
        %v1650 = vand.u32 %v1648, 3
        %v1651 = vsub.s32 0, %v1650
        %v1652 = vsel %vm1646, %v1651, %v1650
        %vm1653 = vcmp.ne.s32.totalorder %v1652, 0
        %vm1654 = vcmp.lt.s32.totalorder %v1652, 0
        %vm1655 = vmand %vm1654, %vm1653
        %v1656 = vadd.s32 %v1652, 4
        %v1657 = vsel %vm1655, %v1656, %v1652
        %vm1658 = vcmp.gt.s32.totalorder %v1657, 0
        %vm1659 = vcmp.lt.s32.totalorder %v1657, 3
        %v1660 = vld [vmem:[#allocation2] sm:$0xff]
        %v1661 = vld [vmem:[#allocation2 + $0x8] sm:$0xff]
        %v1662 = vld [vmem:[#allocation2 + $0x20] sm:$0xff]
        %v1663 = vld [vmem:[#allocation2 + $0x28] sm:$0xff]
        %v1664 = vsel %vm1658, 1, 0
        %vm1665 = vcmp.eq.s32.totalorder %v1664, 1
        %1670 = vrot.lane.b32.xlu0 %v1660, 5
        %v1671 = vpop.permute.xlu0 %1670
        %1672 = vrot.lane.b32.xlu0 %v1661, 5
        %v1673 = vpop.permute.xlu0 %1672
        %1674 = vrot.lane.b32.xlu0 %v1662, 5
        %v1675 = vpop.permute.xlu0 %1674
        %1676 = vrot.lane.b32.xlu0 %v1663, 5
        %v1677 = vpop.permute.xlu0 %1676
        %vm1678 = vcmask 39936
        %v1679 = vsel %vm1678, %v1671, %v1673
        %v1680 = vsel %vm1678, %v1675, %v1677
        %v1683 = vsel %vm1665, %v1679, 0.0
        %v1684 = vsel %vm1665, %v1680, 0.0
        %1685 = vst.msk [vmem:[#allocation3] sm:$0xff] %vm294, %v1683
        %1686 = vst.msk [vmem:[#allocation3 + $0x10] sm:$0xff] %vm294, %v1684
        %v1687 = vld [vmem:[#allocation2] sm:$0xff]
        %v1688 = vld [vmem:[#allocation2 + $0x8] sm:$0xff]
        %v1689 = vld [vmem:[#allocation2 + $0x20] sm:$0xff]
        %v1690 = vld [vmem:[#allocation2 + $0x28] sm:$0xff]
        %1695 = vrot.lane.b32.xlu0 %v1687, 4
        %v1696 = vpop.permute.xlu0 %1695
        %1697 = vrot.lane.b32.xlu0 %v1688, 4
        %v1698 = vpop.permute.xlu0 %1697
        %1699 = vrot.lane.b32.xlu0 %v1689, 4
        %v1700 = vpop.permute.xlu0 %1699
        %1701 = vrot.lane.b32.xlu0 %v1690, 4
        %v1702 = vpop.permute.xlu0 %1701
        %vm1703 = vcmask 31744
        %v1704 = vsel %vm1703, %v1696, %v1698
        %v1705 = vsel %vm1703, %v1700, %v1702
        %1708 = vst.msk [vmem:[#allocation3 + $0x20] sm:$0xff] %vm294, %v1704
        %1709 = vst.msk [vmem:[#allocation3 + $0x30] sm:$0xff] %vm294, %v1705
        %v1710 = vld [vmem:[#allocation2] sm:$0xff]
        %v1711 = vld [vmem:[#allocation2 + $0x8] sm:$0xff]
        %v1712 = vld [vmem:[#allocation2 + $0x20] sm:$0xff]
        %v1713 = vld [vmem:[#allocation2 + $0x28] sm:$0xff]
        %v1714 = vsel %vm1659, 1, 0
        %vm1715 = vcmp.eq.s32.totalorder %v1714, 1
        %1720 = vrot.lane.b32.xlu0 %v1710, 3
        %v1721 = vpop.permute.xlu0 %1720
        %1722 = vrot.lane.b32.xlu0 %v1711, 3
        %v1723 = vpop.permute.xlu0 %1722
        %1724 = vrot.lane.b32.xlu0 %v1712, 3
        %v1725 = vpop.permute.xlu0 %1724
        %1726 = vrot.lane.b32.xlu0 %v1713, 3
        %v1727 = vpop.permute.xlu0 %1726
        %vm1728 = vcmask 23552
        %v1729 = vsel %vm1728, %v1721, %v1723
        %v1730 = vsel %vm1728, %v1725, %v1727
        %v1733 = vsel %vm1715, %v1729, 0.0
        %v1734 = vsel %vm1715, %v1730, 0.0
        %1735 = vst.msk [vmem:[#allocation3 + $0x40] sm:$0xff] %vm294, %v1733
        %1736 = vst.msk [vmem:[#allocation3 + $0x50] sm:$0xff] %vm294, %v1734
        %v1737 = vld [vmem:[#allocation2] sm:$0xff]
        %v1738 = vld [vmem:[#allocation2 + $0x8] sm:$0xff]
        %v1739 = vld [vmem:[#allocation2 + $0x20] sm:$0xff]
        %v1740 = vld [vmem:[#allocation2 + $0x28] sm:$0xff]
        %1745 = vrot.lane.b32.xlu0 %v1737, 1
        %v1746 = vpop.permute.xlu0 %1745
        %1747 = vrot.lane.b32.xlu0 %v1738, 1
        %v1748 = vpop.permute.xlu0 %1747
        %1749 = vrot.lane.b32.xlu0 %v1739, 1
        %v1750 = vpop.permute.xlu0 %1749
        %1751 = vrot.lane.b32.xlu0 %v1740, 1
        %v1752 = vpop.permute.xlu0 %1751
        %v1753 = vsel %vm368, %v1746, %v1748
        %v1754 = vsel %vm368, %v1750, %v1752
        %v1757 = vsel %vm1665, %v1753, 0.0
        %v1758 = vsel %vm1665, %v1754, 0.0
        %1759 = vst.msk [vmem:[#allocation3 + $0x60] sm:$0xff] %vm294, %v1757
        %1760 = vst.msk [vmem:[#allocation3 + $0x70] sm:$0xff] %vm294, %v1758
        %v1761 = vld [vmem:[#allocation2 + $0x8] sm:$0xff]
        %v1762 = vld [vmem:[#allocation2 + $0x28] sm:$0xff]
        %1763 = vst.msk [vmem:[#allocation3 + $0x80] sm:$0xff] %vm294, %v1761
        %1764 = vst.msk [vmem:[#allocation3 + $0x90] sm:$0xff] %vm294, %v1762
        %v1765 = vld [vmem:[#allocation2 + $0x8] sm:$0xff]
        %v1766 = vld [vmem:[#allocation2 + $0x28] sm:$0xff]
        %1769 = vrot.lane.b32.xlu0 %v1765, 127
        %v1770 = vpop.permute.xlu0 %1769
        %1771 = vrot.lane.b32.xlu0 %v1766, 127
        %v1772 = vpop.permute.xlu0 %1771
        %v1775 = vsel %vm1715, %v1770, 0.0
        %v1776 = vsel %vm1715, %v1772, 0.0
        %1777 = vst.msk [vmem:[#allocation3 + $0xa0] sm:$0xff] %vm294, %v1775
        %1778 = vst.msk [vmem:[#allocation3 + $0xb0] sm:$0xff] %vm294, %v1776
        %v1779 = vld [vmem:[#allocation2 + $0x8] sm:$0xff]
        %v1780 = vld [vmem:[#allocation2 + $0x28] sm:$0xff]
        %1783 = vrot.lane.b32.xlu0 %v1779, 125
        %v1784 = vpop.permute.xlu0 %1783
        %1785 = vrot.lane.b32.xlu0 %v1780, 125
        %v1786 = vpop.permute.xlu0 %1785
        %v1789 = vsel %vm1665, %v1784, 0.0
        %v1790 = vsel %vm1665, %v1786, 0.0
        %1791 = vst.msk [vmem:[#allocation3 + $0xc0] sm:$0xff] %vm294, %v1789
        %1792 = vst.msk [vmem:[#allocation3 + $0xd0] sm:$0xff] %vm294, %v1790
        %v1793 = vld [vmem:[#allocation2 + $0x8] sm:$0xff]
        %v1794 = vld [vmem:[#allocation2 + $0x28] sm:$0xff]
        %1797 = vrot.lane.b32.xlu0 %v1793, 124
        %v1798 = vpop.permute.xlu0 %1797
        %1799 = vrot.lane.b32.xlu0 %v1794, 124
        %v1800 = vpop.permute.xlu0 %1799
        %1803 = vst.msk [vmem:[#allocation3 + $0xe0] sm:$0xff] %vm294, %v1798
        %1804 = vst.msk [vmem:[#allocation3 + $0xf0] sm:$0xff] %vm294, %v1800
        %v1805 = vld [vmem:[#allocation2 + $0x8] sm:$0xff]
        %v1806 = vld [vmem:[#allocation2 + $0x28] sm:$0xff]
        %1809 = vrot.lane.b32.xlu0 %v1805, 123
        %v1810 = vpop.permute.xlu0 %1809
        %1811 = vrot.lane.b32.xlu0 %v1806, 123
        %v1812 = vpop.permute.xlu0 %1811
        %v1815 = vsel %vm1715, %v1810, 0.0
        %v1816 = vsel %vm1715, %v1812, 0.0
        %1817 = vst.msk [vmem:[#allocation3 + $0x100] sm:$0xff] %vm294, %v1815
        %1818 = vst.msk [vmem:[#allocation3 + $0x110] sm:$0xff] %vm294, %v1816
        %v1819 = vld [vmem:[#allocation4 + $0x300] sm:$0xff]
        %v1820 = vld [vmem:[#allocation4 + $0x310] sm:$0xff]
        %v1821 = vld [vmem:[#allocation4 + $0x320] sm:$0xff]
        %v1822 = vld [vmem:[#allocation4 + $0x330] sm:$0xff]
        %v1823 = vld [vmem:[#allocation3] sm:$0xff]
        %v1824 = vld [vmem:[#allocation3 + $0x10] sm:$0xff]
        %v1825 = vld [vmem:[#allocation3 + $0x20] sm:$0xff]
        %v1826 = vld [vmem:[#allocation3 + $0x30] sm:$0xff]
        %v1827 = vld [vmem:[#allocation3 + $0x40] sm:$0xff]
        %v1828 = vld [vmem:[#allocation3 + $0x50] sm:$0xff]
        %v1829 = vld [vmem:[#allocation3 + $0x60] sm:$0xff]
        %v1830 = vld [vmem:[#allocation3 + $0x70] sm:$0xff]
        %v1831 = vld [vmem:[#allocation3 + $0x80] sm:$0xff]
        %v1832 = vld [vmem:[#allocation3 + $0x90] sm:$0xff]
        %v1833 = vld [vmem:[#allocation3 + $0xa0] sm:$0xff]
        %v1834 = vld [vmem:[#allocation3 + $0xb0] sm:$0xff]
        %v1835 = vld [vmem:[#allocation3 + $0xc0] sm:$0xff]
        %v1836 = vld [vmem:[#allocation3 + $0xd0] sm:$0xff]
        %v1837 = vld [vmem:[#allocation3 + $0xe0] sm:$0xff]
        %v1838 = vld [vmem:[#allocation3 + $0xf0] sm:$0xff]
        %v1839 = vld [vmem:[#allocation3 + $0x100] sm:$0xff]
        %v1840 = vld [vmem:[#allocation3 + $0x110] sm:$0xff]
        %v1841 = vpack.c.bf16 %v1824, %v1823
        %v1842 = vpack.c.bf16 %v1826, %v1825
        %v1843 = vpack.c.bf16 %v1828, %v1827
        %v1844 = vpack.c.bf16 %v1830, %v1829
        %v1845 = vpack.c.bf16 %v1832, %v1831
        %v1846 = vpack.c.bf16 %v1834, %v1833
        %v1847 = vpack.c.bf16 %v1836, %v1835
        %v1848 = vpack.c.bf16 %v1838, %v1837
        %v1849 = vpack.c.bf16 %v1840, %v1839
        %v1850 = vld [vmem:[#allocation6] sm:$0xff]
        %v1851 = vld [vmem:[#allocation6 + $0x8] sm:$0xff]
        %v1852 = vld [vmem:[#allocation6 + $0x10] sm:$0xff]
        %v1853 = vld [vmem:[#allocation6 + $0x18] sm:$0xff]
        %1855 = vset.pattern.permute.xlu0 4
        %1856 = vperm.xlu0 %1855, %v1850
        %v1857 = vpop.permute.xlu0 %1856
        %1860 = vset.pattern.permute.xlu0 4
        %1861 = vperm.xlu0 %1860, %v1851
        %v1862 = vpop.permute.xlu0 %1861
        %1865 = vset.pattern.permute.xlu0 4
        %1866 = vperm.xlu0 %1865, %v1852
        %v1867 = vpop.permute.xlu0 %1866
        %1870 = vset.pattern.permute.xlu0 4
        %1871 = vperm.xlu0 %1870, %v1853
        %v1872 = vpop.permute.xlu0 %1871
        %v1878 = vunpack.c.l.b16 %v1819
        %v1879 = vunpack.c.h.b16 %v1819
        %v1880 = vunpack.c.l.b16 %v1820
        %v1881 = vunpack.c.h.b16 %v1820
        %v1882 = vunpack.c.l.b16 %v1821
        %v1883 = vunpack.c.h.b16 %v1821
        %v1884 = vunpack.c.l.b16 %v1822
        %v1885 = vunpack.c.h.b16 %v1822
        %v1886 = vpack.c.b16 %v1880, %v1878
        %v1887 = vpack.c.b16 %v1881, %v1879
        %v1888 = vpack.c.b16 %v1884, %v1882
        %v1889 = vpack.c.b16 %v1885, %v1883
        %v1893 = vsel %vm294, %v1887, 0
        %v1896 = vsel %vm294, %v1889, 0
        %1898 = vmatprep.subr.bf16.mxu0 0
        %1899 = vmatpush1.bf16.msra.mxu0 %v1841
        %1900 = vmatprep.subr.bf16.mxu0 0
        %1901 = vmatpush1.bf16.msra.mxu0 %v1842
        %1902 = vmatprep.subr.bf16.mxu0 0
        %1903 = vmatpush1.bf16.msra.mxu0 %v1843
        %1904 = vmatprep.subr.bf16.mxu0 0
        %1905 = vmatpush1.bf16.msra.mxu0 %v1844
        %1906 = vmatprep.subr.bf16.mxu0 0
        %1907 = vmatpush1.bf16.msra.mxu0 %v1845
        %1908 = vmatprep.subr.bf16.mxu0 0
        %1909 = vmatpush1.bf16.msra.mxu0 %v1846
        %1910 = vmatprep.subr.bf16.mxu0 0
        %1911 = vmatpush1.bf16.msra.mxu0 %v1847
        %1912 = vmatprep.subr.bf16.mxu0 0
        %1913 = vmatpush1.bf16.msra.mxu0 %v1848
        %1914 = vmatprep.subr.bf16.mxu0 0
        %1915 = vmatpush1.bf16.msra.mxu0 %v1849
        %1916 = vmatprep.subr.bf16.mxu0 0
        %1917 = vmatpush1.bf16.msra.mxu0 0
        %1918 = vmatprep.subr.bf16.mxu0 0
        %1919 = vmatpush1.bf16.msra.mxu0 0
        %1920 = vmatprep.subr.bf16.mxu0 0
        %1921 = vmatpush1.bf16.msra.mxu0 0
        %1922 = vmatprep.subr.bf16.mxu0 0
        %1923 = vmatpush1.bf16.msra.mxu0 0
        %1924 = vmatprep.subr.bf16.mxu0 0
        %1925 = vmatpush1.bf16.msra.mxu0 0
        %1926 = vmatprep.subr.bf16.mxu0 0
        %1927 = vmatpush1.bf16.msra.mxu0 0
        %1928 = vmatprep.subr.bf16.mxu0 0
        %1929 = vmatpush1.bf16.msra.mxu0 0
        %1930 = vmatprep.mubr.bf16.mxu0 %v1893
        %1931 = vmatmul.mubr.bf16.gmra.mrb[0].mxu0 %v1886
        %v1932 = vpop.f32.mrb[0].mxu0
        %v1933 = vadd.f32 %v1857, %v1932
        %v1934 = vpop.f32.mrb[0].mxu0
        %v1935 = vpop.f32.mrb[0].mxu0
        %v1936 = vadd.f32 %v1862, %v1935
        %v1937 = vpop.f32.mrb[0].mxu0
        %1938 = vmatprep.mubr.bf16.mxu0 %v1896
        %1939 = vmatmul.mubr.bf16.gmra.mrb[0].mxu0 %v1888
        %v1940 = vpop.f32.mrb[0].mxu0
        %v1941 = vadd.f32 %v1867, %v1940
        %v1942 = vpop.f32.mrb[0].mxu0
        %v1943 = vpop.f32.mrb[0].mxu0
        %v1944 = vadd.f32 %v1872, %v1943
        %v1945 = vpop.f32.mrb[0].mxu0
        %1946 = vdwg.mxu0
        %v1947 = vmax.f32 %v1933, 0.0
        %v1948 = vmax.f32 %v1936, 0.0
        %v1949 = vmax.f32 %v1941, 0.0
        %v1950 = vmax.f32 %v1944, 0.0
        %1951 = vst.msk [vmem:[#allocation2] sm:$0xff] %vm1638, 0.0
        %1952 = vst.msk [vmem:[#allocation2 + $0x20] sm:$0xff] %vm1638, 0.0
        %1953 = vst.msk [vmem:[#allocation2 + $0x40] sm:$0xff] %vm1638, 0.0
        %1954 = vst.msk [vmem:[#allocation2 + $0x60] sm:$0xff] %vm1638, 0.0
        %1955 = vst.msk [vmem:[#allocation2 + $0x8] sm:$0xff] %vm1641, 0.0
        %1956 = vst.msk [vmem:[#allocation2 + $0x28] sm:$0xff] %vm1641, 0.0
        %1957 = vst.msk [vmem:[#allocation2 + $0x48] sm:$0xff] %vm1641, 0.0
        %1958 = vst.msk [vmem:[#allocation2 + $0x68] sm:$0xff] %vm1641, 0.0
        %1959 = vst.msk [vmem:[#allocation2 + $0x8] sm:$0xff] %vm294, %v1947
        %1960 = vst.msk [vmem:[#allocation2 + $0x28] sm:$0xff] %vm294, %v1948
        %1961 = vst.msk [vmem:[#allocation2 + $0x48] sm:$0xff] %vm294, %v1949
        %1962 = vst.msk [vmem:[#allocation2 + $0x68] sm:$0xff] %vm294, %v1950
        %v1963 = vld [vmem:[#allocation2] sm:$0xff]
        %v1964 = vld [vmem:[#allocation2 + $0x8] sm:$0xff]
        %v1965 = vld [vmem:[#allocation2 + $0x20] sm:$0xff]
        %v1966 = vld [vmem:[#allocation2 + $0x28] sm:$0xff]
        %v1967 = vld [vmem:[#allocation2 + $0x40] sm:$0xff]
        %v1968 = vld [vmem:[#allocation2 + $0x48] sm:$0xff]
        %v1969 = vld [vmem:[#allocation2 + $0x60] sm:$0xff]
        %v1970 = vld [vmem:[#allocation2 + $0x68] sm:$0xff]
        %1979 = vrot.lane.b32.xlu0 %v1963, 5
        %v1980 = vpop.permute.xlu0 %1979
        %1981 = vrot.lane.b32.xlu0 %v1964, 5
        %v1982 = vpop.permute.xlu0 %1981
        %1983 = vrot.lane.b32.xlu0 %v1965, 5
        %v1984 = vpop.permute.xlu0 %1983
        %1985 = vrot.lane.b32.xlu0 %v1966, 5
        %v1986 = vpop.permute.xlu0 %1985
        %1987 = vrot.lane.b32.xlu0 %v1967, 5
        %v1988 = vpop.permute.xlu0 %1987
        %1989 = vrot.lane.b32.xlu0 %v1968, 5
        %v1990 = vpop.permute.xlu0 %1989
        %1991 = vrot.lane.b32.xlu0 %v1969, 5
        %v1992 = vpop.permute.xlu0 %1991
        %1993 = vrot.lane.b32.xlu0 %v1970, 5
        %v1994 = vpop.permute.xlu0 %1993
        %v1995 = vsel %vm1678, %v1980, %v1982
        %v1996 = vsel %vm1678, %v1984, %v1986
        %v1997 = vsel %vm1678, %v1988, %v1990
        %v1998 = vsel %vm1678, %v1992, %v1994
        %v2003 = vsel %vm1665, %v1995, 0.0
        %v2004 = vsel %vm1665, %v1996, 0.0
        %v2005 = vsel %vm1665, %v1997, 0.0
        %v2006 = vsel %vm1665, %v1998, 0.0
        %2007 = vst.msk [vmem:[#allocation3] sm:$0xff] %vm294, %v2003
        %2008 = vst.msk [vmem:[#allocation3 + $0x10] sm:$0xff] %vm294, %v2004
        %2009 = vst.msk [vmem:[#allocation3 + $0x20] sm:$0xff] %vm294, %v2005
        %2010 = vst.msk [vmem:[#allocation3 + $0x30] sm:$0xff] %vm294, %v2006
        %v2011 = vld [vmem:[#allocation2] sm:$0xff]
        %v2012 = vld [vmem:[#allocation2 + $0x8] sm:$0xff]
        %v2013 = vld [vmem:[#allocation2 + $0x20] sm:$0xff]
        %v2014 = vld [vmem:[#allocation2 + $0x28] sm:$0xff]
        %v2015 = vld [vmem:[#allocation2 + $0x40] sm:$0xff]
        %v2016 = vld [vmem:[#allocation2 + $0x48] sm:$0xff]
        %v2017 = vld [vmem:[#allocation2 + $0x60] sm:$0xff]
        %v2018 = vld [vmem:[#allocation2 + $0x68] sm:$0xff]
        %2027 = vrot.lane.b32.xlu0 %v2011, 4
        %v2028 = vpop.permute.xlu0 %2027
        %2029 = vrot.lane.b32.xlu0 %v2012, 4
        %v2030 = vpop.permute.xlu0 %2029
        %2031 = vrot.lane.b32.xlu0 %v2013, 4
        %v2032 = vpop.permute.xlu0 %2031
        %2033 = vrot.lane.b32.xlu0 %v2014, 4
        %v2034 = vpop.permute.xlu0 %2033
        %2035 = vrot.lane.b32.xlu0 %v2015, 4
        %v2036 = vpop.permute.xlu0 %2035
        %2037 = vrot.lane.b32.xlu0 %v2016, 4
        %v2038 = vpop.permute.xlu0 %2037
        %2039 = vrot.lane.b32.xlu0 %v2017, 4
        %v2040 = vpop.permute.xlu0 %2039
        %2041 = vrot.lane.b32.xlu0 %v2018, 4
        %v2042 = vpop.permute.xlu0 %2041
        %v2043 = vsel %vm1703, %v2028, %v2030
        %v2044 = vsel %vm1703, %v2032, %v2034
        %v2045 = vsel %vm1703, %v2036, %v2038
        %v2046 = vsel %vm1703, %v2040, %v2042
        %2051 = vst.msk [vmem:[#allocation3 + $0x40] sm:$0xff] %vm294, %v2043
        %2052 = vst.msk [vmem:[#allocation3 + $0x50] sm:$0xff] %vm294, %v2044
        %2053 = vst.msk [vmem:[#allocation3 + $0x60] sm:$0xff] %vm294, %v2045
        %2054 = vst.msk [vmem:[#allocation3 + $0x70] sm:$0xff] %vm294, %v2046
        %v2055 = vld [vmem:[#allocation2] sm:$0xff]
        %v2056 = vld [vmem:[#allocation2 + $0x8] sm:$0xff]
        %v2057 = vld [vmem:[#allocation2 + $0x20] sm:$0xff]
        %v2058 = vld [vmem:[#allocation2 + $0x28] sm:$0xff]
        %v2059 = vld [vmem:[#allocation2 + $0x40] sm:$0xff]
        %v2060 = vld [vmem:[#allocation2 + $0x48] sm:$0xff]
        %v2061 = vld [vmem:[#allocation2 + $0x60] sm:$0xff]
        %v2062 = vld [vmem:[#allocation2 + $0x68] sm:$0xff]
        %2071 = vrot.lane.b32.xlu0 %v2055, 3
        %v2072 = vpop.permute.xlu0 %2071
        %2073 = vrot.lane.b32.xlu0 %v2056, 3
        %v2074 = vpop.permute.xlu0 %2073
        %2075 = vrot.lane.b32.xlu0 %v2057, 3
        %v2076 = vpop.permute.xlu0 %2075
        %2077 = vrot.lane.b32.xlu0 %v2058, 3
        %v2078 = vpop.permute.xlu0 %2077
        %2079 = vrot.lane.b32.xlu0 %v2059, 3
        %v2080 = vpop.permute.xlu0 %2079
        %2081 = vrot.lane.b32.xlu0 %v2060, 3
        %v2082 = vpop.permute.xlu0 %2081
        %2083 = vrot.lane.b32.xlu0 %v2061, 3
        %v2084 = vpop.permute.xlu0 %2083
        %2085 = vrot.lane.b32.xlu0 %v2062, 3
        %v2086 = vpop.permute.xlu0 %2085
        %v2087 = vsel %vm1728, %v2072, %v2074
        %v2088 = vsel %vm1728, %v2076, %v2078
        %v2089 = vsel %vm1728, %v2080, %v2082
        %v2090 = vsel %vm1728, %v2084, %v2086
        %v2095 = vsel %vm1715, %v2087, 0.0
        %v2096 = vsel %vm1715, %v2088, 0.0
        %v2097 = vsel %vm1715, %v2089, 0.0
        %v2098 = vsel %vm1715, %v2090, 0.0
        %2099 = vst.msk [vmem:[#allocation3 + $0x80] sm:$0xff] %vm294, %v2095
        %2100 = vst.msk [vmem:[#allocation3 + $0x90] sm:$0xff] %vm294, %v2096
        %2101 = vst.msk [vmem:[#allocation3 + $0xa0] sm:$0xff] %vm294, %v2097
        %2102 = vst.msk [vmem:[#allocation3 + $0xb0] sm:$0xff] %vm294, %v2098
        %v2103 = vld [vmem:[#allocation2] sm:$0xff]
        %v2104 = vld [vmem:[#allocation2 + $0x8] sm:$0xff]
        %v2105 = vld [vmem:[#allocation2 + $0x20] sm:$0xff]
        %v2106 = vld [vmem:[#allocation2 + $0x28] sm:$0xff]
        %v2107 = vld [vmem:[#allocation2 + $0x40] sm:$0xff]
        %v2108 = vld [vmem:[#allocation2 + $0x48] sm:$0xff]
        %v2109 = vld [vmem:[#allocation2 + $0x60] sm:$0xff]
        %v2110 = vld [vmem:[#allocation2 + $0x68] sm:$0xff]
        %2119 = vrot.lane.b32.xlu0 %v2103, 1
        %v2120 = vpop.permute.xlu0 %2119
        %2121 = vrot.lane.b32.xlu0 %v2104, 1
        %v2122 = vpop.permute.xlu0 %2121
        %2123 = vrot.lane.b32.xlu0 %v2105, 1
        %v2124 = vpop.permute.xlu0 %2123
        %2125 = vrot.lane.b32.xlu0 %v2106, 1
        %v2126 = vpop.permute.xlu0 %2125
        %2127 = vrot.lane.b32.xlu0 %v2107, 1
        %v2128 = vpop.permute.xlu0 %2127
        %2129 = vrot.lane.b32.xlu0 %v2108, 1
        %v2130 = vpop.permute.xlu0 %2129
        %2131 = vrot.lane.b32.xlu0 %v2109, 1
        %v2132 = vpop.permute.xlu0 %2131
        %2133 = vrot.lane.b32.xlu0 %v2110, 1
        %v2134 = vpop.permute.xlu0 %2133
        %v2135 = vsel %vm368, %v2120, %v2122
        %v2136 = vsel %vm368, %v2124, %v2126
        %v2137 = vsel %vm368, %v2128, %v2130
        %v2138 = vsel %vm368, %v2132, %v2134
        %v2143 = vsel %vm1665, %v2135, 0.0
        %v2144 = vsel %vm1665, %v2136, 0.0
        %v2145 = vsel %vm1665, %v2137, 0.0
        %v2146 = vsel %vm1665, %v2138, 0.0
        %2147 = vst.msk [vmem:[#allocation3 + $0xc0] sm:$0xff] %vm294, %v2143
        %2148 = vst.msk [vmem:[#allocation3 + $0xd0] sm:$0xff] %vm294, %v2144
        %2149 = vst.msk [vmem:[#allocation3 + $0xe0] sm:$0xff] %vm294, %v2145
        %2150 = vst.msk [vmem:[#allocation3 + $0xf0] sm:$0xff] %vm294, %v2146
        %v2151 = vld [vmem:[#allocation2 + $0x8] sm:$0xff]
        %v2152 = vld [vmem:[#allocation2 + $0x28] sm:$0xff]
        %v2153 = vld [vmem:[#allocation2 + $0x48] sm:$0xff]
        %v2154 = vld [vmem:[#allocation2 + $0x68] sm:$0xff]
        %2155 = vst.msk [vmem:[#allocation3 + $0x100] sm:$0xff] %vm294, %v2151
        %2156 = vst.msk [vmem:[#allocation3 + $0x110] sm:$0xff] %vm294, %v2152
        %2157 = vst.msk [vmem:[#allocation3 + $0x120] sm:$0xff] %vm294, %v2153
        %2158 = vst.msk [vmem:[#allocation3 + $0x130] sm:$0xff] %vm294, %v2154
        %v2159 = vld [vmem:[#allocation2 + $0x8] sm:$0xff]
        %v2160 = vld [vmem:[#allocation2 + $0x28] sm:$0xff]
        %v2161 = vld [vmem:[#allocation2 + $0x48] sm:$0xff]
        %v2162 = vld [vmem:[#allocation2 + $0x68] sm:$0xff]
        %2167 = vrot.lane.b32.xlu0 %v2159, 127
        %v2168 = vpop.permute.xlu0 %2167
        %2169 = vrot.lane.b32.xlu0 %v2160, 127
        %v2170 = vpop.permute.xlu0 %2169
        %2171 = vrot.lane.b32.xlu0 %v2161, 127
        %v2172 = vpop.permute.xlu0 %2171
        %2173 = vrot.lane.b32.xlu0 %v2162, 127
        %v2174 = vpop.permute.xlu0 %2173
        %v2179 = vsel %vm1715, %v2168, 0.0
        %v2180 = vsel %vm1715, %v2170, 0.0
        %v2181 = vsel %vm1715, %v2172, 0.0
        %v2182 = vsel %vm1715, %v2174, 0.0
        %2183 = vst.msk [vmem:[#allocation3 + $0x140] sm:$0xff] %vm294, %v2179
        %2184 = vst.msk [vmem:[#allocation3 + $0x150] sm:$0xff] %vm294, %v2180
        %2185 = vst.msk [vmem:[#allocation3 + $0x160] sm:$0xff] %vm294, %v2181
        %2186 = vst.msk [vmem:[#allocation3 + $0x170] sm:$0xff] %vm294, %v2182
        %v2187 = vld [vmem:[#allocation2 + $0x8] sm:$0xff]
        %v2188 = vld [vmem:[#allocation2 + $0x28] sm:$0xff]
        %v2189 = vld [vmem:[#allocation2 + $0x48] sm:$0xff]
        %v2190 = vld [vmem:[#allocation2 + $0x68] sm:$0xff]
        %2195 = vrot.lane.b32.xlu0 %v2187, 125
        %v2196 = vpop.permute.xlu0 %2195
        %2197 = vrot.lane.b32.xlu0 %v2188, 125
        %v2198 = vpop.permute.xlu0 %2197
        %2199 = vrot.lane.b32.xlu0 %v2189, 125
        %v2200 = vpop.permute.xlu0 %2199
        %2201 = vrot.lane.b32.xlu0 %v2190, 125
        %v2202 = vpop.permute.xlu0 %2201
        %v2207 = vsel %vm1665, %v2196, 0.0
        %v2208 = vsel %vm1665, %v2198, 0.0
        %v2209 = vsel %vm1665, %v2200, 0.0
        %v2210 = vsel %vm1665, %v2202, 0.0
        %2211 = vst.msk [vmem:[#allocation3 + $0x180] sm:$0xff] %vm294, %v2207
        %2212 = vst.msk [vmem:[#allocation3 + $0x190] sm:$0xff] %vm294, %v2208
        %2213 = vst.msk [vmem:[#allocation3 + $0x1a0] sm:$0xff] %vm294, %v2209
        %2214 = vst.msk [vmem:[#allocation3 + $0x1b0] sm:$0xff] %vm294, %v2210
        %v2215 = vld [vmem:[#allocation2 + $0x8] sm:$0xff]
        %v2216 = vld [vmem:[#allocation2 + $0x28] sm:$0xff]
        %v2217 = vld [vmem:[#allocation2 + $0x48] sm:$0xff]
        %v2218 = vld [vmem:[#allocation2 + $0x68] sm:$0xff]
        %2223 = vrot.lane.b32.xlu0 %v2215, 124
        %v2224 = vpop.permute.xlu0 %2223
        %2225 = vrot.lane.b32.xlu0 %v2216, 124
        %v2226 = vpop.permute.xlu0 %2225
        %2227 = vrot.lane.b32.xlu0 %v2217, 124
        %v2228 = vpop.permute.xlu0 %2227
        %2229 = vrot.lane.b32.xlu0 %v2218, 124
        %v2230 = vpop.permute.xlu0 %2229
        %2235 = vst.msk [vmem:[#allocation3 + $0x1c0] sm:$0xff] %vm294, %v2224
        %2236 = vst.msk [vmem:[#allocation3 + $0x1d0] sm:$0xff] %vm294, %v2226
        %2237 = vst.msk [vmem:[#allocation3 + $0x1e0] sm:$0xff] %vm294, %v2228
        %2238 = vst.msk [vmem:[#allocation3 + $0x1f0] sm:$0xff] %vm294, %v2230
        %v2239 = vld [vmem:[#allocation2 + $0x8] sm:$0xff]
        %v2240 = vld [vmem:[#allocation2 + $0x28] sm:$0xff]
        %v2241 = vld [vmem:[#allocation2 + $0x48] sm:$0xff]
        %v2242 = vld [vmem:[#allocation2 + $0x68] sm:$0xff]
        %2247 = vrot.lane.b32.xlu0 %v2239, 123
        %v2248 = vpop.permute.xlu0 %2247
        %2249 = vrot.lane.b32.xlu0 %v2240, 123
        %v2250 = vpop.permute.xlu0 %2249
        %2251 = vrot.lane.b32.xlu0 %v2241, 123
        %v2252 = vpop.permute.xlu0 %2251
        %2253 = vrot.lane.b32.xlu0 %v2242, 123
        %v2254 = vpop.permute.xlu0 %2253
        %v2259 = vsel %vm1715, %v2248, 0.0
        %v2260 = vsel %vm1715, %v2250, 0.0
        %v2261 = vsel %vm1715, %v2252, 0.0
        %v2262 = vsel %vm1715, %v2254, 0.0
        %2263 = vst.msk [vmem:[#allocation3 + $0x200] sm:$0xff] %vm294, %v2259
        %2264 = vst.msk [vmem:[#allocation3 + $0x210] sm:$0xff] %vm294, %v2260
        %2265 = vst.msk [vmem:[#allocation3 + $0x220] sm:$0xff] %vm294, %v2261
        %2266 = vst.msk [vmem:[#allocation3 + $0x230] sm:$0xff] %vm294, %v2262
        %v2267 = vld [vmem:[#allocation4 + $0x340] sm:$0xff]
        %v2268 = vld [vmem:[#allocation4 + $0x348] sm:$0xf]
        %v2269 = vld [vmem:[#allocation4 + $0x350] sm:$0xff]
        %v2270 = vld [vmem:[#allocation4 + $0x358] sm:$0xf]
        %v2271 = vld [vmem:[#allocation4 + $0x360] sm:$0xff]
        %v2272 = vld [vmem:[#allocation4 + $0x368] sm:$0xf]
        %v2273 = vld [vmem:[#allocation4 + $0x370] sm:$0xff]
        %v2274 = vld [vmem:[#allocation4 + $0x378] sm:$0xf]
        %v2275 = vld [vmem:[#allocation3] sm:$0xff]
        %v2276 = vld [vmem:[#allocation3 + $0x10] sm:$0xff]
        %v2277 = vld [vmem:[#allocation3 + $0x20] sm:$0xff]
        %v2278 = vld [vmem:[#allocation3 + $0x30] sm:$0xff]
        %v2279 = vld [vmem:[#allocation3 + $0x40] sm:$0xff]
        %v2280 = vld [vmem:[#allocation3 + $0x50] sm:$0xff]
        %v2281 = vld [vmem:[#allocation3 + $0x60] sm:$0xff]
        %v2282 = vld [vmem:[#allocation3 + $0x70] sm:$0xff]
        %v2283 = vld [vmem:[#allocation3 + $0x80] sm:$0xff]
        %v2284 = vld [vmem:[#allocation3 + $0x90] sm:$0xff]
        %v2285 = vld [vmem:[#allocation3 + $0xa0] sm:$0xff]
        %v2286 = vld [vmem:[#allocation3 + $0xb0] sm:$0xff]
        %v2287 = vld [vmem:[#allocation3 + $0xc0] sm:$0xff]
        %v2288 = vld [vmem:[#allocation3 + $0xd0] sm:$0xff]
        %v2289 = vld [vmem:[#allocation3 + $0xe0] sm:$0xff]
        %v2290 = vld [vmem:[#allocation3 + $0xf0] sm:$0xff]
        %v2291 = vld [vmem:[#allocation3 + $0x100] sm:$0xff]
        %v2292 = vld [vmem:[#allocation3 + $0x110] sm:$0xff]
        %v2293 = vld [vmem:[#allocation3 + $0x120] sm:$0xff]
        %v2294 = vld [vmem:[#allocation3 + $0x130] sm:$0xff]
        %v2295 = vld [vmem:[#allocation3 + $0x140] sm:$0xff]
        %v2296 = vld [vmem:[#allocation3 + $0x150] sm:$0xff]
        %v2297 = vld [vmem:[#allocation3 + $0x160] sm:$0xff]
        %v2298 = vld [vmem:[#allocation3 + $0x170] sm:$0xff]
        %v2299 = vld [vmem:[#allocation3 + $0x180] sm:$0xff]
        %v2300 = vld [vmem:[#allocation3 + $0x190] sm:$0xff]
        %v2301 = vld [vmem:[#allocation3 + $0x1a0] sm:$0xff]
        %v2302 = vld [vmem:[#allocation3 + $0x1b0] sm:$0xff]
        %v2303 = vld [vmem:[#allocation3 + $0x1c0] sm:$0xff]
        %v2304 = vld [vmem:[#allocation3 + $0x1d0] sm:$0xff]
        %v2305 = vld [vmem:[#allocation3 + $0x1e0] sm:$0xff]
        %v2306 = vld [vmem:[#allocation3 + $0x1f0] sm:$0xff]
        %v2307 = vld [vmem:[#allocation3 + $0x200] sm:$0xff]
        %v2308 = vld [vmem:[#allocation3 + $0x210] sm:$0xff]
        %v2309 = vld [vmem:[#allocation3 + $0x220] sm:$0xff]
        %v2310 = vld [vmem:[#allocation3 + $0x230] sm:$0xff]
        %v2311 = vpack.c.bf16 %v2276, %v2275
        %v2312 = vpack.c.bf16 %v2278, %v2277
        %v2313 = vpack.c.bf16 %v2280, %v2279
        %v2314 = vpack.c.bf16 %v2282, %v2281
        %v2315 = vpack.c.bf16 %v2284, %v2283
        %v2316 = vpack.c.bf16 %v2286, %v2285
        %v2317 = vpack.c.bf16 %v2288, %v2287
        %v2318 = vpack.c.bf16 %v2290, %v2289
        %v2319 = vpack.c.bf16 %v2292, %v2291
        %v2320 = vpack.c.bf16 %v2294, %v2293
        %v2321 = vpack.c.bf16 %v2296, %v2295
        %v2322 = vpack.c.bf16 %v2298, %v2297
        %v2323 = vpack.c.bf16 %v2300, %v2299
        %v2324 = vpack.c.bf16 %v2302, %v2301
        %v2325 = vpack.c.bf16 %v2304, %v2303
        %v2326 = vpack.c.bf16 %v2306, %v2305
        %v2327 = vpack.c.bf16 %v2308, %v2307
        %v2328 = vpack.c.bf16 %v2310, %v2309
        %v2329 = vld [vmem:[#allocation6] sm:$0xff]
        %v2330 = vld [vmem:[#allocation6 + $0x8] sm:$0xff]
        %v2331 = vld [vmem:[#allocation6 + $0x10] sm:$0xff]
        %v2332 = vld [vmem:[#allocation6 + $0x18] sm:$0xff]
        %2334 = vset.pattern.permute.xlu0 5
        %2335 = vperm.xlu0 %2334, %v2329
        %v2336 = vpop.permute.xlu0 %2335
        %2339 = vset.pattern.permute.xlu0 5
        %2340 = vperm.xlu0 %2339, %v2330
        %v2341 = vpop.permute.xlu0 %2340
        %2344 = vset.pattern.permute.xlu0 5
        %2345 = vperm.xlu0 %2344, %v2331
        %v2346 = vpop.permute.xlu0 %2345
        %2349 = vset.pattern.permute.xlu0 5
        %2350 = vperm.xlu0 %2349, %v2332
        %v2351 = vpop.permute.xlu0 %2350
        %v2361 = vunpack.c.l.b16 %v2267
        %v2362 = vunpack.c.h.b16 %v2267
        %v2363 = vunpack.c.l.b16 %v2268
        %v2364 = vunpack.c.l.b16 %v2269
        %v2365 = vunpack.c.h.b16 %v2269
        %v2366 = vunpack.c.l.b16 %v2270
        %v2367 = vunpack.c.l.b16 %v2271
        %v2368 = vunpack.c.h.b16 %v2271
        %v2369 = vunpack.c.l.b16 %v2272
        %v2370 = vunpack.c.l.b16 %v2273
        %v2371 = vunpack.c.h.b16 %v2273
        %v2372 = vunpack.c.l.b16 %v2274
        %v2373 = vpack.c.b16 %v2364, %v2361
        %v2374 = vpack.c.b16 %v2365, %v2362
        %v2375 = vpack.c.b16 %v2366, %v2363
        %v2376 = vpack.c.b16 %v2370, %v2367
        %v2377 = vpack.c.b16 %v2371, %v2368
        %v2378 = vpack.c.b16 %v2372, %v2369
        %vm2383 = vcmask 261120
        %v2385 = vsel %vm2383, %v2375, 0
        %v2388 = vsel %vm2383, %v2378, 0
        %2390 = vmatprep.subr.bf16.mxu0 0
        %2391 = vmatpush1.bf16.msra.mxu0 %v2311
        %2392 = vmatprep.subr.bf16.mxu0 0
        %2393 = vmatpush1.bf16.msra.mxu0 %v2312
        %2394 = vmatprep.subr.bf16.mxu0 0
        %2395 = vmatpush1.bf16.msra.mxu0 %v2313
        %2396 = vmatprep.subr.bf16.mxu0 0
        %2397 = vmatpush1.bf16.msra.mxu0 %v2314
        %2398 = vmatprep.subr.bf16.mxu0 0
        %2399 = vmatpush1.bf16.msra.mxu0 %v2315
        %2400 = vmatprep.subr.bf16.mxu0 0
        %2401 = vmatpush1.bf16.msra.mxu0 %v2316
        %2402 = vmatprep.subr.bf16.mxu0 0
        %2403 = vmatpush1.bf16.msra.mxu0 %v2317
        %2404 = vmatprep.subr.bf16.mxu0 0
        %2405 = vmatpush1.bf16.msra.mxu0 %v2318
        %2406 = vmatprep.subr.bf16.mxu0 0
        %2407 = vmatpush1.bf16.msra.mxu0 %v2319
        %2408 = vmatprep.subr.bf16.mxu0 0
        %2409 = vmatpush1.bf16.msra.mxu0 %v2320
        %2410 = vmatprep.subr.bf16.mxu0 0
        %2411 = vmatpush1.bf16.msra.mxu0 %v2321
        %2412 = vmatprep.subr.bf16.mxu0 0
        %2413 = vmatpush1.bf16.msra.mxu0 %v2322
        %2414 = vmatprep.subr.bf16.mxu0 0
        %2415 = vmatpush1.bf16.msra.mxu0 %v2323
        %2416 = vmatprep.subr.bf16.mxu0 0
        %2417 = vmatpush1.bf16.msra.mxu0 %v2324
        %2418 = vmatprep.subr.bf16.mxu0 0
        %2419 = vmatpush1.bf16.msra.mxu0 %v2325
        %2420 = vmatprep.subr.bf16.mxu0 0
        %2421 = vmatpush1.bf16.msra.mxu0 %v2326
        %2422 = vmatprep.mubr.bf16.mxu0 %v2374
        %2423 = vmatmul.mubr.bf16.gmra.mrb[0].mxu0 %v2373
        %v2424 = vpop.f32.mrb[0].mxu0
        %v2425 = vadd.f32 %v2336, %v2424
        %v2426 = vpop.f32.mrb[0].mxu0
        %v2427 = vpop.f32.mrb[0].mxu0
        %v2428 = vadd.f32 %v2341, %v2427
        %v2429 = vpop.f32.mrb[0].mxu0
        %2430 = vmatprep.mubr.bf16.mxu0 %v2377
        %2431 = vmatmul.mubr.bf16.gmra.mrb[0].mxu0 %v2376
        %v2432 = vpop.f32.mrb[0].mxu0
        %v2433 = vadd.f32 %v2346, %v2432
        %v2434 = vpop.f32.mrb[0].mxu0
        %v2435 = vpop.f32.mrb[0].mxu0
        %v2436 = vadd.f32 %v2351, %v2435
        %v2437 = vpop.f32.mrb[0].mxu0
        %2438 = vdwg.mxu0
        %2439 = vmatprep.subr.bf16.mxu0 0
        %2440 = vmatpush1.bf16.msra.mxu0 %v2327
        %2441 = vmatprep.subr.bf16.mxu0 0
        %2442 = vmatpush1.bf16.msra.mxu0 %v2328
        %2443 = vmatprep.subr.bf16.mxu0 0
        %2444 = vmatpush1.bf16.msra.mxu0 0
        %2445 = vmatprep.subr.bf16.mxu0 0
        %2446 = vmatpush1.bf16.msra.mxu0 0
        %2447 = vmatprep.subr.bf16.mxu0 0
        %2448 = vmatpush1.bf16.msra.mxu0 0
        %2449 = vmatprep.subr.bf16.mxu0 0
        %2450 = vmatpush1.bf16.msra.mxu0 0
        %2451 = vmatprep.subr.bf16.mxu0 0
        %2452 = vmatpush1.bf16.msra.mxu0 0
        %2453 = vmatprep.subr.bf16.mxu0 0
        %2454 = vmatpush1.bf16.msra.mxu0 0
        %2455 = vmatprep.subr.bf16.mxu0 0
        %2456 = vmatpush1.bf16.msra.mxu0 0
        %2457 = vmatprep.subr.bf16.mxu0 0
        %2458 = vmatpush1.bf16.msra.mxu0 0
        %2459 = vmatprep.subr.bf16.mxu0 0
        %2460 = vmatpush1.bf16.msra.mxu0 0
        %2461 = vmatprep.subr.bf16.mxu0 0
        %2462 = vmatpush1.bf16.msra.mxu0 0
        %2463 = vmatprep.subr.bf16.mxu0 0
        %2464 = vmatpush1.bf16.msra.mxu0 0
        %2465 = vmatprep.subr.bf16.mxu0 0
        %2466 = vmatpush1.bf16.msra.mxu0 0
        %2467 = vmatprep.subr.bf16.mxu0 0
        %2468 = vmatpush1.bf16.msra.mxu0 0
        %2469 = vmatprep.subr.bf16.mxu0 0
        %2470 = vmatpush1.bf16.msra.mxu0 0
        %2471 = vmatprep.mubr.bf16.mxu0 0
        %2472 = vmatmul.mubr.bf16.gmra.mrb[0].mxu0 %v2385
        %v2473 = vpop.f32.mrb[0].mxu0
        %v2474 = vadd.f32 %v2425, %v2473
        %v2475 = vpop.f32.mrb[0].mxu0
        %v2476 = vpop.f32.mrb[0].mxu0
        %v2477 = vadd.f32 %v2428, %v2476
        %v2478 = vpop.f32.mrb[0].mxu0
        %2479 = vmatprep.mubr.bf16.mxu0 0
        %2480 = vmatmul.mubr.bf16.gmra.mrb[0].mxu0 %v2388
        %v2481 = vpop.f32.mrb[0].mxu0
        %v2482 = vadd.f32 %v2433, %v2481
        %v2483 = vpop.f32.mrb[0].mxu0
        %v2484 = vpop.f32.mrb[0].mxu0
        %v2485 = vadd.f32 %v2436, %v2484
        %v2486 = vpop.f32.mrb[0].mxu0
        %2487 = vdwg.mxu0
        %v2488 = vmax.f32 %v2474, 0.0
        %v2489 = vmax.f32 %v2477, 0.0
        %v2490 = vmax.f32 %v2482, 0.0
        %v2491 = vmax.f32 %v2485, 0.0
        %v2492 = vld [vmem:[#allocation4 + $0x380] sm:$0xf]
        %v2493 = vld [vmem:[#allocation4 + $0x390] sm:$0xf]
        %v2494 = vld [vmem:[#allocation4 + $0x3a0] sm:$0xf]
        %v2495 = vld [vmem:[#allocation4 + $0x3b0] sm:$0xf]
        %v2496 = vld [vmem:[#allocation4 + $0x3c0] sm:$0xf]
        %v2497 = vld [vmem:[#allocation4 + $0x3d0] sm:$0xf]
        %v2498 = vld [vmem:[#allocation4 + $0x3e0] sm:$0xf]
        %v2499 = vld [vmem:[#allocation4 + $0x3f0] sm:$0xf]
        %v2500 = vld [vmem:[#allocation4 + $0x400] sm:$0xf]
        %v2501 = vld [vmem:[#allocation4 + $0x410] sm:$0xf]
        %v2502 = vld [vmem:[#allocation4 + $0x420] sm:$0xf]
        %v2503 = vld [vmem:[#allocation4 + $0x430] sm:$0xf]
        %v2504 = vld [vmem:[#allocation4 + $0x440] sm:$0xf]
        %v2505 = vld [vmem:[#allocation4 + $0x450] sm:$0xf]
        %v2506 = vld [vmem:[#allocation4 + $0x460] sm:$0xf]
        %v2507 = vld [vmem:[#allocation4 + $0x470] sm:$0xf]
        %v2508 = vpack.c.bf16 %v2489, %v2488
        %v2509 = vpack.c.bf16 %v2491, %v2490
        %v2526 = vunpack.c.l.b16 %v2492
        %v2527 = vunpack.c.l.b16 %v2493
        %v2528 = vunpack.c.l.b16 %v2494
        %v2529 = vunpack.c.l.b16 %v2495
        %v2530 = vunpack.c.l.b16 %v2496
        %v2531 = vunpack.c.l.b16 %v2497
        %v2532 = vunpack.c.l.b16 %v2498
        %v2533 = vunpack.c.l.b16 %v2499
        %v2534 = vunpack.c.l.b16 %v2500
        %v2535 = vunpack.c.l.b16 %v2501
        %v2536 = vunpack.c.l.b16 %v2502
        %v2537 = vunpack.c.l.b16 %v2503
        %v2538 = vunpack.c.l.b16 %v2504
        %v2539 = vunpack.c.l.b16 %v2505
        %v2540 = vunpack.c.l.b16 %v2506
        %v2541 = vunpack.c.l.b16 %v2507
        %v2542 = vpack.c.b16 %v2527, %v2526
        %v2543 = vpack.c.b16 %v2529, %v2528
        %v2544 = vpack.c.b16 %v2531, %v2530
        %v2545 = vpack.c.b16 %v2533, %v2532
        %v2546 = vpack.c.b16 %v2535, %v2534
        %v2547 = vpack.c.b16 %v2537, %v2536
        %v2548 = vpack.c.b16 %v2539, %v2538
        %v2549 = vpack.c.b16 %v2541, %v2540
        %v2551 = vsel %vm2383, %v2542, 0
        %v2554 = vsel %vm2383, %v2543, 0
        %v2557 = vsel %vm2383, %v2544, 0
        %v2560 = vsel %vm2383, %v2545, 0
        %v2563 = vsel %vm2383, %v2546, 0
        %v2566 = vsel %vm2383, %v2547, 0
        %v2569 = vsel %vm2383, %v2548, 0
        %v2572 = vsel %vm2383, %v2549, 0
        %2574 = vmatprep.subr.bf16.mxu0 0
        %2575 = vmatpush1.bf16.msra.mxu0 %v2508
        %2576 = vmatprep.subr.bf16.mxu0 0
        %2577 = vmatpush1.bf16.msra.mxu0 %v2509
        %2578 = vmatprep.subr.bf16.mxu0 0
        %2579 = vmatpush1.bf16.msra.mxu0 0
        %2580 = vmatprep.subr.bf16.mxu0 0
        %2581 = vmatpush1.bf16.msra.mxu0 0
        %2582 = vmatprep.subr.bf16.mxu0 0
        %2583 = vmatpush1.bf16.msra.mxu0 0
        %2584 = vmatprep.subr.bf16.mxu0 0
        %2585 = vmatpush1.bf16.msra.mxu0 0
        %2586 = vmatprep.subr.bf16.mxu0 0
        %2587 = vmatpush1.bf16.msra.mxu0 0
        %2588 = vmatprep.subr.bf16.mxu0 0
        %2589 = vmatpush1.bf16.msra.mxu0 0
        %2590 = vmatprep.subr.bf16.mxu0 0
        %2591 = vmatpush1.bf16.msra.mxu0 0
        %2592 = vmatprep.subr.bf16.mxu0 0
        %2593 = vmatpush1.bf16.msra.mxu0 0
        %2594 = vmatprep.subr.bf16.mxu0 0
        %2595 = vmatpush1.bf16.msra.mxu0 0
        %2596 = vmatprep.subr.bf16.mxu0 0
        %2597 = vmatpush1.bf16.msra.mxu0 0
        %2598 = vmatprep.subr.bf16.mxu0 0
        %2599 = vmatpush1.bf16.msra.mxu0 0
        %2600 = vmatprep.subr.bf16.mxu0 0
        %2601 = vmatpush1.bf16.msra.mxu0 0
        %2602 = vmatprep.subr.bf16.mxu0 0
        %2603 = vmatpush1.bf16.msra.mxu0 0
        %2604 = vmatprep.subr.bf16.mxu0 0
        %2605 = vmatpush1.bf16.msra.mxu0 0
        %2606 = vmatprep.mubr.bf16.mxu0 0
        %2607 = vmatmul.mubr.bf16.gmra.mrb[0].mxu0 %v2551
        %v2608 = vpop.f32.mrb[0].mxu0
        %v2609 = vadd.f32 0.0, %v2608
        %v2610 = vpop.f32.mrb[0].mxu0
        %v2611 = vpop.f32.mrb[0].mxu0
        %v2612 = vadd.f32 0.0, %v2611
        %v2613 = vpop.f32.mrb[0].mxu0
        %2614 = vmatprep.mubr.bf16.mxu0 0
        %2615 = vmatmul.mubr.bf16.gmra.mrb[0].mxu0 %v2554
        %v2616 = vpop.f32.mrb[0].mxu0
        %v2617 = vadd.f32 0.0, %v2616
        %v2618 = vpop.f32.mrb[0].mxu0
        %v2619 = vpop.f32.mrb[0].mxu0
        %v2620 = vadd.f32 0.0, %v2619
        %v2621 = vpop.f32.mrb[0].mxu0
        %2622 = vmatprep.mubr.bf16.mxu0 0
        %2623 = vmatmul.mubr.bf16.gmra.mrb[0].mxu0 %v2557
        %v2624 = vpop.f32.mrb[0].mxu0
        %v2625 = vadd.f32 0.0, %v2624
        %v2626 = vpop.f32.mrb[0].mxu0
        %v2627 = vpop.f32.mrb[0].mxu0
        %v2628 = vadd.f32 0.0, %v2627
        %v2629 = vpop.f32.mrb[0].mxu0
        %2630 = vmatprep.mubr.bf16.mxu0 0
        %2631 = vmatmul.mubr.bf16.gmra.mrb[0].mxu0 %v2560
        %v2632 = vpop.f32.mrb[0].mxu0
        %v2633 = vadd.f32 0.0, %v2632
        %v2634 = vpop.f32.mrb[0].mxu0
        %v2635 = vpop.f32.mrb[0].mxu0
        %v2636 = vadd.f32 0.0, %v2635
        %v2637 = vpop.f32.mrb[0].mxu0
        %2638 = vmatprep.mubr.bf16.mxu0 0
        %2639 = vmatmul.mubr.bf16.gmra.mrb[0].mxu0 %v2563
        %v2640 = vpop.f32.mrb[0].mxu0
        %v2641 = vadd.f32 0.0, %v2640
        %v2642 = vpop.f32.mrb[0].mxu0
        %v2643 = vpop.f32.mrb[0].mxu0
        %v2644 = vadd.f32 0.0, %v2643
        %v2645 = vpop.f32.mrb[0].mxu0
        %2646 = vmatprep.mubr.bf16.mxu0 0
        %2647 = vmatmul.mubr.bf16.gmra.mrb[0].mxu0 %v2566
        %v2648 = vpop.f32.mrb[0].mxu0
        %v2649 = vadd.f32 0.0, %v2648
        %v2650 = vpop.f32.mrb[0].mxu0
        %v2651 = vpop.f32.mrb[0].mxu0
        %v2652 = vadd.f32 0.0, %v2651
        %v2653 = vpop.f32.mrb[0].mxu0
        %2654 = vmatprep.mubr.bf16.mxu0 0
        %2655 = vmatmul.mubr.bf16.gmra.mrb[0].mxu0 %v2569
        %v2656 = vpop.f32.mrb[0].mxu0
        %v2657 = vadd.f32 0.0, %v2656
        %v2658 = vpop.f32.mrb[0].mxu0
        %v2659 = vpop.f32.mrb[0].mxu0
        %v2660 = vadd.f32 0.0, %v2659
        %v2661 = vpop.f32.mrb[0].mxu0
        %2662 = vmatprep.mubr.bf16.mxu0 0
        %2663 = vmatmul.mubr.bf16.gmra.mrb[0].mxu0 %v2572
        %v2664 = vpop.f32.mrb[0].mxu0
        %v2665 = vadd.f32 0.0, %v2664
        %v2666 = vpop.f32.mrb[0].mxu0
        %v2667 = vpop.f32.mrb[0].mxu0
        %v2668 = vadd.f32 0.0, %v2667
        %v2669 = vpop.f32.mrb[0].mxu0
        %2670 = vdwg.mxu0
        %v2671 = vpack.c.bf16 %v2612, %v2609
        %v2672 = vpack.c.bf16 %v2620, %v2617
        %v2673 = vpack.c.bf16 %v2628, %v2625
        %v2674 = vpack.c.bf16 %v2636, %v2633
        %v2675 = vpack.c.bf16 %v2644, %v2641
        %v2676 = vpack.c.bf16 %v2652, %v2649
        %v2677 = vpack.c.bf16 %v2660, %v2657
        %v2678 = vpack.c.bf16 %v2668, %v2665
        %v2679 = vld [vmem:[#allocation4 + $0x480] sm:$0xf]
        %v2680 = vld [vmem:[#allocation4 + $0x490] sm:$0xf]
        %v2681 = vld [vmem:[#allocation4 + $0x4a0] sm:$0xf]
        %v2682 = vld [vmem:[#allocation4 + $0x4b0] sm:$0xf]
        %v2685 = vunpack.c.l.b16 %v2681
        %v2686 = vunpack.c.l.b16 %v2682
        %v2687 = vpack.c.b16 %v2686, %v2685
        %v2690 = vsel %vm294, %v2673, 0
        %v2693 = vsel %vm294, %v2674, 0
        %2695 = vmatprep.subr.bf16.mxu0 0
        %2696 = vmatpush1.bf16.msra.mxu0 %v2687
        %2697 = vmatprep.subr.bf16.mxu0 0
        %2698 = vmatpush1.bf16.msra.mxu0 0
        %2699 = vmatprep.subr.bf16.mxu0 0
        %2700 = vmatpush1.bf16.msra.mxu0 0
        %2701 = vmatprep.subr.bf16.mxu0 0
        %2702 = vmatpush1.bf16.msra.mxu0 0
        %2703 = vmatprep.subr.bf16.mxu0 0
        %2704 = vmatpush1.bf16.msra.mxu0 0
        %2705 = vmatprep.subr.bf16.mxu0 0
        %2706 = vmatpush1.bf16.msra.mxu0 0
        %2707 = vmatprep.subr.bf16.mxu0 0
        %2708 = vmatpush1.bf16.msra.mxu0 0
        %2709 = vmatprep.subr.bf16.mxu0 0
        %2710 = vmatpush1.bf16.msra.mxu0 0
        %2711 = vmatprep.subr.bf16.mxu0 0
        %2712 = vmatpush1.bf16.msra.mxu0 0
        %2713 = vmatprep.subr.bf16.mxu0 0
        %2714 = vmatpush1.bf16.msra.mxu0 0
        %2715 = vmatprep.subr.bf16.mxu0 0
        %2716 = vmatpush1.bf16.msra.mxu0 0
        %2717 = vmatprep.subr.bf16.mxu0 0
        %2718 = vmatpush1.bf16.msra.mxu0 0
        %2719 = vmatprep.subr.bf16.mxu0 0
        %2720 = vmatpush1.bf16.msra.mxu0 0
        %2721 = vmatprep.subr.bf16.mxu0 0
        %2722 = vmatpush1.bf16.msra.mxu0 0
        %2723 = vmatprep.subr.bf16.mxu0 0
        %2724 = vmatpush1.bf16.msra.mxu0 0
        %2725 = vmatprep.subr.bf16.mxu0 0
        %2726 = vmatpush1.bf16.msra.mxu0 0
        %2727 = vmatprep.mubr.bf16.mxu0 0
        %2728 = vmatmul.mubr.bf16.gmra.mrb[0].mxu0 %v2690
        %v2729 = vpop.f32.mrb[0].mxu0
        %v2730 = vadd.f32 0.0, %v2729
        %v2731 = vpop.f32.mrb[0].mxu0
        %v2732 = vpop.f32.mrb[0].mxu0
        %v2733 = vadd.f32 0.0, %v2732
        %v2734 = vpop.f32.mrb[0].mxu0
        %2735 = vmatprep.mubr.bf16.mxu0 0
        %2736 = vmatmul.mubr.bf16.gmra.mrb[0].mxu0 %v2693
        %v2737 = vpop.f32.mrb[0].mxu0
        %v2738 = vadd.f32 0.0, %v2737
        %v2739 = vpop.f32.mrb[0].mxu0
        %v2740 = vpop.f32.mrb[0].mxu0
        %v2741 = vadd.f32 0.0, %v2740
        %v2742 = vpop.f32.mrb[0].mxu0
        %2743 = vdwg.mxu0
        %v2746 = vunpack.c.l.b16 %v2679
        %v2747 = vunpack.c.l.b16 %v2680
        %v2748 = vpack.c.b16 %v2747, %v2746
        %v2751 = vsel %vm294, %v2671, 0
        %v2754 = vsel %vm294, %v2672, 0
        %2756 = vmatprep.subr.bf16.mxu0 0
        %2757 = vmatpush1.bf16.msra.mxu0 %v2748
        %2758 = vmatprep.subr.bf16.mxu0 0
        %2759 = vmatpush1.bf16.msra.mxu0 0
        %2760 = vmatprep.subr.bf16.mxu0 0
        %2761 = vmatpush1.bf16.msra.mxu0 0
        %2762 = vmatprep.subr.bf16.mxu0 0
        %2763 = vmatpush1.bf16.msra.mxu0 0
        %2764 = vmatprep.subr.bf16.mxu0 0
        %2765 = vmatpush1.bf16.msra.mxu0 0
        %2766 = vmatprep.subr.bf16.mxu0 0
        %2767 = vmatpush1.bf16.msra.mxu0 0
        %2768 = vmatprep.subr.bf16.mxu0 0
        %2769 = vmatpush1.bf16.msra.mxu0 0
        %2770 = vmatprep.subr.bf16.mxu0 0
        %2771 = vmatpush1.bf16.msra.mxu0 0
        %2772 = vmatprep.subr.bf16.mxu0 0
        %2773 = vmatpush1.bf16.msra.mxu0 0
        %2774 = vmatprep.subr.bf16.mxu0 0
        %2775 = vmatpush1.bf16.msra.mxu0 0
        %2776 = vmatprep.subr.bf16.mxu0 0
        %2777 = vmatpush1.bf16.msra.mxu0 0
        %2778 = vmatprep.subr.bf16.mxu0 0
        %2779 = vmatpush1.bf16.msra.mxu0 0
        %2780 = vmatprep.subr.bf16.mxu0 0
        %2781 = vmatpush1.bf16.msra.mxu0 0
        %2782 = vmatprep.subr.bf16.mxu0 0
        %2783 = vmatpush1.bf16.msra.mxu0 0
        %2784 = vmatprep.subr.bf16.mxu0 0
        %2785 = vmatpush1.bf16.msra.mxu0 0
        %2786 = vmatprep.subr.bf16.mxu0 0
        %2787 = vmatpush1.bf16.msra.mxu0 0
        %2788 = vmatprep.mubr.bf16.mxu0 0
        %2789 = vmatmul.mubr.bf16.gmra.mrb[0].mxu0 %v2751
        %v2790 = vpop.f32.mrb[0].mxu0
        %v2791 = vadd.f32 %v2730, %v2790
        %v2792 = vpop.f32.mrb[0].mxu0
        %v2793 = vpop.f32.mrb[0].mxu0
        %v2794 = vadd.f32 %v2733, %v2793
        %v2795 = vpop.f32.mrb[0].mxu0
        %2796 = vmatprep.mubr.bf16.mxu0 0
        %2797 = vmatmul.mubr.bf16.gmra.mrb[0].mxu0 %v2754
        %v2798 = vpop.f32.mrb[0].mxu0
        %v2799 = vadd.f32 %v2738, %v2798
        %v2800 = vpop.f32.mrb[0].mxu0
        %v2801 = vpop.f32.mrb[0].mxu0
        %v2802 = vadd.f32 %v2741, %v2801
        %v2803 = vpop.f32.mrb[0].mxu0
        %2804 = vdwg.mxu0
        %v2805 = vld [vmem:[#allocation4 + $0x4c0] sm:$0xf]
        %v2806 = vld [vmem:[#allocation4 + $0x4d0] sm:$0xf]
        %v2809 = vunpack.c.l.b16 %v2805
        %v2810 = vunpack.c.l.b16 %v2806
        %v2811 = vpack.c.b16 %v2810, %v2809
        %v2814 = vsel %vm294, %v2675, 0
        %v2817 = vsel %vm294, %v2676, 0
        %2819 = vmatprep.subr.bf16.mxu0 0
        %2820 = vmatpush1.bf16.msra.mxu0 %v2811
        %2821 = vmatprep.subr.bf16.mxu0 0
        %2822 = vmatpush1.bf16.msra.mxu0 0
        %2823 = vmatprep.subr.bf16.mxu0 0
        %2824 = vmatpush1.bf16.msra.mxu0 0
        %2825 = vmatprep.subr.bf16.mxu0 0
        %2826 = vmatpush1.bf16.msra.mxu0 0
        %2827 = vmatprep.subr.bf16.mxu0 0
        %2828 = vmatpush1.bf16.msra.mxu0 0
        %2829 = vmatprep.subr.bf16.mxu0 0
        %2830 = vmatpush1.bf16.msra.mxu0 0
        %2831 = vmatprep.subr.bf16.mxu0 0
        %2832 = vmatpush1.bf16.msra.mxu0 0
        %2833 = vmatprep.subr.bf16.mxu0 0
        %2834 = vmatpush1.bf16.msra.mxu0 0
        %2835 = vmatprep.subr.bf16.mxu0 0
        %2836 = vmatpush1.bf16.msra.mxu0 0
        %2837 = vmatprep.subr.bf16.mxu0 0
        %2838 = vmatpush1.bf16.msra.mxu0 0
        %2839 = vmatprep.subr.bf16.mxu0 0
        %2840 = vmatpush1.bf16.msra.mxu0 0
        %2841 = vmatprep.subr.bf16.mxu0 0
        %2842 = vmatpush1.bf16.msra.mxu0 0
        %2843 = vmatprep.subr.bf16.mxu0 0
        %2844 = vmatpush1.bf16.msra.mxu0 0
        %2845 = vmatprep.subr.bf16.mxu0 0
        %2846 = vmatpush1.bf16.msra.mxu0 0
        %2847 = vmatprep.subr.bf16.mxu0 0
        %2848 = vmatpush1.bf16.msra.mxu0 0
        %2849 = vmatprep.subr.bf16.mxu0 0
        %2850 = vmatpush1.bf16.msra.mxu0 0
        %2851 = vmatprep.mubr.bf16.mxu0 0
        %2852 = vmatmul.mubr.bf16.gmra.mrb[0].mxu0 %v2814
        %v2853 = vpop.f32.mrb[0].mxu0
        %v2854 = vadd.f32 0.0, %v2853
        %v2855 = vpop.f32.mrb[0].mxu0
        %v2856 = vpop.f32.mrb[0].mxu0
        %v2857 = vadd.f32 0.0, %v2856
        %v2858 = vpop.f32.mrb[0].mxu0
        %2859 = vmatprep.mubr.bf16.mxu0 0
        %2860 = vmatmul.mubr.bf16.gmra.mrb[0].mxu0 %v2817
        %v2861 = vpop.f32.mrb[0].mxu0
        %v2862 = vadd.f32 0.0, %v2861
        %v2863 = vpop.f32.mrb[0].mxu0
        %v2864 = vpop.f32.mrb[0].mxu0
        %v2865 = vadd.f32 0.0, %v2864
        %v2866 = vpop.f32.mrb[0].mxu0
        %2867 = vdwg.mxu0
        %v2868 = vadd.f32 %v2791, %v2854
        %v2869 = vadd.f32 %v2794, %v2857
        %v2870 = vadd.f32 %v2799, %v2862
        %v2871 = vadd.f32 %v2802, %v2865
        %v2872 = vld [vmem:[#allocation4 + $0x4e0] sm:$0xf]
        %v2873 = vld [vmem:[#allocation4 + $0x4f0] sm:$0xf]
        %v2876 = vunpack.c.l.b16 %v2872
        %v2877 = vunpack.c.l.b16 %v2873
        %v2878 = vpack.c.b16 %v2877, %v2876
        %v2881 = vsel %vm294, %v2677, 0
        %v2884 = vsel %vm294, %v2678, 0
        %2886 = vmatprep.subr.bf16.mxu0 0
        %2887 = vmatpush1.bf16.msra.mxu0 %v2878
        %2888 = vmatprep.subr.bf16.mxu0 0
        %2889 = vmatpush1.bf16.msra.mxu0 0
        %2890 = vmatprep.subr.bf16.mxu0 0
        %2891 = vmatpush1.bf16.msra.mxu0 0
        %2892 = vmatprep.subr.bf16.mxu0 0
        %2893 = vmatpush1.bf16.msra.mxu0 0
        %2894 = vmatprep.subr.bf16.mxu0 0
        %2895 = vmatpush1.bf16.msra.mxu0 0
        %2896 = vmatprep.subr.bf16.mxu0 0
        %2897 = vmatpush1.bf16.msra.mxu0 0
        %2898 = vmatprep.subr.bf16.mxu0 0
        %2899 = vmatpush1.bf16.msra.mxu0 0
        %2900 = vmatprep.subr.bf16.mxu0 0
        %2901 = vmatpush1.bf16.msra.mxu0 0
        %2902 = vmatprep.subr.bf16.mxu0 0
        %2903 = vmatpush1.bf16.msra.mxu0 0
        %2904 = vmatprep.subr.bf16.mxu0 0
        %2905 = vmatpush1.bf16.msra.mxu0 0
        %2906 = vmatprep.subr.bf16.mxu0 0
        %2907 = vmatpush1.bf16.msra.mxu0 0
        %2908 = vmatprep.subr.bf16.mxu0 0
        %2909 = vmatpush1.bf16.msra.mxu0 0
        %2910 = vmatprep.subr.bf16.mxu0 0
        %2911 = vmatpush1.bf16.msra.mxu0 0
        %2912 = vmatprep.subr.bf16.mxu0 0
        %2913 = vmatpush1.bf16.msra.mxu0 0
        %2914 = vmatprep.subr.bf16.mxu0 0
        %2915 = vmatpush1.bf16.msra.mxu0 0
        %2916 = vmatprep.subr.bf16.mxu0 0
        %2917 = vmatpush1.bf16.msra.mxu0 0
        %2918 = vmatprep.mubr.bf16.mxu0 0
        %2919 = vmatmul.mubr.bf16.gmra.mrb[0].mxu0 %v2881
        %v2920 = vpop.f32.mrb[0].mxu0
        %v2921 = vadd.f32 0.0, %v2920
        %v2922 = vpop.f32.mrb[0].mxu0
        %v2923 = vpop.f32.mrb[0].mxu0
        %v2924 = vadd.f32 0.0, %v2923
        %v2925 = vpop.f32.mrb[0].mxu0
        %2926 = vmatprep.mubr.bf16.mxu0 0
        %2927 = vmatmul.mubr.bf16.gmra.mrb[0].mxu0 %v2884
        %v2928 = vpop.f32.mrb[0].mxu0
        %v2929 = vadd.f32 0.0, %v2928
        %v2930 = vpop.f32.mrb[0].mxu0
        %v2931 = vpop.f32.mrb[0].mxu0
        %v2932 = vadd.f32 0.0, %v2931
        %v2933 = vpop.f32.mrb[0].mxu0
        %2934 = vdwg.mxu0
        %v2935 = vadd.f32 %v2868, %v2921
        %v2936 = vadd.f32 %v2869, %v2924
        %v2937 = vadd.f32 %v2870, %v2929
        %v2938 = vadd.f32 %v2871, %v2932
        %2939 = vset.pattern.permute.xlu0 6
        %2940 = vperm.xlu0 %2939, %v2329
        %v2941 = vpop.permute.xlu0 %2940
        %2943 = vset.pattern.permute.xlu0 6
        %2944 = vperm.xlu0 %2943, %v2330
        %v2945 = vpop.permute.xlu0 %2944
        %2947 = vset.pattern.permute.xlu0 6
        %2948 = vperm.xlu0 %2947, %v2331
        %v2949 = vpop.permute.xlu0 %2948
        %2951 = vset.pattern.permute.xlu0 6
        %2952 = vperm.xlu0 %2951, %v2332
        %v2953 = vpop.permute.xlu0 %2952
        %v2955 = vadd.f32 %v2935, %v2941
        %v2956 = vadd.f32 %v2936, %v2945
        %v2957 = vadd.f32 %v2937, %v2949
        %v2958 = vadd.f32 %v2938, %v2953
        %2959 = vst.msk [vmem:[#allocation2] sm:$0xff] %vm1095, 0.0
        %2960 = vst.msk [vmem:[#allocation2 + $0x20] sm:$0xff] %vm1095, 0.0
        %2961 = vst.msk [vmem:[#allocation2 + $0x40] sm:$0xff] %vm1095, 0.0
        %2962 = vst.msk [vmem:[#allocation2 + $0x60] sm:$0xff] %vm1095, 0.0
        %2963 = vst.msk [vmem:[#allocation2 + $0x80] sm:$0xff] %vm1095, 0.0
        %2964 = vst.msk [vmem:[#allocation2 + $0xa0] sm:$0xff] %vm1095, 0.0
        %2965 = vst.msk [vmem:[#allocation2 + $0x8] sm:$0xff] %vm1097, 0.0
        %2966 = vst.msk [vmem:[#allocation2 + $0x28] sm:$0xff] %vm1097, 0.0
        %2967 = vst.msk [vmem:[#allocation2 + $0x48] sm:$0xff] %vm1097, 0.0
        %2968 = vst.msk [vmem:[#allocation2 + $0x68] sm:$0xff] %vm1097, 0.0
        %2969 = vst.msk [vmem:[#allocation2 + $0x88] sm:$0xff] %vm1097, 0.0
        %2970 = vst.msk [vmem:[#allocation2 + $0xa8] sm:$0xff] %vm1097, 0.0
        %2971 = vst.msk [vmem:[#allocation2 + $0x8] sm:$0xff] %vm1099, %v1531
        %2972 = vst.msk [vmem:[#allocation2 + $0x28] sm:$0xff] %vm1099, %v1532
        %2973 = vst.msk [vmem:[#allocation2 + $0x48] sm:$0xff] %vm1099, %v2955
        %2974 = vst.msk [vmem:[#allocation2 + $0x68] sm:$0xff] %vm1099, %v2956
        %2975 = vst.msk [vmem:[#allocation2 + $0x88] sm:$0xff] %vm1099, %v2957
        %2976 = vst.msk [vmem:[#allocation2 + $0xa8] sm:$0xff] %vm1099, %v2958
        %v2977 = vld [vmem:[#allocation2] sm:$0xff]
        %v2978 = vld [vmem:[#allocation2 + $0x8] sm:$0xff]
        %v2979 = vld [vmem:[#allocation2 + $0x20] sm:$0xff]
        %v2980 = vld [vmem:[#allocation2 + $0x28] sm:$0xff]
        %v2981 = vld [vmem:[#allocation2 + $0x40] sm:$0xff]
        %v2982 = vld [vmem:[#allocation2 + $0x48] sm:$0xff]
        %v2983 = vld [vmem:[#allocation2 + $0x60] sm:$0xff]
        %v2984 = vld [vmem:[#allocation2 + $0x68] sm:$0xff]
        %v2985 = vld [vmem:[#allocation2 + $0x80] sm:$0xff]
        %v2986 = vld [vmem:[#allocation2 + $0x88] sm:$0xff]
        %v2987 = vld [vmem:[#allocation2 + $0xa0] sm:$0xff]
        %v2988 = vld [vmem:[#allocation2 + $0xa8] sm:$0xff]
        %3001 = vrot.lane.b32.xlu0 %v2977, 9
        %v3002 = vpop.permute.xlu0 %3001
        %3003 = vrot.lane.b32.xlu0 %v2978, 9
        %v3004 = vpop.permute.xlu0 %3003
        %3005 = vrot.lane.b32.xlu0 %v2979, 9
        %v3006 = vpop.permute.xlu0 %3005
        %3007 = vrot.lane.b32.xlu0 %v2980, 9
        %v3008 = vpop.permute.xlu0 %3007
        %3009 = vrot.lane.b32.xlu0 %v2981, 9
        %v3010 = vpop.permute.xlu0 %3009
        %3011 = vrot.lane.b32.xlu0 %v2982, 9
        %v3012 = vpop.permute.xlu0 %3011
        %3013 = vrot.lane.b32.xlu0 %v2983, 9
        %v3014 = vpop.permute.xlu0 %3013
        %3015 = vrot.lane.b32.xlu0 %v2984, 9
        %v3016 = vpop.permute.xlu0 %3015
        %3017 = vrot.lane.b32.xlu0 %v2985, 9
        %v3018 = vpop.permute.xlu0 %3017
        %3019 = vrot.lane.b32.xlu0 %v2986, 9
        %v3020 = vpop.permute.xlu0 %3019
        %3021 = vrot.lane.b32.xlu0 %v2987, 9
        %v3022 = vpop.permute.xlu0 %3021
        %3023 = vrot.lane.b32.xlu0 %v2988, 9
        %v3024 = vpop.permute.xlu0 %3023
        %v3025 = vsel %vm568, %v3002, %v3004
        %v3026 = vsel %vm568, %v3006, %v3008
        %v3027 = vsel %vm568, %v3010, %v3012
        %v3028 = vsel %vm568, %v3014, %v3016
        %v3029 = vsel %vm568, %v3018, %v3020
        %v3030 = vsel %vm568, %v3022, %v3024
        %v3037 = vsel %vm1118, %v3025, 0.0
        %v3038 = vsel %vm1118, %v3026, 0.0
        %v3039 = vsel %vm1118, %v3027, 0.0
        %v3040 = vsel %vm1118, %v3028, 0.0
        %v3041 = vsel %vm1118, %v3029, 0.0
        %v3042 = vsel %vm1118, %v3030, 0.0
        %3043 = vst.msk [vmem:[#allocation3] sm:$0xff] %vm1099, %v3037
        %3044 = vst.msk [vmem:[#allocation3 + $0x10] sm:$0xff] %vm1099, %v3038
        %3045 = vst.msk [vmem:[#allocation3 + $0x20] sm:$0xff] %vm1099, %v3039
        %3046 = vst.msk [vmem:[#allocation3 + $0x30] sm:$0xff] %vm1099, %v3040
        %3047 = vst.msk [vmem:[#allocation3 + $0x40] sm:$0xff] %vm1099, %v3041
        %3048 = vst.msk [vmem:[#allocation3 + $0x50] sm:$0xff] %vm1099, %v3042
        %v3049 = vld [vmem:[#allocation2] sm:$0xff]
        %v3050 = vld [vmem:[#allocation2 + $0x8] sm:$0xff]
        %v3051 = vld [vmem:[#allocation2 + $0x20] sm:$0xff]
        %v3052 = vld [vmem:[#allocation2 + $0x28] sm:$0xff]
        %v3053 = vld [vmem:[#allocation2 + $0x40] sm:$0xff]
        %v3054 = vld [vmem:[#allocation2 + $0x48] sm:$0xff]
        %v3055 = vld [vmem:[#allocation2 + $0x60] sm:$0xff]
        %v3056 = vld [vmem:[#allocation2 + $0x68] sm:$0xff]
        %v3057 = vld [vmem:[#allocation2 + $0x80] sm:$0xff]
        %v3058 = vld [vmem:[#allocation2 + $0x88] sm:$0xff]
        %v3059 = vld [vmem:[#allocation2 + $0xa0] sm:$0xff]
        %v3060 = vld [vmem:[#allocation2 + $0xa8] sm:$0xff]
        %3073 = vrot.lane.b32.xlu0 %v3049, 8
        %v3074 = vpop.permute.xlu0 %3073
        %3075 = vrot.lane.b32.xlu0 %v3050, 8
        %v3076 = vpop.permute.xlu0 %3075
        %3077 = vrot.lane.b32.xlu0 %v3051, 8
        %v3078 = vpop.permute.xlu0 %3077
        %3079 = vrot.lane.b32.xlu0 %v3052, 8
        %v3080 = vpop.permute.xlu0 %3079
        %3081 = vrot.lane.b32.xlu0 %v3053, 8
        %v3082 = vpop.permute.xlu0 %3081
        %3083 = vrot.lane.b32.xlu0 %v3054, 8
        %v3084 = vpop.permute.xlu0 %3083
        %3085 = vrot.lane.b32.xlu0 %v3055, 8
        %v3086 = vpop.permute.xlu0 %3085
        %3087 = vrot.lane.b32.xlu0 %v3056, 8
        %v3088 = vpop.permute.xlu0 %3087
        %3089 = vrot.lane.b32.xlu0 %v3057, 8
        %v3090 = vpop.permute.xlu0 %3089
        %3091 = vrot.lane.b32.xlu0 %v3058, 8
        %v3092 = vpop.permute.xlu0 %3091
        %3093 = vrot.lane.b32.xlu0 %v3059, 8
        %v3094 = vpop.permute.xlu0 %3093
        %3095 = vrot.lane.b32.xlu0 %v3060, 8
        %v3096 = vpop.permute.xlu0 %3095
        %v3097 = vsel %vm1137, %v3074, %v3076
        %v3098 = vsel %vm1137, %v3078, %v3080
        %v3099 = vsel %vm1137, %v3082, %v3084
        %v3100 = vsel %vm1137, %v3086, %v3088
        %v3101 = vsel %vm1137, %v3090, %v3092
        %v3102 = vsel %vm1137, %v3094, %v3096
        %3109 = vst.msk [vmem:[#allocation3 + $0x60] sm:$0xff] %vm1099, %v3097
        %3110 = vst.msk [vmem:[#allocation3 + $0x70] sm:$0xff] %vm1099, %v3098
        %3111 = vst.msk [vmem:[#allocation3 + $0x80] sm:$0xff] %vm1099, %v3099
        %3112 = vst.msk [vmem:[#allocation3 + $0x90] sm:$0xff] %vm1099, %v3100
        %3113 = vst.msk [vmem:[#allocation3 + $0xa0] sm:$0xff] %vm1099, %v3101
        %3114 = vst.msk [vmem:[#allocation3 + $0xb0] sm:$0xff] %vm1099, %v3102
        %v3115 = vld [vmem:[#allocation2] sm:$0xff]
        %v3116 = vld [vmem:[#allocation2 + $0x8] sm:$0xff]
        %v3117 = vld [vmem:[#allocation2 + $0x20] sm:$0xff]
        %v3118 = vld [vmem:[#allocation2 + $0x28] sm:$0xff]
        %v3119 = vld [vmem:[#allocation2 + $0x40] sm:$0xff]
        %v3120 = vld [vmem:[#allocation2 + $0x48] sm:$0xff]
        %v3121 = vld [vmem:[#allocation2 + $0x60] sm:$0xff]
        %v3122 = vld [vmem:[#allocation2 + $0x68] sm:$0xff]
        %v3123 = vld [vmem:[#allocation2 + $0x80] sm:$0xff]
        %v3124 = vld [vmem:[#allocation2 + $0x88] sm:$0xff]
        %v3125 = vld [vmem:[#allocation2 + $0xa0] sm:$0xff]
        %v3126 = vld [vmem:[#allocation2 + $0xa8] sm:$0xff]
        %3139 = vrot.lane.b32.xlu0 %v3115, 7
        %v3140 = vpop.permute.xlu0 %3139
        %3141 = vrot.lane.b32.xlu0 %v3116, 7
        %v3142 = vpop.permute.xlu0 %3141
        %3143 = vrot.lane.b32.xlu0 %v3117, 7
        %v3144 = vpop.permute.xlu0 %3143
        %3145 = vrot.lane.b32.xlu0 %v3118, 7
        %v3146 = vpop.permute.xlu0 %3145
        %3147 = vrot.lane.b32.xlu0 %v3119, 7
        %v3148 = vpop.permute.xlu0 %3147
        %3149 = vrot.lane.b32.xlu0 %v3120, 7
        %v3150 = vpop.permute.xlu0 %3149
        %3151 = vrot.lane.b32.xlu0 %v3121, 7
        %v3152 = vpop.permute.xlu0 %3151
        %3153 = vrot.lane.b32.xlu0 %v3122, 7
        %v3154 = vpop.permute.xlu0 %3153
        %3155 = vrot.lane.b32.xlu0 %v3123, 7
        %v3156 = vpop.permute.xlu0 %3155
        %3157 = vrot.lane.b32.xlu0 %v3124, 7
        %v3158 = vpop.permute.xlu0 %3157
        %3159 = vrot.lane.b32.xlu0 %v3125, 7
        %v3160 = vpop.permute.xlu0 %3159
        %3161 = vrot.lane.b32.xlu0 %v3126, 7
        %v3162 = vpop.permute.xlu0 %3161
        %v3163 = vsel %vm1151, %v3140, %v3142
        %v3164 = vsel %vm1151, %v3144, %v3146
        %v3165 = vsel %vm1151, %v3148, %v3150
        %v3166 = vsel %vm1151, %v3152, %v3154
        %v3167 = vsel %vm1151, %v3156, %v3158
        %v3168 = vsel %vm1151, %v3160, %v3162
        %v3175 = vsel %vm1144, %v3163, 0.0
        %v3176 = vsel %vm1144, %v3164, 0.0
        %v3177 = vsel %vm1144, %v3165, 0.0
        %v3178 = vsel %vm1144, %v3166, 0.0
        %v3179 = vsel %vm1144, %v3167, 0.0
        %v3180 = vsel %vm1144, %v3168, 0.0
        %3181 = vst.msk [vmem:[#allocation3 + $0xc0] sm:$0xff] %vm1099, %v3175
        %3182 = vst.msk [vmem:[#allocation3 + $0xd0] sm:$0xff] %vm1099, %v3176
        %3183 = vst.msk [vmem:[#allocation3 + $0xe0] sm:$0xff] %vm1099, %v3177
        %3184 = vst.msk [vmem:[#allocation3 + $0xf0] sm:$0xff] %vm1099, %v3178
        %3185 = vst.msk [vmem:[#allocation3 + $0x100] sm:$0xff] %vm1099, %v3179
        %3186 = vst.msk [vmem:[#allocation3 + $0x110] sm:$0xff] %vm1099, %v3180
        %v3187 = vld [vmem:[#allocation2] sm:$0xff]
        %v3188 = vld [vmem:[#allocation2 + $0x8] sm:$0xff]
        %v3189 = vld [vmem:[#allocation2 + $0x20] sm:$0xff]
        %v3190 = vld [vmem:[#allocation2 + $0x28] sm:$0xff]
        %v3191 = vld [vmem:[#allocation2 + $0x40] sm:$0xff]
        %v3192 = vld [vmem:[#allocation2 + $0x48] sm:$0xff]
        %v3193 = vld [vmem:[#allocation2 + $0x60] sm:$0xff]
        %v3194 = vld [vmem:[#allocation2 + $0x68] sm:$0xff]
        %v3195 = vld [vmem:[#allocation2 + $0x80] sm:$0xff]
        %v3196 = vld [vmem:[#allocation2 + $0x88] sm:$0xff]
        %v3197 = vld [vmem:[#allocation2 + $0xa0] sm:$0xff]
        %v3198 = vld [vmem:[#allocation2 + $0xa8] sm:$0xff]
        %3211 = vrot.lane.b32.xlu0 %v3187, 1
        %v3212 = vpop.permute.xlu0 %3211
        %3213 = vrot.lane.b32.xlu0 %v3188, 1
        %v3214 = vpop.permute.xlu0 %3213
        %3215 = vrot.lane.b32.xlu0 %v3189, 1
        %v3216 = vpop.permute.xlu0 %3215
        %3217 = vrot.lane.b32.xlu0 %v3190, 1
        %v3218 = vpop.permute.xlu0 %3217
        %3219 = vrot.lane.b32.xlu0 %v3191, 1
        %v3220 = vpop.permute.xlu0 %3219
        %3221 = vrot.lane.b32.xlu0 %v3192, 1
        %v3222 = vpop.permute.xlu0 %3221
        %3223 = vrot.lane.b32.xlu0 %v3193, 1
        %v3224 = vpop.permute.xlu0 %3223
        %3225 = vrot.lane.b32.xlu0 %v3194, 1
        %v3226 = vpop.permute.xlu0 %3225
        %3227 = vrot.lane.b32.xlu0 %v3195, 1
        %v3228 = vpop.permute.xlu0 %3227
        %3229 = vrot.lane.b32.xlu0 %v3196, 1
        %v3230 = vpop.permute.xlu0 %3229
        %3231 = vrot.lane.b32.xlu0 %v3197, 1
        %v3232 = vpop.permute.xlu0 %3231
        %3233 = vrot.lane.b32.xlu0 %v3198, 1
        %v3234 = vpop.permute.xlu0 %3233
        %v3235 = vsel %vm368, %v3212, %v3214
        %v3236 = vsel %vm368, %v3216, %v3218
        %v3237 = vsel %vm368, %v3220, %v3222
        %v3238 = vsel %vm368, %v3224, %v3226
        %v3239 = vsel %vm368, %v3228, %v3230
        %v3240 = vsel %vm368, %v3232, %v3234
        %v3247 = vsel %vm1118, %v3235, 0.0
        %v3248 = vsel %vm1118, %v3236, 0.0
        %v3249 = vsel %vm1118, %v3237, 0.0
        %v3250 = vsel %vm1118, %v3238, 0.0
        %v3251 = vsel %vm1118, %v3239, 0.0
        %v3252 = vsel %vm1118, %v3240, 0.0
        %3253 = vst.msk [vmem:[#allocation3 + $0x120] sm:$0xff] %vm1099, %v3247
        %3254 = vst.msk [vmem:[#allocation3 + $0x130] sm:$0xff] %vm1099, %v3248
        %3255 = vst.msk [vmem:[#allocation3 + $0x140] sm:$0xff] %vm1099, %v3249
        %3256 = vst.msk [vmem:[#allocation3 + $0x150] sm:$0xff] %vm1099, %v3250
        %3257 = vst.msk [vmem:[#allocation3 + $0x160] sm:$0xff] %vm1099, %v3251
        %3258 = vst.msk [vmem:[#allocation3 + $0x170] sm:$0xff] %vm1099, %v3252
        %v3259 = vld [vmem:[#allocation2 + $0x8] sm:$0xff]
        %v3260 = vld [vmem:[#allocation2 + $0x28] sm:$0xff]
        %v3261 = vld [vmem:[#allocation2 + $0x48] sm:$0xff]
        %v3262 = vld [vmem:[#allocation2 + $0x68] sm:$0xff]
        %v3263 = vld [vmem:[#allocation2 + $0x88] sm:$0xff]
        %v3264 = vld [vmem:[#allocation2 + $0xa8] sm:$0xff]
        %3265 = vst.msk [vmem:[#allocation3 + $0x180] sm:$0xff] %vm1099, %v3259
        %3266 = vst.msk [vmem:[#allocation3 + $0x190] sm:$0xff] %vm1099, %v3260
        %3267 = vst.msk [vmem:[#allocation3 + $0x1a0] sm:$0xff] %vm1099, %v3261
        %3268 = vst.msk [vmem:[#allocation3 + $0x1b0] sm:$0xff] %vm1099, %v3262
        %3269 = vst.msk [vmem:[#allocation3 + $0x1c0] sm:$0xff] %vm1099, %v3263
        %3270 = vst.msk [vmem:[#allocation3 + $0x1d0] sm:$0xff] %vm1099, %v3264
        %v3271 = vld [vmem:[#allocation2 + $0x8] sm:$0xff]
        %v3272 = vld [vmem:[#allocation2 + $0x28] sm:$0xff]
        %v3273 = vld [vmem:[#allocation2 + $0x48] sm:$0xff]
        %v3274 = vld [vmem:[#allocation2 + $0x68] sm:$0xff]
        %v3275 = vld [vmem:[#allocation2 + $0x88] sm:$0xff]
        %v3276 = vld [vmem:[#allocation2 + $0xa8] sm:$0xff]
        %3283 = vrot.lane.b32.xlu0 %v3271, 127
        %v3284 = vpop.permute.xlu0 %3283
        %3285 = vrot.lane.b32.xlu0 %v3272, 127
        %v3286 = vpop.permute.xlu0 %3285
        %3287 = vrot.lane.b32.xlu0 %v3273, 127
        %v3288 = vpop.permute.xlu0 %3287
        %3289 = vrot.lane.b32.xlu0 %v3274, 127
        %v3290 = vpop.permute.xlu0 %3289
        %3291 = vrot.lane.b32.xlu0 %v3275, 127
        %v3292 = vpop.permute.xlu0 %3291
        %3293 = vrot.lane.b32.xlu0 %v3276, 127
        %v3294 = vpop.permute.xlu0 %3293
        %v3301 = vsel %vm1144, %v3284, 0.0
        %v3302 = vsel %vm1144, %v3286, 0.0
        %v3303 = vsel %vm1144, %v3288, 0.0
        %v3304 = vsel %vm1144, %v3290, 0.0
        %v3305 = vsel %vm1144, %v3292, 0.0
        %v3306 = vsel %vm1144, %v3294, 0.0
        %3307 = vst.msk [vmem:[#allocation3 + $0x1e0] sm:$0xff] %vm1099, %v3301
        %3308 = vst.msk [vmem:[#allocation3 + $0x1f0] sm:$0xff] %vm1099, %v3302
        %3309 = vst.msk [vmem:[#allocation3 + $0x200] sm:$0xff] %vm1099, %v3303
        %3310 = vst.msk [vmem:[#allocation3 + $0x210] sm:$0xff] %vm1099, %v3304
        %3311 = vst.msk [vmem:[#allocation3 + $0x220] sm:$0xff] %vm1099, %v3305
        %3312 = vst.msk [vmem:[#allocation3 + $0x230] sm:$0xff] %vm1099, %v3306
        %v3313 = vld [vmem:[#allocation2 + $0x8] sm:$0xff]
        %v3314 = vld [vmem:[#allocation2 + $0x28] sm:$0xff]
        %v3315 = vld [vmem:[#allocation2 + $0x48] sm:$0xff]
        %v3316 = vld [vmem:[#allocation2 + $0x68] sm:$0xff]
        %v3317 = vld [vmem:[#allocation2 + $0x88] sm:$0xff]
        %v3318 = vld [vmem:[#allocation2 + $0xa8] sm:$0xff]
        %3325 = vrot.lane.b32.xlu0 %v3313, 121
        %v3326 = vpop.permute.xlu0 %3325
        %3327 = vrot.lane.b32.xlu0 %v3314, 121
        %v3328 = vpop.permute.xlu0 %3327
        %3329 = vrot.lane.b32.xlu0 %v3315, 121
        %v3330 = vpop.permute.xlu0 %3329
        %3331 = vrot.lane.b32.xlu0 %v3316, 121
        %v3332 = vpop.permute.xlu0 %3331
        %3333 = vrot.lane.b32.xlu0 %v3317, 121
        %v3334 = vpop.permute.xlu0 %3333
        %3335 = vrot.lane.b32.xlu0 %v3318, 121
        %v3336 = vpop.permute.xlu0 %3335
        %v3343 = vsel %vm1118, %v3326, 0.0
        %v3344 = vsel %vm1118, %v3328, 0.0
        %v3345 = vsel %vm1118, %v3330, 0.0
        %v3346 = vsel %vm1118, %v3332, 0.0
        %v3347 = vsel %vm1118, %v3334, 0.0
        %v3348 = vsel %vm1118, %v3336, 0.0
        %3349 = vst.msk [vmem:[#allocation3 + $0x240] sm:$0xff] %vm1099, %v3343
        %3350 = vst.msk [vmem:[#allocation3 + $0x250] sm:$0xff] %vm1099, %v3344
        %3351 = vst.msk [vmem:[#allocation3 + $0x260] sm:$0xff] %vm1099, %v3345
        %3352 = vst.msk [vmem:[#allocation3 + $0x270] sm:$0xff] %vm1099, %v3346
        %3353 = vst.msk [vmem:[#allocation3 + $0x280] sm:$0xff] %vm1099, %v3347
        %3354 = vst.msk [vmem:[#allocation3 + $0x290] sm:$0xff] %vm1099, %v3348
        %v3355 = vld [vmem:[#allocation2 + $0x8] sm:$0xff]
        %v3356 = vld [vmem:[#allocation2 + $0x28] sm:$0xff]
        %v3357 = vld [vmem:[#allocation2 + $0x48] sm:$0xff]
        %v3358 = vld [vmem:[#allocation2 + $0x68] sm:$0xff]
        %v3359 = vld [vmem:[#allocation2 + $0x88] sm:$0xff]
        %v3360 = vld [vmem:[#allocation2 + $0xa8] sm:$0xff]
        %3367 = vrot.lane.b32.xlu0 %v3355, 120
        %v3368 = vpop.permute.xlu0 %3367
        %3369 = vrot.lane.b32.xlu0 %v3356, 120
        %v3370 = vpop.permute.xlu0 %3369
        %3371 = vrot.lane.b32.xlu0 %v3357, 120
        %v3372 = vpop.permute.xlu0 %3371
        %3373 = vrot.lane.b32.xlu0 %v3358, 120
        %v3374 = vpop.permute.xlu0 %3373
        %3375 = vrot.lane.b32.xlu0 %v3359, 120
        %v3376 = vpop.permute.xlu0 %3375
        %3377 = vrot.lane.b32.xlu0 %v3360, 120
        %v3378 = vpop.permute.xlu0 %3377
        %3385 = vst.msk [vmem:[#allocation3 + $0x2a0] sm:$0xff] %vm1099, %v3368
        %3386 = vst.msk [vmem:[#allocation3 + $0x2b0] sm:$0xff] %vm1099, %v3370
        %3387 = vst.msk [vmem:[#allocation3 + $0x2c0] sm:$0xff] %vm1099, %v3372
        %3388 = vst.msk [vmem:[#allocation3 + $0x2d0] sm:$0xff] %vm1099, %v3374
        %3389 = vst.msk [vmem:[#allocation3 + $0x2e0] sm:$0xff] %vm1099, %v3376
        %3390 = vst.msk [vmem:[#allocation3 + $0x2f0] sm:$0xff] %vm1099, %v3378
        %v3391 = vld [vmem:[#allocation2 + $0x8] sm:$0xff]
        %v3392 = vld [vmem:[#allocation2 + $0x28] sm:$0xff]
        %v3393 = vld [vmem:[#allocation2 + $0x48] sm:$0xff]
        %v3394 = vld [vmem:[#allocation2 + $0x68] sm:$0xff]
        %v3395 = vld [vmem:[#allocation2 + $0x88] sm:$0xff]
        %v3396 = vld [vmem:[#allocation2 + $0xa8] sm:$0xff]
        %3403 = vrot.lane.b32.xlu0 %v3391, 119
        %v3404 = vpop.permute.xlu0 %3403
        %3405 = vrot.lane.b32.xlu0 %v3392, 119
        %v3406 = vpop.permute.xlu0 %3405
        %3407 = vrot.lane.b32.xlu0 %v3393, 119
        %v3408 = vpop.permute.xlu0 %3407
        %3409 = vrot.lane.b32.xlu0 %v3394, 119
        %v3410 = vpop.permute.xlu0 %3409
        %3411 = vrot.lane.b32.xlu0 %v3395, 119
        %v3412 = vpop.permute.xlu0 %3411
        %3413 = vrot.lane.b32.xlu0 %v3396, 119
        %v3414 = vpop.permute.xlu0 %3413
        %v3421 = vsel %vm1144, %v3404, 0.0
        %v3422 = vsel %vm1144, %v3406, 0.0
        %v3423 = vsel %vm1144, %v3408, 0.0
        %v3424 = vsel %vm1144, %v3410, 0.0
        %v3425 = vsel %vm1144, %v3412, 0.0
        %v3426 = vsel %vm1144, %v3414, 0.0
        %3427 = vst.msk [vmem:[#allocation3 + $0x300] sm:$0xff] %vm1099, %v3421
        %3428 = vst.msk [vmem:[#allocation3 + $0x310] sm:$0xff] %vm1099, %v3422
        %3429 = vst.msk [vmem:[#allocation3 + $0x320] sm:$0xff] %vm1099, %v3423
        %3430 = vst.msk [vmem:[#allocation3 + $0x330] sm:$0xff] %vm1099, %v3424
        %3431 = vst.msk [vmem:[#allocation3 + $0x340] sm:$0xff] %vm1099, %v3425
        %3432 = vst.msk [vmem:[#allocation3 + $0x350] sm:$0xff] %vm1099, %v3426
        %v3433 = vld [vmem:[#allocation4 + $0x500] sm:$0xff]
        %v3434 = vld [vmem:[#allocation4 + $0x508] sm:$0xff]
        %v3435 = vld [vmem:[#allocation4 + $0x510] sm:$0xff]
        %v3436 = vld [vmem:[#allocation4 + $0x518] sm:$0xff]
        %v3437 = vld [vmem:[#allocation3] sm:$0xff]
        %v3438 = vld [vmem:[#allocation3 + $0x10] sm:$0xff]
        %v3439 = vld [vmem:[#allocation3 + $0x20] sm:$0xff]
        %v3440 = vld [vmem:[#allocation3 + $0x30] sm:$0xff]
        %v3441 = vld [vmem:[#allocation3 + $0x40] sm:$0xff]
        %v3442 = vld [vmem:[#allocation3 + $0x50] sm:$0xff]
        %v3443 = vld [vmem:[#allocation3 + $0x60] sm:$0xff]
        %v3444 = vld [vmem:[#allocation3 + $0x70] sm:$0xff]
        %v3445 = vld [vmem:[#allocation3 + $0x80] sm:$0xff]
        %v3446 = vld [vmem:[#allocation3 + $0x90] sm:$0xff]
        %v3447 = vld [vmem:[#allocation3 + $0xa0] sm:$0xff]
        %v3448 = vld [vmem:[#allocation3 + $0xb0] sm:$0xff]
        %v3449 = vld [vmem:[#allocation3 + $0xc0] sm:$0xff]
        %v3450 = vld [vmem:[#allocation3 + $0xd0] sm:$0xff]
        %v3451 = vld [vmem:[#allocation3 + $0xe0] sm:$0xff]
        %v3452 = vld [vmem:[#allocation3 + $0xf0] sm:$0xff]
        %v3453 = vld [vmem:[#allocation3 + $0x100] sm:$0xff]
        %v3454 = vld [vmem:[#allocation3 + $0x110] sm:$0xff]
        %v3455 = vld [vmem:[#allocation3 + $0x120] sm:$0xff]
        %v3456 = vld [vmem:[#allocation3 + $0x130] sm:$0xff]
        %v3457 = vld [vmem:[#allocation3 + $0x140] sm:$0xff]
        %v3458 = vld [vmem:[#allocation3 + $0x150] sm:$0xff]
        %v3459 = vld [vmem:[#allocation3 + $0x160] sm:$0xff]
        %v3460 = vld [vmem:[#allocation3 + $0x170] sm:$0xff]
        %v3461 = vld [vmem:[#allocation3 + $0x180] sm:$0xff]
        %v3462 = vld [vmem:[#allocation3 + $0x190] sm:$0xff]
        %v3463 = vld [vmem:[#allocation3 + $0x1a0] sm:$0xff]
        %v3464 = vld [vmem:[#allocation3 + $0x1b0] sm:$0xff]
        %v3465 = vld [vmem:[#allocation3 + $0x1c0] sm:$0xff]
        %v3466 = vld [vmem:[#allocation3 + $0x1d0] sm:$0xff]
        %v3467 = vld [vmem:[#allocation3 + $0x1e0] sm:$0xff]
        %v3468 = vld [vmem:[#allocation3 + $0x1f0] sm:$0xff]
        %v3469 = vld [vmem:[#allocation3 + $0x200] sm:$0xff]
        %v3470 = vld [vmem:[#allocation3 + $0x210] sm:$0xff]
        %v3471 = vld [vmem:[#allocation3 + $0x220] sm:$0xff]
        %v3472 = vld [vmem:[#allocation3 + $0x230] sm:$0xff]
        %v3473 = vld [vmem:[#allocation3 + $0x240] sm:$0xff]
        %v3474 = vld [vmem:[#allocation3 + $0x250] sm:$0xff]
        %v3475 = vld [vmem:[#allocation3 + $0x260] sm:$0xff]
        %v3476 = vld [vmem:[#allocation3 + $0x270] sm:$0xff]
        %v3477 = vld [vmem:[#allocation3 + $0x280] sm:$0xff]
        %v3478 = vld [vmem:[#allocation3 + $0x290] sm:$0xff]
        %v3479 = vld [vmem:[#allocation3 + $0x2a0] sm:$0xff]
        %v3480 = vld [vmem:[#allocation3 + $0x2b0] sm:$0xff]
        %v3481 = vld [vmem:[#allocation3 + $0x2c0] sm:$0xff]
        %v3482 = vld [vmem:[#allocation3 + $0x2d0] sm:$0xff]
        %v3483 = vld [vmem:[#allocation3 + $0x2e0] sm:$0xff]
        %v3484 = vld [vmem:[#allocation3 + $0x2f0] sm:$0xff]
        %v3485 = vld [vmem:[#allocation3 + $0x300] sm:$0xff]
        %v3486 = vld [vmem:[#allocation3 + $0x310] sm:$0xff]
        %v3487 = vld [vmem:[#allocation3 + $0x320] sm:$0xff]
        %v3488 = vld [vmem:[#allocation3 + $0x330] sm:$0xff]
        %v3489 = vld [vmem:[#allocation3 + $0x340] sm:$0xff]
        %v3490 = vld [vmem:[#allocation3 + $0x350] sm:$0xff]
        %v3491 = vpack.c.bf16 %v3438, %v3437
        %v3492 = vpack.c.bf16 %v3440, %v3439
        %v3493 = vpack.c.bf16 %v3442, %v3441
        %v3494 = vpack.c.bf16 %v3444, %v3443
        %v3495 = vpack.c.bf16 %v3446, %v3445
        %v3496 = vpack.c.bf16 %v3448, %v3447
        %v3497 = vpack.c.bf16 %v3450, %v3449
        %v3498 = vpack.c.bf16 %v3452, %v3451
        %v3499 = vpack.c.bf16 %v3454, %v3453
        %v3500 = vpack.c.bf16 %v3456, %v3455
        %v3501 = vpack.c.bf16 %v3458, %v3457
        %v3502 = vpack.c.bf16 %v3460, %v3459
        %v3503 = vpack.c.bf16 %v3462, %v3461
        %v3504 = vpack.c.bf16 %v3464, %v3463
        %v3505 = vpack.c.bf16 %v3466, %v3465
        %v3506 = vpack.c.bf16 %v3468, %v3467
        %v3507 = vpack.c.bf16 %v3470, %v3469
        %v3508 = vpack.c.bf16 %v3472, %v3471
        %v3509 = vpack.c.bf16 %v3474, %v3473
        %v3510 = vpack.c.bf16 %v3476, %v3475
        %v3511 = vpack.c.bf16 %v3478, %v3477
        %v3512 = vpack.c.bf16 %v3480, %v3479
        %v3513 = vpack.c.bf16 %v3482, %v3481
        %v3514 = vpack.c.bf16 %v3484, %v3483
        %v3515 = vpack.c.bf16 %v3486, %v3485
        %v3516 = vpack.c.bf16 %v3488, %v3487
        %v3517 = vpack.c.bf16 %v3490, %v3489
        %v3518 = vld [vmem:[#allocation6] sm:$0xff]
        %v3519 = vld [vmem:[#allocation6 + $0x8] sm:$0xff]
        %3521 = vset.pattern.permute.xlu0 7
        %3522 = vperm.xlu0 %3521, %v3518
        %v3523 = vpop.permute.xlu0 %3522
        %3526 = vset.pattern.permute.xlu0 7
        %3527 = vperm.xlu0 %3526, %v3519
        %v3528 = vpop.permute.xlu0 %3527
        %v3534 = vunpack.c.l.b16 %v3433
        %v3535 = vunpack.c.h.b16 %v3433
        %v3536 = vunpack.c.l.b16 %v3434
        %v3537 = vunpack.c.h.b16 %v3434
        %v3538 = vunpack.c.l.b16 %v3435
        %v3539 = vunpack.c.h.b16 %v3435
        %v3540 = vunpack.c.l.b16 %v3436
        %v3541 = vunpack.c.h.b16 %v3436
        %v3542 = vpack.c.b16 %v3538, %v3534
        %v3543 = vpack.c.b16 %v3539, %v3535
        %v3544 = vpack.c.b16 %v3540, %v3536
        %v3545 = vpack.c.b16 %v3541, %v3537
        %vm3549 = vcmask 392192
        %v3551 = vsel %vm3549, %v3545, 0
        %3553 = vmatprep.subr.bf16.mxu0 0
        %3554 = vmatpush1.bf16.msra.mxu0 %v3491
        %3555 = vmatprep.subr.bf16.mxu0 0
        %3556 = vmatpush1.bf16.msra.mxu0 %v3492
        %3557 = vmatprep.subr.bf16.mxu0 0
        %3558 = vmatpush1.bf16.msra.mxu0 %v3493
        %3559 = vmatprep.subr.bf16.mxu0 0
        %3560 = vmatpush1.bf16.msra.mxu0 %v3494
        %3561 = vmatprep.subr.bf16.mxu0 0
        %3562 = vmatpush1.bf16.msra.mxu0 %v3495
        %3563 = vmatprep.subr.bf16.mxu0 0
        %3564 = vmatpush1.bf16.msra.mxu0 %v3496
        %3565 = vmatprep.subr.bf16.mxu0 0
        %3566 = vmatpush1.bf16.msra.mxu0 %v3497
        %3567 = vmatprep.subr.bf16.mxu0 0
        %3568 = vmatpush1.bf16.msra.mxu0 %v3498
        %3569 = vmatprep.subr.bf16.mxu0 0
        %3570 = vmatpush1.bf16.msra.mxu0 %v3499
        %3571 = vmatprep.subr.bf16.mxu0 0
        %3572 = vmatpush1.bf16.msra.mxu0 %v3500
        %3573 = vmatprep.subr.bf16.mxu0 0
        %3574 = vmatpush1.bf16.msra.mxu0 %v3501
        %3575 = vmatprep.subr.bf16.mxu0 0
        %3576 = vmatpush1.bf16.msra.mxu0 %v3502
        %3577 = vmatprep.subr.bf16.mxu0 0
        %3578 = vmatpush1.bf16.msra.mxu0 %v3503
        %3579 = vmatprep.subr.bf16.mxu0 0
        %3580 = vmatpush1.bf16.msra.mxu0 %v3504
        %3581 = vmatprep.subr.bf16.mxu0 0
        %3582 = vmatpush1.bf16.msra.mxu0 %v3505
        %3583 = vmatprep.subr.bf16.mxu0 0
        %3584 = vmatpush1.bf16.msra.mxu0 %v3506
        %3585 = vmatprep.mubr.bf16.mxu0 %v3543
        %3586 = vmatmul.mubr.bf16.gmra.mrb[0].mxu0 %v3542
        %v3587 = vpop.f32.mrb[0].mxu0
        %v3588 = vadd.f32 %v3523, %v3587
        %v3589 = vpop.f32.mrb[0].mxu0
        %v3590 = vpop.f32.mrb[0].mxu0
        %v3591 = vadd.f32 %v3528, %v3590
        %v3592 = vpop.f32.mrb[0].mxu0
        %3593 = vdwg.mxu0
        %3594 = vmatprep.subr.bf16.mxu0 0
        %3595 = vmatpush1.bf16.msra.mxu0 %v3507
        %3596 = vmatprep.subr.bf16.mxu0 0
        %3597 = vmatpush1.bf16.msra.mxu0 %v3508
        %3598 = vmatprep.subr.bf16.mxu0 0
        %3599 = vmatpush1.bf16.msra.mxu0 %v3509
        %3600 = vmatprep.subr.bf16.mxu0 0
        %3601 = vmatpush1.bf16.msra.mxu0 %v3510
        %3602 = vmatprep.subr.bf16.mxu0 0
        %3603 = vmatpush1.bf16.msra.mxu0 %v3511
        %3604 = vmatprep.subr.bf16.mxu0 0
        %3605 = vmatpush1.bf16.msra.mxu0 %v3512
        %3606 = vmatprep.subr.bf16.mxu0 0
        %3607 = vmatpush1.bf16.msra.mxu0 %v3513
        %3608 = vmatprep.subr.bf16.mxu0 0
        %3609 = vmatpush1.bf16.msra.mxu0 %v3514
        %3610 = vmatprep.subr.bf16.mxu0 0
        %3611 = vmatpush1.bf16.msra.mxu0 %v3515
        %3612 = vmatprep.subr.bf16.mxu0 0
        %3613 = vmatpush1.bf16.msra.mxu0 %v3516
        %3614 = vmatprep.subr.bf16.mxu0 0
        %3615 = vmatpush1.bf16.msra.mxu0 %v3517
        %3616 = vmatprep.subr.bf16.mxu0 0
        %3617 = vmatpush1.bf16.msra.mxu0 0
        %3618 = vmatprep.subr.bf16.mxu0 0
        %3619 = vmatpush1.bf16.msra.mxu0 0
        %3620 = vmatprep.subr.bf16.mxu0 0
        %3621 = vmatpush1.bf16.msra.mxu0 0
        %3622 = vmatprep.subr.bf16.mxu0 0
        %3623 = vmatpush1.bf16.msra.mxu0 0
        %3624 = vmatprep.subr.bf16.mxu0 0
        %3625 = vmatpush1.bf16.msra.mxu0 0
        %3626 = vmatprep.mubr.bf16.mxu0 %v3551
        %3627 = vmatmul.mubr.bf16.gmra.mrb[0].mxu0 %v3544
        %v3628 = vpop.f32.mrb[0].mxu0
        %v3629 = vadd.f32 %v3588, %v3628
        %v3630 = vpop.f32.mrb[0].mxu0
        %v3631 = vpop.f32.mrb[0].mxu0
        %v3632 = vadd.f32 %v3591, %v3631
        %v3633 = vpop.f32.mrb[0].mxu0
        %3634 = vdwg.mxu0
        %v3635 = vmax.f32 %v3629, 0.0
        %v3636 = vmax.f32 %v3632, 0.0
        %3637 = vst.msk [vmem:[#allocation2] sm:$0xff] %vm1095, 0.0
        %3638 = vst.msk [vmem:[#allocation2 + $0x20] sm:$0xff] %vm1095, 0.0
        %3639 = vst.msk [vmem:[#allocation2 + $0x8] sm:$0xff] %vm1097, 0.0
        %3640 = vst.msk [vmem:[#allocation2 + $0x28] sm:$0xff] %vm1097, 0.0
        %3641 = vst.msk [vmem:[#allocation2 + $0x8] sm:$0xff] %vm1099, %v3635
        %3642 = vst.msk [vmem:[#allocation2 + $0x28] sm:$0xff] %vm1099, %v3636
        %v3643 = vld [vmem:[#allocation2] sm:$0xff]
        %v3644 = vld [vmem:[#allocation2 + $0x8] sm:$0xff]
        %v3645 = vld [vmem:[#allocation2 + $0x20] sm:$0xff]
        %v3646 = vld [vmem:[#allocation2 + $0x28] sm:$0xff]
        %3651 = vrot.lane.b32.xlu0 %v3643, 9
        %v3652 = vpop.permute.xlu0 %3651
        %3653 = vrot.lane.b32.xlu0 %v3644, 9
        %v3654 = vpop.permute.xlu0 %3653
        %3655 = vrot.lane.b32.xlu0 %v3645, 9
        %v3656 = vpop.permute.xlu0 %3655
        %3657 = vrot.lane.b32.xlu0 %v3646, 9
        %v3658 = vpop.permute.xlu0 %3657
        %v3659 = vsel %vm568, %v3652, %v3654
        %v3660 = vsel %vm568, %v3656, %v3658
        %v3663 = vsel %vm1118, %v3659, 0.0
        %v3664 = vsel %vm1118, %v3660, 0.0
        %3665 = vst.msk [vmem:[#allocation3] sm:$0xff] %vm1099, %v3663
        %3666 = vst.msk [vmem:[#allocation3 + $0x10] sm:$0xff] %vm1099, %v3664
        %v3667 = vld [vmem:[#allocation2] sm:$0xff]
        %v3668 = vld [vmem:[#allocation2 + $0x8] sm:$0xff]
        %v3669 = vld [vmem:[#allocation2 + $0x20] sm:$0xff]
        %v3670 = vld [vmem:[#allocation2 + $0x28] sm:$0xff]
        %3675 = vrot.lane.b32.xlu0 %v3667, 8
        %v3676 = vpop.permute.xlu0 %3675
        %3677 = vrot.lane.b32.xlu0 %v3668, 8
        %v3678 = vpop.permute.xlu0 %3677
        %3679 = vrot.lane.b32.xlu0 %v3669, 8
        %v3680 = vpop.permute.xlu0 %3679
        %3681 = vrot.lane.b32.xlu0 %v3670, 8
        %v3682 = vpop.permute.xlu0 %3681
        %v3683 = vsel %vm1137, %v3676, %v3678
        %v3684 = vsel %vm1137, %v3680, %v3682
        %3687 = vst.msk [vmem:[#allocation3 + $0x20] sm:$0xff] %vm1099, %v3683
        %3688 = vst.msk [vmem:[#allocation3 + $0x30] sm:$0xff] %vm1099, %v3684
        %v3689 = vld [vmem:[#allocation2] sm:$0xff]
        %v3690 = vld [vmem:[#allocation2 + $0x8] sm:$0xff]
        %v3691 = vld [vmem:[#allocation2 + $0x20] sm:$0xff]
        %v3692 = vld [vmem:[#allocation2 + $0x28] sm:$0xff]
        %3697 = vrot.lane.b32.xlu0 %v3689, 7
        %v3698 = vpop.permute.xlu0 %3697
        %3699 = vrot.lane.b32.xlu0 %v3690, 7
        %v3700 = vpop.permute.xlu0 %3699
        %3701 = vrot.lane.b32.xlu0 %v3691, 7
        %v3702 = vpop.permute.xlu0 %3701
        %3703 = vrot.lane.b32.xlu0 %v3692, 7
        %v3704 = vpop.permute.xlu0 %3703
        %v3705 = vsel %vm1151, %v3698, %v3700
        %v3706 = vsel %vm1151, %v3702, %v3704
        %v3709 = vsel %vm1144, %v3705, 0.0
        %v3710 = vsel %vm1144, %v3706, 0.0
        %3711 = vst.msk [vmem:[#allocation3 + $0x40] sm:$0xff] %vm1099, %v3709
        %3712 = vst.msk [vmem:[#allocation3 + $0x50] sm:$0xff] %vm1099, %v3710
        %v3713 = vld [vmem:[#allocation2] sm:$0xff]
        %v3714 = vld [vmem:[#allocation2 + $0x8] sm:$0xff]
        %v3715 = vld [vmem:[#allocation2 + $0x20] sm:$0xff]
        %v3716 = vld [vmem:[#allocation2 + $0x28] sm:$0xff]
        %3721 = vrot.lane.b32.xlu0 %v3713, 1
        %v3722 = vpop.permute.xlu0 %3721
        %3723 = vrot.lane.b32.xlu0 %v3714, 1
        %v3724 = vpop.permute.xlu0 %3723
        %3725 = vrot.lane.b32.xlu0 %v3715, 1
        %v3726 = vpop.permute.xlu0 %3725
        %3727 = vrot.lane.b32.xlu0 %v3716, 1
        %v3728 = vpop.permute.xlu0 %3727
        %v3729 = vsel %vm368, %v3722, %v3724
        %v3730 = vsel %vm368, %v3726, %v3728
        %v3733 = vsel %vm1118, %v3729, 0.0
        %v3734 = vsel %vm1118, %v3730, 0.0
        %3735 = vst.msk [vmem:[#allocation3 + $0x60] sm:$0xff] %vm1099, %v3733
        %3736 = vst.msk [vmem:[#allocation3 + $0x70] sm:$0xff] %vm1099, %v3734
        %v3737 = vld [vmem:[#allocation2 + $0x8] sm:$0xff]
        %v3738 = vld [vmem:[#allocation2 + $0x28] sm:$0xff]
        %3739 = vst.msk [vmem:[#allocation3 + $0x80] sm:$0xff] %vm1099, %v3737
        %3740 = vst.msk [vmem:[#allocation3 + $0x90] sm:$0xff] %vm1099, %v3738
        %v3741 = vld [vmem:[#allocation2 + $0x8] sm:$0xff]
        %v3742 = vld [vmem:[#allocation2 + $0x28] sm:$0xff]
        %3745 = vrot.lane.b32.xlu0 %v3741, 127
        %v3746 = vpop.permute.xlu0 %3745
        %3747 = vrot.lane.b32.xlu0 %v3742, 127
        %v3748 = vpop.permute.xlu0 %3747
        %v3751 = vsel %vm1144, %v3746, 0.0
        %v3752 = vsel %vm1144, %v3748, 0.0
        %3753 = vst.msk [vmem:[#allocation3 + $0xa0] sm:$0xff] %vm1099, %v3751
        %3754 = vst.msk [vmem:[#allocation3 + $0xb0] sm:$0xff] %vm1099, %v3752
        %v3755 = vld [vmem:[#allocation2 + $0x8] sm:$0xff]
        %v3756 = vld [vmem:[#allocation2 + $0x28] sm:$0xff]
        %3759 = vrot.lane.b32.xlu0 %v3755, 121
        %v3760 = vpop.permute.xlu0 %3759
        %3761 = vrot.lane.b32.xlu0 %v3756, 121
        %v3762 = vpop.permute.xlu0 %3761
        %v3765 = vsel %vm1118, %v3760, 0.0
        %v3766 = vsel %vm1118, %v3762, 0.0
        %3767 = vst.msk [vmem:[#allocation3 + $0xc0] sm:$0xff] %vm1099, %v3765
        %3768 = vst.msk [vmem:[#allocation3 + $0xd0] sm:$0xff] %vm1099, %v3766
        %v3769 = vld [vmem:[#allocation2 + $0x8] sm:$0xff]
        %v3770 = vld [vmem:[#allocation2 + $0x28] sm:$0xff]
        %3773 = vrot.lane.b32.xlu0 %v3769, 120
        %v3774 = vpop.permute.xlu0 %3773
        %3775 = vrot.lane.b32.xlu0 %v3770, 120
        %v3776 = vpop.permute.xlu0 %3775
        %3779 = vst.msk [vmem:[#allocation3 + $0xe0] sm:$0xff] %vm1099, %v3774
        %3780 = vst.msk [vmem:[#allocation3 + $0xf0] sm:$0xff] %vm1099, %v3776
        %v3781 = vld [vmem:[#allocation2 + $0x8] sm:$0xff]
        %v3782 = vld [vmem:[#allocation2 + $0x28] sm:$0xff]
        %3785 = vrot.lane.b32.xlu0 %v3781, 119
        %v3786 = vpop.permute.xlu0 %3785
        %3787 = vrot.lane.b32.xlu0 %v3782, 119
        %v3788 = vpop.permute.xlu0 %3787
        %v3791 = vsel %vm1144, %v3786, 0.0
        %v3792 = vsel %vm1144, %v3788, 0.0
        %3793 = vst.msk [vmem:[#allocation3 + $0x100] sm:$0xff] %vm1099, %v3791
        %3794 = vst.msk [vmem:[#allocation3 + $0x110] sm:$0xff] %vm1099, %v3792
        %v3795 = vld [vmem:[#allocation4 + $0x520] sm:$0xff]
        %v3796 = vld [vmem:[#allocation4 + $0x530] sm:$0xff]
        %v3797 = vld [vmem:[#allocation3] sm:$0xff]
        %v3798 = vld [vmem:[#allocation3 + $0x10] sm:$0xff]
        %v3799 = vld [vmem:[#allocation3 + $0x20] sm:$0xff]
        %v3800 = vld [vmem:[#allocation3 + $0x30] sm:$0xff]
        %v3801 = vld [vmem:[#allocation3 + $0x40] sm:$0xff]
        %v3802 = vld [vmem:[#allocation3 + $0x50] sm:$0xff]
        %v3803 = vld [vmem:[#allocation3 + $0x60] sm:$0xff]
        %v3804 = vld [vmem:[#allocation3 + $0x70] sm:$0xff]
        %v3805 = vld [vmem:[#allocation3 + $0x80] sm:$0xff]
        %v3806 = vld [vmem:[#allocation3 + $0x90] sm:$0xff]
        %v3807 = vld [vmem:[#allocation3 + $0xa0] sm:$0xff]
        %v3808 = vld [vmem:[#allocation3 + $0xb0] sm:$0xff]
        %v3809 = vld [vmem:[#allocation3 + $0xc0] sm:$0xff]
        %v3810 = vld [vmem:[#allocation3 + $0xd0] sm:$0xff]
        %v3811 = vld [vmem:[#allocation3 + $0xe0] sm:$0xff]
        %v3812 = vld [vmem:[#allocation3 + $0xf0] sm:$0xff]
        %v3813 = vld [vmem:[#allocation3 + $0x100] sm:$0xff]
        %v3814 = vld [vmem:[#allocation3 + $0x110] sm:$0xff]
        %v3815 = vpack.c.bf16 %v3798, %v3797
        %v3816 = vpack.c.bf16 %v3800, %v3799
        %v3817 = vpack.c.bf16 %v3802, %v3801
        %v3818 = vpack.c.bf16 %v3804, %v3803
        %v3819 = vpack.c.bf16 %v3806, %v3805
        %v3820 = vpack.c.bf16 %v3808, %v3807
        %v3821 = vpack.c.bf16 %v3810, %v3809
        %v3822 = vpack.c.bf16 %v3812, %v3811
        %v3823 = vpack.c.bf16 %v3814, %v3813
        %v3824 = vld [vmem:[#allocation6] sm:$0xff]
        %v3825 = vld [vmem:[#allocation6 + $0x8] sm:$0xff]
        %3827 = vset.pattern.permute.xlu0 8
        %3828 = vperm.xlu0 %3827, %v3824
        %v3829 = vpop.permute.xlu0 %3828
        %3832 = vset.pattern.permute.xlu0 8
        %3833 = vperm.xlu0 %3832, %v3825
        %v3834 = vpop.permute.xlu0 %3833
        %v3838 = vunpack.c.l.b16 %v3795
        %v3839 = vunpack.c.h.b16 %v3795
        %v3840 = vunpack.c.l.b16 %v3796
        %v3841 = vunpack.c.h.b16 %v3796
        %v3842 = vpack.c.b16 %v3840, %v3838
        %v3843 = vpack.c.b16 %v3841, %v3839
        %v3846 = vsel %vm294, %v3843, 0
        %3848 = vmatprep.subr.bf16.mxu0 0
        %3849 = vmatpush1.bf16.msra.mxu0 %v3815
        %3850 = vmatprep.subr.bf16.mxu0 0
        %3851 = vmatpush1.bf16.msra.mxu0 %v3816
        %3852 = vmatprep.subr.bf16.mxu0 0
        %3853 = vmatpush1.bf16.msra.mxu0 %v3817
        %3854 = vmatprep.subr.bf16.mxu0 0
        %3855 = vmatpush1.bf16.msra.mxu0 %v3818
        %3856 = vmatprep.subr.bf16.mxu0 0
        %3857 = vmatpush1.bf16.msra.mxu0 %v3819
        %3858 = vmatprep.subr.bf16.mxu0 0
        %3859 = vmatpush1.bf16.msra.mxu0 %v3820
        %3860 = vmatprep.subr.bf16.mxu0 0
        %3861 = vmatpush1.bf16.msra.mxu0 %v3821
        %3862 = vmatprep.subr.bf16.mxu0 0
        %3863 = vmatpush1.bf16.msra.mxu0 %v3822
        %3864 = vmatprep.subr.bf16.mxu0 0
        %3865 = vmatpush1.bf16.msra.mxu0 %v3823
        %3866 = vmatprep.subr.bf16.mxu0 0
        %3867 = vmatpush1.bf16.msra.mxu0 0
        %3868 = vmatprep.subr.bf16.mxu0 0
        %3869 = vmatpush1.bf16.msra.mxu0 0
        %3870 = vmatprep.subr.bf16.mxu0 0
        %3871 = vmatpush1.bf16.msra.mxu0 0
        %3872 = vmatprep.subr.bf16.mxu0 0
        %3873 = vmatpush1.bf16.msra.mxu0 0
        %3874 = vmatprep.subr.bf16.mxu0 0
        %3875 = vmatpush1.bf16.msra.mxu0 0
        %3876 = vmatprep.subr.bf16.mxu0 0
        %3877 = vmatpush1.bf16.msra.mxu0 0
        %3878 = vmatprep.subr.bf16.mxu0 0
        %3879 = vmatpush1.bf16.msra.mxu0 0
        %3880 = vmatprep.mubr.bf16.mxu0 %v3846
        %3881 = vmatmul.mubr.bf16.gmra.mrb[0].mxu0 %v3842
        %v3882 = vpop.f32.mrb[0].mxu0
        %v3883 = vadd.f32 %v3829, %v3882
        %v3884 = vpop.f32.mrb[0].mxu0
        %v3885 = vpop.f32.mrb[0].mxu0
        %v3886 = vadd.f32 %v3834, %v3885
        %v3887 = vpop.f32.mrb[0].mxu0
        %3888 = vdwg.mxu0
        %v3889 = vmax.f32 %v3883, 0.0
        %v3890 = vmax.f32 %v3886, 0.0
        %v3891 = vld [vmem:[#allocation4 + $0x540] sm:$0xf]
        %v3892 = vld [vmem:[#allocation4 + $0x550] sm:$0xf]
        %v3893 = vld [vmem:[#allocation4 + $0x560] sm:$0xf]
        %v3894 = vld [vmem:[#allocation4 + $0x570] sm:$0xf]
        %v3895 = vld [vmem:[#allocation4 + $0x580] sm:$0xf]
        %v3896 = vld [vmem:[#allocation4 + $0x590] sm:$0xf]
        %v3897 = vld [vmem:[#allocation4 + $0x5a0] sm:$0xf]
        %v3898 = vld [vmem:[#allocation4 + $0x5b0] sm:$0xf]
        %v3899 = vpack.c.bf16 %v3890, %v3889
        %v3908 = vunpack.c.l.b16 %v3891
        %v3909 = vunpack.c.l.b16 %v3892
        %v3910 = vunpack.c.l.b16 %v3893
        %v3911 = vunpack.c.l.b16 %v3894
        %v3912 = vunpack.c.l.b16 %v3895
        %v3913 = vunpack.c.l.b16 %v3896
        %v3914 = vunpack.c.l.b16 %v3897
        %v3915 = vunpack.c.l.b16 %v3898
        %v3916 = vpack.c.b16 %v3909, %v3908
        %v3917 = vpack.c.b16 %v3911, %v3910
        %v3918 = vpack.c.b16 %v3913, %v3912
        %v3919 = vpack.c.b16 %v3915, %v3914
        %v3921 = vsel %vm294, %v3916, 0
        %v3924 = vsel %vm294, %v3917, 0
        %v3927 = vsel %vm294, %v3918, 0
        %v3930 = vsel %vm294, %v3919, 0
        %3932 = vmatprep.subr.bf16.mxu0 0
        %3933 = vmatpush1.bf16.msra.mxu0 %v3899
        %3934 = vmatprep.subr.bf16.mxu0 0
        %3935 = vmatpush1.bf16.msra.mxu0 0
        %3936 = vmatprep.subr.bf16.mxu0 0
        %3937 = vmatpush1.bf16.msra.mxu0 0
        %3938 = vmatprep.subr.bf16.mxu0 0
        %3939 = vmatpush1.bf16.msra.mxu0 0
        %3940 = vmatprep.subr.bf16.mxu0 0
        %3941 = vmatpush1.bf16.msra.mxu0 0
        %3942 = vmatprep.subr.bf16.mxu0 0
        %3943 = vmatpush1.bf16.msra.mxu0 0
        %3944 = vmatprep.subr.bf16.mxu0 0
        %3945 = vmatpush1.bf16.msra.mxu0 0
        %3946 = vmatprep.subr.bf16.mxu0 0
        %3947 = vmatpush1.bf16.msra.mxu0 0
        %3948 = vmatprep.subr.bf16.mxu0 0
        %3949 = vmatpush1.bf16.msra.mxu0 0
        %3950 = vmatprep.subr.bf16.mxu0 0
        %3951 = vmatpush1.bf16.msra.mxu0 0
        %3952 = vmatprep.subr.bf16.mxu0 0
        %3953 = vmatpush1.bf16.msra.mxu0 0
        %3954 = vmatprep.subr.bf16.mxu0 0
        %3955 = vmatpush1.bf16.msra.mxu0 0
        %3956 = vmatprep.subr.bf16.mxu0 0
        %3957 = vmatpush1.bf16.msra.mxu0 0
        %3958 = vmatprep.subr.bf16.mxu0 0
        %3959 = vmatpush1.bf16.msra.mxu0 0
        %3960 = vmatprep.subr.bf16.mxu0 0
        %3961 = vmatpush1.bf16.msra.mxu0 0
        %3962 = vmatprep.subr.bf16.mxu0 0
        %3963 = vmatpush1.bf16.msra.mxu0 0
        %3964 = vmatprep.mubr.bf16.mxu0 0
        %3965 = vmatmul.mubr.bf16.gmra.mrb[0].mxu0 %v3921
        %v3966 = vpop.f32.mrb[0].mxu0
        %v3967 = vadd.f32 0.0, %v3966
        %v3968 = vpop.f32.mrb[0].mxu0
        %v3969 = vpop.f32.mrb[0].mxu0
        %v3970 = vadd.f32 0.0, %v3969
        %v3971 = vpop.f32.mrb[0].mxu0
        %3972 = vmatprep.mubr.bf16.mxu0 0
        %3973 = vmatmul.mubr.bf16.gmra.mrb[0].mxu0 %v3924
        %v3974 = vpop.f32.mrb[0].mxu0
        %v3975 = vadd.f32 0.0, %v3974
        %v3976 = vpop.f32.mrb[0].mxu0
        %v3977 = vpop.f32.mrb[0].mxu0
        %v3978 = vadd.f32 0.0, %v3977
        %v3979 = vpop.f32.mrb[0].mxu0
        %3980 = vmatprep.mubr.bf16.mxu0 0
        %3981 = vmatmul.mubr.bf16.gmra.mrb[0].mxu0 %v3927
        %v3982 = vpop.f32.mrb[0].mxu0
        %v3983 = vadd.f32 0.0, %v3982
        %v3984 = vpop.f32.mrb[0].mxu0
        %v3985 = vpop.f32.mrb[0].mxu0
        %v3986 = vadd.f32 0.0, %v3985
        %v3987 = vpop.f32.mrb[0].mxu0
        %3988 = vmatprep.mubr.bf16.mxu0 0
        %3989 = vmatmul.mubr.bf16.gmra.mrb[0].mxu0 %v3930
        %v3990 = vpop.f32.mrb[0].mxu0
        %v3991 = vadd.f32 0.0, %v3990
        %v3992 = vpop.f32.mrb[0].mxu0
        %v3993 = vpop.f32.mrb[0].mxu0
        %v3994 = vadd.f32 0.0, %v3993
        %v3995 = vpop.f32.mrb[0].mxu0
        %3996 = vdwg.mxu0
        %v3997 = vpack.c.bf16 %v3970, %v3967
        %v3998 = vpack.c.bf16 %v3978, %v3975
        %v3999 = vpack.c.bf16 %v3986, %v3983
        %v4000 = vpack.c.bf16 %v3994, %v3991
        %v4001 = vld [vmem:[#allocation4 + $0x5c0] sm:$0xff]
        %v4002 = vld [vmem:[#allocation4 + $0x5d0] sm:$0xff]
        %v4003 = vld [vmem:[#allocation4 + $0x5e0] sm:$0xff]
        %v4004 = vld [vmem:[#allocation4 + $0x5f0] sm:$0xff]
        %v4005 = vld [vmem:[#allocation4 + $0x600] sm:$0xff]
        %v4006 = vld [vmem:[#allocation4 + $0x610] sm:$0xff]
        %v4007 = vld [vmem:[#allocation4 + $0x620] sm:$0xff]
        %v4008 = vld [vmem:[#allocation4 + $0x630] sm:$0xff]
        %v4009 = vld [vmem:[#allocation4 + $0x640] sm:$0xff]
        %v4010 = vld [vmem:[#allocation4 + $0x650] sm:$0xff]
        %v4011 = vld [vmem:[#allocation4 + $0x660] sm:$0xff]
        %v4012 = vld [vmem:[#allocation4 + $0x670] sm:$0xff]
        %v4013 = vld [vmem:[#allocation4 + $0x680] sm:$0xff]
        %v4014 = vld [vmem:[#allocation4 + $0x690] sm:$0xff]
        %v4015 = vld [vmem:[#allocation4 + $0x6a0] sm:$0xff]
        %v4016 = vld [vmem:[#allocation4 + $0x6b0] sm:$0xff]
        %v4025 = vunpack.c.l.b16 %v4009
        %v4026 = vunpack.c.h.b16 %v4009
        %v4027 = vunpack.c.l.b16 %v4010
        %v4028 = vunpack.c.h.b16 %v4010
        %v4029 = vunpack.c.l.b16 %v4011
        %v4030 = vunpack.c.h.b16 %v4011
        %v4031 = vunpack.c.l.b16 %v4012
        %v4032 = vunpack.c.h.b16 %v4012
        %v4033 = vunpack.c.l.b16 %v4013
        %v4034 = vunpack.c.h.b16 %v4013
        %v4035 = vunpack.c.l.b16 %v4014
        %v4036 = vunpack.c.h.b16 %v4014
        %v4037 = vunpack.c.l.b16 %v4015
        %v4038 = vunpack.c.h.b16 %v4015
        %v4039 = vunpack.c.l.b16 %v4016
        %v4040 = vunpack.c.h.b16 %v4016
        %v4041 = vpack.c.b16 %v4027, %v4025
        %v4042 = vpack.c.b16 %v4028, %v4026
        %v4043 = vpack.c.b16 %v4031, %v4029
        %v4044 = vpack.c.b16 %v4032, %v4030
        %v4045 = vpack.c.b16 %v4035, %v4033
        %v4046 = vpack.c.b16 %v4036, %v4034
        %v4047 = vpack.c.b16 %v4039, %v4037
        %v4048 = vpack.c.b16 %v4040, %v4038
        %v4058 = vsel %vm1099, %v3998, 0
        %4060 = vmatprep.subr.bf16.mxu0 %v4042
        %4061 = vmatpush1.bf16.msra.mxu0 %v4041
        %4062 = vmatprep.subr.bf16.mxu0 %v4044
        %4063 = vmatpush1.bf16.msra.mxu0 %v4043
        %4064 = vmatprep.subr.bf16.mxu0 %v4046
        %4065 = vmatpush1.bf16.msra.mxu0 %v4045
        %4066 = vmatprep.subr.bf16.mxu0 %v4048
        %4067 = vmatpush1.bf16.msra.mxu0 %v4047
        %4068 = vmatprep.subr.bf16.mxu0 0
        %4069 = vmatpush1.bf16.msra.mxu0 0
        %4070 = vmatprep.subr.bf16.mxu0 0
        %4071 = vmatpush1.bf16.msra.mxu0 0
        %4072 = vmatprep.subr.bf16.mxu0 0
        %4073 = vmatpush1.bf16.msra.mxu0 0
        %4074 = vmatprep.subr.bf16.mxu0 0
        %4075 = vmatpush1.bf16.msra.mxu0 0
        %4076 = vmatprep.subr.bf16.mxu0 0
        %4077 = vmatpush1.bf16.msra.mxu0 0
        %4078 = vmatprep.subr.bf16.mxu0 0
        %4079 = vmatpush1.bf16.msra.mxu0 0
        %4080 = vmatprep.subr.bf16.mxu0 0
        %4081 = vmatpush1.bf16.msra.mxu0 0
        %4082 = vmatprep.subr.bf16.mxu0 0
        %4083 = vmatpush1.bf16.msra.mxu0 0
        %4084 = vmatprep.subr.bf16.mxu0 0
        %4085 = vmatpush1.bf16.msra.mxu0 0
        %4086 = vmatprep.subr.bf16.mxu0 0
        %4087 = vmatpush1.bf16.msra.mxu0 0
        %4088 = vmatprep.subr.bf16.mxu0 0
        %4089 = vmatpush1.bf16.msra.mxu0 0
        %4090 = vmatprep.subr.bf16.mxu0 0
        %4091 = vmatpush1.bf16.msra.mxu0 0
        %4092 = vmatprep.mubr.bf16.mxu0 0
        %4093 = vmatmul.mubr.bf16.gmra.mrb[0].mxu0 %v4058
        %v4094 = vpop.f32.mrb[0].mxu0
        %v4095 = vadd.f32 0.0, %v4094
        %v4096 = vpop.f32.mrb[0].mxu0
        %v4097 = vadd.f32 0.0, %v4096
        %v4098 = vpop.f32.mrb[0].mxu0
        %v4099 = vadd.f32 0.0, %v4098
        %v4100 = vpop.f32.mrb[0].mxu0
        %v4101 = vadd.f32 0.0, %v4100
        %4102 = vdwg.mxu0
        %v4111 = vunpack.c.l.b16 %v4001
        %v4112 = vunpack.c.h.b16 %v4001
        %v4113 = vunpack.c.l.b16 %v4002
        %v4114 = vunpack.c.h.b16 %v4002
        %v4115 = vunpack.c.l.b16 %v4003
        %v4116 = vunpack.c.h.b16 %v4003
        %v4117 = vunpack.c.l.b16 %v4004
        %v4118 = vunpack.c.h.b16 %v4004
        %v4119 = vunpack.c.l.b16 %v4005
        %v4120 = vunpack.c.h.b16 %v4005
        %v4121 = vunpack.c.l.b16 %v4006
        %v4122 = vunpack.c.h.b16 %v4006
        %v4123 = vunpack.c.l.b16 %v4007
        %v4124 = vunpack.c.h.b16 %v4007
        %v4125 = vunpack.c.l.b16 %v4008
        %v4126 = vunpack.c.h.b16 %v4008
        %v4127 = vpack.c.b16 %v4113, %v4111
        %v4128 = vpack.c.b16 %v4114, %v4112
        %v4129 = vpack.c.b16 %v4117, %v4115
        %v4130 = vpack.c.b16 %v4118, %v4116
        %v4131 = vpack.c.b16 %v4121, %v4119
        %v4132 = vpack.c.b16 %v4122, %v4120
        %v4133 = vpack.c.b16 %v4125, %v4123
        %v4134 = vpack.c.b16 %v4126, %v4124
        %v4144 = vsel %vm1099, %v3997, 0
        %4146 = vmatprep.subr.bf16.mxu0 %v4128
        %4147 = vmatpush1.bf16.msra.mxu0 %v4127
        %4148 = vmatprep.subr.bf16.mxu0 %v4130
        %4149 = vmatpush1.bf16.msra.mxu0 %v4129
        %4150 = vmatprep.subr.bf16.mxu0 %v4132
        %4151 = vmatpush1.bf16.msra.mxu0 %v4131
        %4152 = vmatprep.subr.bf16.mxu0 %v4134
        %4153 = vmatpush1.bf16.msra.mxu0 %v4133
        %4154 = vmatprep.subr.bf16.mxu0 0
        %4155 = vmatpush1.bf16.msra.mxu0 0
        %4156 = vmatprep.subr.bf16.mxu0 0
        %4157 = vmatpush1.bf16.msra.mxu0 0
        %4158 = vmatprep.subr.bf16.mxu0 0
        %4159 = vmatpush1.bf16.msra.mxu0 0
        %4160 = vmatprep.subr.bf16.mxu0 0
        %4161 = vmatpush1.bf16.msra.mxu0 0
        %4162 = vmatprep.subr.bf16.mxu0 0
        %4163 = vmatpush1.bf16.msra.mxu0 0
        %4164 = vmatprep.subr.bf16.mxu0 0
        %4165 = vmatpush1.bf16.msra.mxu0 0
        %4166 = vmatprep.subr.bf16.mxu0 0
        %4167 = vmatpush1.bf16.msra.mxu0 0
        %4168 = vmatprep.subr.bf16.mxu0 0
        %4169 = vmatpush1.bf16.msra.mxu0 0
        %4170 = vmatprep.subr.bf16.mxu0 0
        %4171 = vmatpush1.bf16.msra.mxu0 0
        %4172 = vmatprep.subr.bf16.mxu0 0
        %4173 = vmatpush1.bf16.msra.mxu0 0
        %4174 = vmatprep.subr.bf16.mxu0 0
        %4175 = vmatpush1.bf16.msra.mxu0 0
        %4176 = vmatprep.subr.bf16.mxu0 0
        %4177 = vmatpush1.bf16.msra.mxu0 0
        %4178 = vmatprep.mubr.bf16.mxu0 0
        %4179 = vmatmul.mubr.bf16.gmra.mrb[0].mxu0 %v4144
        %v4180 = vpop.f32.mrb[0].mxu0
        %v4181 = vadd.f32 %v4095, %v4180
        %v4182 = vpop.f32.mrb[0].mxu0
        %v4183 = vadd.f32 %v4097, %v4182
        %v4184 = vpop.f32.mrb[0].mxu0
        %v4185 = vadd.f32 %v4099, %v4184
        %v4186 = vpop.f32.mrb[0].mxu0
        %v4187 = vadd.f32 %v4101, %v4186
        %4188 = vdwg.mxu0
        %v4189 = vld [vmem:[#allocation4 + $0x6c0] sm:$0xff]
        %v4190 = vld [vmem:[#allocation4 + $0x6d0] sm:$0xff]
        %v4191 = vld [vmem:[#allocation4 + $0x6e0] sm:$0xff]
        %v4192 = vld [vmem:[#allocation4 + $0x6f0] sm:$0xff]
        %v4193 = vld [vmem:[#allocation4 + $0x700] sm:$0xff]
        %v4194 = vld [vmem:[#allocation4 + $0x710] sm:$0xff]
        %v4195 = vld [vmem:[#allocation4 + $0x720] sm:$0xff]
        %v4196 = vld [vmem:[#allocation4 + $0x730] sm:$0xff]
        %v4205 = vunpack.c.l.b16 %v4189
        %v4206 = vunpack.c.h.b16 %v4189
        %v4207 = vunpack.c.l.b16 %v4190
        %v4208 = vunpack.c.h.b16 %v4190
        %v4209 = vunpack.c.l.b16 %v4191
        %v4210 = vunpack.c.h.b16 %v4191
        %v4211 = vunpack.c.l.b16 %v4192
        %v4212 = vunpack.c.h.b16 %v4192
        %v4213 = vunpack.c.l.b16 %v4193
        %v4214 = vunpack.c.h.b16 %v4193
        %v4215 = vunpack.c.l.b16 %v4194
        %v4216 = vunpack.c.h.b16 %v4194
        %v4217 = vunpack.c.l.b16 %v4195
        %v4218 = vunpack.c.h.b16 %v4195
        %v4219 = vunpack.c.l.b16 %v4196
        %v4220 = vunpack.c.h.b16 %v4196
        %v4221 = vpack.c.b16 %v4207, %v4205
        %v4222 = vpack.c.b16 %v4208, %v4206
        %v4223 = vpack.c.b16 %v4211, %v4209
        %v4224 = vpack.c.b16 %v4212, %v4210
        %v4225 = vpack.c.b16 %v4215, %v4213
        %v4226 = vpack.c.b16 %v4216, %v4214
        %v4227 = vpack.c.b16 %v4219, %v4217
        %v4228 = vpack.c.b16 %v4220, %v4218
        %v4238 = vsel %vm1099, %v3999, 0
        %4240 = vmatprep.subr.bf16.mxu0 %v4222
        %4241 = vmatpush1.bf16.msra.mxu0 %v4221
        %4242 = vmatprep.subr.bf16.mxu0 %v4224
        %4243 = vmatpush1.bf16.msra.mxu0 %v4223
        %4244 = vmatprep.subr.bf16.mxu0 %v4226
        %4245 = vmatpush1.bf16.msra.mxu0 %v4225
        %4246 = vmatprep.subr.bf16.mxu0 %v4228
        %4247 = vmatpush1.bf16.msra.mxu0 %v4227
        %4248 = vmatprep.subr.bf16.mxu0 0
        %4249 = vmatpush1.bf16.msra.mxu0 0
        %4250 = vmatprep.subr.bf16.mxu0 0
        %4251 = vmatpush1.bf16.msra.mxu0 0
        %4252 = vmatprep.subr.bf16.mxu0 0
        %4253 = vmatpush1.bf16.msra.mxu0 0
        %4254 = vmatprep.subr.bf16.mxu0 0
        %4255 = vmatpush1.bf16.msra.mxu0 0
        %4256 = vmatprep.subr.bf16.mxu0 0
        %4257 = vmatpush1.bf16.msra.mxu0 0
        %4258 = vmatprep.subr.bf16.mxu0 0
        %4259 = vmatpush1.bf16.msra.mxu0 0
        %4260 = vmatprep.subr.bf16.mxu0 0
        %4261 = vmatpush1.bf16.msra.mxu0 0
        %4262 = vmatprep.subr.bf16.mxu0 0
        %4263 = vmatpush1.bf16.msra.mxu0 0
        %4264 = vmatprep.subr.bf16.mxu0 0
        %4265 = vmatpush1.bf16.msra.mxu0 0
        %4266 = vmatprep.subr.bf16.mxu0 0
        %4267 = vmatpush1.bf16.msra.mxu0 0
        %4268 = vmatprep.subr.bf16.mxu0 0
        %4269 = vmatpush1.bf16.msra.mxu0 0
        %4270 = vmatprep.subr.bf16.mxu0 0
        %4271 = vmatpush1.bf16.msra.mxu0 0
        %4272 = vmatprep.mubr.bf16.mxu0 0
        %4273 = vmatmul.mubr.bf16.gmra.mrb[0].mxu0 %v4238
        %v4274 = vpop.f32.mrb[0].mxu0
        %v4275 = vadd.f32 0.0, %v4274
        %v4276 = vpop.f32.mrb[0].mxu0
        %v4277 = vadd.f32 0.0, %v4276
        %v4278 = vpop.f32.mrb[0].mxu0
        %v4279 = vadd.f32 0.0, %v4278
        %v4280 = vpop.f32.mrb[0].mxu0
        %v4281 = vadd.f32 0.0, %v4280
        %4282 = vdwg.mxu0
        %v4283 = vadd.f32 %v4181, %v4275
        %v4284 = vadd.f32 %v4183, %v4277
        %v4285 = vadd.f32 %v4185, %v4279
        %v4286 = vadd.f32 %v4187, %v4281
        %v4287 = vld [vmem:[#allocation4 + $0x740] sm:$0xff]
        %v4288 = vld [vmem:[#allocation4 + $0x750] sm:$0xff]
        %v4289 = vld [vmem:[#allocation4 + $0x760] sm:$0xff]
        %v4290 = vld [vmem:[#allocation4 + $0x770] sm:$0xff]
        %v4291 = vld [vmem:[#allocation4 + $0x780] sm:$0xff]
        %v4292 = vld [vmem:[#allocation4 + $0x790] sm:$0xff]
        %v4293 = vld [vmem:[#allocation4 + $0x7a0] sm:$0xff]
        %v4294 = vld [vmem:[#allocation4 + $0x7b0] sm:$0xff]
        %v4303 = vunpack.c.l.b16 %v4287
        %v4304 = vunpack.c.h.b16 %v4287
        %v4305 = vunpack.c.l.b16 %v4288
        %v4306 = vunpack.c.h.b16 %v4288
        %v4307 = vunpack.c.l.b16 %v4289
        %v4308 = vunpack.c.h.b16 %v4289
        %v4309 = vunpack.c.l.b16 %v4290
        %v4310 = vunpack.c.h.b16 %v4290
        %v4311 = vunpack.c.l.b16 %v4291
        %v4312 = vunpack.c.h.b16 %v4291
        %v4313 = vunpack.c.l.b16 %v4292
        %v4314 = vunpack.c.h.b16 %v4292
        %v4315 = vunpack.c.l.b16 %v4293
        %v4316 = vunpack.c.h.b16 %v4293
        %v4317 = vunpack.c.l.b16 %v4294
        %v4318 = vunpack.c.h.b16 %v4294
        %v4319 = vpack.c.b16 %v4305, %v4303
        %v4320 = vpack.c.b16 %v4306, %v4304
        %v4321 = vpack.c.b16 %v4309, %v4307
        %v4322 = vpack.c.b16 %v4310, %v4308
        %v4323 = vpack.c.b16 %v4313, %v4311
        %v4324 = vpack.c.b16 %v4314, %v4312
        %v4325 = vpack.c.b16 %v4317, %v4315
        %v4326 = vpack.c.b16 %v4318, %v4316
        %v4336 = vsel %vm1099, %v4000, 0
        %4338 = vmatprep.subr.bf16.mxu0 %v4320
        %4339 = vmatpush1.bf16.msra.mxu0 %v4319
        %4340 = vmatprep.subr.bf16.mxu0 %v4322
        %4341 = vmatpush1.bf16.msra.mxu0 %v4321
        %4342 = vmatprep.subr.bf16.mxu0 %v4324
        %4343 = vmatpush1.bf16.msra.mxu0 %v4323
        %4344 = vmatprep.subr.bf16.mxu0 %v4326
        %4345 = vmatpush1.bf16.msra.mxu0 %v4325
        %4346 = vmatprep.subr.bf16.mxu0 0
        %4347 = vmatpush1.bf16.msra.mxu0 0
        %4348 = vmatprep.subr.bf16.mxu0 0
        %4349 = vmatpush1.bf16.msra.mxu0 0
        %4350 = vmatprep.subr.bf16.mxu0 0
        %4351 = vmatpush1.bf16.msra.mxu0 0
        %4352 = vmatprep.subr.bf16.mxu0 0
        %4353 = vmatpush1.bf16.msra.mxu0 0
        %4354 = vmatprep.subr.bf16.mxu0 0
        %4355 = vmatpush1.bf16.msra.mxu0 0
        %4356 = vmatprep.subr.bf16.mxu0 0
        %4357 = vmatpush1.bf16.msra.mxu0 0
        %4358 = vmatprep.subr.bf16.mxu0 0
        %4359 = vmatpush1.bf16.msra.mxu0 0
        %4360 = vmatprep.subr.bf16.mxu0 0
        %4361 = vmatpush1.bf16.msra.mxu0 0
        %4362 = vmatprep.subr.bf16.mxu0 0
        %4363 = vmatpush1.bf16.msra.mxu0 0
        %4364 = vmatprep.subr.bf16.mxu0 0
        %4365 = vmatpush1.bf16.msra.mxu0 0
        %4366 = vmatprep.subr.bf16.mxu0 0
        %4367 = vmatpush1.bf16.msra.mxu0 0
        %4368 = vmatprep.subr.bf16.mxu0 0
        %4369 = vmatpush1.bf16.msra.mxu0 0
        %4370 = vmatprep.mubr.bf16.mxu0 0
        %4371 = vmatmul.mubr.bf16.gmra.mrb[0].mxu0 %v4336
        %v4372 = vpop.f32.mrb[0].mxu0
        %v4373 = vadd.f32 0.0, %v4372
        %v4374 = vpop.f32.mrb[0].mxu0
        %v4375 = vadd.f32 0.0, %v4374
        %v4376 = vpop.f32.mrb[0].mxu0
        %v4377 = vadd.f32 0.0, %v4376
        %v4378 = vpop.f32.mrb[0].mxu0
        %v4379 = vadd.f32 0.0, %v4378
        %4380 = vdwg.mxu0
        %v4381 = vadd.f32 %v4283, %v4373
        %v4382 = vadd.f32 %v4284, %v4375
        %v4383 = vadd.f32 %v4285, %v4377
        %v4384 = vadd.f32 %v4286, %v4379
        %4385 = vset.pattern.permute.xlu0 9
        %4386 = vperm.xlu0 %4385, %v3824
        %v4387 = vpop.permute.xlu0 %4386
        %4389 = vset.pattern.permute.xlu0 9
        %4390 = vperm.xlu0 %4389, %v3825
        %v4391 = vpop.permute.xlu0 %4390
        %v4393 = vadd.f32 %v4381, %v4387
        %v4394 = vadd.f32 %v4382, %v4387
        %v4395 = vadd.f32 %v4383, %v4391
        %v4396 = vadd.f32 %v4384, %v4391
        %4397 = vst.msk [vmem:[#allocation2] sm:$0xff] %vm625, 0.0
        %4398 = vst.msk [vmem:[#allocation2 + $0x20] sm:$0xff] %vm625, 0.0
        %4399 = vst.msk [vmem:[#allocation2 + $0x40] sm:$0xff] %vm625, 0.0
        %4400 = vst.msk [vmem:[#allocation2 + $0x18] sm:$0xff] %vm262, 0.0
        %4401 = vst.msk [vmem:[#allocation2 + $0x38] sm:$0xff] %vm262, 0.0
        %4402 = vst.msk [vmem:[#allocation2 + $0x58] sm:$0xff] %vm262, 0.0
        %4403 = vst [vmem:[#allocation2 + $0x8] sm:$0xff] %v884
        %4404 = vst [vmem:[#allocation2 + $0x10] sm:$0xff] %v885
        %4405 = vst [vmem:[#allocation2 + $0x28] sm:$0xff] %v4393
        %4406 = vst [vmem:[#allocation2 + $0x30] sm:$0xff] %v4394
        %4407 = vst [vmem:[#allocation2 + $0x48] sm:$0xff] %v4395
        %4408 = vst [vmem:[#allocation2 + $0x50] sm:$0xff] %v4396
        %v4409 = vld [vmem:[#allocation2] sm:$0xff]
        %v4410 = vld [vmem:[#allocation2 + $0x8] sm:$0xff]
        %v4411 = vld [vmem:[#allocation2 + $0x10] sm:$0xff]
        %v4412 = vld [vmem:[#allocation2 + $0x20] sm:$0xff]
        %v4413 = vld [vmem:[#allocation2 + $0x28] sm:$0xff]
        %v4414 = vld [vmem:[#allocation2 + $0x30] sm:$0xff]
        %v4415 = vld [vmem:[#allocation2 + $0x40] sm:$0xff]
        %v4416 = vld [vmem:[#allocation2 + $0x48] sm:$0xff]
        %v4417 = vld [vmem:[#allocation2 + $0x50] sm:$0xff]
        %4427 = vrot.lane.b32.xlu0 %v4409, 17
        %v4428 = vpop.permute.xlu0 %4427
        %4429 = vrot.lane.b32.xlu0 %v4410, 17
        %v4430 = vpop.permute.xlu0 %4429
        %4431 = vrot.lane.b32.xlu0 %v4411, 17
        %v4432 = vpop.permute.xlu0 %4431
        %4433 = vrot.lane.b32.xlu0 %v4412, 17
        %v4434 = vpop.permute.xlu0 %4433
        %4435 = vrot.lane.b32.xlu0 %v4413, 17
        %v4436 = vpop.permute.xlu0 %4435
        %4437 = vrot.lane.b32.xlu0 %v4414, 17
        %v4438 = vpop.permute.xlu0 %4437
        %4439 = vrot.lane.b32.xlu0 %v4415, 17
        %v4440 = vpop.permute.xlu0 %4439
        %4441 = vrot.lane.b32.xlu0 %v4416, 17
        %v4442 = vpop.permute.xlu0 %4441
        %4443 = vrot.lane.b32.xlu0 %v4417, 17
        %v4444 = vpop.permute.xlu0 %4443
        %v4445 = vsel %vm262, %v4428, %v4430
        %v4446 = vsel %vm262, %v4430, %v4432
        %v4447 = vsel %vm262, %v4434, %v4436
        %v4448 = vsel %vm262, %v4436, %v4438
        %v4449 = vsel %vm262, %v4440, %v4442
        %v4450 = vsel %vm262, %v4442, %v4444
        %v4457 = vsel %vm635, %v4445, 0.0
        %v4458 = vsel %vm636, %v4446, 0.0
        %v4459 = vsel %vm635, %v4447, 0.0
        %v4460 = vsel %vm636, %v4448, 0.0
        %v4461 = vsel %vm635, %v4449, 0.0
        %v4462 = vsel %vm636, %v4450, 0.0
        %4463 = vst [vmem:[#allocation3] sm:$0xff] %v4457
        %4464 = vst [vmem:[#allocation3 + $0x8] sm:$0xff] %v4458
        %4465 = vst [vmem:[#allocation3 + $0x10] sm:$0xff] %v4459
        %4466 = vst [vmem:[#allocation3 + $0x18] sm:$0xff] %v4460
        %4467 = vst [vmem:[#allocation3 + $0x20] sm:$0xff] %v4461
        %4468 = vst [vmem:[#allocation3 + $0x28] sm:$0xff] %v4462
        %v4469 = vld [vmem:[#allocation2] sm:$0xff]
        %v4470 = vld [vmem:[#allocation2 + $0x8] sm:$0xff]
        %v4471 = vld [vmem:[#allocation2 + $0x10] sm:$0xff]
        %v4472 = vld [vmem:[#allocation2 + $0x20] sm:$0xff]
        %v4473 = vld [vmem:[#allocation2 + $0x28] sm:$0xff]
        %v4474 = vld [vmem:[#allocation2 + $0x30] sm:$0xff]
        %v4475 = vld [vmem:[#allocation2 + $0x40] sm:$0xff]
        %v4476 = vld [vmem:[#allocation2 + $0x48] sm:$0xff]
        %v4477 = vld [vmem:[#allocation2 + $0x50] sm:$0xff]
        %4487 = vrot.lane.b32.xlu0 %v4469, 16
        %v4488 = vpop.permute.xlu0 %4487
        %4489 = vrot.lane.b32.xlu0 %v4470, 16
        %v4490 = vpop.permute.xlu0 %4489
        %4491 = vrot.lane.b32.xlu0 %v4471, 16
        %v4492 = vpop.permute.xlu0 %4491
        %4493 = vrot.lane.b32.xlu0 %v4472, 16
        %v4494 = vpop.permute.xlu0 %4493
        %4495 = vrot.lane.b32.xlu0 %v4473, 16
        %v4496 = vpop.permute.xlu0 %4495
        %4497 = vrot.lane.b32.xlu0 %v4474, 16
        %v4498 = vpop.permute.xlu0 %4497
        %4499 = vrot.lane.b32.xlu0 %v4475, 16
        %v4500 = vpop.permute.xlu0 %4499
        %4501 = vrot.lane.b32.xlu0 %v4476, 16
        %v4502 = vpop.permute.xlu0 %4501
        %4503 = vrot.lane.b32.xlu0 %v4477, 16
        %v4504 = vpop.permute.xlu0 %4503
        %v4505 = vsel %vm294, %v4488, %v4490
        %v4506 = vsel %vm294, %v4490, %v4492
        %v4507 = vsel %vm294, %v4494, %v4496
        %v4508 = vsel %vm294, %v4496, %v4498
        %v4509 = vsel %vm294, %v4500, %v4502
        %v4510 = vsel %vm294, %v4502, %v4504
        %4517 = vst [vmem:[#allocation3 + $0x30] sm:$0xff] %v4505
        %4518 = vst [vmem:[#allocation3 + $0x38] sm:$0xff] %v4506
        %4519 = vst [vmem:[#allocation3 + $0x40] sm:$0xff] %v4507
        %4520 = vst [vmem:[#allocation3 + $0x48] sm:$0xff] %v4508
        %4521 = vst [vmem:[#allocation3 + $0x50] sm:$0xff] %v4509
        %4522 = vst [vmem:[#allocation3 + $0x58] sm:$0xff] %v4510
        %v4523 = vld [vmem:[#allocation2] sm:$0xff]
        %v4524 = vld [vmem:[#allocation2 + $0x8] sm:$0xff]
        %v4525 = vld [vmem:[#allocation2 + $0x10] sm:$0xff]
        %v4526 = vld [vmem:[#allocation2 + $0x20] sm:$0xff]
        %v4527 = vld [vmem:[#allocation2 + $0x28] sm:$0xff]
        %v4528 = vld [vmem:[#allocation2 + $0x30] sm:$0xff]
        %v4529 = vld [vmem:[#allocation2 + $0x40] sm:$0xff]
        %v4530 = vld [vmem:[#allocation2 + $0x48] sm:$0xff]
        %v4531 = vld [vmem:[#allocation2 + $0x50] sm:$0xff]
        %4541 = vrot.lane.b32.xlu0 %v4523, 15
        %v4542 = vpop.permute.xlu0 %4541
        %4543 = vrot.lane.b32.xlu0 %v4524, 15
        %v4544 = vpop.permute.xlu0 %4543
        %4545 = vrot.lane.b32.xlu0 %v4525, 15
        %v4546 = vpop.permute.xlu0 %4545
        %4547 = vrot.lane.b32.xlu0 %v4526, 15
        %v4548 = vpop.permute.xlu0 %4547
        %4549 = vrot.lane.b32.xlu0 %v4527, 15
        %v4550 = vpop.permute.xlu0 %4549
        %4551 = vrot.lane.b32.xlu0 %v4528, 15
        %v4552 = vpop.permute.xlu0 %4551
        %4553 = vrot.lane.b32.xlu0 %v4529, 15
        %v4554 = vpop.permute.xlu0 %4553
        %4555 = vrot.lane.b32.xlu0 %v4530, 15
        %v4556 = vpop.permute.xlu0 %4555
        %4557 = vrot.lane.b32.xlu0 %v4531, 15
        %v4558 = vpop.permute.xlu0 %4557
        %v4559 = vsel %vm320, %v4542, %v4544
        %v4560 = vsel %vm320, %v4544, %v4546
        %v4561 = vsel %vm320, %v4548, %v4550
        %v4562 = vsel %vm320, %v4550, %v4552
        %v4563 = vsel %vm320, %v4554, %v4556
        %v4564 = vsel %vm320, %v4556, %v4558
        %v4571 = vsel %vm677, %v4559, 0.0
        %v4572 = vsel %vm678, %v4560, 0.0
        %v4573 = vsel %vm677, %v4561, 0.0
        %v4574 = vsel %vm678, %v4562, 0.0
        %v4575 = vsel %vm677, %v4563, 0.0
        %v4576 = vsel %vm678, %v4564, 0.0
        %4577 = vst [vmem:[#allocation3 + $0x60] sm:$0xff] %v4571
        %4578 = vst [vmem:[#allocation3 + $0x68] sm:$0xff] %v4572
        %4579 = vst [vmem:[#allocation3 + $0x70] sm:$0xff] %v4573
        %4580 = vst [vmem:[#allocation3 + $0x78] sm:$0xff] %v4574
        %4581 = vst [vmem:[#allocation3 + $0x80] sm:$0xff] %v4575
        %4582 = vst [vmem:[#allocation3 + $0x88] sm:$0xff] %v4576
        %v4583 = vld [vmem:[#allocation2] sm:$0xff]
        %v4584 = vld [vmem:[#allocation2 + $0x8] sm:$0xff]
        %v4585 = vld [vmem:[#allocation2 + $0x10] sm:$0xff]
        %v4586 = vld [vmem:[#allocation2 + $0x20] sm:$0xff]
        %v4587 = vld [vmem:[#allocation2 + $0x28] sm:$0xff]
        %v4588 = vld [vmem:[#allocation2 + $0x30] sm:$0xff]
        %v4589 = vld [vmem:[#allocation2 + $0x40] sm:$0xff]
        %v4590 = vld [vmem:[#allocation2 + $0x48] sm:$0xff]
        %v4591 = vld [vmem:[#allocation2 + $0x50] sm:$0xff]
        %4601 = vrot.lane.b32.xlu0 %v4583, 1
        %v4602 = vpop.permute.xlu0 %4601
        %4603 = vrot.lane.b32.xlu0 %v4584, 1
        %v4604 = vpop.permute.xlu0 %4603
        %4605 = vrot.lane.b32.xlu0 %v4585, 1
        %v4606 = vpop.permute.xlu0 %4605
        %4607 = vrot.lane.b32.xlu0 %v4586, 1
        %v4608 = vpop.permute.xlu0 %4607
        %4609 = vrot.lane.b32.xlu0 %v4587, 1
        %v4610 = vpop.permute.xlu0 %4609
        %4611 = vrot.lane.b32.xlu0 %v4588, 1
        %v4612 = vpop.permute.xlu0 %4611
        %4613 = vrot.lane.b32.xlu0 %v4589, 1
        %v4614 = vpop.permute.xlu0 %4613
        %4615 = vrot.lane.b32.xlu0 %v4590, 1
        %v4616 = vpop.permute.xlu0 %4615
        %4617 = vrot.lane.b32.xlu0 %v4591, 1
        %v4618 = vpop.permute.xlu0 %4617
        %v4619 = vsel %vm368, %v4602, %v4604
        %v4620 = vsel %vm368, %v4604, %v4606
        %v4621 = vsel %vm368, %v4608, %v4610
        %v4622 = vsel %vm368, %v4610, %v4612
        %v4623 = vsel %vm368, %v4614, %v4616
        %v4624 = vsel %vm368, %v4616, %v4618
        %v4631 = vsel %vm635, %v4619, 0.0
        %v4632 = vsel %vm636, %v4620, 0.0
        %v4633 = vsel %vm635, %v4621, 0.0
        %v4634 = vsel %vm636, %v4622, 0.0
        %v4635 = vsel %vm635, %v4623, 0.0
        %v4636 = vsel %vm636, %v4624, 0.0
        %4637 = vst [vmem:[#allocation3 + $0x90] sm:$0xff] %v4631
        %4638 = vst [vmem:[#allocation3 + $0x98] sm:$0xff] %v4632
        %4639 = vst [vmem:[#allocation3 + $0xa0] sm:$0xff] %v4633
        %4640 = vst [vmem:[#allocation3 + $0xa8] sm:$0xff] %v4634
        %4641 = vst [vmem:[#allocation3 + $0xb0] sm:$0xff] %v4635
        %4642 = vst [vmem:[#allocation3 + $0xb8] sm:$0xff] %v4636
        %v4643 = vld [vmem:[#allocation2 + $0x8] sm:$0xff]
        %v4644 = vld [vmem:[#allocation2 + $0x10] sm:$0xff]
        %v4645 = vld [vmem:[#allocation2 + $0x28] sm:$0xff]
        %v4646 = vld [vmem:[#allocation2 + $0x30] sm:$0xff]
        %v4647 = vld [vmem:[#allocation2 + $0x48] sm:$0xff]
        %v4648 = vld [vmem:[#allocation2 + $0x50] sm:$0xff]
        %4649 = vst [vmem:[#allocation3 + $0xc0] sm:$0xff] %v4643
        %4650 = vst [vmem:[#allocation3 + $0xc8] sm:$0xff] %v4644
        %4651 = vst [vmem:[#allocation3 + $0xd0] sm:$0xff] %v4645
        %4652 = vst [vmem:[#allocation3 + $0xd8] sm:$0xff] %v4646
        %4653 = vst [vmem:[#allocation3 + $0xe0] sm:$0xff] %v4647
        %4654 = vst [vmem:[#allocation3 + $0xe8] sm:$0xff] %v4648
        %v4655 = vld [vmem:[#allocation2 + $0x8] sm:$0xff]
        %v4656 = vld [vmem:[#allocation2 + $0x10] sm:$0xff]
        %v4657 = vld [vmem:[#allocation2 + $0x18] sm:$0xff]
        %v4658 = vld [vmem:[#allocation2 + $0x28] sm:$0xff]
        %v4659 = vld [vmem:[#allocation2 + $0x30] sm:$0xff]
        %v4660 = vld [vmem:[#allocation2 + $0x38] sm:$0xff]
        %v4661 = vld [vmem:[#allocation2 + $0x48] sm:$0xff]
        %v4662 = vld [vmem:[#allocation2 + $0x50] sm:$0xff]
        %v4663 = vld [vmem:[#allocation2 + $0x58] sm:$0xff]
        %4673 = vrot.lane.b32.xlu0 %v4655, 127
        %v4674 = vpop.permute.xlu0 %4673
        %4675 = vrot.lane.b32.xlu0 %v4656, 127
        %v4676 = vpop.permute.xlu0 %4675
        %4677 = vrot.lane.b32.xlu0 %v4657, 127
        %v4678 = vpop.permute.xlu0 %4677
        %4679 = vrot.lane.b32.xlu0 %v4658, 127
        %v4680 = vpop.permute.xlu0 %4679
        %4681 = vrot.lane.b32.xlu0 %v4659, 127
        %v4682 = vpop.permute.xlu0 %4681
        %4683 = vrot.lane.b32.xlu0 %v4660, 127
        %v4684 = vpop.permute.xlu0 %4683
        %4685 = vrot.lane.b32.xlu0 %v4661, 127
        %v4686 = vpop.permute.xlu0 %4685
        %4687 = vrot.lane.b32.xlu0 %v4662, 127
        %v4688 = vpop.permute.xlu0 %4687
        %4689 = vrot.lane.b32.xlu0 %v4663, 127
        %v4690 = vpop.permute.xlu0 %4689
        %v4691 = vsel %vm420, %v4674, %v4676
        %v4692 = vsel %vm420, %v4676, %v4678
        %v4693 = vsel %vm420, %v4680, %v4682
        %v4694 = vsel %vm420, %v4682, %v4684
        %v4695 = vsel %vm420, %v4686, %v4688
        %v4696 = vsel %vm420, %v4688, %v4690
        %v4703 = vsel %vm677, %v4691, 0.0
        %v4704 = vsel %vm678, %v4692, 0.0
        %v4705 = vsel %vm677, %v4693, 0.0
        %v4706 = vsel %vm678, %v4694, 0.0
        %v4707 = vsel %vm677, %v4695, 0.0
        %v4708 = vsel %vm678, %v4696, 0.0
        %4709 = vst [vmem:[#allocation3 + $0xf0] sm:$0xff] %v4703
        %4710 = vst [vmem:[#allocation3 + $0xf8] sm:$0xff] %v4704
        %4711 = vst [vmem:[#allocation3 + $0x100] sm:$0xff] %v4705
        %4712 = vst [vmem:[#allocation3 + $0x108] sm:$0xff] %v4706
        %4713 = vst [vmem:[#allocation3 + $0x110] sm:$0xff] %v4707
        %4714 = vst [vmem:[#allocation3 + $0x118] sm:$0xff] %v4708
        %v4715 = vld [vmem:[#allocation2 + $0x8] sm:$0xff]
        %v4716 = vld [vmem:[#allocation2 + $0x10] sm:$0xff]
        %v4717 = vld [vmem:[#allocation2 + $0x18] sm:$0xff]
        %v4718 = vld [vmem:[#allocation2 + $0x28] sm:$0xff]
        %v4719 = vld [vmem:[#allocation2 + $0x30] sm:$0xff]
        %v4720 = vld [vmem:[#allocation2 + $0x38] sm:$0xff]
        %v4721 = vld [vmem:[#allocation2 + $0x48] sm:$0xff]
        %v4722 = vld [vmem:[#allocation2 + $0x50] sm:$0xff]
        %v4723 = vld [vmem:[#allocation2 + $0x58] sm:$0xff]
        %4733 = vrot.lane.b32.xlu0 %v4715, 113
        %v4734 = vpop.permute.xlu0 %4733
        %4735 = vrot.lane.b32.xlu0 %v4716, 113
        %v4736 = vpop.permute.xlu0 %4735
        %4737 = vrot.lane.b32.xlu0 %v4717, 113
        %v4738 = vpop.permute.xlu0 %4737
        %4739 = vrot.lane.b32.xlu0 %v4718, 113
        %v4740 = vpop.permute.xlu0 %4739
        %4741 = vrot.lane.b32.xlu0 %v4719, 113
        %v4742 = vpop.permute.xlu0 %4741
        %4743 = vrot.lane.b32.xlu0 %v4720, 113
        %v4744 = vpop.permute.xlu0 %4743
        %4745 = vrot.lane.b32.xlu0 %v4721, 113
        %v4746 = vpop.permute.xlu0 %4745
        %4747 = vrot.lane.b32.xlu0 %v4722, 113
        %v4748 = vpop.permute.xlu0 %4747
        %4749 = vrot.lane.b32.xlu0 %v4723, 113
        %v4750 = vpop.permute.xlu0 %4749
        %v4751 = vsel %vm468, %v4734, %v4736
        %v4752 = vsel %vm468, %v4736, %v4738
        %v4753 = vsel %vm468, %v4740, %v4742
        %v4754 = vsel %vm468, %v4742, %v4744
        %v4755 = vsel %vm468, %v4746, %v4748
        %v4756 = vsel %vm468, %v4748, %v4750
        %v4763 = vsel %vm635, %v4751, 0.0
        %v4764 = vsel %vm636, %v4752, 0.0
        %v4765 = vsel %vm635, %v4753, 0.0
        %v4766 = vsel %vm636, %v4754, 0.0
        %v4767 = vsel %vm635, %v4755, 0.0
        %v4768 = vsel %vm636, %v4756, 0.0
        %4769 = vst [vmem:[#allocation3 + $0x120] sm:$0xff] %v4763
        %4770 = vst [vmem:[#allocation3 + $0x128] sm:$0xff] %v4764
        %4771 = vst [vmem:[#allocation3 + $0x130] sm:$0xff] %v4765
        %4772 = vst [vmem:[#allocation3 + $0x138] sm:$0xff] %v4766
        %4773 = vst [vmem:[#allocation3 + $0x140] sm:$0xff] %v4767
        %4774 = vst [vmem:[#allocation3 + $0x148] sm:$0xff] %v4768
        %v4775 = vld [vmem:[#allocation2 + $0x8] sm:$0xff]
        %v4776 = vld [vmem:[#allocation2 + $0x10] sm:$0xff]
        %v4777 = vld [vmem:[#allocation2 + $0x18] sm:$0xff]
        %v4778 = vld [vmem:[#allocation2 + $0x28] sm:$0xff]
        %v4779 = vld [vmem:[#allocation2 + $0x30] sm:$0xff]
        %v4780 = vld [vmem:[#allocation2 + $0x38] sm:$0xff]
        %v4781 = vld [vmem:[#allocation2 + $0x48] sm:$0xff]
        %v4782 = vld [vmem:[#allocation2 + $0x50] sm:$0xff]
        %v4783 = vld [vmem:[#allocation2 + $0x58] sm:$0xff]
        %4793 = vrot.lane.b32.xlu0 %v4775, 112
        %v4794 = vpop.permute.xlu0 %4793
        %4795 = vrot.lane.b32.xlu0 %v4776, 112
        %v4796 = vpop.permute.xlu0 %4795
        %4797 = vrot.lane.b32.xlu0 %v4777, 112
        %v4798 = vpop.permute.xlu0 %4797
        %4799 = vrot.lane.b32.xlu0 %v4778, 112
        %v4800 = vpop.permute.xlu0 %4799
        %4801 = vrot.lane.b32.xlu0 %v4779, 112
        %v4802 = vpop.permute.xlu0 %4801
        %4803 = vrot.lane.b32.xlu0 %v4780, 112
        %v4804 = vpop.permute.xlu0 %4803
        %4805 = vrot.lane.b32.xlu0 %v4781, 112
        %v4806 = vpop.permute.xlu0 %4805
        %4807 = vrot.lane.b32.xlu0 %v4782, 112
        %v4808 = vpop.permute.xlu0 %4807
        %4809 = vrot.lane.b32.xlu0 %v4783, 112
        %v4810 = vpop.permute.xlu0 %4809
        %v4811 = vsel %vm501, %v4794, %v4796
        %v4812 = vsel %vm501, %v4796, %v4798
        %v4813 = vsel %vm501, %v4800, %v4802
        %v4814 = vsel %vm501, %v4802, %v4804
        %v4815 = vsel %vm501, %v4806, %v4808
        %v4816 = vsel %vm501, %v4808, %v4810
        %4823 = vst [vmem:[#allocation3 + $0x150] sm:$0xff] %v4811
        %4824 = vst [vmem:[#allocation3 + $0x158] sm:$0xff] %v4812
        %4825 = vst [vmem:[#allocation3 + $0x160] sm:$0xff] %v4813
        %4826 = vst [vmem:[#allocation3 + $0x168] sm:$0xff] %v4814
        %4827 = vst [vmem:[#allocation3 + $0x170] sm:$0xff] %v4815
        %4828 = vst [vmem:[#allocation3 + $0x178] sm:$0xff] %v4816
        %v4829 = vld [vmem:[#allocation2 + $0x8] sm:$0xff]
        %v4830 = vld [vmem:[#allocation2 + $0x10] sm:$0xff]
        %v4831 = vld [vmem:[#allocation2 + $0x18] sm:$0xff]
        %v4832 = vld [vmem:[#allocation2 + $0x28] sm:$0xff]
        %v4833 = vld [vmem:[#allocation2 + $0x30] sm:$0xff]
        %v4834 = vld [vmem:[#allocation2 + $0x38] sm:$0xff]
        %v4835 = vld [vmem:[#allocation2 + $0x48] sm:$0xff]
        %v4836 = vld [vmem:[#allocation2 + $0x50] sm:$0xff]
        %v4837 = vld [vmem:[#allocation2 + $0x58] sm:$0xff]
        %4847 = vrot.lane.b32.xlu0 %v4829, 111
        %v4848 = vpop.permute.xlu0 %4847
        %4849 = vrot.lane.b32.xlu0 %v4830, 111
        %v4850 = vpop.permute.xlu0 %4849
        %4851 = vrot.lane.b32.xlu0 %v4831, 111
        %v4852 = vpop.permute.xlu0 %4851
        %4853 = vrot.lane.b32.xlu0 %v4832, 111
        %v4854 = vpop.permute.xlu0 %4853
        %4855 = vrot.lane.b32.xlu0 %v4833, 111
        %v4856 = vpop.permute.xlu0 %4855
        %4857 = vrot.lane.b32.xlu0 %v4834, 111
        %v4858 = vpop.permute.xlu0 %4857
        %4859 = vrot.lane.b32.xlu0 %v4835, 111
        %v4860 = vpop.permute.xlu0 %4859
        %4861 = vrot.lane.b32.xlu0 %v4836, 111
        %v4862 = vpop.permute.xlu0 %4861
        %4863 = vrot.lane.b32.xlu0 %v4837, 111
        %v4864 = vpop.permute.xlu0 %4863
        %v4865 = vsel %vm527, %v4848, %v4850
        %v4866 = vsel %vm527, %v4850, %v4852
        %v4867 = vsel %vm527, %v4854, %v4856
        %v4868 = vsel %vm527, %v4856, %v4858
        %v4869 = vsel %vm527, %v4860, %v4862
        %v4870 = vsel %vm527, %v4862, %v4864
        %v4877 = vsel %vm677, %v4865, 0.0
        %v4878 = vsel %vm678, %v4866, 0.0
        %v4879 = vsel %vm677, %v4867, 0.0
        %v4880 = vsel %vm678, %v4868, 0.0
        %v4881 = vsel %vm677, %v4869, 0.0
        %v4882 = vsel %vm678, %v4870, 0.0
        %4883 = vst [vmem:[#allocation3 + $0x180] sm:$0xff] %v4877
        %4884 = vst [vmem:[#allocation3 + $0x188] sm:$0xff] %v4878
        %4885 = vst [vmem:[#allocation3 + $0x190] sm:$0xff] %v4879
        %4886 = vst [vmem:[#allocation3 + $0x198] sm:$0xff] %v4880
        %4887 = vst [vmem:[#allocation3 + $0x1a0] sm:$0xff] %v4881
        %4888 = vst [vmem:[#allocation3 + $0x1a8] sm:$0xff] %v4882
        %v4889 = vld [vmem:[#allocation4 + $0x7c0] sm:$0xff]
        %v4890 = vld [vmem:[#allocation3] sm:$0xff]
        %v4891 = vld [vmem:[#allocation3 + $0x8] sm:$0xff]
        %v4892 = vld [vmem:[#allocation3 + $0x10] sm:$0xff]
        %v4893 = vld [vmem:[#allocation3 + $0x18] sm:$0xff]
        %v4894 = vld [vmem:[#allocation3 + $0x20] sm:$0xff]
        %v4895 = vld [vmem:[#allocation3 + $0x28] sm:$0xff]
        %v4896 = vld [vmem:[#allocation3 + $0x30] sm:$0xff]
        %v4897 = vld [vmem:[#allocation3 + $0x38] sm:$0xff]
        %v4898 = vld [vmem:[#allocation3 + $0x40] sm:$0xff]
        %v4899 = vld [vmem:[#allocation3 + $0x48] sm:$0xff]
        %v4900 = vld [vmem:[#allocation3 + $0x50] sm:$0xff]
        %v4901 = vld [vmem:[#allocation3 + $0x58] sm:$0xff]
        %v4902 = vld [vmem:[#allocation3 + $0x60] sm:$0xff]
        %v4903 = vld [vmem:[#allocation3 + $0x68] sm:$0xff]
        %v4904 = vld [vmem:[#allocation3 + $0x70] sm:$0xff]
        %v4905 = vld [vmem:[#allocation3 + $0x78] sm:$0xff]
        %v4906 = vld [vmem:[#allocation3 + $0x80] sm:$0xff]
        %v4907 = vld [vmem:[#allocation3 + $0x88] sm:$0xff]
        %v4908 = vld [vmem:[#allocation3 + $0x90] sm:$0xff]
        %v4909 = vld [vmem:[#allocation3 + $0x98] sm:$0xff]
        %v4910 = vld [vmem:[#allocation3 + $0xa0] sm:$0xff]
        %v4911 = vld [vmem:[#allocation3 + $0xa8] sm:$0xff]
        %v4912 = vld [vmem:[#allocation3 + $0xb0] sm:$0xff]
        %v4913 = vld [vmem:[#allocation3 + $0xb8] sm:$0xff]
        %v4914 = vld [vmem:[#allocation3 + $0xc0] sm:$0xff]
        %v4915 = vld [vmem:[#allocation3 + $0xc8] sm:$0xff]
        %v4916 = vld [vmem:[#allocation3 + $0xd0] sm:$0xff]
        %v4917 = vld [vmem:[#allocation3 + $0xd8] sm:$0xff]
        %v4918 = vld [vmem:[#allocation3 + $0xe0] sm:$0xff]
        %v4919 = vld [vmem:[#allocation3 + $0xe8] sm:$0xff]
        %v4920 = vld [vmem:[#allocation3 + $0xf0] sm:$0xff]
        %v4921 = vld [vmem:[#allocation3 + $0xf8] sm:$0xff]
        %v4922 = vld [vmem:[#allocation3 + $0x100] sm:$0xff]
        %v4923 = vld [vmem:[#allocation3 + $0x108] sm:$0xff]
        %v4924 = vld [vmem:[#allocation3 + $0x110] sm:$0xff]
        %v4925 = vld [vmem:[#allocation3 + $0x118] sm:$0xff]
        %v4926 = vld [vmem:[#allocation3 + $0x120] sm:$0xff]
        %v4927 = vld [vmem:[#allocation3 + $0x128] sm:$0xff]
        %v4928 = vld [vmem:[#allocation3 + $0x130] sm:$0xff]
        %v4929 = vld [vmem:[#allocation3 + $0x138] sm:$0xff]
        %v4930 = vld [vmem:[#allocation3 + $0x140] sm:$0xff]
        %v4931 = vld [vmem:[#allocation3 + $0x148] sm:$0xff]
        %v4932 = vld [vmem:[#allocation3 + $0x150] sm:$0xff]
        %v4933 = vld [vmem:[#allocation3 + $0x158] sm:$0xff]
        %v4934 = vld [vmem:[#allocation3 + $0x160] sm:$0xff]
        %v4935 = vld [vmem:[#allocation3 + $0x168] sm:$0xff]
        %v4936 = vld [vmem:[#allocation3 + $0x170] sm:$0xff]
        %v4937 = vld [vmem:[#allocation3 + $0x178] sm:$0xff]
        %v4938 = vld [vmem:[#allocation3 + $0x180] sm:$0xff]
        %v4939 = vld [vmem:[#allocation3 + $0x188] sm:$0xff]
        %v4940 = vld [vmem:[#allocation3 + $0x190] sm:$0xff]
        %v4941 = vld [vmem:[#allocation3 + $0x198] sm:$0xff]
        %v4942 = vld [vmem:[#allocation3 + $0x1a0] sm:$0xff]
        %v4943 = vld [vmem:[#allocation3 + $0x1a8] sm:$0xff]
        %v4944 = vpack.c.bf16 %v4892, %v4890
        %v4945 = vpack.c.bf16 %v4893, %v4891
        %v4946 = vpack.c.bf16 %v4896, %v4894
        %v4947 = vpack.c.bf16 %v4897, %v4895
        %v4948 = vpack.c.bf16 %v4900, %v4898
        %v4949 = vpack.c.bf16 %v4901, %v4899
        %v4950 = vpack.c.bf16 %v4904, %v4902
        %v4951 = vpack.c.bf16 %v4905, %v4903
        %v4952 = vpack.c.bf16 %v4908, %v4906
        %v4953 = vpack.c.bf16 %v4909, %v4907
        %v4954 = vpack.c.bf16 %v4912, %v4910
        %v4955 = vpack.c.bf16 %v4913, %v4911
        %v4956 = vpack.c.bf16 %v4916, %v4914
        %v4957 = vpack.c.bf16 %v4917, %v4915
        %v4958 = vpack.c.bf16 %v4920, %v4918
        %v4959 = vpack.c.bf16 %v4921, %v4919
        %v4960 = vpack.c.bf16 %v4924, %v4922
        %v4961 = vpack.c.bf16 %v4925, %v4923
        %v4962 = vpack.c.bf16 %v4928, %v4926
        %v4963 = vpack.c.bf16 %v4929, %v4927
        %v4964 = vpack.c.bf16 %v4932, %v4930
        %v4965 = vpack.c.bf16 %v4933, %v4931
        %v4966 = vpack.c.bf16 %v4936, %v4934
        %v4967 = vpack.c.bf16 %v4937, %v4935
        %v4968 = vpack.c.bf16 %v4940, %v4938
        %v4969 = vpack.c.bf16 %v4941, %v4939
        %v4970 = vpack.c.bf16 %v4942, %v4942
        %v4971 = vpack.c.bf16 %v4943, %v4943
        %v4972 = vld [vmem:[#allocation6] sm:$0xff]
        %4974 = vset.pattern.permute.xlu0 10
        %4975 = vperm.xlu0 %4974, %v4972
        %v4976 = vpop.permute.xlu0 %4975
        %v4979 = vunpack.c.l.b16 %v4889
        %v4980 = vunpack.c.h.b16 %v4889
        %v4981 = vpack.c.b16 %v4979, %v4979
        %v4982 = vpack.c.b16 %v4980, %v4980
        %vm4984 = vcmask 719872
        %v4986 = vsel %vm4984, %v4982, 0
        %v4989 = vsel %vm572, %v4970, 0
        %v4992 = vsel %vm572, %v4971, 0
        %4994 = vmatprep.subr.bf16.mxu0 %v4945
        %4995 = vmatpush1.bf16.msra.mxu0 %v4944
        %4996 = vmatprep.subr.bf16.mxu0 %v4947
        %4997 = vmatpush1.bf16.msra.mxu0 %v4946
        %4998 = vmatprep.subr.bf16.mxu0 %v4949
        %4999 = vmatpush1.bf16.msra.mxu0 %v4948
        %5000 = vmatprep.subr.bf16.mxu0 %v4951
        %5001 = vmatpush1.bf16.msra.mxu0 %v4950
        %5002 = vmatprep.subr.bf16.mxu0 %v4953
        %5003 = vmatpush1.bf16.msra.mxu0 %v4952
        %5004 = vmatprep.subr.bf16.mxu0 %v4955
        %5005 = vmatpush1.bf16.msra.mxu0 %v4954
        %5006 = vmatprep.subr.bf16.mxu0 %v4957
        %5007 = vmatpush1.bf16.msra.mxu0 %v4956
        %5008 = vmatprep.subr.bf16.mxu0 %v4959
        %5009 = vmatpush1.bf16.msra.mxu0 %v4958
        %5010 = vmatprep.subr.bf16.mxu0 %v4961
        %5011 = vmatpush1.bf16.msra.mxu0 %v4960
        %5012 = vmatprep.subr.bf16.mxu0 %v4963
        %5013 = vmatpush1.bf16.msra.mxu0 %v4962
        %5014 = vmatprep.subr.bf16.mxu0 %v4965
        %5015 = vmatpush1.bf16.msra.mxu0 %v4964
        %5016 = vmatprep.subr.bf16.mxu0 %v4967
        %5017 = vmatpush1.bf16.msra.mxu0 %v4966
        %5018 = vmatprep.subr.bf16.mxu0 %v4969
        %5019 = vmatpush1.bf16.msra.mxu0 %v4968
        %5020 = vmatprep.subr.bf16.mxu0 %v4992
        %5021 = vmatpush1.bf16.msra.mxu0 %v4989
        %5022 = vmatprep.subr.bf16.mxu0 0
        %5023 = vmatpush1.bf16.msra.mxu0 0
        %5024 = vmatprep.subr.bf16.mxu0 0
        %5025 = vmatpush1.bf16.msra.mxu0 0
        %5026 = vmatprep.mubr.bf16.mxu0 %v4986
        %5027 = vmatmul.mubr.bf16.gmra.mrb[0].mxu0 %v4981
        %v5028 = vpop.f32.mrb[0].mxu0
        %v5029 = vadd.f32 %v4976, %v5028
        %v5030 = vpop.f32.mrb[0].mxu0
        %v5031 = vadd.f32 %v4976, %v5030
        %v5032 = vpop.f32.mrb[0].mxu0
        %v5033 = vpop.f32.mrb[0].mxu0
        %5034 = vdwg.mxu0
        %v5035 = vmax.f32 %v5029, 0.0
        %v5036 = vmax.f32 %v5031, 0.0
        %5037 = vst.msk [vmem:[#allocation2] sm:$0xff] %vm625, 0.0
        %5038 = vst.msk [vmem:[#allocation2 + $0x18] sm:$0xff] %vm262, 0.0
        %5039 = vst [vmem:[#allocation2 + $0x8] sm:$0xff] %v5035
        %5040 = vst [vmem:[#allocation2 + $0x10] sm:$0xff] %v5036
        %v5041 = vld [vmem:[#allocation2] sm:$0xff]
        %v5042 = vld [vmem:[#allocation2 + $0x8] sm:$0xff]
        %v5043 = vld [vmem:[#allocation2 + $0x10] sm:$0xff]
        %5047 = vrot.lane.b32.xlu0 %v5041, 17
        %v5048 = vpop.permute.xlu0 %5047
        %5049 = vrot.lane.b32.xlu0 %v5042, 17
        %v5050 = vpop.permute.xlu0 %5049
        %5051 = vrot.lane.b32.xlu0 %v5043, 17
        %v5052 = vpop.permute.xlu0 %5051
        %v5053 = vsel %vm262, %v5048, %v5050
        %v5054 = vsel %vm262, %v5050, %v5052
        %v5057 = vsel %vm635, %v5053, 0.0
        %v5058 = vsel %vm636, %v5054, 0.0
        %5059 = vst [vmem:[#allocation3] sm:$0xff] %v5057
        %5060 = vst [vmem:[#allocation3 + $0x8] sm:$0xff] %v5058
        %v5061 = vld [vmem:[#allocation2] sm:$0xff]
        %v5062 = vld [vmem:[#allocation2 + $0x8] sm:$0xff]
        %v5063 = vld [vmem:[#allocation2 + $0x10] sm:$0xff]
        %5067 = vrot.lane.b32.xlu0 %v5061, 16
        %v5068 = vpop.permute.xlu0 %5067
        %5069 = vrot.lane.b32.xlu0 %v5062, 16
        %v5070 = vpop.permute.xlu0 %5069
        %5071 = vrot.lane.b32.xlu0 %v5063, 16
        %v5072 = vpop.permute.xlu0 %5071
        %v5073 = vsel %vm294, %v5068, %v5070
        %v5074 = vsel %vm294, %v5070, %v5072
        %5077 = vst [vmem:[#allocation3 + $0x10] sm:$0xff] %v5073
        %5078 = vst [vmem:[#allocation3 + $0x18] sm:$0xff] %v5074
        %v5079 = vld [vmem:[#allocation2] sm:$0xff]
        %v5080 = vld [vmem:[#allocation2 + $0x8] sm:$0xff]
        %v5081 = vld [vmem:[#allocation2 + $0x10] sm:$0xff]
        %5085 = vrot.lane.b32.xlu0 %v5079, 15
        %v5086 = vpop.permute.xlu0 %5085
        %5087 = vrot.lane.b32.xlu0 %v5080, 15
        %v5088 = vpop.permute.xlu0 %5087
        %5089 = vrot.lane.b32.xlu0 %v5081, 15
        %v5090 = vpop.permute.xlu0 %5089
        %v5091 = vsel %vm320, %v5086, %v5088
        %v5092 = vsel %vm320, %v5088, %v5090
        %v5095 = vsel %vm677, %v5091, 0.0
        %v5096 = vsel %vm678, %v5092, 0.0
        %5097 = vst [vmem:[#allocation3 + $0x20] sm:$0xff] %v5095
        %5098 = vst [vmem:[#allocation3 + $0x28] sm:$0xff] %v5096
        %v5099 = vld [vmem:[#allocation2] sm:$0xff]
        %v5100 = vld [vmem:[#allocation2 + $0x8] sm:$0xff]
        %v5101 = vld [vmem:[#allocation2 + $0x10] sm:$0xff]
        %5105 = vrot.lane.b32.xlu0 %v5099, 1
        %v5106 = vpop.permute.xlu0 %5105
        %5107 = vrot.lane.b32.xlu0 %v5100, 1
        %v5108 = vpop.permute.xlu0 %5107
        %5109 = vrot.lane.b32.xlu0 %v5101, 1
        %v5110 = vpop.permute.xlu0 %5109
        %v5111 = vsel %vm368, %v5106, %v5108
        %v5112 = vsel %vm368, %v5108, %v5110
        %v5115 = vsel %vm635, %v5111, 0.0
        %v5116 = vsel %vm636, %v5112, 0.0
        %5117 = vst [vmem:[#allocation3 + $0x30] sm:$0xff] %v5115
        %5118 = vst [vmem:[#allocation3 + $0x38] sm:$0xff] %v5116
        %v5119 = vld [vmem:[#allocation2 + $0x8] sm:$0xff]
        %v5120 = vld [vmem:[#allocation2 + $0x10] sm:$0xff]
        %5121 = vst [vmem:[#allocation3 + $0x40] sm:$0xff] %v5119
        %5122 = vst [vmem:[#allocation3 + $0x48] sm:$0xff] %v5120
        %v5123 = vld [vmem:[#allocation2 + $0x8] sm:$0xff]
        %v5124 = vld [vmem:[#allocation2 + $0x10] sm:$0xff]
        %v5125 = vld [vmem:[#allocation2 + $0x18] sm:$0xff]
        %5129 = vrot.lane.b32.xlu0 %v5123, 127
        %v5130 = vpop.permute.xlu0 %5129
        %5131 = vrot.lane.b32.xlu0 %v5124, 127
        %v5132 = vpop.permute.xlu0 %5131
        %5133 = vrot.lane.b32.xlu0 %v5125, 127
        %v5134 = vpop.permute.xlu0 %5133
        %v5135 = vsel %vm420, %v5130, %v5132
        %v5136 = vsel %vm420, %v5132, %v5134
        %v5139 = vsel %vm677, %v5135, 0.0
        %v5140 = vsel %vm678, %v5136, 0.0
        %5141 = vst [vmem:[#allocation3 + $0x50] sm:$0xff] %v5139
        %5142 = vst [vmem:[#allocation3 + $0x58] sm:$0xff] %v5140
        %v5143 = vld [vmem:[#allocation2 + $0x8] sm:$0xff]
        %v5144 = vld [vmem:[#allocation2 + $0x10] sm:$0xff]
        %v5145 = vld [vmem:[#allocation2 + $0x18] sm:$0xff]
        %5149 = vrot.lane.b32.xlu0 %v5143, 113
        %v5150 = vpop.permute.xlu0 %5149
        %5151 = vrot.lane.b32.xlu0 %v5144, 113
        %v5152 = vpop.permute.xlu0 %5151
        %5153 = vrot.lane.b32.xlu0 %v5145, 113
        %v5154 = vpop.permute.xlu0 %5153
        %v5155 = vsel %vm468, %v5150, %v5152
        %v5156 = vsel %vm468, %v5152, %v5154
        %v5159 = vsel %vm635, %v5155, 0.0
        %v5160 = vsel %vm636, %v5156, 0.0
        %5161 = vst [vmem:[#allocation3 + $0x60] sm:$0xff] %v5159
        %5162 = vst [vmem:[#allocation3 + $0x68] sm:$0xff] %v5160
        %v5163 = vld [vmem:[#allocation2 + $0x8] sm:$0xff]
        %v5164 = vld [vmem:[#allocation2 + $0x10] sm:$0xff]
        %v5165 = vld [vmem:[#allocation2 + $0x18] sm:$0xff]
        %5169 = vrot.lane.b32.xlu0 %v5163, 112
        %v5170 = vpop.permute.xlu0 %5169
        %5171 = vrot.lane.b32.xlu0 %v5164, 112
        %v5172 = vpop.permute.xlu0 %5171
        %5173 = vrot.lane.b32.xlu0 %v5165, 112
        %v5174 = vpop.permute.xlu0 %5173
        %v5175 = vsel %vm501, %v5170, %v5172
        %v5176 = vsel %vm501, %v5172, %v5174
        %5179 = vst [vmem:[#allocation3 + $0x70] sm:$0xff] %v5175
        %5180 = vst [vmem:[#allocation3 + $0x78] sm:$0xff] %v5176
        %v5181 = vld [vmem:[#allocation2 + $0x8] sm:$0xff]
        %v5182 = vld [vmem:[#allocation2 + $0x10] sm:$0xff]
        %v5183 = vld [vmem:[#allocation2 + $0x18] sm:$0xff]
        %5187 = vrot.lane.b32.xlu0 %v5181, 111
        %v5188 = vpop.permute.xlu0 %5187
        %5189 = vrot.lane.b32.xlu0 %v5182, 111
        %v5190 = vpop.permute.xlu0 %5189
        %5191 = vrot.lane.b32.xlu0 %v5183, 111
        %v5192 = vpop.permute.xlu0 %5191
        %v5193 = vsel %vm527, %v5188, %v5190
        %v5194 = vsel %vm527, %v5190, %v5192
        %v5197 = vsel %vm677, %v5193, 0.0
        %v5198 = vsel %vm678, %v5194, 0.0
        %5199 = vst [vmem:[#allocation3 + $0x80] sm:$0xff] %v5197
        %5200 = vst [vmem:[#allocation3 + $0x88] sm:$0xff] %v5198
        %v5201 = vld [vmem:[#allocation4 + $0x7e0] sm:$0xf]
        %v5202 = vld [vmem:[#allocation3] sm:$0xff]
        %v5203 = vld [vmem:[#allocation3 + $0x8] sm:$0xff]
        %v5204 = vld [vmem:[#allocation3 + $0x10] sm:$0xff]
        %v5205 = vld [vmem:[#allocation3 + $0x18] sm:$0xff]
        %v5206 = vld [vmem:[#allocation3 + $0x20] sm:$0xff]
        %v5207 = vld [vmem:[#allocation3 + $0x28] sm:$0xff]
        %v5208 = vld [vmem:[#allocation3 + $0x30] sm:$0xff]
        %v5209 = vld [vmem:[#allocation3 + $0x38] sm:$0xff]
        %v5210 = vld [vmem:[#allocation3 + $0x40] sm:$0xff]
        %v5211 = vld [vmem:[#allocation3 + $0x48] sm:$0xff]
        %v5212 = vld [vmem:[#allocation3 + $0x50] sm:$0xff]
        %v5213 = vld [vmem:[#allocation3 + $0x58] sm:$0xff]
        %v5214 = vld [vmem:[#allocation3 + $0x60] sm:$0xff]
        %v5215 = vld [vmem:[#allocation3 + $0x68] sm:$0xff]
        %v5216 = vld [vmem:[#allocation3 + $0x70] sm:$0xff]
        %v5217 = vld [vmem:[#allocation3 + $0x78] sm:$0xff]
        %v5218 = vld [vmem:[#allocation3 + $0x80] sm:$0xff]
        %v5219 = vld [vmem:[#allocation3 + $0x88] sm:$0xff]
        %v5220 = vpack.c.bf16 %v5204, %v5202
        %v5221 = vpack.c.bf16 %v5205, %v5203
        %v5222 = vpack.c.bf16 %v5208, %v5206
        %v5223 = vpack.c.bf16 %v5209, %v5207
        %v5224 = vpack.c.bf16 %v5212, %v5210
        %v5225 = vpack.c.bf16 %v5213, %v5211
        %v5226 = vpack.c.bf16 %v5216, %v5214
        %v5227 = vpack.c.bf16 %v5217, %v5215
        %v5228 = vpack.c.bf16 %v5218, %v5218
        %v5229 = vpack.c.bf16 %v5219, %v5219
        %v5230 = vld [vmem:[#allocation6] sm:$0xff]
        %5232 = vset.pattern.permute.xlu0 11
        %5233 = vperm.xlu0 %5232, %v5230
        %v5234 = vpop.permute.xlu0 %5233
        %v5237 = vsel %vm833, %v5201, 0
        %v5240 = vsel %vm572, %v5228, 0
        %v5243 = vsel %vm572, %v5229, 0
        %5245 = vmatprep.subr.bf16.mxu0 %v5221
        %5246 = vmatpush1.bf16.msra.mxu0 %v5220
        %5247 = vmatprep.subr.bf16.mxu0 %v5223
        %5248 = vmatpush1.bf16.msra.mxu0 %v5222
        %5249 = vmatprep.subr.bf16.mxu0 %v5225
        %5250 = vmatpush1.bf16.msra.mxu0 %v5224
        %5251 = vmatprep.subr.bf16.mxu0 %v5227
        %5252 = vmatpush1.bf16.msra.mxu0 %v5226
        %5253 = vmatprep.subr.bf16.mxu0 %v5243
        %5254 = vmatpush1.bf16.msra.mxu0 %v5240
        %5255 = vmatprep.subr.bf16.mxu0 0
        %5256 = vmatpush1.bf16.msra.mxu0 0
        %5257 = vmatprep.subr.bf16.mxu0 0
        %5258 = vmatpush1.bf16.msra.mxu0 0
        %5259 = vmatprep.subr.bf16.mxu0 0
        %5260 = vmatpush1.bf16.msra.mxu0 0
        %5261 = vmatprep.subr.bf16.mxu0 0
        %5262 = vmatpush1.bf16.msra.mxu0 0
        %5263 = vmatprep.subr.bf16.mxu0 0
        %5264 = vmatpush1.bf16.msra.mxu0 0
        %5265 = vmatprep.subr.bf16.mxu0 0
        %5266 = vmatpush1.bf16.msra.mxu0 0
        %5267 = vmatprep.subr.bf16.mxu0 0
        %5268 = vmatpush1.bf16.msra.mxu0 0
        %5269 = vmatprep.subr.bf16.mxu0 0
        %5270 = vmatpush1.bf16.msra.mxu0 0
        %5271 = vmatprep.subr.bf16.mxu0 0
        %5272 = vmatpush1.bf16.msra.mxu0 0
        %5273 = vmatprep.subr.bf16.mxu0 0
        %5274 = vmatpush1.bf16.msra.mxu0 0
        %5275 = vmatprep.subr.bf16.mxu0 0
        %5276 = vmatpush1.bf16.msra.mxu0 0
        %5277 = vmatprep.mubr.bf16.mxu0 0
        %5278 = vmatmul.mubr.bf16.gmra.mrb[0].mxu0 %v5237
        %v5279 = vpop.f32.mrb[0].mxu0
        %v5280 = vadd.f32 %v5234, %v5279
        %v5281 = vpop.f32.mrb[0].mxu0
        %v5282 = vadd.f32 %v5234, %v5281
        %v5283 = vpop.f32.mrb[0].mxu0
        %v5284 = vpop.f32.mrb[0].mxu0
        %5285 = vdwg.mxu0
        %v5286 = vmax.f32 %v5280, 0.0
        %v5287 = vmax.f32 %v5282, 0.0
        %v5288 = vld [vmem:[#allocation4 + $0x800] sm:$0x1]
        %v5289 = vpack.c.bf16 %v5286, %v5286
        %v5290 = vpack.c.bf16 %v5287, %v5287
        %v5291 = vld [vmem:[#allocation6] sm:$0x3]
        %5293 = vset.pattern.permute.xlu0 12
        %5294 = vperm.xlu0 %5293, %v5291
        %v5295 = vpop.permute.xlu0 %5294
        %v5298 = vsel %vm1137, %v5288, 0
        %v5301 = vsel %vm572, %v5289, 0
        %v5304 = vsel %vm572, %v5290, 0
        %5306 = vmatprep.subr.bf16.mxu0 %v5304
        %5307 = vmatpush1.bf16.msra.mxu0 %v5301
        %5308 = vmatprep.subr.bf16.mxu0 0
        %5309 = vmatpush1.bf16.msra.mxu0 0
        %5310 = vmatprep.subr.bf16.mxu0 0
        %5311 = vmatpush1.bf16.msra.mxu0 0
        %5312 = vmatprep.subr.bf16.mxu0 0
        %5313 = vmatpush1.bf16.msra.mxu0 0
        %5314 = vmatprep.subr.bf16.mxu0 0
        %5315 = vmatpush1.bf16.msra.mxu0 0
        %5316 = vmatprep.subr.bf16.mxu0 0
        %5317 = vmatpush1.bf16.msra.mxu0 0
        %5318 = vmatprep.subr.bf16.mxu0 0
        %5319 = vmatpush1.bf16.msra.mxu0 0
        %5320 = vmatprep.subr.bf16.mxu0 0
        %5321 = vmatpush1.bf16.msra.mxu0 0
        %5322 = vmatprep.subr.bf16.mxu0 0
        %5323 = vmatpush1.bf16.msra.mxu0 0
        %5324 = vmatprep.subr.bf16.mxu0 0
        %5325 = vmatpush1.bf16.msra.mxu0 0
        %5326 = vmatprep.subr.bf16.mxu0 0
        %5327 = vmatpush1.bf16.msra.mxu0 0
        %5328 = vmatprep.subr.bf16.mxu0 0
        %5329 = vmatpush1.bf16.msra.mxu0 0
        %5330 = vmatprep.subr.bf16.mxu0 0
        %5331 = vmatpush1.bf16.msra.mxu0 0
        %5332 = vmatprep.subr.bf16.mxu0 0
        %5333 = vmatpush1.bf16.msra.mxu0 0
        %5334 = vmatprep.subr.bf16.mxu0 0
        %5335 = vmatpush1.bf16.msra.mxu0 0
        %5336 = vmatprep.subr.bf16.mxu0 0
        %5337 = vmatpush1.bf16.msra.mxu0 0
        %5338 = vmatprep.mubr.bf16.mxu0 0
        %5339 = vmatmul.mubr.bf16.gmra.mrb[0].mxu0 %v5298
        %v5340 = vpop.f32.mrb[0].mxu0
        %v5341 = vadd.f32 %v5295, %v5340
        %v5342 = vpop.f32.mrb[0].mxu0
        %v5343 = vadd.f32 %v5295, %v5342
        %v5344 = vpop.f32.mrb[0].mxu0
        %v5345 = vpop.f32.mrb[0].mxu0
        %5346 = vdwg.mxu0
        %v5349 = vcombine.low %v5341, %v5343
        %v5351 = vunpack.c.l.s4 1983009808
        %v5352 = vunpack.c.0.s8 %v5351
        %v5353 = vlaneseq
        %v5354 = vshrl.u32 %v5353, 7
        %v5355 = vsub.s32 %v5352, %v5354
        %v5356 = vrot.slane %v5349, %v5355
        %5358 = vst [vmem:[%s197] sm:$0xf] %v5356
        %p5359 = scmp.lt.s32.totalorder %s16, 1
        %s5360 = scalar_select %p5359, %s16, 1
        %s5361 = smul.addr %s5360, 2
        %s5362 = smul.addr %s5361, 2
        %s5363 = scalar_lea.vmem %s3, %s5362
        // Predicated region
        $region41: #{unet_forward.1} parent=31 // pred_check
          %p5364 = pneg %p102
        $region42: #{unet_forward.1} parent=31 // pred_check_branch
          %5366 = sbr.rel (%p5364) target = $region44
        $region43: #{unet_forward.1} parent=31 // pred_region
          _
        $region44: #{unet_forward.1} parent=31 // pred_fallthru
          _
      $region32: #{unet_forward.1} parent=5 // pred_fallthru
        _
      %p5367 = scmp.le.s32.totalorder 2, %s11
      // Predicated region
      $region45: #{unet_forward.1} parent=5 // pred_check
        %p5368 = pneg %p5367
      $region46: #{unet_forward.1} parent=5 // pred_check_branch
        %5370 = sbr.rel (%p5368) target = $region48
      $region47: #{unet_forward.1} parent=5 // pred_region
        %s5371 = ssub.s32 %s11, 2
        // Predicated region
        $region49: #{unet_forward.1} parent=47 // pred_check
          %p5372 = pneg %p108
        $region50: #{unet_forward.1} parent=47 // pred_check_branch
          %5374 = sbr.rel (%p5372) target = $region52
        $region51: #{unet_forward.1} parent=47 // pred_region
          %p5375 = scmp.lt.s32.totalorder %s17, 1
          %s5376 = scalar_select %p5375, %s17, 1
          %s5377 = smul.addr %s5376, 2
          %s5378 = smul.addr %s5377, 2
          %s5379 = scalar_lea.vmem %s3, %s5378
        $region52: #{unet_forward.1} parent=47 // pred_fallthru
          _
      $region48: #{unet_forward.1} parent=5 // pred_fallthru
        _
    $region6: #{unet_forward.1} parent=1 // loop_footer
      %s15 = sadd.s32 1, %s11
    $region7: #{unet_forward.1} parent=1 // loop_footer_branch
      %10 = sbr.rel target = $region3
    $region8: #{unet_forward.1} parent=1 // loop_exit
      _
    %5380 = vsyncpa [#allocation5], 1
    %s5381 = scalar_lea.sflag [#allocation5], 1
    %5382 = vsyncpa %s5381, 1
    %5383 = vsyncpa [#allocation7], 1

</llo_original>
